<compile_context>
chip_gen: v6e
topology: v6e:2x2x1
jax: 0.10.0
libtpu: 0.0.40
codegen_flags: <defaults>
</compile_context>

<pallas_src>
import jax
import jax.numpy as jnp
from jax.experimental import pallas as pl
from jax.experimental.pallas import tpu as pltpu


def _char_bilstm_kernel(chars_ref, lens_ref, table_ref, whh_ref, out_ref):
    """Fused bidirectional char-LSTM over one tile of words.

    chars_ref : [NB, T]        int32  -- padded char ids (original time order).
    lens_ref  : [NB, 1]        int32  -- word lengths.
    table_ref : [2*Vp, 8H]     f32    -- fused per-char gate table; rows [0,Vp) forward
                                         (zeros in backward columns), rows [Vp,2Vp)
                                         backward.  Column layout per gate block (2H):
                                         [fwd H | bwd H], gates ordered (i, f, o, g).
    whh_ref   : [2H, 8H]       f32    -- block-diagonal recurrent weights, same layout.
    out_ref   : [NB, 2H]       f32    -- [h_fwd_final | h_bwd_final].
    """
    NB, T = chars_ref.shape
    V2 = table_ref.shape[0]
    v_off = V2 // 2                 # start row of the backward half of the table
    H2 = whh_ref.shape[0]           # 2H
    H = H2 // 2

    # Hoisted loads / constants.
    chars = chars_ref[...]                                            # [NB, T]
    lens = lens_ref[...]                                              # [NB, 1]
    table = table_ref[...]                                            # [2Vp, 8H]
    whh = whh_ref[...]                                                # [2H, 8H]
    lane_v = jax.lax.broadcasted_iota(jnp.int32, (NB, V2), 1)         # [NB, 2Vp]
    is_bwd = jax.lax.broadcasted_iota(jnp.int32, (1, H2), 1) >= H     # [1, 2H]

    h = jnp.zeros((NB, H2), jnp.float32)
    c = jnp.zeros((NB, H2), jnp.float32)

    # Static unroll over the (short) char dimension; indices are compile-time constants.
    for s in range(T):
        # --- In-kernel fused embedding/input-projection lookup via a two-hot matmul.
        ids_f = chars[:, s:s + 1]                                     # char t = s
        ids_b = chars[:, T - 1 - s:T - s]                             # char t = T-1-s
        twohot = jnp.logical_or(lane_v == ids_f, lane_v == ids_b + v_off)
        gx = jnp.dot(twohot.astype(jnp.float32), table,
                     preferred_element_type=jnp.float32)              # [NB, 8H]

        # --- Fused fwd+bwd LSTM cell.
        gates = gx + jnp.dot(h, whh, preferred_element_type=jnp.float32)
        i_g = jax.nn.sigmoid(gates[:, 0:H2])
        f_g = jax.nn.sigmoid(gates[:, H2:2 * H2])
        o_g = jax.nn.sigmoid(gates[:, 2 * H2:3 * H2])
        g_g = jnp.tanh(gates[:, 3 * H2:4 * H2])
        c_new = f_g * c + i_g * g_g
        h_new = o_g * jnp.tanh(c_new)

        # pack_padded semantics: forward half updates while s < len, backward half while
        # T-1-s < len.  (t_row is a constant [1, 2H] array per unrolled step.)
        t_row = jnp.where(is_bwd, T - 1 - s, s)                       # [1, 2H]
        upd = t_row < lens                                            # [NB, 2H]
        h = jnp.where(upd, h_new, h)
        c = jnp.where(upd, c_new, c)

    out_ref[...] = h.astype(out_ref.dtype)


def _reorder_ifog(w, H):
    """PyTorch gate order (i, f, g, o) -> (i, f, o, g) along the last axis."""
    return jnp.concatenate(
        [w[..., 0:H], w[..., H:2 * H], w[..., 3 * H:4 * H], w[..., 2 * H:3 * H]],
        axis=-1)


def character_lstm_forward(chars_padded, word_lens, params, *, n_block=128):
    """CharacterLSTM.forward (char_dropout=0, normalize=False).

    chars_padded: [N, T] int32, word_lens: [N] int32.  Returns [N, d_out] f32.
    n_block: words per grid tile (128 for v5e, 256 for v6e/v7x; keep >=2 tiles on v7x).
    """
    N, T = chars_padded.shape
    emb = params["emb"].astype(jnp.float32)
    V = emb.shape[0]
    H = params["whh_f"].shape[0]

    # ---- Fuse embedding + input projection + biases into a tiny per-char gate table,
    #      columns permuted to (i, f, o, g), each gate block = [fwd H | bwd H].
    tf = _reorder_ifog(emb @ params["wih_f"] + params["b_f"], H)       # [V, 4H]
    tb = _reorder_ifog(emb @ params["wih_b"] + params["b_b"], H)       # [V, 4H]
    zeros4 = jnp.zeros((V, 4, H), jnp.float32)
    tf8 = jnp.concatenate([tf.reshape(V, 4, H), zeros4], axis=-1).reshape(V, 8 * H)
    tb8 = jnp.concatenate([zeros4, tb.reshape(V, 4, H)], axis=-1).reshape(V, 8 * H)
    v_pad = pl.cdiv(V, 8) * 8                                          # sublane multiple
    if v_pad != V:
        tf8 = jnp.pad(tf8, ((0, v_pad - V), (0, 0)))
        tb8 = jnp.pad(tb8, ((0, v_pad - V), (0, 0)))
    table_cat = jnp.concatenate([tf8, tb8], axis=0)                    # [2*v_pad, 8H]

    # ---- Block-diagonal recurrent weight in the same layout.
    wf = _reorder_ifog(params["whh_f"], H).reshape(H, 4, H)
    wb = _reorder_ifog(params["whh_b"], H).reshape(H, 4, H)
    whh_cat = jnp.concatenate(
        [jnp.concatenate([wf, jnp.zeros_like(wf)], axis=-1),
         jnp.concatenate([jnp.zeros_like(wb), wb], axis=-1)], axis=0
    ).reshape(2 * H, 8 * H).astype(jnp.float32)

    # ---- Pad the word dim to a tile multiple; padded words get len 0 (-> zero output).
    n_pad = pl.cdiv(N, n_block) * n_block
    chars_i = chars_padded.astype(jnp.int32)
    lens_i = word_lens.astype(jnp.int32)
    if n_pad != N:
        chars_i = jnp.pad(chars_i, ((0, n_pad - N), (0, 0)))
        lens_i = jnp.pad(lens_i, (0, n_pad - N))
    lens2d = lens_i.reshape(n_pad, 1)

    out = pl.pallas_call(
        _char_bilstm_kernel,
        out_shape=jax.ShapeDtypeStruct((n_pad, 2 * H), jnp.float32),
        grid_spec=pltpu.PrefetchScalarGridSpec(
            num_scalar_prefetch=0,
            grid=(n_pad // n_block,),
            in_specs=[
                pl.BlockSpec((n_block, T), lambda i: (i, 0)),            # char ids (4 B/char)
                pl.BlockSpec((n_block, 1), lambda i: (i, 0)),            # lengths
                pl.BlockSpec((2 * v_pad, 8 * H), lambda i: (0, 0)),      # resident table
                pl.BlockSpec((2 * H, 8 * H), lambda i: (0, 0)),          # resident weights
            ],
            out_specs=pl.BlockSpec((n_block, 2 * H), lambda i: (i, 0)),
        ),
        compiler_params=pltpu.CompilerParams(
            dimension_semantics=("parallel",)),
    )(chars_i, lens2d, table_cat, whh_cat)

    # normalize=False -> layer_norm is identity; order is already the original word order.
    return out[:N]


def _reference_forward(chars_padded, word_lens, params):
    """Pure-JAX reference (same pack_padded semantics, PyTorch gate order)."""
    emb = params["emb"]
    x = jnp.transpose(emb[chars_padded], (1, 0, 2)).astype(jnp.float32)  # [T, N, E]
    T, N, _ = x.shape
    H = params["whh_f"].shape[0]
    lens = word_lens.astype(jnp.int32).reshape(N, 1)

    def cell(x_t, h, c, wih, whh, b):
        gates = x_t @ wih + h @ whh + b
        i, f, g, o = jnp.split(gates, 4, axis=-1)
        c_new = jax.nn.sigmoid(f) * c + jax.nn.sigmoid(i) * jnp.tanh(g)
        h_new = jax.nn.sigmoid(o) * jnp.tanh(c_new)
        return h_new, c_new

    h = c = jnp.zeros((N, H), jnp.float32)
    for t in range(T):
        hn, cn = cell(x[t], h, c, params["wih_f"], params["whh_f"], params["b_f"])
        m = t < lens
        h, c = jnp.where(m, hn, h), jnp.where(m, cn, c)
    h_f = h
    h = c = jnp.zeros((N, H), jnp.float32)
    for t in range(T - 1, -1, -1):
        hn, cn = cell(x[t], h, c, params["wih_b"], params["whh_b"], params["b_b"])
        m = t < lens
        h, c = jnp.where(m, hn, h), jnp.where(m, cn, c)
    return jnp.concatenate([h_f, h], axis=-1)


def init_params(key, num_embeddings, d_embedding, d_out):
    """Deterministic synthetic params matching nn.LSTM / nn.Embedding shapes."""
    H = d_out // 2
    ks = jax.random.split(key, 11)
    bound = 1.0 / jnp.sqrt(H)

    def u(k, shape):
        return jax.random.uniform(k, shape, jnp.float32, -bound, bound)

    # PyTorch: weight_ih_l0 [4H, E], weight_hh_l0 [4H, H]; stored transposed here.
    wih_f = u(ks[0], (d_embedding, 4 * H))
    whh_f = u(ks[1], (H, 4 * H))
    b_f = u(ks[2], (1, 4 * H)) + u(ks[3], (1, 4 * H))     # b_ih + b_hh
    wih_b = u(ks[4], (d_embedding, 4 * H))
    whh_b = u(ks[5], (H, 4 * H))
    b_b = u(ks[6], (1, 4 * H)) + u(ks[7], (1, 4 * H))
    emb = jax.random.normal(ks[8], (num_embeddings, d_embedding), jnp.float32)
    return {"emb": emb, "wih_f": wih_f, "whh_f": whh_f, "b_f": b_f,
            "wih_b": wih_b, "whh_b": whh_b, "b_b": b_b}


if __name__ == "__main__":
    # Small shapes: 200 words (pads to 256 -> 2 word tiles of 128), up to 8 chars each,
    # d_embedding=32, d_out=32 (H=16 -> 8H = 128 lanes, lane-aligned gates), vocab 24.
    NUM_EMBEDDINGS = 24
    D_EMB = 32
    D_OUT = 32
    N_WORDS = 200
    T_MAX = 8

    key = jax.random.PRNGKey(0)
    k_par, k_chars, k_lens = jax.random.split(key, 3)

    params = init_params(k_par, NUM_EMBEDDINGS, D_EMB, D_OUT)
    chars_padded = jax.random.randint(k_chars, (N_WORDS, T_MAX), 0, NUM_EMBEDDINGS,
                                      dtype=jnp.int32)
    word_lens = jax.random.randint(k_lens, (N_WORDS,), 1, T_MAX + 1, dtype=jnp.int32)

    out = character_lstm_forward(chars_padded, word_lens, params, n_block=128)
    out = jax.block_until_ready(out)

    ref = _reference_forward(chars_padded, word_lens, params)
    assert out.shape == (N_WORDS, D_OUT)
    assert jnp.allclose(out, ref, atol=1e-4, rtol=1e-4)

    print("KERNEL_OK")
</pallas_src>

<mosaic_0001>
module attributes {stable_mosaic.version = 11 : i64} {
  func.func @_char_bilstm_kernel(%arg0: i32, %arg1: memref<128x8xi32, #tpu.memory_space<vmem>>, %arg2: memref<128x1xi32, #tpu.memory_space<vmem>>, %arg3: memref<48x128xf32, #tpu.memory_space<vmem>>, %arg4: memref<32x128xf32, #tpu.memory_space<vmem>>, %arg5: memref<128x32xf32, #tpu.memory_space<vmem>>) attributes {dimension_semantics = [#tpu.dimension_semantics<parallel>], iteration_bounds = array<i64: 2>, scalar_prefetch = 0 : i64, scratch_operands = 0 : i64, tpu.core_type = #tpu.core_type<tc>, window_params = [{transform_indices = @transform_0, window_bounds = array<i64: 128, 8>}, {transform_indices = @transform_1, window_bounds = array<i64: 128, 1>}, {pipeline_mode = #tpu.pipeline_mode<synchronous>, transform_indices = @transform_2, window_bounds = array<i64: 48, 128>}, {pipeline_mode = #tpu.pipeline_mode<synchronous>, transform_indices = @transform_3, window_bounds = array<i64: 32, 128>}, {transform_indices = @transform_4, window_bounds = array<i64: 128, 32>}]} {
    %c0 = arith.constant 0 : index
    %c0_0 = arith.constant 0 : index
    %0 = vector.load %arg1[%c0, %c0_0] : memref<128x8xi32, #tpu.memory_space<vmem>>, vector<128x8xi32>
    %c0_1 = arith.constant 0 : index
    %c0_2 = arith.constant 0 : index
    %1 = vector.load %arg2[%c0_1, %c0_2] : memref<128x1xi32, #tpu.memory_space<vmem>>, vector<128x1xi32>
    %c0_3 = arith.constant 0 : index
    %c0_4 = arith.constant 0 : index
    %2 = vector.load %arg3[%c0_3, %c0_4] : memref<48x128xf32, #tpu.memory_space<vmem>>, vector<48x128xf32>
    %c0_5 = arith.constant 0 : index
    %c0_6 = arith.constant 0 : index
    %3 = vector.load %arg4[%c0_5, %c0_6] : memref<32x128xf32, #tpu.memory_space<vmem>>, vector<32x128xf32>
    %4 = tpu.iota {dimensions = array<i32: 1>} : vector<128x48xi32>
    %5 = tpu.iota {dimensions = array<i32: 1>} : vector<1x32xi32>
    %c16_i32 = arith.constant 16 : i32
    %6 = vector.broadcast %c16_i32 : i32 to vector<1x32xi32>
    %7 = arith.cmpi sge, %5, %6 : vector<1x32xi32>
    %cst = arith.constant 0.000000e+00 : f32
    %8 = vector.broadcast %cst : f32 to vector<128x32xf32>
    %cst_7 = arith.constant 0.000000e+00 : f32
    %9 = vector.broadcast %cst_7 : f32 to vector<128x32xf32>
    %10 = vector.extract_strided_slice %0 {offsets = [0, 0], sizes = [128, 1], strides = [1, 1]} : vector<128x8xi32> to vector<128x1xi32>
    %11 = vector.extract_strided_slice %0 {offsets = [0, 7], sizes = [128, 1], strides = [1, 1]} : vector<128x8xi32> to vector<128x1xi32>
    %12 = vector.broadcast %10 : vector<128x1xi32> to vector<128x48xi32>
    %13 = arith.cmpi eq, %4, %12 : vector<128x48xi32>
    %c24_i32 = arith.constant 24 : i32
    %14 = vector.broadcast %c24_i32 : i32 to vector<128x1xi32>
    %15 = arith.addi %11, %14 : vector<128x1xi32>
    %16 = vector.broadcast %15 : vector<128x1xi32> to vector<128x48xi32>
    %17 = arith.cmpi eq, %4, %16 : vector<128x48xi32>
    %18 = arith.ori %13, %17 : vector<128x48xi1>
    %19 = arith.extui %18 : vector<128x48xi1> to vector<128x48xi32>
    %20 = arith.sitofp %19 : vector<128x48xi32> to vector<128x48xf32>
    %cst_8 = arith.constant dense<0.000000e+00> : vector<128x128xf32>
    %21 = tpu.matmul %20, %2, %cst_8 {dimension_numbers = #tpu.dot_dimension_numbers<[1], [0], [0], [1], [0, 0, 1, 1], [], []>} : vector<128x48xf32>, vector<48x128xf32>, vector<128x128xf32> -> vector<128x128xf32>
    %cst_9 = arith.constant dense<0.000000e+00> : vector<128x128xf32>
    %22 = tpu.matmul %8, %3, %cst_9 {dimension_numbers = #tpu.dot_dimension_numbers<[1], [0], [0], [1], [0, 0, 1, 1], [], []>} : vector<128x32xf32>, vector<32x128xf32>, vector<128x128xf32> -> vector<128x128xf32>
    %23 = arith.addf %21, %22 : vector<128x128xf32>
    %24 = vector.extract_strided_slice %23 {offsets = [0, 0], sizes = [128, 32], strides = [1, 1]} : vector<128x128xf32> to vector<128x32xf32>
    %25 = arith.negf %24 : vector<128x32xf32>
    %26 = math.exp %25 : vector<128x32xf32>
    %cst_10 = arith.constant 1.000000e+00 : f32
    %27 = vector.broadcast %cst_10 : f32 to vector<128x32xf32>
    %28 = arith.addf %27, %26 : vector<128x32xf32>
    %29 = arith.divf %27, %28 : vector<128x32xf32>
    %30 = vector.extract_strided_slice %23 {offsets = [0, 32], sizes = [128, 32], strides = [1, 1]} : vector<128x128xf32> to vector<128x32xf32>
    %31 = arith.negf %30 : vector<128x32xf32>
    %32 = math.exp %31 : vector<128x32xf32>
    %cst_11 = arith.constant 1.000000e+00 : f32
    %33 = vector.broadcast %cst_11 : f32 to vector<128x32xf32>
    %34 = arith.addf %33, %32 : vector<128x32xf32>
    %35 = arith.divf %33, %34 : vector<128x32xf32>
    %36 = vector.extract_strided_slice %23 {offsets = [0, 64], sizes = [128, 32], strides = [1, 1]} : vector<128x128xf32> to vector<128x32xf32>
    %37 = arith.negf %36 : vector<128x32xf32>
    %38 = math.exp %37 : vector<128x32xf32>
    %cst_12 = arith.constant 1.000000e+00 : f32
    %39 = vector.broadcast %cst_12 : f32 to vector<128x32xf32>
    %40 = arith.addf %39, %38 : vector<128x32xf32>
    %41 = arith.divf %39, %40 : vector<128x32xf32>
    %42 = vector.extract_strided_slice %23 {offsets = [0, 96], sizes = [128, 32], strides = [1, 1]} : vector<128x128xf32> to vector<128x32xf32>
    %43 = math.tanh %42 : vector<128x32xf32>
    %44 = arith.mulf %35, %9 : vector<128x32xf32>
    %45 = arith.mulf %29, %43 : vector<128x32xf32>
    %46 = arith.addf %44, %45 : vector<128x32xf32>
    %47 = math.tanh %46 : vector<128x32xf32>
    %48 = arith.mulf %41, %47 : vector<128x32xf32>
    %c7_i32 = arith.constant 7 : i32
    %c0_i32 = arith.constant 0 : i32
    %49 = vector.broadcast %c7_i32 : i32 to vector<1x32xi32>
    %50 = vector.broadcast %c0_i32 : i32 to vector<1x32xi32>
    %51 = arith.select %7, %49, %50 : vector<1x32xi1>, vector<1x32xi32>
    %52 = vector.broadcast %51 : vector<1x32xi32> to vector<128x32xi32>
    %53 = vector.broadcast %1 : vector<128x1xi32> to vector<128x32xi32>
    %54 = arith.cmpi slt, %52, %53 : vector<128x32xi32>
    %55 = arith.select %54, %48, %8 : vector<128x32xi1>, vector<128x32xf32>
    %56 = arith.select %54, %46, %9 : vector<128x32xi1>, vector<128x32xf32>
    %57 = vector.extract_strided_slice %0 {offsets = [0, 1], sizes = [128, 1], strides = [1, 1]} : vector<128x8xi32> to vector<128x1xi32>
    %58 = vector.extract_strided_slice %0 {offsets = [0, 6], sizes = [128, 1], strides = [1, 1]} : vector<128x8xi32> to vector<128x1xi32>
    %59 = vector.broadcast %57 : vector<128x1xi32> to vector<128x48xi32>
    %60 = arith.cmpi eq, %4, %59 : vector<128x48xi32>
    %c24_i32_13 = arith.constant 24 : i32
    %61 = vector.broadcast %c24_i32_13 : i32 to vector<128x1xi32>
    %62 = arith.addi %58, %61 : vector<128x1xi32>
    %63 = vector.broadcast %62 : vector<128x1xi32> to vector<128x48xi32>
    %64 = arith.cmpi eq, %4, %63 : vector<128x48xi32>
    %65 = arith.ori %60, %64 : vector<128x48xi1>
    %66 = arith.extui %65 : vector<128x48xi1> to vector<128x48xi32>
    %67 = arith.sitofp %66 : vector<128x48xi32> to vector<128x48xf32>
    %cst_14 = arith.constant dense<0.000000e+00> : vector<128x128xf32>
    %68 = tpu.matmul %67, %2, %cst_14 {dimension_numbers = #tpu.dot_dimension_numbers<[1], [0], [0], [1], [0, 0, 1, 1], [], []>} : vector<128x48xf32>, vector<48x128xf32>, vector<128x128xf32> -> vector<128x128xf32>
    %cst_15 = arith.constant dense<0.000000e+00> : vector<128x128xf32>
    %69 = tpu.matmul %55, %3, %cst_15 {dimension_numbers = #tpu.dot_dimension_numbers<[1], [0], [0], [1], [0, 0, 1, 1], [], []>} : vector<128x32xf32>, vector<32x128xf32>, vector<128x128xf32> -> vector<128x128xf32>
    %70 = arith.addf %68, %69 : vector<128x128xf32>
    %71 = vector.extract_strided_slice %70 {offsets = [0, 0], sizes = [128, 32], strides = [1, 1]} : vector<128x128xf32> to vector<128x32xf32>
    %72 = arith.negf %71 : vector<128x32xf32>
    %73 = math.exp %72 : vector<128x32xf32>
    %cst_16 = arith.constant 1.000000e+00 : f32
    %74 = vector.broadcast %cst_16 : f32 to vector<128x32xf32>
    %75 = arith.addf %74, %73 : vector<128x32xf32>
    %76 = arith.divf %74, %75 : vector<128x32xf32>
    %77 = vector.extract_strided_slice %70 {offsets = [0, 32], sizes = [128, 32], strides = [1, 1]} : vector<128x128xf32> to vector<128x32xf32>
    %78 = arith.negf %77 : vector<128x32xf32>
    %79 = math.exp %78 : vector<128x32xf32>
    %cst_17 = arith.constant 1.000000e+00 : f32
    %80 = vector.broadcast %cst_17 : f32 to vector<128x32xf32>
    %81 = arith.addf %80, %79 : vector<128x32xf32>
    %82 = arith.divf %80, %81 : vector<128x32xf32>
    %83 = vector.extract_strided_slice %70 {offsets = [0, 64], sizes = [128, 32], strides = [1, 1]} : vector<128x128xf32> to vector<128x32xf32>
    %84 = arith.negf %83 : vector<128x32xf32>
    %85 = math.exp %84 : vector<128x32xf32>
    %cst_18 = arith.constant 1.000000e+00 : f32
    %86 = vector.broadcast %cst_18 : f32 to vector<128x32xf32>
    %87 = arith.addf %86, %85 : vector<128x32xf32>
    %88 = arith.divf %86, %87 : vector<128x32xf32>
    %89 = vector.extract_strided_slice %70 {offsets = [0, 96], sizes = [128, 32], strides = [1, 1]} : vector<128x128xf32> to vector<128x32xf32>
    %90 = math.tanh %89 : vector<128x32xf32>
    %91 = arith.mulf %82, %56 : vector<128x32xf32>
    %92 = arith.mulf %76, %90 : vector<128x32xf32>
    %93 = arith.addf %91, %92 : vector<128x32xf32>
    %94 = math.tanh %93 : vector<128x32xf32>
    %95 = arith.mulf %88, %94 : vector<128x32xf32>
    %c6_i32 = arith.constant 6 : i32
    %c1_i32 = arith.constant 1 : i32
    %96 = vector.broadcast %c6_i32 : i32 to vector<1x32xi32>
    %97 = vector.broadcast %c1_i32 : i32 to vector<1x32xi32>
    %98 = arith.select %7, %96, %97 : vector<1x32xi1>, vector<1x32xi32>
    %99 = vector.broadcast %98 : vector<1x32xi32> to vector<128x32xi32>
    %100 = vector.broadcast %1 : vector<128x1xi32> to vector<128x32xi32>
    %101 = arith.cmpi slt, %99, %100 : vector<128x32xi32>
    %102 = arith.select %101, %95, %55 : vector<128x32xi1>, vector<128x32xf32>
    %103 = arith.select %101, %93, %56 : vector<128x32xi1>, vector<128x32xf32>
    %104 = vector.extract_strided_slice %0 {offsets = [0, 2], sizes = [128, 1], strides = [1, 1]} : vector<128x8xi32> to vector<128x1xi32>
    %105 = vector.extract_strided_slice %0 {offsets = [0, 5], sizes = [128, 1], strides = [1, 1]} : vector<128x8xi32> to vector<128x1xi32>
    %106 = vector.broadcast %104 : vector<128x1xi32> to vector<128x48xi32>
    %107 = arith.cmpi eq, %4, %106 : vector<128x48xi32>
    %c24_i32_19 = arith.constant 24 : i32
    %108 = vector.broadcast %c24_i32_19 : i32 to vector<128x1xi32>
    %109 = arith.addi %105, %108 : vector<128x1xi32>
    %110 = vector.broadcast %109 : vector<128x1xi32> to vector<128x48xi32>
    %111 = arith.cmpi eq, %4, %110 : vector<128x48xi32>
    %112 = arith.ori %107, %111 : vector<128x48xi1>
    %113 = arith.extui %112 : vector<128x48xi1> to vector<128x48xi32>
    %114 = arith.sitofp %113 : vector<128x48xi32> to vector<128x48xf32>
    %cst_20 = arith.constant dense<0.000000e+00> : vector<128x128xf32>
    %115 = tpu.matmul %114, %2, %cst_20 {dimension_numbers = #tpu.dot_dimension_numbers<[1], [0], [0], [1], [0, 0, 1, 1], [], []>} : vector<128x48xf32>, vector<48x128xf32>, vector<128x128xf32> -> vector<128x128xf32>
    %cst_21 = arith.constant dense<0.000000e+00> : vector<128x128xf32>
    %116 = tpu.matmul %102, %3, %cst_21 {dimension_numbers = #tpu.dot_dimension_numbers<[1], [0], [0], [1], [0, 0, 1, 1], [], []>} : vector<128x32xf32>, vector<32x128xf32>, vector<128x128xf32> -> vector<128x128xf32>
    %117 = arith.addf %115, %116 : vector<128x128xf32>
    %118 = vector.extract_strided_slice %117 {offsets = [0, 0], sizes = [128, 32], strides = [1, 1]} : vector<128x128xf32> to vector<128x32xf32>
    %119 = arith.negf %118 : vector<128x32xf32>
    %120 = math.exp %119 : vector<128x32xf32>
    %cst_22 = arith.constant 1.000000e+00 : f32
    %121 = vector.broadcast %cst_22 : f32 to vector<128x32xf32>
    %122 = arith.addf %121, %120 : vector<128x32xf32>
    %123 = arith.divf %121, %122 : vector<128x32xf32>
    %124 = vector.extract_strided_slice %117 {offsets = [0, 32], sizes = [128, 32], strides = [1, 1]} : vector<128x128xf32> to vector<128x32xf32>
    %125 = arith.negf %124 : vector<128x32xf32>
    %126 = math.exp %125 : vector<128x32xf32>
    %cst_23 = arith.constant 1.000000e+00 : f32
    %127 = vector.broadcast %cst_23 : f32 to vector<128x32xf32>
    %128 = arith.addf %127, %126 : vector<128x32xf32>
    %129 = arith.divf %127, %128 : vector<128x32xf32>
    %130 = vector.extract_strided_slice %117 {offsets = [0, 64], sizes = [128, 32], strides = [1, 1]} : vector<128x128xf32> to vector<128x32xf32>
    %131 = arith.negf %130 : vector<128x32xf32>
    %132 = math.exp %131 : vector<128x32xf32>
    %cst_24 = arith.constant 1.000000e+00 : f32
    %133 = vector.broadcast %cst_24 : f32 to vector<128x32xf32>
    %134 = arith.addf %133, %132 : vector<128x32xf32>
    %135 = arith.divf %133, %134 : vector<128x32xf32>
    %136 = vector.extract_strided_slice %117 {offsets = [0, 96], sizes = [128, 32], strides = [1, 1]} : vector<128x128xf32> to vector<128x32xf32>
    %137 = math.tanh %136 : vector<128x32xf32>
    %138 = arith.mulf %129, %103 : vector<128x32xf32>
    %139 = arith.mulf %123, %137 : vector<128x32xf32>
    %140 = arith.addf %138, %139 : vector<128x32xf32>
    %141 = math.tanh %140 : vector<128x32xf32>
    %142 = arith.mulf %135, %141 : vector<128x32xf32>
    %c5_i32 = arith.constant 5 : i32
    %c2_i32 = arith.constant 2 : i32
    %143 = vector.broadcast %c5_i32 : i32 to vector<1x32xi32>
    %144 = vector.broadcast %c2_i32 : i32 to vector<1x32xi32>
    %145 = arith.select %7, %143, %144 : vector<1x32xi1>, vector<1x32xi32>
    %146 = vector.broadcast %145 : vector<1x32xi32> to vector<128x32xi32>
    %147 = vector.broadcast %1 : vector<128x1xi32> to vector<128x32xi32>
    %148 = arith.cmpi slt, %146, %147 : vector<128x32xi32>
    %149 = arith.select %148, %142, %102 : vector<128x32xi1>, vector<128x32xf32>
    %150 = arith.select %148, %140, %103 : vector<128x32xi1>, vector<128x32xf32>
    %151 = vector.extract_strided_slice %0 {offsets = [0, 3], sizes = [128, 1], strides = [1, 1]} : vector<128x8xi32> to vector<128x1xi32>
    %152 = vector.extract_strided_slice %0 {offsets = [0, 4], sizes = [128, 1], strides = [1, 1]} : vector<128x8xi32> to vector<128x1xi32>
    %153 = vector.broadcast %151 : vector<128x1xi32> to vector<128x48xi32>
    %154 = arith.cmpi eq, %4, %153 : vector<128x48xi32>
    %c24_i32_25 = arith.constant 24 : i32
    %155 = vector.broadcast %c24_i32_25 : i32 to vector<128x1xi32>
    %156 = arith.addi %152, %155 : vector<128x1xi32>
    %157 = vector.broadcast %156 : vector<128x1xi32> to vector<128x48xi32>
    %158 = arith.cmpi eq, %4, %157 : vector<128x48xi32>
    %159 = arith.ori %154, %158 : vector<128x48xi1>
    %160 = arith.extui %159 : vector<128x48xi1> to vector<128x48xi32>
    %161 = arith.sitofp %160 : vector<128x48xi32> to vector<128x48xf32>
    %cst_26 = arith.constant dense<0.000000e+00> : vector<128x128xf32>
    %162 = tpu.matmul %161, %2, %cst_26 {dimension_numbers = #tpu.dot_dimension_numbers<[1], [0], [0], [1], [0, 0, 1, 1], [], []>} : vector<128x48xf32>, vector<48x128xf32>, vector<128x128xf32> -> vector<128x128xf32>
    %cst_27 = arith.constant dense<0.000000e+00> : vector<128x128xf32>
    %163 = tpu.matmul %149, %3, %cst_27 {dimension_numbers = #tpu.dot_dimension_numbers<[1], [0], [0], [1], [0, 0, 1, 1], [], []>} : vector<128x32xf32>, vector<32x128xf32>, vector<128x128xf32> -> vector<128x128xf32>
    %164 = arith.addf %162, %163 : vector<128x128xf32>
    %165 = vector.extract_strided_slice %164 {offsets = [0, 0], sizes = [128, 32], strides = [1, 1]} : vector<128x128xf32> to vector<128x32xf32>
    %166 = arith.negf %165 : vector<128x32xf32>
    %167 = math.exp %166 : vector<128x32xf32>
    %cst_28 = arith.constant 1.000000e+00 : f32
    %168 = vector.broadcast %cst_28 : f32 to vector<128x32xf32>
    %169 = arith.addf %168, %167 : vector<128x32xf32>
    %170 = arith.divf %168, %169 : vector<128x32xf32>
    %171 = vector.extract_strided_slice %164 {offsets = [0, 32], sizes = [128, 32], strides = [1, 1]} : vector<128x128xf32> to vector<128x32xf32>
    %172 = arith.negf %171 : vector<128x32xf32>
    %173 = math.exp %172 : vector<128x32xf32>
    %cst_29 = arith.constant 1.000000e+00 : f32
    %174 = vector.broadcast %cst_29 : f32 to vector<128x32xf32>
    %175 = arith.addf %174, %173 : vector<128x32xf32>
    %176 = arith.divf %174, %175 : vector<128x32xf32>
    %177 = vector.extract_strided_slice %164 {offsets = [0, 64], sizes = [128, 32], strides = [1, 1]} : vector<128x128xf32> to vector<128x32xf32>
    %178 = arith.negf %177 : vector<128x32xf32>
    %179 = math.exp %178 : vector<128x32xf32>
    %cst_30 = arith.constant 1.000000e+00 : f32
    %180 = vector.broadcast %cst_30 : f32 to vector<128x32xf32>
    %181 = arith.addf %180, %179 : vector<128x32xf32>
    %182 = arith.divf %180, %181 : vector<128x32xf32>
    %183 = vector.extract_strided_slice %164 {offsets = [0, 96], sizes = [128, 32], strides = [1, 1]} : vector<128x128xf32> to vector<128x32xf32>
    %184 = math.tanh %183 : vector<128x32xf32>
    %185 = arith.mulf %176, %150 : vector<128x32xf32>
    %186 = arith.mulf %170, %184 : vector<128x32xf32>
    %187 = arith.addf %185, %186 : vector<128x32xf32>
    %188 = math.tanh %187 : vector<128x32xf32>
    %189 = arith.mulf %182, %188 : vector<128x32xf32>
    %c4_i32 = arith.constant 4 : i32
    %c3_i32 = arith.constant 3 : i32
    %190 = vector.broadcast %c4_i32 : i32 to vector<1x32xi32>
    %191 = vector.broadcast %c3_i32 : i32 to vector<1x32xi32>
    %192 = arith.select %7, %190, %191 : vector<1x32xi1>, vector<1x32xi32>
    %193 = vector.broadcast %192 : vector<1x32xi32> to vector<128x32xi32>
    %194 = vector.broadcast %1 : vector<128x1xi32> to vector<128x32xi32>
    %195 = arith.cmpi slt, %193, %194 : vector<128x32xi32>
    %196 = arith.select %195, %189, %149 : vector<128x32xi1>, vector<128x32xf32>
    %197 = arith.select %195, %187, %150 : vector<128x32xi1>, vector<128x32xf32>
    %198 = vector.extract_strided_slice %0 {offsets = [0, 4], sizes = [128, 1], strides = [1, 1]} : vector<128x8xi32> to vector<128x1xi32>
    %199 = vector.extract_strided_slice %0 {offsets = [0, 3], sizes = [128, 1], strides = [1, 1]} : vector<128x8xi32> to vector<128x1xi32>
    %200 = vector.broadcast %198 : vector<128x1xi32> to vector<128x48xi32>
    %201 = arith.cmpi eq, %4, %200 : vector<128x48xi32>
    %c24_i32_31 = arith.constant 24 : i32
    %202 = vector.broadcast %c24_i32_31 : i32 to vector<128x1xi32>
    %203 = arith.addi %199, %202 : vector<128x1xi32>
    %204 = vector.broadcast %203 : vector<128x1xi32> to vector<128x48xi32>
    %205 = arith.cmpi eq, %4, %204 : vector<128x48xi32>
    %206 = arith.ori %201, %205 : vector<128x48xi1>
    %207 = arith.extui %206 : vector<128x48xi1> to vector<128x48xi32>
    %208 = arith.sitofp %207 : vector<128x48xi32> to vector<128x48xf32>
    %cst_32 = arith.constant dense<0.000000e+00> : vector<128x128xf32>
    %209 = tpu.matmul %208, %2, %cst_32 {dimension_numbers = #tpu.dot_dimension_numbers<[1], [0], [0], [1], [0, 0, 1, 1], [], []>} : vector<128x48xf32>, vector<48x128xf32>, vector<128x128xf32> -> vector<128x128xf32>
    %cst_33 = arith.constant dense<0.000000e+00> : vector<128x128xf32>
    %210 = tpu.matmul %196, %3, %cst_33 {dimension_numbers = #tpu.dot_dimension_numbers<[1], [0], [0], [1], [0, 0, 1, 1], [], []>} : vector<128x32xf32>, vector<32x128xf32>, vector<128x128xf32> -> vector<128x128xf32>
    %211 = arith.addf %209, %210 : vector<128x128xf32>
    %212 = vector.extract_strided_slice %211 {offsets = [0, 0], sizes = [128, 32], strides = [1, 1]} : vector<128x128xf32> to vector<128x32xf32>
    %213 = arith.negf %212 : vector<128x32xf32>
    %214 = math.exp %213 : vector<128x32xf32>
    %cst_34 = arith.constant 1.000000e+00 : f32
    %215 = vector.broadcast %cst_34 : f32 to vector<128x32xf32>
    %216 = arith.addf %215, %214 : vector<128x32xf32>
    %217 = arith.divf %215, %216 : vector<128x32xf32>
    %218 = vector.extract_strided_slice %211 {offsets = [0, 32], sizes = [128, 32], strides = [1, 1]} : vector<128x128xf32> to vector<128x32xf32>
    %219 = arith.negf %218 : vector<128x32xf32>
    %220 = math.exp %219 : vector<128x32xf32>
    %cst_35 = arith.constant 1.000000e+00 : f32
    %221 = vector.broadcast %cst_35 : f32 to vector<128x32xf32>
    %222 = arith.addf %221, %220 : vector<128x32xf32>
    %223 = arith.divf %221, %222 : vector<128x32xf32>
    %224 = vector.extract_strided_slice %211 {offsets = [0, 64], sizes = [128, 32], strides = [1, 1]} : vector<128x128xf32> to vector<128x32xf32>
    %225 = arith.negf %224 : vector<128x32xf32>
    %226 = math.exp %225 : vector<128x32xf32>
    %cst_36 = arith.constant 1.000000e+00 : f32
    %227 = vector.broadcast %cst_36 : f32 to vector<128x32xf32>
    %228 = arith.addf %227, %226 : vector<128x32xf32>
    %229 = arith.divf %227, %228 : vector<128x32xf32>
    %230 = vector.extract_strided_slice %211 {offsets = [0, 96], sizes = [128, 32], strides = [1, 1]} : vector<128x128xf32> to vector<128x32xf32>
    %231 = math.tanh %230 : vector<128x32xf32>
    %232 = arith.mulf %223, %197 : vector<128x32xf32>
    %233 = arith.mulf %217, %231 : vector<128x32xf32>
    %234 = arith.addf %232, %233 : vector<128x32xf32>
    %235 = math.tanh %234 : vector<128x32xf32>
    %236 = arith.mulf %229, %235 : vector<128x32xf32>
    %c3_i32_37 = arith.constant 3 : i32
    %c4_i32_38 = arith.constant 4 : i32
    %237 = vector.broadcast %c3_i32_37 : i32 to vector<1x32xi32>
    %238 = vector.broadcast %c4_i32_38 : i32 to vector<1x32xi32>
    %239 = arith.select %7, %237, %238 : vector<1x32xi1>, vector<1x32xi32>
    %240 = vector.broadcast %239 : vector<1x32xi32> to vector<128x32xi32>
    %241 = vector.broadcast %1 : vector<128x1xi32> to vector<128x32xi32>
    %242 = arith.cmpi slt, %240, %241 : vector<128x32xi32>
    %243 = arith.select %242, %236, %196 : vector<128x32xi1>, vector<128x32xf32>
    %244 = arith.select %242, %234, %197 : vector<128x32xi1>, vector<128x32xf32>
    %245 = vector.extract_strided_slice %0 {offsets = [0, 5], sizes = [128, 1], strides = [1, 1]} : vector<128x8xi32> to vector<128x1xi32>
    %246 = vector.extract_strided_slice %0 {offsets = [0, 2], sizes = [128, 1], strides = [1, 1]} : vector<128x8xi32> to vector<128x1xi32>
    %247 = vector.broadcast %245 : vector<128x1xi32> to vector<128x48xi32>
    %248 = arith.cmpi eq, %4, %247 : vector<128x48xi32>
    %c24_i32_39 = arith.constant 24 : i32
    %249 = vector.broadcast %c24_i32_39 : i32 to vector<128x1xi32>
    %250 = arith.addi %246, %249 : vector<128x1xi32>
    %251 = vector.broadcast %250 : vector<128x1xi32> to vector<128x48xi32>
    %252 = arith.cmpi eq, %4, %251 : vector<128x48xi32>
    %253 = arith.ori %248, %252 : vector<128x48xi1>
    %254 = arith.extui %253 : vector<128x48xi1> to vector<128x48xi32>
    %255 = arith.sitofp %254 : vector<128x48xi32> to vector<128x48xf32>
    %cst_40 = arith.constant dense<0.000000e+00> : vector<128x128xf32>
    %256 = tpu.matmul %255, %2, %cst_40 {dimension_numbers = #tpu.dot_dimension_numbers<[1], [0], [0], [1], [0, 0, 1, 1], [], []>} : vector<128x48xf32>, vector<48x128xf32>, vector<128x128xf32> -> vector<128x128xf32>
    %cst_41 = arith.constant dense<0.000000e+00> : vector<128x128xf32>
    %257 = tpu.matmul %243, %3, %cst_41 {dimension_numbers = #tpu.dot_dimension_numbers<[1], [0], [0], [1], [0, 0, 1, 1], [], []>} : vector<128x32xf32>, vector<32x128xf32>, vector<128x128xf32> -> vector<128x128xf32>
    %258 = arith.addf %256, %257 : vector<128x128xf32>
    %259 = vector.extract_strided_slice %258 {offsets = [0, 0], sizes = [128, 32], strides = [1, 1]} : vector<128x128xf32> to vector<128x32xf32>
    %260 = arith.negf %259 : vector<128x32xf32>
    %261 = math.exp %260 : vector<128x32xf32>
    %cst_42 = arith.constant 1.000000e+00 : f32
    %262 = vector.broadcast %cst_42 : f32 to vector<128x32xf32>
    %263 = arith.addf %262, %261 : vector<128x32xf32>
    %264 = arith.divf %262, %263 : vector<128x32xf32>
    %265 = vector.extract_strided_slice %258 {offsets = [0, 32], sizes = [128, 32], strides = [1, 1]} : vector<128x128xf32> to vector<128x32xf32>
    %266 = arith.negf %265 : vector<128x32xf32>
    %267 = math.exp %266 : vector<128x32xf32>
    %cst_43 = arith.constant 1.000000e+00 : f32
    %268 = vector.broadcast %cst_43 : f32 to vector<128x32xf32>
    %269 = arith.addf %268, %267 : vector<128x32xf32>
    %270 = arith.divf %268, %269 : vector<128x32xf32>
    %271 = vector.extract_strided_slice %258 {offsets = [0, 64], sizes = [128, 32], strides = [1, 1]} : vector<128x128xf32> to vector<128x32xf32>
    %272 = arith.negf %271 : vector<128x32xf32>
    %273 = math.exp %272 : vector<128x32xf32>
    %cst_44 = arith.constant 1.000000e+00 : f32
    %274 = vector.broadcast %cst_44 : f32 to vector<128x32xf32>
    %275 = arith.addf %274, %273 : vector<128x32xf32>
    %276 = arith.divf %274, %275 : vector<128x32xf32>
    %277 = vector.extract_strided_slice %258 {offsets = [0, 96], sizes = [128, 32], strides = [1, 1]} : vector<128x128xf32> to vector<128x32xf32>
    %278 = math.tanh %277 : vector<128x32xf32>
    %279 = arith.mulf %270, %244 : vector<128x32xf32>
    %280 = arith.mulf %264, %278 : vector<128x32xf32>
    %281 = arith.addf %279, %280 : vector<128x32xf32>
    %282 = math.tanh %281 : vector<128x32xf32>
    %283 = arith.mulf %276, %282 : vector<128x32xf32>
    %c2_i32_45 = arith.constant 2 : i32
    %c5_i32_46 = arith.constant 5 : i32
    %284 = vector.broadcast %c2_i32_45 : i32 to vector<1x32xi32>
    %285 = vector.broadcast %c5_i32_46 : i32 to vector<1x32xi32>
    %286 = arith.select %7, %284, %285 : vector<1x32xi1>, vector<1x32xi32>
    %287 = vector.broadcast %286 : vector<1x32xi32> to vector<128x32xi32>
    %288 = vector.broadcast %1 : vector<128x1xi32> to vector<128x32xi32>
    %289 = arith.cmpi slt, %287, %288 : vector<128x32xi32>
    %290 = arith.select %289, %283, %243 : vector<128x32xi1>, vector<128x32xf32>
    %291 = arith.select %289, %281, %244 : vector<128x32xi1>, vector<128x32xf32>
    %292 = vector.extract_strided_slice %0 {offsets = [0, 6], sizes = [128, 1], strides = [1, 1]} : vector<128x8xi32> to vector<128x1xi32>
    %293 = vector.extract_strided_slice %0 {offsets = [0, 1], sizes = [128, 1], strides = [1, 1]} : vector<128x8xi32> to vector<128x1xi32>
    %294 = vector.broadcast %292 : vector<128x1xi32> to vector<128x48xi32>
    %295 = arith.cmpi eq, %4, %294 : vector<128x48xi32>
    %c24_i32_47 = arith.constant 24 : i32
    %296 = vector.broadcast %c24_i32_47 : i32 to vector<128x1xi32>
    %297 = arith.addi %293, %296 : vector<128x1xi32>
    %298 = vector.broadcast %297 : vector<128x1xi32> to vector<128x48xi32>
    %299 = arith.cmpi eq, %4, %298 : vector<128x48xi32>
    %300 = arith.ori %295, %299 : vector<128x48xi1>
    %301 = arith.extui %300 : vector<128x48xi1> to vector<128x48xi32>
    %302 = arith.sitofp %301 : vector<128x48xi32> to vector<128x48xf32>
    %cst_48 = arith.constant dense<0.000000e+00> : vector<128x128xf32>
    %303 = tpu.matmul %302, %2, %cst_48 {dimension_numbers = #tpu.dot_dimension_numbers<[1], [0], [0], [1], [0, 0, 1, 1], [], []>} : vector<128x48xf32>, vector<48x128xf32>, vector<128x128xf32> -> vector<128x128xf32>
    %cst_49 = arith.constant dense<0.000000e+00> : vector<128x128xf32>
    %304 = tpu.matmul %290, %3, %cst_49 {dimension_numbers = #tpu.dot_dimension_numbers<[1], [0], [0], [1], [0, 0, 1, 1], [], []>} : vector<128x32xf32>, vector<32x128xf32>, vector<128x128xf32> -> vector<128x128xf32>
    %305 = arith.addf %303, %304 : vector<128x128xf32>
    %306 = vector.extract_strided_slice %305 {offsets = [0, 0], sizes = [128, 32], strides = [1, 1]} : vector<128x128xf32> to vector<128x32xf32>
    %307 = arith.negf %306 : vector<128x32xf32>
    %308 = math.exp %307 : vector<128x32xf32>
    %cst_50 = arith.constant 1.000000e+00 : f32
    %309 = vector.broadcast %cst_50 : f32 to vector<128x32xf32>
    %310 = arith.addf %309, %308 : vector<128x32xf32>
    %311 = arith.divf %309, %310 : vector<128x32xf32>
    %312 = vector.extract_strided_slice %305 {offsets = [0, 32], sizes = [128, 32], strides = [1, 1]} : vector<128x128xf32> to vector<128x32xf32>
    %313 = arith.negf %312 : vector<128x32xf32>
    %314 = math.exp %313 : vector<128x32xf32>
    %cst_51 = arith.constant 1.000000e+00 : f32
    %315 = vector.broadcast %cst_51 : f32 to vector<128x32xf32>
    %316 = arith.addf %315, %314 : vector<128x32xf32>
    %317 = arith.divf %315, %316 : vector<128x32xf32>
    %318 = vector.extract_strided_slice %305 {offsets = [0, 64], sizes = [128, 32], strides = [1, 1]} : vector<128x128xf32> to vector<128x32xf32>
    %319 = arith.negf %318 : vector<128x32xf32>
    %320 = math.exp %319 : vector<128x32xf32>
    %cst_52 = arith.constant 1.000000e+00 : f32
    %321 = vector.broadcast %cst_52 : f32 to vector<128x32xf32>
    %322 = arith.addf %321, %320 : vector<128x32xf32>
    %323 = arith.divf %321, %322 : vector<128x32xf32>
    %324 = vector.extract_strided_slice %305 {offsets = [0, 96], sizes = [128, 32], strides = [1, 1]} : vector<128x128xf32> to vector<128x32xf32>
    %325 = math.tanh %324 : vector<128x32xf32>
    %326 = arith.mulf %317, %291 : vector<128x32xf32>
    %327 = arith.mulf %311, %325 : vector<128x32xf32>
    %328 = arith.addf %326, %327 : vector<128x32xf32>
    %329 = math.tanh %328 : vector<128x32xf32>
    %330 = arith.mulf %323, %329 : vector<128x32xf32>
    %c1_i32_53 = arith.constant 1 : i32
    %c6_i32_54 = arith.constant 6 : i32
    %331 = vector.broadcast %c1_i32_53 : i32 to vector<1x32xi32>
    %332 = vector.broadcast %c6_i32_54 : i32 to vector<1x32xi32>
    %333 = arith.select %7, %331, %332 : vector<1x32xi1>, vector<1x32xi32>
    %334 = vector.broadcast %333 : vector<1x32xi32> to vector<128x32xi32>
    %335 = vector.broadcast %1 : vector<128x1xi32> to vector<128x32xi32>
    %336 = arith.cmpi slt, %334, %335 : vector<128x32xi32>
    %337 = arith.select %336, %330, %290 : vector<128x32xi1>, vector<128x32xf32>
    %338 = arith.select %336, %328, %291 : vector<128x32xi1>, vector<128x32xf32>
    %339 = vector.extract_strided_slice %0 {offsets = [0, 7], sizes = [128, 1], strides = [1, 1]} : vector<128x8xi32> to vector<128x1xi32>
    %340 = vector.extract_strided_slice %0 {offsets = [0, 0], sizes = [128, 1], strides = [1, 1]} : vector<128x8xi32> to vector<128x1xi32>
    %341 = vector.broadcast %339 : vector<128x1xi32> to vector<128x48xi32>
    %342 = arith.cmpi eq, %4, %341 : vector<128x48xi32>
    %c24_i32_55 = arith.constant 24 : i32
    %343 = vector.broadcast %c24_i32_55 : i32 to vector<128x1xi32>
    %344 = arith.addi %340, %343 : vector<128x1xi32>
    %345 = vector.broadcast %344 : vector<128x1xi32> to vector<128x48xi32>
    %346 = arith.cmpi eq, %4, %345 : vector<128x48xi32>
    %347 = arith.ori %342, %346 : vector<128x48xi1>
    %348 = arith.extui %347 : vector<128x48xi1> to vector<128x48xi32>
    %349 = arith.sitofp %348 : vector<128x48xi32> to vector<128x48xf32>
    %cst_56 = arith.constant dense<0.000000e+00> : vector<128x128xf32>
    %350 = tpu.matmul %349, %2, %cst_56 {dimension_numbers = #tpu.dot_dimension_numbers<[1], [0], [0], [1], [0, 0, 1, 1], [], []>} : vector<128x48xf32>, vector<48x128xf32>, vector<128x128xf32> -> vector<128x128xf32>
    %cst_57 = arith.constant dense<0.000000e+00> : vector<128x128xf32>
    %351 = tpu.matmul %337, %3, %cst_57 {dimension_numbers = #tpu.dot_dimension_numbers<[1], [0], [0], [1], [0, 0, 1, 1], [], []>} : vector<128x32xf32>, vector<32x128xf32>, vector<128x128xf32> -> vector<128x128xf32>
    %352 = arith.addf %350, %351 : vector<128x128xf32>
    %353 = vector.extract_strided_slice %352 {offsets = [0, 0], sizes = [128, 32], strides = [1, 1]} : vector<128x128xf32> to vector<128x32xf32>
    %354 = arith.negf %353 : vector<128x32xf32>
    %355 = math.exp %354 : vector<128x32xf32>
    %cst_58 = arith.constant 1.000000e+00 : f32
    %356 = vector.broadcast %cst_58 : f32 to vector<128x32xf32>
    %357 = arith.addf %356, %355 : vector<128x32xf32>
    %358 = arith.divf %356, %357 : vector<128x32xf32>
    %359 = vector.extract_strided_slice %352 {offsets = [0, 32], sizes = [128, 32], strides = [1, 1]} : vector<128x128xf32> to vector<128x32xf32>
    %360 = arith.negf %359 : vector<128x32xf32>
    %361 = math.exp %360 : vector<128x32xf32>
    %cst_59 = arith.constant 1.000000e+00 : f32
    %362 = vector.broadcast %cst_59 : f32 to vector<128x32xf32>
    %363 = arith.addf %362, %361 : vector<128x32xf32>
    %364 = arith.divf %362, %363 : vector<128x32xf32>
    %365 = vector.extract_strided_slice %352 {offsets = [0, 64], sizes = [128, 32], strides = [1, 1]} : vector<128x128xf32> to vector<128x32xf32>
    %366 = arith.negf %365 : vector<128x32xf32>
    %367 = math.exp %366 : vector<128x32xf32>
    %cst_60 = arith.constant 1.000000e+00 : f32
    %368 = vector.broadcast %cst_60 : f32 to vector<128x32xf32>
    %369 = arith.addf %368, %367 : vector<128x32xf32>
    %370 = arith.divf %368, %369 : vector<128x32xf32>
    %371 = vector.extract_strided_slice %352 {offsets = [0, 96], sizes = [128, 32], strides = [1, 1]} : vector<128x128xf32> to vector<128x32xf32>
    %372 = math.tanh %371 : vector<128x32xf32>
    %373 = arith.mulf %364, %338 : vector<128x32xf32>
    %374 = arith.mulf %358, %372 : vector<128x32xf32>
    %375 = arith.addf %373, %374 : vector<128x32xf32>
    %376 = math.tanh %375 : vector<128x32xf32>
    %377 = arith.mulf %370, %376 : vector<128x32xf32>
    %c0_i32_61 = arith.constant 0 : i32
    %c7_i32_62 = arith.constant 7 : i32
    %378 = vector.broadcast %c0_i32_61 : i32 to vector<1x32xi32>
    %379 = vector.broadcast %c7_i32_62 : i32 to vector<1x32xi32>
    %380 = arith.select %7, %378, %379 : vector<1x32xi1>, vector<1x32xi32>
    %381 = vector.broadcast %380 : vector<1x32xi32> to vector<128x32xi32>
    %382 = vector.broadcast %1 : vector<128x1xi32> to vector<128x32xi32>
    %383 = arith.cmpi slt, %381, %382 : vector<128x32xi32>
    %384 = arith.select %383, %377, %337 : vector<128x32xi1>, vector<128x32xf32>
    %c0_63 = arith.constant 0 : index
    %c0_64 = arith.constant 0 : index
    %385 = vector.load %arg5[%c0_63, %c0_64] : memref<128x32xf32, #tpu.memory_space<vmem>>, vector<128x32xf32>
    tpu.vector_store %arg5[%c0_63, %c0_64], %384 {strides = array<i32>} : memref<128x32xf32, #tpu.memory_space<vmem>>, vector<128x32xf32>,
    return
  }
  func.func @transform_0(%arg0: i32) -> (i32, i32) {
    %c0_i32 = arith.constant 0 : i32
    %c0_i32_0 = arith.constant 0 : i32
    return %arg0, %c0_i32 : i32, i32
  }
  func.func @transform_1(%arg0: i32) -> (i32, i32) {
    %c0_i32 = arith.constant 0 : i32
    %c0_i32_0 = arith.constant 0 : i32
    return %arg0, %c0_i32 : i32, i32
  }
  func.func @transform_2(%arg0: i32) -> (i32, i32) {
    %c0_i32 = arith.constant 0 : i32
    %c0_i32_0 = arith.constant 0 : i32
    %c0_i32_1 = arith.constant 0 : i32
    return %c0_i32, %c0_i32_0 : i32, i32
  }
  func.func @transform_3(%arg0: i32) -> (i32, i32) {
    %c0_i32 = arith.constant 0 : i32
    %c0_i32_0 = arith.constant 0 : i32
    %c0_i32_1 = arith.constant 0 : i32
    return %c0_i32, %c0_i32_0 : i32, i32
  }
  func.func @transform_4(%arg0: i32) -> (i32, i32) {
    %c0_i32 = arith.constant 0 : i32
    %c0_i32_0 = arith.constant 0 : i32
    return %arg0, %c0_i32 : i32, i32
  }
}

</mosaic_0001>

<llo_original>
// kernel: tpu_custom_call.1
$region0: #{tpu_custom_call.1}
  #allocation0 [shape = 'u32[]', space=smem, size = 0x4, offset = 0x4, fixed_abs, tag = 'smem constant byte address 0x4 - core index']
  #allocation1 [shape = 'u32[144,128]{1,0:T(1,128)}', space=vmem, size = 0x12000, scoped, tag = 'internal scratch']
  %s0 = inlined_call_operand.vmem [shape: s32[256,8], index: 0, kind: input, shape index: {}]
  %s1 = inlined_call_operand.vmem [shape: s32[256,1], index: 1, kind: input, shape index: {}]
  %s2 = inlined_call_operand.vmem [shape: f32[48,128], index: 2, kind: input, shape index: {}]
  %s3 = inlined_call_operand.vmem [shape: f32[32,128], index: 3, kind: input, shape index: {}]
  %s4 = inlined_call_operand.vmem [shape: f32[256,32], index: 4, kind: output, shape index: {}]
  %s5 = sld [smem:[#allocation0]]
  $region49: #{tpu_custom_call.1} parent=0
    _
  %s7 = ssub.s32 1, %s5
  %s8 = scalar_select 0, %s7, %s5
  loop: start=0, step=1, limit=4
  $region2: #{tpu_custom_call.1} parent=0 // loop_pre_header
    _
  $region3: #{tpu_custom_call.1} parent=0 // loop_header
    %s10 = sphi 0, %s14
    %p11 = scmp.ge.s32.totalorder %s10, 4
    %s20 = sphi 0, %s22
    %s23 = sphi 0, %s20
    %s24 = sphi 0, %s23
    %s40 = sphi 0, %s24
    %s46 = sphi 0, %s48
    %s49 = sphi 0, %s46
    %s50 = sphi 0, %s49
    %s66 = sphi 0, %s50
    %s70 = sphi 0, %s70
    %s72 = sphi 0, %s70
    %s73 = sphi 0, %s72
    %s87 = sphi 0, %s73
    %s91 = sphi 0, %s91
    %s93 = sphi 0, %s91
    %s94 = sphi 0, %s93
    %s108 = sphi 0, %s94
    %s114 = sphi 0, %s116
    %s117 = sphi 0, %s114
    %s118 = sphi 0, %s117
    %s134 = sphi 0, %s118
  $region4: #{tpu_custom_call.1} parent=0 // loop_header_branch
    %13 = sbr.rel (%p11) target = $region8
  $region5: #{tpu_custom_call.1} parent=0 // loop_body
    %s15 = ssub.s32 %s10, 1
    %s16 = ssub.s32 %s10, 2
    %s17 = sadd.s32 %s10, 1
    %s18 = ssub.s32 %s10, %s17
    %p19 = scmp.eq.s32.totalorder %s18, 0
    %s21 = sadd.s32 %s20, 1
    %s22 = scalar_select %p19, %s20, %s21
    %p25 = pneg %p19
    %p26 = scmp.eq.s32.totalorder %s10, 1
    %p27 = por %p25, %p26
    %p28 = scmp.ne.s32.totalorder %s20, %s23
    %p29 = scmp.eq.s32.totalorder %s10, 0
    %p30 = por %p28, %p29
    %p31 = scmp.ne.s32.totalorder %s20, %s23
    %p32 = scmp.eq.s32.totalorder %s15, 1
    %p33 = por %p31, %p32
    %p34 = scmp.ne.s32.totalorder %s23, %s24
    %p35 = scmp.eq.s32.totalorder %s15, 0
    %p36 = por %p34, %p35
    %p37 = scmp.ne.s32.totalorder %s23, %s24
    %p38 = scmp.eq.s32.totalorder %s16, 1
    %p39 = por %p37, %p38
    %p41 = scmp.ne.s32.totalorder %s24, %s40
    %p42 = scmp.eq.s32.totalorder %s16, 0
    %p43 = por %p41, %p42
    %s44 = ssub.s32 %s10, %s17
    %p45 = scmp.eq.s32.totalorder %s44, 0
    %s47 = sadd.s32 %s46, 1
    %s48 = scalar_select %p45, %s46, %s47
    %p51 = pneg %p45
    %p52 = scmp.eq.s32.totalorder %s10, 1
    %p53 = por %p51, %p52
    %p54 = scmp.ne.s32.totalorder %s46, %s49
    %p55 = scmp.eq.s32.totalorder %s10, 0
    %p56 = por %p54, %p55
    %p57 = scmp.ne.s32.totalorder %s46, %s49
    %p58 = scmp.eq.s32.totalorder %s15, 1
    %p59 = por %p57, %p58
    %p60 = scmp.ne.s32.totalorder %s49, %s50
    %p61 = scmp.eq.s32.totalorder %s15, 0
    %p62 = por %p60, %p61
    %p63 = scmp.ne.s32.totalorder %s49, %s50
    %p64 = scmp.eq.s32.totalorder %s16, 1
    %p65 = por %p63, %p64
    %p67 = scmp.ne.s32.totalorder %s50, %s66
    %p68 = scmp.eq.s32.totalorder %s16, 0
    %p69 = por %p67, %p68
    %s71 = sadd.s32 %s70, 1
    %p74 = scmp.eq.s32.totalorder %s10, 1
    %p75 = scmp.ne.s32.totalorder %s70, %s72
    %p76 = scmp.eq.s32.totalorder %s10, 0
    %p77 = por %p75, %p76
    %p78 = scmp.ne.s32.totalorder %s70, %s72
    %p79 = scmp.eq.s32.totalorder %s15, 1
    %p80 = por %p78, %p79
    %p81 = scmp.ne.s32.totalorder %s72, %s73
    %p82 = scmp.eq.s32.totalorder %s15, 0
    %p83 = por %p81, %p82
    %p84 = scmp.ne.s32.totalorder %s72, %s73
    %p85 = scmp.eq.s32.totalorder %s16, 1
    %p86 = por %p84, %p85
    %p88 = scmp.ne.s32.totalorder %s73, %s87
    %p89 = scmp.eq.s32.totalorder %s16, 0
    %p90 = por %p88, %p89
    %s92 = sadd.s32 %s91, 1
    %p95 = scmp.eq.s32.totalorder %s10, 1
    %p96 = scmp.ne.s32.totalorder %s91, %s93
    %p97 = scmp.eq.s32.totalorder %s10, 0
    %p98 = por %p96, %p97
    %p99 = scmp.ne.s32.totalorder %s91, %s93
    %p100 = scmp.eq.s32.totalorder %s15, 1
    %p101 = por %p99, %p100
    %p102 = scmp.ne.s32.totalorder %s93, %s94
    %p103 = scmp.eq.s32.totalorder %s15, 0
    %p104 = por %p102, %p103
    %p105 = scmp.ne.s32.totalorder %s93, %s94
    %p106 = scmp.eq.s32.totalorder %s16, 1
    %p107 = por %p105, %p106
    %p109 = scmp.ne.s32.totalorder %s94, %s108
    %p110 = scmp.eq.s32.totalorder %s16, 0
    %p111 = por %p109, %p110
    %s112 = ssub.s32 %s10, %s17
    %p113 = scmp.eq.s32.totalorder %s112, 0
    %s115 = sadd.s32 %s114, 1
    %s116 = scalar_select %p113, %s114, %s115
    %p119 = pneg %p113
    %p120 = scmp.eq.s32.totalorder %s10, 1
    %p121 = por %p119, %p120
    %p122 = scmp.ne.s32.totalorder %s114, %s117
    %p123 = scmp.eq.s32.totalorder %s10, 0
    %p124 = por %p122, %p123
    %p125 = scmp.ne.s32.totalorder %s114, %s117
    %p126 = scmp.eq.s32.totalorder %s15, 1
    %p127 = por %p125, %p126
    %p128 = scmp.ne.s32.totalorder %s117, %s118
    %p129 = scmp.eq.s32.totalorder %s15, 0
    %p130 = por %p128, %p129
    %p131 = scmp.ne.s32.totalorder %s117, %s118
    %p132 = scmp.eq.s32.totalorder %s16, 1
    %p133 = por %p131, %p132
    %p135 = scmp.ne.s32.totalorder %s118, %s134
    %p136 = scmp.eq.s32.totalorder %s16, 0
    %p137 = por %p135, %p136
    %p138 = scmp.le.s32.totalorder 1, %s10
    %p139 = scmp.lt.s32.totalorder %s10, 3
    %p140 = pnand %p138, %p139
    %p141 = pneg %p140
    // Predicated region
    $region9: #{tpu_custom_call.1} parent=5 // pred_check
      _
    $region10: #{tpu_custom_call.1} parent=5 // pred_check_branch
      %143 = sbr.rel (%p140) target = $region12
    $region11: #{tpu_custom_call.1} parent=5 // pred_region
      %s144 = ssub.s32 %s10, 1
      // Predicated region
      $region13: #{tpu_custom_call.1} parent=11 // pred_check
        %p145 = pneg %p83
      $region14: #{tpu_custom_call.1} parent=11 // pred_check_branch
        %147 = sbr.rel (%p145) target = $region16
      $region15: #{tpu_custom_call.1} parent=11 // pred_region
        _
      $region16: #{tpu_custom_call.1} parent=11 // pred_fallthru
        _
      // Predicated region
      $region17: #{tpu_custom_call.1} parent=11 // pred_check
        %p148 = pneg %p104
      $region18: #{tpu_custom_call.1} parent=11 // pred_check_branch
        %150 = sbr.rel (%p148) target = $region20
      $region19: #{tpu_custom_call.1} parent=11 // pred_region
        _
      $region20: #{tpu_custom_call.1} parent=11 // pred_fallthru
        _
    $region12: #{tpu_custom_call.1} parent=5 // pred_fallthru
      _
    %p151 = scmp.lt.s32.totalorder %s10, 2
    // Predicated region
    $region21: #{tpu_custom_call.1} parent=5 // pred_check
      %p152 = pneg %p151
    $region22: #{tpu_custom_call.1} parent=5 // pred_check_branch
      %154 = sbr.rel (%p152) target = $region24
    $region23: #{tpu_custom_call.1} parent=5 // pred_region
      // Predicated region
      $region25: #{tpu_custom_call.1} parent=23 // pred_check
        %p155 = pneg %p30
      $region26: #{tpu_custom_call.1} parent=23 // pred_check_branch
        %157 = sbr.rel (%p155) target = $region28
      $region27: #{tpu_custom_call.1} parent=23 // pred_region
        %s158 = smul.u32 16, %s10
        %p159 = scmp.lt.s32.totalorder %s158, 31
        %s160 = scalar_select %p159, %s158, 31
        %s161 = smul.addr %s160, 8
        %s162 = scalar_lea.vmem %s0, %s161
        %s163 = smul.u32 16, %s10
      $region28: #{tpu_custom_call.1} parent=23 // pred_fallthru
        _
      // Predicated region
      $region29: #{tpu_custom_call.1} parent=23 // pred_check
        %p164 = pneg %p56
      $region30: #{tpu_custom_call.1} parent=23 // pred_check_branch
        %166 = sbr.rel (%p164) target = $region32
      $region31: #{tpu_custom_call.1} parent=23 // pred_region
        %s167 = smul.u32 16, %s10
        %p168 = scmp.lt.s32.totalorder %s167, 31
        %s169 = scalar_select %p168, %s167, 31
        %s170 = smul.addr %s169, 8
        %s171 = scalar_lea.vmem %s1, %s170
        %s172 = smul.u32 16, %s10
      $region32: #{tpu_custom_call.1} parent=23 // pred_fallthru
        _
    $region24: #{tpu_custom_call.1} parent=5 // pred_fallthru
      _
    %p173 = scmp.le.s32.totalorder 1, %s10
    %p174 = scmp.lt.s32.totalorder %s10, 3
    %p175 = pnand %p173, %p174
    %p176 = pneg %p175
    // Predicated region
    $region33: #{tpu_custom_call.1} parent=5 // pred_check
      _
    $region34: #{tpu_custom_call.1} parent=5 // pred_check_branch
      %178 = sbr.rel (%p175) target = $region36
    $region35: #{tpu_custom_call.1} parent=5 // pred_region
      %s179 = ssub.s32 %s10, 1
      %s180 = smul.u32 16, %s15
      %p181 = scmp.lt.s32.totalorder %s180, 31
      %s182 = scalar_select %p181, %s180, 31
      %s183 = smul.addr %s182, 8
      %s184 = scalar_lea.vmem %s0, %s183
      %p185 = pneg %p36
      %p186 = pneg %p33
      %s187 = smul.u32 16, %s15
      %p188 = scmp.lt.s32.totalorder %s187, 31
      %s189 = scalar_select %p188, %s187, 31
      %s190 = smul.addr %s189, 8
      %s191 = scalar_lea.vmem %s1, %s190
      %p192 = pneg %p62
      %p193 = pneg %p59
      %p194 = pneg %p83
      %p195 = pneg %p80
      %p196 = pneg %p104
      %p197 = pneg %p101
      %p198 = pneg %p130
      %p199 = pneg %p127
      %s200 = smul.u32 16, %s15
      %p201 = scmp.lt.s32.totalorder %s200, 31
      %s202 = scalar_select %p201, %s200, 31
      %s203 = smul.addr %s202, 8
      %s204 = scalar_lea.vmem %s4, %s203
      %s205 = smul.u32 16, %s15
      %p206 = scmp.lt.s32.totalorder %s205, 31
      %s207 = scalar_select %p206, %s205, 31
      %s208 = smul.addr %s207, 8
      %s209 = scalar_lea.vmem %s0, %s208
      %s210 = smul.u32 16, %s15
      %s211 = smul.u32 16, %s15
      %p212 = scmp.lt.s32.totalorder %s211, 31
      %s213 = scalar_select %p212, %s211, 31
      %s214 = smul.addr %s213, 8
      %s215 = scalar_lea.vmem %s1, %s214
      %s216 = smul.u32 16, %s15
      %s217 = smul.u32 16, %s15
      %p218 = scmp.lt.s32.totalorder %s217, 31
      %s219 = scalar_select %p218, %s217, 31
      %s220 = smul.addr %s219, 8
      %s221 = scalar_lea.vmem %s4, %s220
      %s222 = smul.u32 16, %s15
      %v223 = vld [vmem:[%s209] sm:$0xff]
      %v224 = vld [vmem:[%s209 + $0x8] sm:$0xff]
      %v225 = vld [vmem:[%s209 + $0x10] sm:$0xff]
      %v226 = vld [vmem:[%s209 + $0x18] sm:$0xff]
      %v227 = vld [vmem:[%s209 + $0x20] sm:$0xff]
      %v228 = vld [vmem:[%s209 + $0x28] sm:$0xff]
      %v229 = vld [vmem:[%s209 + $0x30] sm:$0xff]
      %v230 = vld [vmem:[%s209 + $0x38] sm:$0xff]
      %v231 = vld [vmem:[%s209 + $0x40] sm:$0xff]
      %v232 = vld [vmem:[%s209 + $0x48] sm:$0xff]
      %v233 = vld [vmem:[%s209 + $0x50] sm:$0xff]
      %v234 = vld [vmem:[%s209 + $0x58] sm:$0xff]
      %v235 = vld [vmem:[%s209 + $0x60] sm:$0xff]
      %v236 = vld [vmem:[%s209 + $0x68] sm:$0xff]
      %v237 = vld [vmem:[%s209 + $0x70] sm:$0xff]
      %v238 = vld [vmem:[%s209 + $0x78] sm:$0xff]
      %v239 = vld [vmem:[%s215] sm:$0xff]
      %v240 = vld [vmem:[%s215 + $0x8] sm:$0xff]
      %v241 = vld [vmem:[%s215 + $0x10] sm:$0xff]
      %v242 = vld [vmem:[%s215 + $0x18] sm:$0xff]
      %v243 = vld [vmem:[%s215 + $0x20] sm:$0xff]
      %v244 = vld [vmem:[%s215 + $0x28] sm:$0xff]
      %v245 = vld [vmem:[%s215 + $0x30] sm:$0xff]
      %v246 = vld [vmem:[%s215 + $0x38] sm:$0xff]
      %v247 = vld [vmem:[%s215 + $0x40] sm:$0xff]
      %v248 = vld [vmem:[%s215 + $0x48] sm:$0xff]
      %v249 = vld [vmem:[%s215 + $0x50] sm:$0xff]
      %v250 = vld [vmem:[%s215 + $0x58] sm:$0xff]
      %v251 = vld [vmem:[%s215 + $0x60] sm:$0xff]
      %v252 = vld [vmem:[%s215 + $0x68] sm:$0xff]
      %v253 = vld [vmem:[%s215 + $0x70] sm:$0xff]
      %v254 = vld [vmem:[%s215 + $0x78] sm:$0xff]
      %v255 = vld [vmem:[%s2] sm:$0xff]
      %v256 = vld [vmem:[%s2 + $0x8] sm:$0xff]
      %v257 = vld [vmem:[%s2 + $0x10] sm:$0xff]
      %v258 = vld [vmem:[%s2 + $0x18] sm:$0xff]
      %v259 = vld [vmem:[%s2 + $0x20] sm:$0xff]
      %v260 = vld [vmem:[%s2 + $0x28] sm:$0xff]
      %v261 = vld [vmem:[%s3] sm:$0xff]
      %v262 = vld [vmem:[%s3 + $0x8] sm:$0xff]
      %v263 = vld [vmem:[%s3 + $0x10] sm:$0xff]
      %v264 = vld [vmem:[%s3 + $0x18] sm:$0xff]
      %v265 = vlaneseq
      %v266 = vand.u32 %v265, 127
      %vm267 = vcmp.ge.s32.totalorder %v266, 16
      %268 = vset.pattern.permute.xlu0 0
      %269 = vperm.xlu0 %268, %v223
      %v270 = vpop.permute.xlu0 %269
      %271 = vset.pattern.permute.xlu0 0
      %272 = vperm.xlu0 %271, %v224
      %v273 = vpop.permute.xlu0 %272
      %274 = vset.pattern.permute.xlu0 0
      %275 = vperm.xlu0 %274, %v225
      %v276 = vpop.permute.xlu0 %275
      %277 = vset.pattern.permute.xlu0 0
      %278 = vperm.xlu0 %277, %v226
      %v279 = vpop.permute.xlu0 %278
      %280 = vset.pattern.permute.xlu0 0
      %281 = vperm.xlu0 %280, %v227
      %v282 = vpop.permute.xlu0 %281
      %283 = vset.pattern.permute.xlu0 0
      %284 = vperm.xlu0 %283, %v228
      %v285 = vpop.permute.xlu0 %284
      %286 = vset.pattern.permute.xlu0 0
      %287 = vperm.xlu0 %286, %v229
      %v288 = vpop.permute.xlu0 %287
      %289 = vset.pattern.permute.xlu0 0
      %290 = vperm.xlu0 %289, %v230
      %v291 = vpop.permute.xlu0 %290
      %292 = vset.pattern.permute.xlu0 0
      %293 = vperm.xlu0 %292, %v231
      %v294 = vpop.permute.xlu0 %293
      %295 = vset.pattern.permute.xlu0 0
      %296 = vperm.xlu0 %295, %v232
      %v297 = vpop.permute.xlu0 %296
      %298 = vset.pattern.permute.xlu0 0
      %299 = vperm.xlu0 %298, %v233
      %v300 = vpop.permute.xlu0 %299
      %301 = vset.pattern.permute.xlu0 0
      %302 = vperm.xlu0 %301, %v234
      %v303 = vpop.permute.xlu0 %302
      %304 = vset.pattern.permute.xlu0 0
      %305 = vperm.xlu0 %304, %v235
      %v306 = vpop.permute.xlu0 %305
      %307 = vset.pattern.permute.xlu0 0
      %308 = vperm.xlu0 %307, %v236
      %v309 = vpop.permute.xlu0 %308
      %310 = vset.pattern.permute.xlu0 0
      %311 = vperm.xlu0 %310, %v237
      %v312 = vpop.permute.xlu0 %311
      %313 = vset.pattern.permute.xlu0 0
      %314 = vperm.xlu0 %313, %v238
      %v315 = vpop.permute.xlu0 %314
      %vm316 = vcmp.eq.s32.totalorder %v266, %v270
      %vm317 = vcmp.eq.s32.totalorder %v266, %v273
      %vm318 = vcmp.eq.s32.totalorder %v266, %v276
      %vm319 = vcmp.eq.s32.totalorder %v266, %v279
      %vm320 = vcmp.eq.s32.totalorder %v266, %v282
      %vm321 = vcmp.eq.s32.totalorder %v266, %v285
      %vm322 = vcmp.eq.s32.totalorder %v266, %v288
      %vm323 = vcmp.eq.s32.totalorder %v266, %v291
      %vm324 = vcmp.eq.s32.totalorder %v266, %v294
      %vm325 = vcmp.eq.s32.totalorder %v266, %v297
      %vm326 = vcmp.eq.s32.totalorder %v266, %v300
      %vm327 = vcmp.eq.s32.totalorder %v266, %v303
      %vm328 = vcmp.eq.s32.totalorder %v266, %v306
      %vm329 = vcmp.eq.s32.totalorder %v266, %v309
      %vm330 = vcmp.eq.s32.totalorder %v266, %v312
      %vm331 = vcmp.eq.s32.totalorder %v266, %v315
      %v332 = vadd.s32 %v223, 24
      %v333 = vadd.s32 %v224, 24
      %v334 = vadd.s32 %v225, 24
      %v335 = vadd.s32 %v226, 24
      %v336 = vadd.s32 %v227, 24
      %v337 = vadd.s32 %v228, 24
      %v338 = vadd.s32 %v229, 24
      %v339 = vadd.s32 %v230, 24
      %v340 = vadd.s32 %v231, 24
      %v341 = vadd.s32 %v232, 24
      %v342 = vadd.s32 %v233, 24
      %v343 = vadd.s32 %v234, 24
      %v344 = vadd.s32 %v235, 24
      %v345 = vadd.s32 %v236, 24
      %v346 = vadd.s32 %v237, 24
      %v347 = vadd.s32 %v238, 24
      %348 = vset.pattern.permute.xlu0 7
      %349 = vperm.xlu0 %348, %v332
      %v350 = vpop.permute.xlu0 %349
      %351 = vset.pattern.permute.xlu0 7
      %352 = vperm.xlu0 %351, %v333
      %v353 = vpop.permute.xlu0 %352
      %354 = vset.pattern.permute.xlu0 7
      %355 = vperm.xlu0 %354, %v334
      %v356 = vpop.permute.xlu0 %355
      %357 = vset.pattern.permute.xlu0 7
      %358 = vperm.xlu0 %357, %v335
      %v359 = vpop.permute.xlu0 %358
      %360 = vset.pattern.permute.xlu0 7
      %361 = vperm.xlu0 %360, %v336
      %v362 = vpop.permute.xlu0 %361
      %363 = vset.pattern.permute.xlu0 7
      %364 = vperm.xlu0 %363, %v337
      %v365 = vpop.permute.xlu0 %364
      %366 = vset.pattern.permute.xlu0 7
      %367 = vperm.xlu0 %366, %v338
      %v368 = vpop.permute.xlu0 %367
      %369 = vset.pattern.permute.xlu0 7
      %370 = vperm.xlu0 %369, %v339
      %v371 = vpop.permute.xlu0 %370
      %372 = vset.pattern.permute.xlu0 7
      %373 = vperm.xlu0 %372, %v340
      %v374 = vpop.permute.xlu0 %373
      %375 = vset.pattern.permute.xlu0 7
      %376 = vperm.xlu0 %375, %v341
      %v377 = vpop.permute.xlu0 %376
      %378 = vset.pattern.permute.xlu0 7
      %379 = vperm.xlu0 %378, %v342
      %v380 = vpop.permute.xlu0 %379
      %381 = vset.pattern.permute.xlu0 7
      %382 = vperm.xlu0 %381, %v343
      %v383 = vpop.permute.xlu0 %382
      %384 = vset.pattern.permute.xlu0 7
      %385 = vperm.xlu0 %384, %v344
      %v386 = vpop.permute.xlu0 %385
      %387 = vset.pattern.permute.xlu0 7
      %388 = vperm.xlu0 %387, %v345
      %v389 = vpop.permute.xlu0 %388
      %390 = vset.pattern.permute.xlu0 7
      %391 = vperm.xlu0 %390, %v346
      %v392 = vpop.permute.xlu0 %391
      %393 = vset.pattern.permute.xlu0 7
      %394 = vperm.xlu0 %393, %v347
      %v395 = vpop.permute.xlu0 %394
      %vm396 = vcmp.eq.s32.totalorder %v266, %v350
      %vm397 = vcmp.eq.s32.totalorder %v266, %v353
      %vm398 = vcmp.eq.s32.totalorder %v266, %v356
      %vm399 = vcmp.eq.s32.totalorder %v266, %v359
      %vm400 = vcmp.eq.s32.totalorder %v266, %v362
      %vm401 = vcmp.eq.s32.totalorder %v266, %v365
      %vm402 = vcmp.eq.s32.totalorder %v266, %v368
      %vm403 = vcmp.eq.s32.totalorder %v266, %v371
      %vm404 = vcmp.eq.s32.totalorder %v266, %v374
      %vm405 = vcmp.eq.s32.totalorder %v266, %v377
      %vm406 = vcmp.eq.s32.totalorder %v266, %v380
      %vm407 = vcmp.eq.s32.totalorder %v266, %v383
      %vm408 = vcmp.eq.s32.totalorder %v266, %v386
      %vm409 = vcmp.eq.s32.totalorder %v266, %v389
      %vm410 = vcmp.eq.s32.totalorder %v266, %v392
      %vm411 = vcmp.eq.s32.totalorder %v266, %v395
      %vm412 = vmor %vm316, %vm396
      %vm413 = vmor %vm317, %vm397
      %vm414 = vmor %vm318, %vm398
      %vm415 = vmor %vm319, %vm399
      %vm416 = vmor %vm320, %vm400
      %vm417 = vmor %vm321, %vm401
      %vm418 = vmor %vm322, %vm402
      %vm419 = vmor %vm323, %vm403
      %vm420 = vmor %vm324, %vm404
      %vm421 = vmor %vm325, %vm405
      %vm422 = vmor %vm326, %vm406
      %vm423 = vmor %vm327, %vm407
      %vm424 = vmor %vm328, %vm408
      %vm425 = vmor %vm329, %vm409
      %vm426 = vmor %vm330, %vm410
      %vm427 = vmor %vm331, %vm411
      %v428 = vsel %vm412, 1, 0
      %v429 = vsel %vm413, 1, 0
      %v430 = vsel %vm414, 1, 0
      %v431 = vsel %vm415, 1, 0
      %v432 = vsel %vm416, 1, 0
      %v433 = vsel %vm417, 1, 0
      %v434 = vsel %vm418, 1, 0
      %v435 = vsel %vm419, 1, 0
      %v436 = vsel %vm420, 1, 0
      %v437 = vsel %vm421, 1, 0
      %v438 = vsel %vm422, 1, 0
      %v439 = vsel %vm423, 1, 0
      %v440 = vsel %vm424, 1, 0
      %v441 = vsel %vm425, 1, 0
      %v442 = vsel %vm426, 1, 0
      %v443 = vsel %vm427, 1, 0
      %v444 = vcvt.s32.f32 %v428
      %v445 = vcvt.s32.f32 %v429
      %v446 = vcvt.s32.f32 %v430
      %v447 = vcvt.s32.f32 %v431
      %v448 = vcvt.s32.f32 %v432
      %v449 = vcvt.s32.f32 %v433
      %v450 = vcvt.s32.f32 %v434
      %v451 = vcvt.s32.f32 %v435
      %v452 = vcvt.s32.f32 %v436
      %v453 = vcvt.s32.f32 %v437
      %v454 = vcvt.s32.f32 %v438
      %v455 = vcvt.s32.f32 %v439
      %v456 = vcvt.s32.f32 %v440
      %v457 = vcvt.s32.f32 %v441
      %v458 = vcvt.s32.f32 %v442
      %v459 = vcvt.s32.f32 %v443
      %vm460 = vcmask 261120
      %v462 = vsel %vm460, 0.0, 0
      %464 = vmatprep.subr.mxu0 0.0
      %465 = vmatpush1.msra.mxu0 0.0
      %466 = vmatprep.subr.mxu0 0.0
      %467 = vmatpush1.msra.mxu0 0.0
      %468 = vmatprep.subr.mxu0 0.0
      %469 = vmatpush1.msra.mxu0 0.0
      %470 = vmatprep.subr.mxu0 0.0
      %471 = vmatpush1.msra.mxu0 0.0
      %472 = vmatprep.subr.mxu0 0.0
      %473 = vmatpush1.msra.mxu0 0.0
      %474 = vmatprep.subr.mxu0 0.0
      %475 = vmatpush1.msra.mxu0 0.0
      %476 = vmatprep.subr.mxu0 0.0
      %477 = vmatpush1.msra.mxu0 0.0
      %478 = vmatprep.subr.mxu0 0.0
      %479 = vmatpush1.msra.mxu0 0.0
      %480 = vmatprep.subr.mxu0 0.0
      %481 = vmatpush1.msra.mxu0 0.0
      %482 = vmatprep.subr.mxu0 0.0
      %483 = vmatpush1.msra.mxu0 0.0
      %484 = vmatprep.subr.mxu0 0.0
      %485 = vmatpush1.msra.mxu0 0.0
      %486 = vmatprep.subr.mxu0 0.0
      %487 = vmatpush1.msra.mxu0 0.0
      %488 = vmatprep.subr.mxu0 0.0
      %489 = vmatpush1.msra.mxu0 %v264
      %490 = vmatprep.subr.mxu0 0.0
      %491 = vmatpush1.msra.mxu0 %v263
      %492 = vmatprep.subr.mxu0 0.0
      %493 = vmatpush1.msra.mxu0 %v262
      %494 = vmatprep.subr.mxu0 0.0
      %495 = vmatpush1.msra.mxu0 %v261
      %496 = vmatprep.subr.mxu0 0.0
      %497 = vmatpush2.msra.mxu0 0.0
      %498 = vmatprep.subr.mxu0 0.0
      %499 = vmatpush2.msra.mxu0 0.0
      %500 = vmatprep.subr.mxu0 0.0
      %501 = vmatpush2.msra.mxu0 0.0
      %502 = vmatprep.subr.mxu0 0.0
      %503 = vmatpush2.msra.mxu0 0.0
      %504 = vmatprep.subr.mxu0 0.0
      %505 = vmatpush2.msra.mxu0 0.0
      %506 = vmatprep.subr.mxu0 0.0
      %507 = vmatpush2.msra.mxu0 0.0
      %508 = vmatprep.subr.mxu0 0.0
      %509 = vmatpush2.msra.mxu0 0.0
      %510 = vmatprep.subr.mxu0 0.0
      %511 = vmatpush2.msra.mxu0 0.0
      %512 = vmatprep.subr.mxu0 0.0
      %513 = vmatpush2.msra.mxu0 0.0
      %514 = vmatprep.subr.mxu0 0.0
      %515 = vmatpush2.msra.mxu0 0.0
      %516 = vmatprep.subr.mxu0 0.0
      %517 = vmatpush2.msra.mxu0 0.0
      %518 = vmatprep.subr.mxu0 0.0
      %519 = vmatpush2.msra.mxu0 0.0
      %520 = vmatprep.subr.mxu0 0.0
      %521 = vmatpush2.msra.mxu0 0.0
      %522 = vmatprep.subr.mxu0 0.0
      %523 = vmatpush2.msra.mxu0 0.0
      %524 = vmatprep.subr.mxu0 0.0
      %525 = vmatpush2.msra.mxu0 0.0
      %526 = vmatprep.subr.mxu0 0.0
      %527 = vmatpush2.msra.mxu0 0.0
      %528 = vmatprep.mubr.f32.mxu0 0.0
      %529 = vmatmul.mubr.f32.gmra.mxu0 %v462
      %v530 = vpop.f32.mrf.mxu0
      %v531 = vadd.f32 0.0, %v530
      %v532 = vpop.f32.mrf.mxu0
      %533 = vmatprep.mubr.f32.mxu0 0.0
      %534 = vmatmul.mubr.f32.gmra.mxu0 %v462
      %v535 = vpop.f32.mrf.mxu0
      %v536 = vadd.f32 0.0, %v535
      %v537 = vpop.f32.mrf.mxu0
      %538 = vmatprep.mubr.f32.mxu0 0.0
      %539 = vmatmul.mubr.f32.gmra.mxu0 %v462
      %v540 = vpop.f32.mrf.mxu0
      %v541 = vadd.f32 0.0, %v540
      %v542 = vpop.f32.mrf.mxu0
      %543 = vmatprep.mubr.f32.mxu0 0.0
      %544 = vmatmul.mubr.f32.gmra.mxu0 %v462
      %v545 = vpop.f32.mrf.mxu0
      %v546 = vadd.f32 0.0, %v545
      %v547 = vpop.f32.mrf.mxu0
      %548 = vmatprep.mubr.f32.mxu0 0.0
      %549 = vmatmul.mubr.f32.gmra.mxu0 %v462
      %v550 = vpop.f32.mrf.mxu0
      %v551 = vadd.f32 0.0, %v550
      %v552 = vpop.f32.mrf.mxu0
      %553 = vmatprep.mubr.f32.mxu0 0.0
      %554 = vmatmul.mubr.f32.gmra.mxu0 %v462
      %v555 = vpop.f32.mrf.mxu0
      %v556 = vadd.f32 0.0, %v555
      %v557 = vpop.f32.mrf.mxu0
      %558 = vmatprep.mubr.f32.mxu0 0.0
      %559 = vmatmul.mubr.f32.gmra.mxu0 %v462
      %v560 = vpop.f32.mrf.mxu0
      %v561 = vadd.f32 0.0, %v560
      %v562 = vpop.f32.mrf.mxu0
      %563 = vmatprep.mubr.f32.mxu0 0.0
      %564 = vmatmul.mubr.f32.gmra.mxu0 %v462
      %v565 = vpop.f32.mrf.mxu0
      %v566 = vadd.f32 0.0, %v565
      %v567 = vpop.f32.mrf.mxu0
      %568 = vmatprep.mubr.f32.mxu0 0.0
      %569 = vmatmul.mubr.f32.gmra.mxu0 %v462
      %v570 = vpop.f32.mrf.mxu0
      %v571 = vadd.f32 0.0, %v570
      %v572 = vpop.f32.mrf.mxu0
      %573 = vmatprep.mubr.f32.mxu0 0.0
      %574 = vmatmul.mubr.f32.gmra.mxu0 %v462
      %v575 = vpop.f32.mrf.mxu0
      %v576 = vadd.f32 0.0, %v575
      %v577 = vpop.f32.mrf.mxu0
      %578 = vmatprep.mubr.f32.mxu0 0.0
      %579 = vmatmul.mubr.f32.gmra.mxu0 %v462
      %v580 = vpop.f32.mrf.mxu0
      %v581 = vadd.f32 0.0, %v580
      %v582 = vpop.f32.mrf.mxu0
      %583 = vmatprep.mubr.f32.mxu0 0.0
      %584 = vmatmul.mubr.f32.gmra.mxu0 %v462
      %v585 = vpop.f32.mrf.mxu0
      %v586 = vadd.f32 0.0, %v585
      %v587 = vpop.f32.mrf.mxu0
      %588 = vmatprep.mubr.f32.mxu0 0.0
      %589 = vmatmul.mubr.f32.gmra.mxu0 %v462
      %v590 = vpop.f32.mrf.mxu0
      %v591 = vadd.f32 0.0, %v590
      %v592 = vpop.f32.mrf.mxu0
      %593 = vmatprep.mubr.f32.mxu0 0.0
      %594 = vmatmul.mubr.f32.gmra.mxu0 %v462
      %v595 = vpop.f32.mrf.mxu0
      %v596 = vadd.f32 0.0, %v595
      %v597 = vpop.f32.mrf.mxu0
      %598 = vmatprep.mubr.f32.mxu0 0.0
      %599 = vmatmul.mubr.f32.gmra.mxu0 %v462
      %v600 = vpop.f32.mrf.mxu0
      %v601 = vadd.f32 0.0, %v600
      %v602 = vpop.f32.mrf.mxu0
      %603 = vmatprep.mubr.f32.mxu0 0.0
      %604 = vmatmul.mubr.f32.gmra.mxu0 %v462
      %v605 = vpop.f32.mrf.mxu0
      %v606 = vadd.f32 0.0, %v605
      %v607 = vpop.f32.mrf.mxu0
      %608 = vdwg.mxu0
      %vm609 = vcmask 392192
      %v611 = vsel %vm609, %v444, 0
      %v614 = vsel %vm609, %v445, 0
      %v617 = vsel %vm609, %v446, 0
      %v620 = vsel %vm609, %v447, 0
      %v623 = vsel %vm609, %v448, 0
      %v626 = vsel %vm609, %v449, 0
      %v629 = vsel %vm609, %v450, 0
      %v632 = vsel %vm609, %v451, 0
      %v635 = vsel %vm609, %v452, 0
      %v638 = vsel %vm609, %v453, 0
      %v641 = vsel %vm609, %v454, 0
      %v644 = vsel %vm609, %v455, 0
      %v647 = vsel %vm609, %v456, 0
      %v650 = vsel %vm609, %v457, 0
      %v653 = vsel %vm609, %v458, 0
      %v656 = vsel %vm609, %v459, 0
      %658 = vmatprep.subr.mxu0 0.0
      %659 = vmatpush1.msra.mxu0 0.0
      %660 = vmatprep.subr.mxu0 0.0
      %661 = vmatpush1.msra.mxu0 0.0
      %662 = vmatprep.subr.mxu0 0.0
      %663 = vmatpush1.msra.mxu0 0.0
      %664 = vmatprep.subr.mxu0 0.0
      %665 = vmatpush1.msra.mxu0 0.0
      %666 = vmatprep.subr.mxu0 0.0
      %667 = vmatpush1.msra.mxu0 0.0
      %668 = vmatprep.subr.mxu0 0.0
      %669 = vmatpush1.msra.mxu0 0.0
      %670 = vmatprep.subr.mxu0 0.0
      %671 = vmatpush1.msra.mxu0 0.0
      %672 = vmatprep.subr.mxu0 0.0
      %673 = vmatpush1.msra.mxu0 0.0
      %674 = vmatprep.subr.mxu0 0.0
      %675 = vmatpush1.msra.mxu0 0.0
      %676 = vmatprep.subr.mxu0 0.0
      %677 = vmatpush1.msra.mxu0 0.0
      %678 = vmatprep.subr.mxu0 0.0
      %679 = vmatpush1.msra.mxu0 %v260
      %680 = vmatprep.subr.mxu0 0.0
      %681 = vmatpush1.msra.mxu0 %v259
      %682 = vmatprep.subr.mxu0 0.0
      %683 = vmatpush1.msra.mxu0 %v258
      %684 = vmatprep.subr.mxu0 0.0
      %685 = vmatpush1.msra.mxu0 %v257
      %686 = vmatprep.subr.mxu0 0.0
      %687 = vmatpush1.msra.mxu0 %v256
      %688 = vmatprep.subr.mxu0 0.0
      %689 = vmatpush1.msra.mxu0 %v255
      %690 = vmatprep.subr.mxu0 0.0
      %691 = vmatpush2.msra.mxu0 0.0
      %692 = vmatprep.subr.mxu0 0.0
      %693 = vmatpush2.msra.mxu0 0.0
      %694 = vmatprep.subr.mxu0 0.0
      %695 = vmatpush2.msra.mxu0 0.0
      %696 = vmatprep.subr.mxu0 0.0
      %697 = vmatpush2.msra.mxu0 0.0
      %698 = vmatprep.subr.mxu0 0.0
      %699 = vmatpush2.msra.mxu0 0.0
      %700 = vmatprep.subr.mxu0 0.0
      %701 = vmatpush2.msra.mxu0 0.0
      %702 = vmatprep.subr.mxu0 0.0
      %703 = vmatpush2.msra.mxu0 0.0
      %704 = vmatprep.subr.mxu0 0.0
      %705 = vmatpush2.msra.mxu0 0.0
      %706 = vmatprep.subr.mxu0 0.0
      %707 = vmatpush2.msra.mxu0 0.0
      %708 = vmatprep.subr.mxu0 0.0
      %709 = vmatpush2.msra.mxu0 0.0
      %710 = vmatprep.subr.mxu0 0.0
      %711 = vmatpush2.msra.mxu0 0.0
      %712 = vmatprep.subr.mxu0 0.0
      %713 = vmatpush2.msra.mxu0 0.0
      %714 = vmatprep.subr.mxu0 0.0
      %715 = vmatpush2.msra.mxu0 0.0
      %716 = vmatprep.subr.mxu0 0.0
      %717 = vmatpush2.msra.mxu0 0.0
      %718 = vmatprep.subr.mxu0 0.0
      %719 = vmatpush2.msra.mxu0 0.0
      %720 = vmatprep.subr.mxu0 0.0
      %721 = vmatpush2.msra.mxu0 0.0
      %722 = vmatprep.mubr.f32.mxu0 0.0
      %723 = vmatmul.mubr.f32.gmra.mxu0 %v611
      %v724 = vpop.f32.mrf.mxu0
      %v725 = vadd.f32 %v531, %v724
      %v726 = vpop.f32.mrf.mxu0
      %727 = vmatprep.mubr.f32.mxu0 0.0
      %728 = vmatmul.mubr.f32.gmra.mxu0 %v614
      %v729 = vpop.f32.mrf.mxu0
      %v730 = vadd.f32 %v536, %v729
      %v731 = vpop.f32.mrf.mxu0
      %732 = vmatprep.mubr.f32.mxu0 0.0
      %733 = vmatmul.mubr.f32.gmra.mxu0 %v617
      %v734 = vpop.f32.mrf.mxu0
      %v735 = vadd.f32 %v541, %v734
      %v736 = vpop.f32.mrf.mxu0
      %737 = vmatprep.mubr.f32.mxu0 0.0
      %738 = vmatmul.mubr.f32.gmra.mxu0 %v620
      %v739 = vpop.f32.mrf.mxu0
      %v740 = vadd.f32 %v546, %v739
      %v741 = vpop.f32.mrf.mxu0
      %742 = vmatprep.mubr.f32.mxu0 0.0
      %743 = vmatmul.mubr.f32.gmra.mxu0 %v623
      %v744 = vpop.f32.mrf.mxu0
      %v745 = vadd.f32 %v551, %v744
      %v746 = vpop.f32.mrf.mxu0
      %747 = vmatprep.mubr.f32.mxu0 0.0
      %748 = vmatmul.mubr.f32.gmra.mxu0 %v626
      %v749 = vpop.f32.mrf.mxu0
      %v750 = vadd.f32 %v556, %v749
      %v751 = vpop.f32.mrf.mxu0
      %752 = vmatprep.mubr.f32.mxu0 0.0
      %753 = vmatmul.mubr.f32.gmra.mxu0 %v629
      %v754 = vpop.f32.mrf.mxu0
      %v755 = vadd.f32 %v561, %v754
      %v756 = vpop.f32.mrf.mxu0
      %757 = vmatprep.mubr.f32.mxu0 0.0
      %758 = vmatmul.mubr.f32.gmra.mxu0 %v632
      %v759 = vpop.f32.mrf.mxu0
      %v760 = vadd.f32 %v566, %v759
      %v761 = vpop.f32.mrf.mxu0
      %762 = vmatprep.mubr.f32.mxu0 0.0
      %763 = vmatmul.mubr.f32.gmra.mxu0 %v635
      %v764 = vpop.f32.mrf.mxu0
      %v765 = vadd.f32 %v571, %v764
      %v766 = vpop.f32.mrf.mxu0
      %767 = vmatprep.mubr.f32.mxu0 0.0
      %768 = vmatmul.mubr.f32.gmra.mxu0 %v638
      %v769 = vpop.f32.mrf.mxu0
      %v770 = vadd.f32 %v576, %v769
      %v771 = vpop.f32.mrf.mxu0
      %772 = vmatprep.mubr.f32.mxu0 0.0
      %773 = vmatmul.mubr.f32.gmra.mxu0 %v641
      %v774 = vpop.f32.mrf.mxu0
      %v775 = vadd.f32 %v581, %v774
      %v776 = vpop.f32.mrf.mxu0
      %777 = vmatprep.mubr.f32.mxu0 0.0
      %778 = vmatmul.mubr.f32.gmra.mxu0 %v644
      %v779 = vpop.f32.mrf.mxu0
      %v780 = vadd.f32 %v586, %v779
      %v781 = vpop.f32.mrf.mxu0
      %782 = vmatprep.mubr.f32.mxu0 0.0
      %783 = vmatmul.mubr.f32.gmra.mxu0 %v647
      %v784 = vpop.f32.mrf.mxu0
      %v785 = vadd.f32 %v591, %v784
      %v786 = vpop.f32.mrf.mxu0
      %787 = vmatprep.mubr.f32.mxu0 0.0
      %788 = vmatmul.mubr.f32.gmra.mxu0 %v650
      %v789 = vpop.f32.mrf.mxu0
      %v790 = vadd.f32 %v596, %v789
      %v791 = vpop.f32.mrf.mxu0
      %792 = vmatprep.mubr.f32.mxu0 0.0
      %793 = vmatmul.mubr.f32.gmra.mxu0 %v653
      %v794 = vpop.f32.mrf.mxu0
      %v795 = vadd.f32 %v601, %v794
      %v796 = vpop.f32.mrf.mxu0
      %797 = vmatprep.mubr.f32.mxu0 0.0
      %798 = vmatmul.mubr.f32.gmra.mxu0 %v656
      %v799 = vpop.f32.mrf.mxu0
      %v800 = vadd.f32 %v606, %v799
      %v801 = vpop.f32.mrf.mxu0
      %802 = vdwg.mxu0
      %v803 = vxor.u32 %v725, 2147483648
      %v804 = vxor.u32 %v730, 2147483648
      %v805 = vxor.u32 %v735, 2147483648
      %v806 = vxor.u32 %v740, 2147483648
      %v807 = vxor.u32 %v745, 2147483648
      %v808 = vxor.u32 %v750, 2147483648
      %v809 = vxor.u32 %v755, 2147483648
      %v810 = vxor.u32 %v760, 2147483648
      %v811 = vxor.u32 %v765, 2147483648
      %v812 = vxor.u32 %v770, 2147483648
      %v813 = vxor.u32 %v775, 2147483648
      %v814 = vxor.u32 %v780, 2147483648
      %v815 = vxor.u32 %v785, 2147483648
      %v816 = vxor.u32 %v790, 2147483648
      %v817 = vxor.u32 %v795, 2147483648
      %v818 = vxor.u32 %v800, 2147483648
      %v819 = vmul.f32 %v803, 1.442695
      %v820 = vpow.pop %v819
      %v821 = vmul.f32 %v804, 1.442695
      %v822 = vpow.pop %v821
      %v823 = vmul.f32 %v805, 1.442695
      %v824 = vpow.pop %v823
      %v825 = vmul.f32 %v806, 1.442695
      %v826 = vpow.pop %v825
      %v827 = vmul.f32 %v807, 1.442695
      %v828 = vpow.pop %v827
      %v829 = vmul.f32 %v808, 1.442695
      %v830 = vpow.pop %v829
      %v831 = vmul.f32 %v809, 1.442695
      %v832 = vpow.pop %v831
      %v833 = vmul.f32 %v810, 1.442695
      %v834 = vpow.pop %v833
      %v835 = vmul.f32 %v811, 1.442695
      %v836 = vpow.pop %v835
      %v837 = vmul.f32 %v812, 1.442695
      %v838 = vpow.pop %v837
      %v839 = vmul.f32 %v813, 1.442695
      %v840 = vpow.pop %v839
      %v841 = vmul.f32 %v814, 1.442695
      %v842 = vpow.pop %v841
      %v843 = vmul.f32 %v815, 1.442695
      %v844 = vpow.pop %v843
      %v845 = vmul.f32 %v816, 1.442695
      %v846 = vpow.pop %v845
      %v847 = vmul.f32 %v817, 1.442695
      %v848 = vpow.pop %v847
      %v849 = vmul.f32 %v818, 1.442695
      %v850 = vpow.pop %v849
      %v851 = vadd.f32 %v820, 1.0
      %v852 = vadd.f32 %v822, 1.0
      %v853 = vadd.f32 %v824, 1.0
      %v854 = vadd.f32 %v826, 1.0
      %v855 = vadd.f32 %v828, 1.0
      %v856 = vadd.f32 %v830, 1.0
      %v857 = vadd.f32 %v832, 1.0
      %v858 = vadd.f32 %v834, 1.0
      %v859 = vadd.f32 %v836, 1.0
      %v860 = vadd.f32 %v838, 1.0
      %v861 = vadd.f32 %v840, 1.0
      %v862 = vadd.f32 %v842, 1.0
      %v863 = vadd.f32 %v844, 1.0
      %v864 = vadd.f32 %v846, 1.0
      %v865 = vadd.f32 %v848, 1.0
      %v866 = vadd.f32 %v850, 1.0
      %v867 = vrcp.pop %v851
      %v868 = vmul.f32 1.0, %v867
      %v869 = vrcp.pop %v852
      %v870 = vmul.f32 1.0, %v869
      %v871 = vrcp.pop %v853
      %v872 = vmul.f32 1.0, %v871
      %v873 = vrcp.pop %v854
      %v874 = vmul.f32 1.0, %v873
      %v875 = vrcp.pop %v855
      %v876 = vmul.f32 1.0, %v875
      %v877 = vrcp.pop %v856
      %v878 = vmul.f32 1.0, %v877
      %v879 = vrcp.pop %v857
      %v880 = vmul.f32 1.0, %v879
      %v881 = vrcp.pop %v858
      %v882 = vmul.f32 1.0, %v881
      %v883 = vrcp.pop %v859
      %v884 = vmul.f32 1.0, %v883
      %v885 = vrcp.pop %v860
      %v886 = vmul.f32 1.0, %v885
      %v887 = vrcp.pop %v861
      %v888 = vmul.f32 1.0, %v887
      %v889 = vrcp.pop %v862
      %v890 = vmul.f32 1.0, %v889
      %v891 = vrcp.pop %v863
      %v892 = vmul.f32 1.0, %v891
      %v893 = vrcp.pop %v864
      %v894 = vmul.f32 1.0, %v893
      %v895 = vrcp.pop %v865
      %v896 = vmul.f32 1.0, %v895
      %v897 = vrcp.pop %v866
      %v898 = vmul.f32 1.0, %v897
      %v899 = vtanh.pop %v725
      %v900 = vtanh.pop %v730
      %v901 = vtanh.pop %v735
      %v902 = vtanh.pop %v740
      %v903 = vtanh.pop %v745
      %v904 = vtanh.pop %v750
      %v905 = vtanh.pop %v755
      %v906 = vtanh.pop %v760
      %v907 = vtanh.pop %v765
      %v908 = vtanh.pop %v770
      %v909 = vtanh.pop %v775
      %v910 = vtanh.pop %v780
      %v911 = vtanh.pop %v785
      %v912 = vtanh.pop %v790
      %v913 = vtanh.pop %v795
      %v914 = vtanh.pop %v800
      %v915 = vmul.f32 %v868, 0.0
      %v916 = vmul.f32 %v870, 0.0
      %v917 = vmul.f32 %v872, 0.0
      %v918 = vmul.f32 %v874, 0.0
      %v919 = vmul.f32 %v876, 0.0
      %v920 = vmul.f32 %v878, 0.0
      %v921 = vmul.f32 %v880, 0.0
      %v922 = vmul.f32 %v882, 0.0
      %v923 = vmul.f32 %v884, 0.0
      %v924 = vmul.f32 %v886, 0.0
      %v925 = vmul.f32 %v888, 0.0
      %v926 = vmul.f32 %v890, 0.0
      %v927 = vmul.f32 %v892, 0.0
      %v928 = vmul.f32 %v894, 0.0
      %v929 = vmul.f32 %v896, 0.0
      %v930 = vmul.f32 %v898, 0.0
      %947 = vrot.lane.b32.xlu0 %v899, 32
      %v948 = vpop.permute.xlu0 %947
      %949 = vrot.lane.b32.xlu0 %v900, 32
      %v950 = vpop.permute.xlu0 %949
      %951 = vrot.lane.b32.xlu0 %v901, 32
      %v952 = vpop.permute.xlu0 %951
      %953 = vrot.lane.b32.xlu0 %v902, 32
      %v954 = vpop.permute.xlu0 %953
      %955 = vrot.lane.b32.xlu0 %v903, 32
      %v956 = vpop.permute.xlu0 %955
      %957 = vrot.lane.b32.xlu0 %v904, 32
      %v958 = vpop.permute.xlu0 %957
      %959 = vrot.lane.b32.xlu0 %v905, 32
      %v960 = vpop.permute.xlu0 %959
      %961 = vrot.lane.b32.xlu0 %v906, 32
      %v962 = vpop.permute.xlu0 %961
      %963 = vrot.lane.b32.xlu0 %v907, 32
      %v964 = vpop.permute.xlu0 %963
      %965 = vrot.lane.b32.xlu0 %v908, 32
      %v966 = vpop.permute.xlu0 %965
      %967 = vrot.lane.b32.xlu0 %v909, 32
      %v968 = vpop.permute.xlu0 %967
      %969 = vrot.lane.b32.xlu0 %v910, 32
      %v970 = vpop.permute.xlu0 %969
      %971 = vrot.lane.b32.xlu0 %v911, 32
      %v972 = vpop.permute.xlu0 %971
      %973 = vrot.lane.b32.xlu0 %v912, 32
      %v974 = vpop.permute.xlu0 %973
      %975 = vrot.lane.b32.xlu0 %v913, 32
      %v976 = vpop.permute.xlu0 %975
      %977 = vrot.lane.b32.xlu0 %v914, 32
      %v978 = vpop.permute.xlu0 %977
      %v995 = vmul.f32 %v868, %v948
      %v996 = vmul.f32 %v870, %v950
      %v997 = vmul.f32 %v872, %v952
      %v998 = vmul.f32 %v874, %v954
      %v999 = vmul.f32 %v876, %v956
      %v1000 = vmul.f32 %v878, %v958
      %v1001 = vmul.f32 %v880, %v960
      %v1002 = vmul.f32 %v882, %v962
      %v1003 = vmul.f32 %v884, %v964
      %v1004 = vmul.f32 %v886, %v966
      %v1005 = vmul.f32 %v888, %v968
      %v1006 = vmul.f32 %v890, %v970
      %v1007 = vmul.f32 %v892, %v972
      %v1008 = vmul.f32 %v894, %v974
      %v1009 = vmul.f32 %v896, %v976
      %v1010 = vmul.f32 %v898, %v978
      %1027 = vrot.lane.b32.xlu0 %v995, 32
      %v1028 = vpop.permute.xlu0 %1027
      %1029 = vrot.lane.b32.xlu0 %v996, 32
      %v1030 = vpop.permute.xlu0 %1029
      %1031 = vrot.lane.b32.xlu0 %v997, 32
      %v1032 = vpop.permute.xlu0 %1031
      %1033 = vrot.lane.b32.xlu0 %v998, 32
      %v1034 = vpop.permute.xlu0 %1033
      %1035 = vrot.lane.b32.xlu0 %v999, 32
      %v1036 = vpop.permute.xlu0 %1035
      %1037 = vrot.lane.b32.xlu0 %v1000, 32
      %v1038 = vpop.permute.xlu0 %1037
      %1039 = vrot.lane.b32.xlu0 %v1001, 32
      %v1040 = vpop.permute.xlu0 %1039
      %1041 = vrot.lane.b32.xlu0 %v1002, 32
      %v1042 = vpop.permute.xlu0 %1041
      %1043 = vrot.lane.b32.xlu0 %v1003, 32
      %v1044 = vpop.permute.xlu0 %1043
      %1045 = vrot.lane.b32.xlu0 %v1004, 32
      %v1046 = vpop.permute.xlu0 %1045
      %1047 = vrot.lane.b32.xlu0 %v1005, 32
      %v1048 = vpop.permute.xlu0 %1047
      %1049 = vrot.lane.b32.xlu0 %v1006, 32
      %v1050 = vpop.permute.xlu0 %1049
      %1051 = vrot.lane.b32.xlu0 %v1007, 32
      %v1052 = vpop.permute.xlu0 %1051
      %1053 = vrot.lane.b32.xlu0 %v1008, 32
      %v1054 = vpop.permute.xlu0 %1053
      %1055 = vrot.lane.b32.xlu0 %v1009, 32
      %v1056 = vpop.permute.xlu0 %1055
      %1057 = vrot.lane.b32.xlu0 %v1010, 32
      %v1058 = vpop.permute.xlu0 %1057
      %v1075 = vadd.f32 %v915, %v1028
      %v1076 = vadd.f32 %v916, %v1030
      %v1077 = vadd.f32 %v917, %v1032
      %v1078 = vadd.f32 %v918, %v1034
      %v1079 = vadd.f32 %v919, %v1036
      %v1080 = vadd.f32 %v920, %v1038
      %v1081 = vadd.f32 %v921, %v1040
      %v1082 = vadd.f32 %v922, %v1042
      %v1083 = vadd.f32 %v923, %v1044
      %v1084 = vadd.f32 %v924, %v1046
      %v1085 = vadd.f32 %v925, %v1048
      %v1086 = vadd.f32 %v926, %v1050
      %v1087 = vadd.f32 %v927, %v1052
      %v1088 = vadd.f32 %v928, %v1054
      %v1089 = vadd.f32 %v929, %v1056
      %v1090 = vadd.f32 %v930, %v1058
      %v1091 = vtanh.pop %v1075
      %v1092 = vtanh.pop %v1076
      %v1093 = vtanh.pop %v1077
      %v1094 = vtanh.pop %v1078
      %v1095 = vtanh.pop %v1079
      %v1096 = vtanh.pop %v1080
      %v1097 = vtanh.pop %v1081
      %v1098 = vtanh.pop %v1082
      %v1099 = vtanh.pop %v1083
      %v1100 = vtanh.pop %v1084
      %v1101 = vtanh.pop %v1085
      %v1102 = vtanh.pop %v1086
      %v1103 = vtanh.pop %v1087
      %v1104 = vtanh.pop %v1088
      %v1105 = vtanh.pop %v1089
      %v1106 = vtanh.pop %v1090
      %1123 = vrot.lane.b32.xlu0 %v1091, 32
      %v1124 = vpop.permute.xlu0 %1123
      %1125 = vrot.lane.b32.xlu0 %v1092, 32
      %v1126 = vpop.permute.xlu0 %1125
      %1127 = vrot.lane.b32.xlu0 %v1093, 32
      %v1128 = vpop.permute.xlu0 %1127
      %1129 = vrot.lane.b32.xlu0 %v1094, 32
      %v1130 = vpop.permute.xlu0 %1129
      %1131 = vrot.lane.b32.xlu0 %v1095, 32
      %v1132 = vpop.permute.xlu0 %1131
      %1133 = vrot.lane.b32.xlu0 %v1096, 32
      %v1134 = vpop.permute.xlu0 %1133
      %1135 = vrot.lane.b32.xlu0 %v1097, 32
      %v1136 = vpop.permute.xlu0 %1135
      %1137 = vrot.lane.b32.xlu0 %v1098, 32
      %v1138 = vpop.permute.xlu0 %1137
      %1139 = vrot.lane.b32.xlu0 %v1099, 32
      %v1140 = vpop.permute.xlu0 %1139
      %1141 = vrot.lane.b32.xlu0 %v1100, 32
      %v1142 = vpop.permute.xlu0 %1141
      %1143 = vrot.lane.b32.xlu0 %v1101, 32
      %v1144 = vpop.permute.xlu0 %1143
      %1145 = vrot.lane.b32.xlu0 %v1102, 32
      %v1146 = vpop.permute.xlu0 %1145
      %1147 = vrot.lane.b32.xlu0 %v1103, 32
      %v1148 = vpop.permute.xlu0 %1147
      %1149 = vrot.lane.b32.xlu0 %v1104, 32
      %v1150 = vpop.permute.xlu0 %1149
      %1151 = vrot.lane.b32.xlu0 %v1105, 32
      %v1152 = vpop.permute.xlu0 %1151
      %1153 = vrot.lane.b32.xlu0 %v1106, 32
      %v1154 = vpop.permute.xlu0 %1153
      %v1171 = vmul.f32 %v868, %v1124
      %v1172 = vmul.f32 %v870, %v1126
      %v1173 = vmul.f32 %v872, %v1128
      %v1174 = vmul.f32 %v874, %v1130
      %v1175 = vmul.f32 %v876, %v1132
      %v1176 = vmul.f32 %v878, %v1134
      %v1177 = vmul.f32 %v880, %v1136
      %v1178 = vmul.f32 %v882, %v1138
      %v1179 = vmul.f32 %v884, %v1140
      %v1180 = vmul.f32 %v886, %v1142
      %v1181 = vmul.f32 %v888, %v1144
      %v1182 = vmul.f32 %v890, %v1146
      %v1183 = vmul.f32 %v892, %v1148
      %v1184 = vmul.f32 %v894, %v1150
      %v1185 = vmul.f32 %v896, %v1152
      %v1186 = vmul.f32 %v898, %v1154
      %v1187 = vsel %vm267, 7, 0
      %1188 = vset.pattern.permute.xlu0 0
      %1189 = vperm.xlu0 %1188, %v239
      %v1190 = vpop.permute.xlu0 %1189
      %1191 = vset.pattern.permute.xlu0 0
      %1192 = vperm.xlu0 %1191, %v240
      %v1193 = vpop.permute.xlu0 %1192
      %1194 = vset.pattern.permute.xlu0 0
      %1195 = vperm.xlu0 %1194, %v241
      %v1196 = vpop.permute.xlu0 %1195
      %1197 = vset.pattern.permute.xlu0 0
      %1198 = vperm.xlu0 %1197, %v242
      %v1199 = vpop.permute.xlu0 %1198
      %1200 = vset.pattern.permute.xlu0 0
      %1201 = vperm.xlu0 %1200, %v243
      %v1202 = vpop.permute.xlu0 %1201
      %1203 = vset.pattern.permute.xlu0 0
      %1204 = vperm.xlu0 %1203, %v244
      %v1205 = vpop.permute.xlu0 %1204
      %1206 = vset.pattern.permute.xlu0 0
      %1207 = vperm.xlu0 %1206, %v245
      %v1208 = vpop.permute.xlu0 %1207
      %1209 = vset.pattern.permute.xlu0 0
      %1210 = vperm.xlu0 %1209, %v246
      %v1211 = vpop.permute.xlu0 %1210
      %1212 = vset.pattern.permute.xlu0 0
      %1213 = vperm.xlu0 %1212, %v247
      %v1214 = vpop.permute.xlu0 %1213
      %1215 = vset.pattern.permute.xlu0 0
      %1216 = vperm.xlu0 %1215, %v248
      %v1217 = vpop.permute.xlu0 %1216
      %1218 = vset.pattern.permute.xlu0 0
      %1219 = vperm.xlu0 %1218, %v249
      %v1220 = vpop.permute.xlu0 %1219
      %1221 = vset.pattern.permute.xlu0 0
      %1222 = vperm.xlu0 %1221, %v250
      %v1223 = vpop.permute.xlu0 %1222
      %1224 = vset.pattern.permute.xlu0 0
      %1225 = vperm.xlu0 %1224, %v251
      %v1226 = vpop.permute.xlu0 %1225
      %1227 = vset.pattern.permute.xlu0 0
      %1228 = vperm.xlu0 %1227, %v252
      %v1229 = vpop.permute.xlu0 %1228
      %1230 = vset.pattern.permute.xlu0 0
      %1231 = vperm.xlu0 %1230, %v253
      %v1232 = vpop.permute.xlu0 %1231
      %1233 = vset.pattern.permute.xlu0 0
      %1234 = vperm.xlu0 %1233, %v254
      %v1235 = vpop.permute.xlu0 %1234
      %vm1236 = vcmp.lt.s32.totalorder %v1187, %v1190
      %vm1237 = vcmp.lt.s32.totalorder %v1187, %v1193
      %vm1238 = vcmp.lt.s32.totalorder %v1187, %v1196
      %vm1239 = vcmp.lt.s32.totalorder %v1187, %v1199
      %vm1240 = vcmp.lt.s32.totalorder %v1187, %v1202
      %vm1241 = vcmp.lt.s32.totalorder %v1187, %v1205
      %vm1242 = vcmp.lt.s32.totalorder %v1187, %v1208
      %vm1243 = vcmp.lt.s32.totalorder %v1187, %v1211
      %vm1244 = vcmp.lt.s32.totalorder %v1187, %v1214
      %vm1245 = vcmp.lt.s32.totalorder %v1187, %v1217
      %vm1246 = vcmp.lt.s32.totalorder %v1187, %v1220
      %vm1247 = vcmp.lt.s32.totalorder %v1187, %v1223
      %vm1248 = vcmp.lt.s32.totalorder %v1187, %v1226
      %vm1249 = vcmp.lt.s32.totalorder %v1187, %v1229
      %vm1250 = vcmp.lt.s32.totalorder %v1187, %v1232
      %vm1251 = vcmp.lt.s32.totalorder %v1187, %v1235
      %1268 = vrot.lane.b32.xlu0 %v1171, 64
      %v1269 = vpop.permute.xlu0 %1268
      %1270 = vrot.lane.b32.xlu0 %v1172, 64
      %v1271 = vpop.permute.xlu0 %1270
      %1272 = vrot.lane.b32.xlu0 %v1173, 64
      %v1273 = vpop.permute.xlu0 %1272
      %1274 = vrot.lane.b32.xlu0 %v1174, 64
      %v1275 = vpop.permute.xlu0 %1274
      %1276 = vrot.lane.b32.xlu0 %v1175, 64
      %v1277 = vpop.permute.xlu0 %1276
      %1278 = vrot.lane.b32.xlu0 %v1176, 64
      %v1279 = vpop.permute.xlu0 %1278
      %1280 = vrot.lane.b32.xlu0 %v1177, 64
      %v1281 = vpop.permute.xlu0 %1280
      %1282 = vrot.lane.b32.xlu0 %v1178, 64
      %v1283 = vpop.permute.xlu0 %1282
      %1284 = vrot.lane.b32.xlu0 %v1179, 64
      %v1285 = vpop.permute.xlu0 %1284
      %1286 = vrot.lane.b32.xlu0 %v1180, 64
      %v1287 = vpop.permute.xlu0 %1286
      %1288 = vrot.lane.b32.xlu0 %v1181, 64
      %v1289 = vpop.permute.xlu0 %1288
      %1290 = vrot.lane.b32.xlu0 %v1182, 64
      %v1291 = vpop.permute.xlu0 %1290
      %1292 = vrot.lane.b32.xlu0 %v1183, 64
      %v1293 = vpop.permute.xlu0 %1292
      %1294 = vrot.lane.b32.xlu0 %v1184, 64
      %v1295 = vpop.permute.xlu0 %1294
      %1296 = vrot.lane.b32.xlu0 %v1185, 64
      %v1297 = vpop.permute.xlu0 %1296
      %1298 = vrot.lane.b32.xlu0 %v1186, 64
      %v1299 = vpop.permute.xlu0 %1298
      %v1316 = vsel %vm1236, %v1269, 0.0
      %v1317 = vsel %vm1237, %v1271, 0.0
      %v1318 = vsel %vm1238, %v1273, 0.0
      %v1319 = vsel %vm1239, %v1275, 0.0
      %v1320 = vsel %vm1240, %v1277, 0.0
      %v1321 = vsel %vm1241, %v1279, 0.0
      %v1322 = vsel %vm1242, %v1281, 0.0
      %v1323 = vsel %vm1243, %v1283, 0.0
      %v1324 = vsel %vm1244, %v1285, 0.0
      %v1325 = vsel %vm1245, %v1287, 0.0
      %v1326 = vsel %vm1246, %v1289, 0.0
      %v1327 = vsel %vm1247, %v1291, 0.0
      %v1328 = vsel %vm1248, %v1293, 0.0
      %v1329 = vsel %vm1249, %v1295, 0.0
      %v1330 = vsel %vm1250, %v1297, 0.0
      %v1331 = vsel %vm1251, %v1299, 0.0
      %1348 = vrot.lane.b32.xlu0 %v1075, 96
      %v1349 = vpop.permute.xlu0 %1348
      %1350 = vrot.lane.b32.xlu0 %v1076, 96
      %v1351 = vpop.permute.xlu0 %1350
      %1352 = vrot.lane.b32.xlu0 %v1077, 96
      %v1353 = vpop.permute.xlu0 %1352
      %1354 = vrot.lane.b32.xlu0 %v1078, 96
      %v1355 = vpop.permute.xlu0 %1354
      %1356 = vrot.lane.b32.xlu0 %v1079, 96
      %v1357 = vpop.permute.xlu0 %1356
      %1358 = vrot.lane.b32.xlu0 %v1080, 96
      %v1359 = vpop.permute.xlu0 %1358
      %1360 = vrot.lane.b32.xlu0 %v1081, 96
      %v1361 = vpop.permute.xlu0 %1360
      %1362 = vrot.lane.b32.xlu0 %v1082, 96
      %v1363 = vpop.permute.xlu0 %1362
      %1364 = vrot.lane.b32.xlu0 %v1083, 96
      %v1365 = vpop.permute.xlu0 %1364
      %1366 = vrot.lane.b32.xlu0 %v1084, 96
      %v1367 = vpop.permute.xlu0 %1366
      %1368 = vrot.lane.b32.xlu0 %v1085, 96
      %v1369 = vpop.permute.xlu0 %1368
      %1370 = vrot.lane.b32.xlu0 %v1086, 96
      %v1371 = vpop.permute.xlu0 %1370
      %1372 = vrot.lane.b32.xlu0 %v1087, 96
      %v1373 = vpop.permute.xlu0 %1372
      %1374 = vrot.lane.b32.xlu0 %v1088, 96
      %v1375 = vpop.permute.xlu0 %1374
      %1376 = vrot.lane.b32.xlu0 %v1089, 96
      %v1377 = vpop.permute.xlu0 %1376
      %1378 = vrot.lane.b32.xlu0 %v1090, 96
      %v1379 = vpop.permute.xlu0 %1378
      %v1396 = vsel %vm1236, %v1349, 0.0
      %v1397 = vsel %vm1237, %v1351, 0.0
      %v1398 = vsel %vm1238, %v1353, 0.0
      %v1399 = vsel %vm1239, %v1355, 0.0
      %v1400 = vsel %vm1240, %v1357, 0.0
      %v1401 = vsel %vm1241, %v1359, 0.0
      %v1402 = vsel %vm1242, %v1361, 0.0
      %v1403 = vsel %vm1243, %v1363, 0.0
      %v1404 = vsel %vm1244, %v1365, 0.0
      %v1405 = vsel %vm1245, %v1367, 0.0
      %v1406 = vsel %vm1246, %v1369, 0.0
      %v1407 = vsel %vm1247, %v1371, 0.0
      %v1408 = vsel %vm1248, %v1373, 0.0
      %v1409 = vsel %vm1249, %v1375, 0.0
      %v1410 = vsel %vm1250, %v1377, 0.0
      %v1411 = vsel %vm1251, %v1379, 0.0
      %1412 = vset.pattern.permute.xlu0 1
      %1413 = vperm.xlu0 %1412, %v223
      %v1414 = vpop.permute.xlu0 %1413
      %1415 = vset.pattern.permute.xlu0 1
      %1416 = vperm.xlu0 %1415, %v224
      %v1417 = vpop.permute.xlu0 %1416
      %1418 = vset.pattern.permute.xlu0 1
      %1419 = vperm.xlu0 %1418, %v225
      %v1420 = vpop.permute.xlu0 %1419
      %1421 = vset.pattern.permute.xlu0 1
      %1422 = vperm.xlu0 %1421, %v226
      %v1423 = vpop.permute.xlu0 %1422
      %1424 = vset.pattern.permute.xlu0 1
      %1425 = vperm.xlu0 %1424, %v227
      %v1426 = vpop.permute.xlu0 %1425
      %1427 = vset.pattern.permute.xlu0 1
      %1428 = vperm.xlu0 %1427, %v228
      %v1429 = vpop.permute.xlu0 %1428
      %1430 = vset.pattern.permute.xlu0 1
      %1431 = vperm.xlu0 %1430, %v229
      %v1432 = vpop.permute.xlu0 %1431
      %1433 = vset.pattern.permute.xlu0 1
      %1434 = vperm.xlu0 %1433, %v230
      %v1435 = vpop.permute.xlu0 %1434
      %1436 = vset.pattern.permute.xlu0 1
      %1437 = vperm.xlu0 %1436, %v231
      %v1438 = vpop.permute.xlu0 %1437
      %1439 = vset.pattern.permute.xlu0 1
      %1440 = vperm.xlu0 %1439, %v232
      %v1441 = vpop.permute.xlu0 %1440
      %1442 = vset.pattern.permute.xlu0 1
      %1443 = vperm.xlu0 %1442, %v233
      %v1444 = vpop.permute.xlu0 %1443
      %1445 = vset.pattern.permute.xlu0 1
      %1446 = vperm.xlu0 %1445, %v234
      %v1447 = vpop.permute.xlu0 %1446
      %1448 = vset.pattern.permute.xlu0 1
      %1449 = vperm.xlu0 %1448, %v235
      %v1450 = vpop.permute.xlu0 %1449
      %1451 = vset.pattern.permute.xlu0 1
      %1452 = vperm.xlu0 %1451, %v236
      %v1453 = vpop.permute.xlu0 %1452
      %1454 = vset.pattern.permute.xlu0 1
      %1455 = vperm.xlu0 %1454, %v237
      %v1456 = vpop.permute.xlu0 %1455
      %1457 = vset.pattern.permute.xlu0 1
      %1458 = vperm.xlu0 %1457, %v238
      %v1459 = vpop.permute.xlu0 %1458
      %vm1460 = vcmp.eq.s32.totalorder %v266, %v1414
      %vm1461 = vcmp.eq.s32.totalorder %v266, %v1417
      %vm1462 = vcmp.eq.s32.totalorder %v266, %v1420
      %vm1463 = vcmp.eq.s32.totalorder %v266, %v1423
      %vm1464 = vcmp.eq.s32.totalorder %v266, %v1426
      %vm1465 = vcmp.eq.s32.totalorder %v266, %v1429
      %vm1466 = vcmp.eq.s32.totalorder %v266, %v1432
      %vm1467 = vcmp.eq.s32.totalorder %v266, %v1435
      %vm1468 = vcmp.eq.s32.totalorder %v266, %v1438
      %vm1469 = vcmp.eq.s32.totalorder %v266, %v1441
      %vm1470 = vcmp.eq.s32.totalorder %v266, %v1444
      %vm1471 = vcmp.eq.s32.totalorder %v266, %v1447
      %vm1472 = vcmp.eq.s32.totalorder %v266, %v1450
      %vm1473 = vcmp.eq.s32.totalorder %v266, %v1453
      %vm1474 = vcmp.eq.s32.totalorder %v266, %v1456
      %vm1475 = vcmp.eq.s32.totalorder %v266, %v1459
      %1476 = vset.pattern.permute.xlu0 6
      %1477 = vperm.xlu0 %1476, %v332
      %v1478 = vpop.permute.xlu0 %1477
      %1479 = vset.pattern.permute.xlu0 6
      %1480 = vperm.xlu0 %1479, %v333
      %v1481 = vpop.permute.xlu0 %1480
      %1482 = vset.pattern.permute.xlu0 6
      %1483 = vperm.xlu0 %1482, %v334
      %v1484 = vpop.permute.xlu0 %1483
      %1485 = vset.pattern.permute.xlu0 6
      %1486 = vperm.xlu0 %1485, %v335
      %v1487 = vpop.permute.xlu0 %1486
      %1488 = vset.pattern.permute.xlu0 6
      %1489 = vperm.xlu0 %1488, %v336
      %v1490 = vpop.permute.xlu0 %1489
      %1491 = vset.pattern.permute.xlu0 6
      %1492 = vperm.xlu0 %1491, %v337
      %v1493 = vpop.permute.xlu0 %1492
      %1494 = vset.pattern.permute.xlu0 6
      %1495 = vperm.xlu0 %1494, %v338
      %v1496 = vpop.permute.xlu0 %1495
      %1497 = vset.pattern.permute.xlu0 6
      %1498 = vperm.xlu0 %1497, %v339
      %v1499 = vpop.permute.xlu0 %1498
      %1500 = vset.pattern.permute.xlu0 6
      %1501 = vperm.xlu0 %1500, %v340
      %v1502 = vpop.permute.xlu0 %1501
      %1503 = vset.pattern.permute.xlu0 6
      %1504 = vperm.xlu0 %1503, %v341
      %v1505 = vpop.permute.xlu0 %1504
      %1506 = vset.pattern.permute.xlu0 6
      %1507 = vperm.xlu0 %1506, %v342
      %v1508 = vpop.permute.xlu0 %1507
      %1509 = vset.pattern.permute.xlu0 6
      %1510 = vperm.xlu0 %1509, %v343
      %v1511 = vpop.permute.xlu0 %1510
      %1512 = vset.pattern.permute.xlu0 6
      %1513 = vperm.xlu0 %1512, %v344
      %v1514 = vpop.permute.xlu0 %1513
      %1515 = vset.pattern.permute.xlu0 6
      %1516 = vperm.xlu0 %1515, %v345
      %v1517 = vpop.permute.xlu0 %1516
      %1518 = vset.pattern.permute.xlu0 6
      %1519 = vperm.xlu0 %1518, %v346
      %v1520 = vpop.permute.xlu0 %1519
      %1521 = vset.pattern.permute.xlu0 6
      %1522 = vperm.xlu0 %1521, %v347
      %v1523 = vpop.permute.xlu0 %1522
      %vm1524 = vcmp.eq.s32.totalorder %v266, %v1478
      %vm1525 = vcmp.eq.s32.totalorder %v266, %v1481
      %vm1526 = vcmp.eq.s32.totalorder %v266, %v1484
      %vm1527 = vcmp.eq.s32.totalorder %v266, %v1487
      %vm1528 = vcmp.eq.s32.totalorder %v266, %v1490
      %vm1529 = vcmp.eq.s32.totalorder %v266, %v1493
      %vm1530 = vcmp.eq.s32.totalorder %v266, %v1496
      %vm1531 = vcmp.eq.s32.totalorder %v266, %v1499
      %vm1532 = vcmp.eq.s32.totalorder %v266, %v1502
      %vm1533 = vcmp.eq.s32.totalorder %v266, %v1505
      %vm1534 = vcmp.eq.s32.totalorder %v266, %v1508
      %vm1535 = vcmp.eq.s32.totalorder %v266, %v1511
      %vm1536 = vcmp.eq.s32.totalorder %v266, %v1514
      %vm1537 = vcmp.eq.s32.totalorder %v266, %v1517
      %vm1538 = vcmp.eq.s32.totalorder %v266, %v1520
      %vm1539 = vcmp.eq.s32.totalorder %v266, %v1523
      %vm1540 = vmor %vm1460, %vm1524
      %vm1541 = vmor %vm1461, %vm1525
      %vm1542 = vmor %vm1462, %vm1526
      %vm1543 = vmor %vm1463, %vm1527
      %vm1544 = vmor %vm1464, %vm1528
      %vm1545 = vmor %vm1465, %vm1529
      %vm1546 = vmor %vm1466, %vm1530
      %vm1547 = vmor %vm1467, %vm1531
      %vm1548 = vmor %vm1468, %vm1532
      %vm1549 = vmor %vm1469, %vm1533
      %vm1550 = vmor %vm1470, %vm1534
      %vm1551 = vmor %vm1471, %vm1535
      %vm1552 = vmor %vm1472, %vm1536
      %vm1553 = vmor %vm1473, %vm1537
      %vm1554 = vmor %vm1474, %vm1538
      %vm1555 = vmor %vm1475, %vm1539
      %v1556 = vsel %vm1540, 1, 0
      %v1557 = vsel %vm1541, 1, 0
      %v1558 = vsel %vm1542, 1, 0
      %v1559 = vsel %vm1543, 1, 0
      %v1560 = vsel %vm1544, 1, 0
      %v1561 = vsel %vm1545, 1, 0
      %v1562 = vsel %vm1546, 1, 0
      %v1563 = vsel %vm1547, 1, 0
      %v1564 = vsel %vm1548, 1, 0
      %v1565 = vsel %vm1549, 1, 0
      %v1566 = vsel %vm1550, 1, 0
      %v1567 = vsel %vm1551, 1, 0
      %v1568 = vsel %vm1552, 1, 0
      %v1569 = vsel %vm1553, 1, 0
      %v1570 = vsel %vm1554, 1, 0
      %v1571 = vsel %vm1555, 1, 0
      %v1572 = vcvt.s32.f32 %v1556
      %v1573 = vcvt.s32.f32 %v1557
      %v1574 = vcvt.s32.f32 %v1558
      %v1575 = vcvt.s32.f32 %v1559
      %v1576 = vcvt.s32.f32 %v1560
      %v1577 = vcvt.s32.f32 %v1561
      %v1578 = vcvt.s32.f32 %v1562
      %v1579 = vcvt.s32.f32 %v1563
      %v1580 = vcvt.s32.f32 %v1564
      %v1581 = vcvt.s32.f32 %v1565
      %v1582 = vcvt.s32.f32 %v1566
      %v1583 = vcvt.s32.f32 %v1567
      %v1584 = vcvt.s32.f32 %v1568
      %v1585 = vcvt.s32.f32 %v1569
      %v1586 = vcvt.s32.f32 %v1570
      %v1587 = vcvt.s32.f32 %v1571
      %v1589 = vsel %vm460, %v1316, 0
      %v1592 = vsel %vm460, %v1317, 0
      %v1595 = vsel %vm460, %v1318, 0
      %v1598 = vsel %vm460, %v1319, 0
      %v1601 = vsel %vm460, %v1320, 0
      %v1604 = vsel %vm460, %v1321, 0
      %v1607 = vsel %vm460, %v1322, 0
      %v1610 = vsel %vm460, %v1323, 0
      %v1613 = vsel %vm460, %v1324, 0
      %v1616 = vsel %vm460, %v1325, 0
      %v1619 = vsel %vm460, %v1326, 0
      %v1622 = vsel %vm460, %v1327, 0
      %v1625 = vsel %vm460, %v1328, 0
      %v1628 = vsel %vm460, %v1329, 0
      %v1631 = vsel %vm460, %v1330, 0
      %v1634 = vsel %vm460, %v1331, 0
      %1636 = vmatprep.subr.mxu0 0.0
      %1637 = vmatpush1.msra.mxu0 0.0
      %1638 = vmatprep.subr.mxu0 0.0
      %1639 = vmatpush1.msra.mxu0 0.0
      %1640 = vmatprep.subr.mxu0 0.0
      %1641 = vmatpush1.msra.mxu0 0.0
      %1642 = vmatprep.subr.mxu0 0.0
      %1643 = vmatpush1.msra.mxu0 0.0
      %1644 = vmatprep.subr.mxu0 0.0
      %1645 = vmatpush1.msra.mxu0 0.0
      %1646 = vmatprep.subr.mxu0 0.0
      %1647 = vmatpush1.msra.mxu0 0.0
      %1648 = vmatprep.subr.mxu0 0.0
      %1649 = vmatpush1.msra.mxu0 0.0
      %1650 = vmatprep.subr.mxu0 0.0
      %1651 = vmatpush1.msra.mxu0 0.0
      %1652 = vmatprep.subr.mxu0 0.0
      %1653 = vmatpush1.msra.mxu0 0.0
      %1654 = vmatprep.subr.mxu0 0.0
      %1655 = vmatpush1.msra.mxu0 0.0
      %1656 = vmatprep.subr.mxu0 0.0
      %1657 = vmatpush1.msra.mxu0 0.0
      %1658 = vmatprep.subr.mxu0 0.0
      %1659 = vmatpush1.msra.mxu0 0.0
      %1660 = vmatprep.subr.mxu0 0.0
      %1661 = vmatpush1.msra.mxu0 %v264
      %1662 = vmatprep.subr.mxu0 0.0
      %1663 = vmatpush1.msra.mxu0 %v263
      %1664 = vmatprep.subr.mxu0 0.0
      %1665 = vmatpush1.msra.mxu0 %v262
      %1666 = vmatprep.subr.mxu0 0.0
      %1667 = vmatpush1.msra.mxu0 %v261
      %1668 = vmatprep.subr.mxu0 0.0
      %1669 = vmatpush2.msra.mxu0 0.0
      %1670 = vmatprep.subr.mxu0 0.0
      %1671 = vmatpush2.msra.mxu0 0.0
      %1672 = vmatprep.subr.mxu0 0.0
      %1673 = vmatpush2.msra.mxu0 0.0
      %1674 = vmatprep.subr.mxu0 0.0
      %1675 = vmatpush2.msra.mxu0 0.0
      %1676 = vmatprep.subr.mxu0 0.0
      %1677 = vmatpush2.msra.mxu0 0.0
      %1678 = vmatprep.subr.mxu0 0.0
      %1679 = vmatpush2.msra.mxu0 0.0
      %1680 = vmatprep.subr.mxu0 0.0
      %1681 = vmatpush2.msra.mxu0 0.0
      %1682 = vmatprep.subr.mxu0 0.0
      %1683 = vmatpush2.msra.mxu0 0.0
      %1684 = vmatprep.subr.mxu0 0.0
      %1685 = vmatpush2.msra.mxu0 0.0
      %1686 = vmatprep.subr.mxu0 0.0
      %1687 = vmatpush2.msra.mxu0 0.0
      %1688 = vmatprep.subr.mxu0 0.0
      %1689 = vmatpush2.msra.mxu0 0.0
      %1690 = vmatprep.subr.mxu0 0.0
      %1691 = vmatpush2.msra.mxu0 0.0
      %1692 = vmatprep.subr.mxu0 0.0
      %1693 = vmatpush2.msra.mxu0 0.0
      %1694 = vmatprep.subr.mxu0 0.0
      %1695 = vmatpush2.msra.mxu0 0.0
      %1696 = vmatprep.subr.mxu0 0.0
      %1697 = vmatpush2.msra.mxu0 0.0
      %1698 = vmatprep.subr.mxu0 0.0
      %1699 = vmatpush2.msra.mxu0 0.0
      %1700 = vmatprep.mubr.f32.mxu0 0.0
      %1701 = vmatmul.mubr.f32.gmra.mxu0 %v1589
      %v1702 = vpop.f32.mrf.mxu0
      %v1703 = vadd.f32 0.0, %v1702
      %v1704 = vpop.f32.mrf.mxu0
      %1705 = vmatprep.mubr.f32.mxu0 0.0
      %1706 = vmatmul.mubr.f32.gmra.mxu0 %v1592
      %v1707 = vpop.f32.mrf.mxu0
      %v1708 = vadd.f32 0.0, %v1707
      %v1709 = vpop.f32.mrf.mxu0
      %1710 = vmatprep.mubr.f32.mxu0 0.0
      %1711 = vmatmul.mubr.f32.gmra.mxu0 %v1595
      %v1712 = vpop.f32.mrf.mxu0
      %v1713 = vadd.f32 0.0, %v1712
      %v1714 = vpop.f32.mrf.mxu0
      %1715 = vmatprep.mubr.f32.mxu0 0.0
      %1716 = vmatmul.mubr.f32.gmra.mxu0 %v1598
      %v1717 = vpop.f32.mrf.mxu0
      %v1718 = vadd.f32 0.0, %v1717
      %v1719 = vpop.f32.mrf.mxu0
      %1720 = vmatprep.mubr.f32.mxu0 0.0
      %1721 = vmatmul.mubr.f32.gmra.mxu0 %v1601
      %v1722 = vpop.f32.mrf.mxu0
      %v1723 = vadd.f32 0.0, %v1722
      %v1724 = vpop.f32.mrf.mxu0
      %1725 = vmatprep.mubr.f32.mxu0 0.0
      %1726 = vmatmul.mubr.f32.gmra.mxu0 %v1604
      %v1727 = vpop.f32.mrf.mxu0
      %v1728 = vadd.f32 0.0, %v1727
      %v1729 = vpop.f32.mrf.mxu0
      %1730 = vmatprep.mubr.f32.mxu0 0.0
      %1731 = vmatmul.mubr.f32.gmra.mxu0 %v1607
      %v1732 = vpop.f32.mrf.mxu0
      %v1733 = vadd.f32 0.0, %v1732
      %v1734 = vpop.f32.mrf.mxu0
      %1735 = vmatprep.mubr.f32.mxu0 0.0
      %1736 = vmatmul.mubr.f32.gmra.mxu0 %v1610
      %v1737 = vpop.f32.mrf.mxu0
      %v1738 = vadd.f32 0.0, %v1737
      %v1739 = vpop.f32.mrf.mxu0
      %1740 = vmatprep.mubr.f32.mxu0 0.0
      %1741 = vmatmul.mubr.f32.gmra.mxu0 %v1613
      %v1742 = vpop.f32.mrf.mxu0
      %v1743 = vadd.f32 0.0, %v1742
      %v1744 = vpop.f32.mrf.mxu0
      %1745 = vmatprep.mubr.f32.mxu0 0.0
      %1746 = vmatmul.mubr.f32.gmra.mxu0 %v1616
      %v1747 = vpop.f32.mrf.mxu0
      %v1748 = vadd.f32 0.0, %v1747
      %v1749 = vpop.f32.mrf.mxu0
      %1750 = vmatprep.mubr.f32.mxu0 0.0
      %1751 = vmatmul.mubr.f32.gmra.mxu0 %v1619
      %v1752 = vpop.f32.mrf.mxu0
      %v1753 = vadd.f32 0.0, %v1752
      %v1754 = vpop.f32.mrf.mxu0
      %1755 = vmatprep.mubr.f32.mxu0 0.0
      %1756 = vmatmul.mubr.f32.gmra.mxu0 %v1622
      %v1757 = vpop.f32.mrf.mxu0
      %v1758 = vadd.f32 0.0, %v1757
      %v1759 = vpop.f32.mrf.mxu0
      %1760 = vmatprep.mubr.f32.mxu0 0.0
      %1761 = vmatmul.mubr.f32.gmra.mxu0 %v1625
      %v1762 = vpop.f32.mrf.mxu0
      %v1763 = vadd.f32 0.0, %v1762
      %v1764 = vpop.f32.mrf.mxu0
      %1765 = vmatprep.mubr.f32.mxu0 0.0
      %1766 = vmatmul.mubr.f32.gmra.mxu0 %v1628
      %v1767 = vpop.f32.mrf.mxu0
      %v1768 = vadd.f32 0.0, %v1767
      %v1769 = vpop.f32.mrf.mxu0
      %1770 = vmatprep.mubr.f32.mxu0 0.0
      %1771 = vmatmul.mubr.f32.gmra.mxu0 %v1631
      %v1772 = vpop.f32.mrf.mxu0
      %v1773 = vadd.f32 0.0, %v1772
      %v1774 = vpop.f32.mrf.mxu0
      %1775 = vmatprep.mubr.f32.mxu0 0.0
      %1776 = vmatmul.mubr.f32.gmra.mxu0 %v1634
      %v1777 = vpop.f32.mrf.mxu0
      %v1778 = vadd.f32 0.0, %v1777
      %v1779 = vpop.f32.mrf.mxu0
      %1780 = vdwg.mxu0
      %v1782 = vsel %vm609, %v1572, 0
      %v1785 = vsel %vm609, %v1573, 0
      %v1788 = vsel %vm609, %v1574, 0
      %v1791 = vsel %vm609, %v1575, 0
      %v1794 = vsel %vm609, %v1576, 0
      %v1797 = vsel %vm609, %v1577, 0
      %v1800 = vsel %vm609, %v1578, 0
      %v1803 = vsel %vm609, %v1579, 0
      %v1806 = vsel %vm609, %v1580, 0
      %v1809 = vsel %vm609, %v1581, 0
      %v1812 = vsel %vm609, %v1582, 0
      %v1815 = vsel %vm609, %v1583, 0
      %v1818 = vsel %vm609, %v1584, 0
      %v1821 = vsel %vm609, %v1585, 0
      %v1824 = vsel %vm609, %v1586, 0
      %v1827 = vsel %vm609, %v1587, 0
      %1829 = vmatprep.subr.mxu0 0.0
      %1830 = vmatpush1.msra.mxu0 0.0
      %1831 = vmatprep.subr.mxu0 0.0
      %1832 = vmatpush1.msra.mxu0 0.0
      %1833 = vmatprep.subr.mxu0 0.0
      %1834 = vmatpush1.msra.mxu0 0.0
      %1835 = vmatprep.subr.mxu0 0.0
      %1836 = vmatpush1.msra.mxu0 0.0
      %1837 = vmatprep.subr.mxu0 0.0
      %1838 = vmatpush1.msra.mxu0 0.0
      %1839 = vmatprep.subr.mxu0 0.0
      %1840 = vmatpush1.msra.mxu0 0.0
      %1841 = vmatprep.subr.mxu0 0.0
      %1842 = vmatpush1.msra.mxu0 0.0
      %1843 = vmatprep.subr.mxu0 0.0
      %1844 = vmatpush1.msra.mxu0 0.0
      %1845 = vmatprep.subr.mxu0 0.0
      %1846 = vmatpush1.msra.mxu0 0.0
      %1847 = vmatprep.subr.mxu0 0.0
      %1848 = vmatpush1.msra.mxu0 0.0
      %1849 = vmatprep.subr.mxu0 0.0
      %1850 = vmatpush1.msra.mxu0 %v260
      %1851 = vmatprep.subr.mxu0 0.0
      %1852 = vmatpush1.msra.mxu0 %v259
      %1853 = vmatprep.subr.mxu0 0.0
      %1854 = vmatpush1.msra.mxu0 %v258
      %1855 = vmatprep.subr.mxu0 0.0
      %1856 = vmatpush1.msra.mxu0 %v257
      %1857 = vmatprep.subr.mxu0 0.0
      %1858 = vmatpush1.msra.mxu0 %v256
      %1859 = vmatprep.subr.mxu0 0.0
      %1860 = vmatpush1.msra.mxu0 %v255
      %1861 = vmatprep.subr.mxu0 0.0
      %1862 = vmatpush2.msra.mxu0 0.0
      %1863 = vmatprep.subr.mxu0 0.0
      %1864 = vmatpush2.msra.mxu0 0.0
      %1865 = vmatprep.subr.mxu0 0.0
      %1866 = vmatpush2.msra.mxu0 0.0
      %1867 = vmatprep.subr.mxu0 0.0
      %1868 = vmatpush2.msra.mxu0 0.0
      %1869 = vmatprep.subr.mxu0 0.0
      %1870 = vmatpush2.msra.mxu0 0.0
      %1871 = vmatprep.subr.mxu0 0.0
      %1872 = vmatpush2.msra.mxu0 0.0
      %1873 = vmatprep.subr.mxu0 0.0
      %1874 = vmatpush2.msra.mxu0 0.0
      %1875 = vmatprep.subr.mxu0 0.0
      %1876 = vmatpush2.msra.mxu0 0.0
      %1877 = vmatprep.subr.mxu0 0.0
      %1878 = vmatpush2.msra.mxu0 0.0
      %1879 = vmatprep.subr.mxu0 0.0
      %1880 = vmatpush2.msra.mxu0 0.0
      %1881 = vmatprep.subr.mxu0 0.0
      %1882 = vmatpush2.msra.mxu0 0.0
      %1883 = vmatprep.subr.mxu0 0.0
      %1884 = vmatpush2.msra.mxu0 0.0
      %1885 = vmatprep.subr.mxu0 0.0
      %1886 = vmatpush2.msra.mxu0 0.0
      %1887 = vmatprep.subr.mxu0 0.0
      %1888 = vmatpush2.msra.mxu0 0.0
      %1889 = vmatprep.subr.mxu0 0.0
      %1890 = vmatpush2.msra.mxu0 0.0
      %1891 = vmatprep.subr.mxu0 0.0
      %1892 = vmatpush2.msra.mxu0 0.0
      %1893 = vmatprep.mubr.f32.mxu0 0.0
      %1894 = vmatmul.mubr.f32.gmra.mxu0 %v1782
      %v1895 = vpop.f32.mrf.mxu0
      %v1896 = vadd.f32 %v1703, %v1895
      %v1897 = vpop.f32.mrf.mxu0
      %1898 = vmatprep.mubr.f32.mxu0 0.0
      %1899 = vmatmul.mubr.f32.gmra.mxu0 %v1785
      %v1900 = vpop.f32.mrf.mxu0
      %v1901 = vadd.f32 %v1708, %v1900
      %v1902 = vpop.f32.mrf.mxu0
      %1903 = vmatprep.mubr.f32.mxu0 0.0
      %1904 = vmatmul.mubr.f32.gmra.mxu0 %v1788
      %v1905 = vpop.f32.mrf.mxu0
      %v1906 = vadd.f32 %v1713, %v1905
      %v1907 = vpop.f32.mrf.mxu0
      %1908 = vmatprep.mubr.f32.mxu0 0.0
      %1909 = vmatmul.mubr.f32.gmra.mxu0 %v1791
      %v1910 = vpop.f32.mrf.mxu0
      %v1911 = vadd.f32 %v1718, %v1910
      %v1912 = vpop.f32.mrf.mxu0
      %1913 = vmatprep.mubr.f32.mxu0 0.0
      %1914 = vmatmul.mubr.f32.gmra.mxu0 %v1794
      %v1915 = vpop.f32.mrf.mxu0
      %v1916 = vadd.f32 %v1723, %v1915
      %v1917 = vpop.f32.mrf.mxu0
      %1918 = vmatprep.mubr.f32.mxu0 0.0
      %1919 = vmatmul.mubr.f32.gmra.mxu0 %v1797
      %v1920 = vpop.f32.mrf.mxu0
      %v1921 = vadd.f32 %v1728, %v1920
      %v1922 = vpop.f32.mrf.mxu0
      %1923 = vmatprep.mubr.f32.mxu0 0.0
      %1924 = vmatmul.mubr.f32.gmra.mxu0 %v1800
      %v1925 = vpop.f32.mrf.mxu0
      %v1926 = vadd.f32 %v1733, %v1925
      %v1927 = vpop.f32.mrf.mxu0
      %1928 = vmatprep.mubr.f32.mxu0 0.0
      %1929 = vmatmul.mubr.f32.gmra.mxu0 %v1803
      %v1930 = vpop.f32.mrf.mxu0
      %v1931 = vadd.f32 %v1738, %v1930
      %v1932 = vpop.f32.mrf.mxu0
      %1933 = vmatprep.mubr.f32.mxu0 0.0
      %1934 = vmatmul.mubr.f32.gmra.mxu0 %v1806
      %v1935 = vpop.f32.mrf.mxu0
      %v1936 = vadd.f32 %v1743, %v1935
      %v1937 = vpop.f32.mrf.mxu0
      %1938 = vmatprep.mubr.f32.mxu0 0.0
      %1939 = vmatmul.mubr.f32.gmra.mxu0 %v1809
      %v1940 = vpop.f32.mrf.mxu0
      %v1941 = vadd.f32 %v1748, %v1940
      %v1942 = vpop.f32.mrf.mxu0
      %1943 = vmatprep.mubr.f32.mxu0 0.0
      %1944 = vmatmul.mubr.f32.gmra.mxu0 %v1812
      %v1945 = vpop.f32.mrf.mxu0
      %v1946 = vadd.f32 %v1753, %v1945
      %v1947 = vpop.f32.mrf.mxu0
      %1948 = vmatprep.mubr.f32.mxu0 0.0
      %1949 = vmatmul.mubr.f32.gmra.mxu0 %v1815
      %v1950 = vpop.f32.mrf.mxu0
      %v1951 = vadd.f32 %v1758, %v1950
      %v1952 = vpop.f32.mrf.mxu0
      %1953 = vmatprep.mubr.f32.mxu0 0.0
      %1954 = vmatmul.mubr.f32.gmra.mxu0 %v1818
      %v1955 = vpop.f32.mrf.mxu0
      %v1956 = vadd.f32 %v1763, %v1955
      %v1957 = vpop.f32.mrf.mxu0
      %1958 = vmatprep.mubr.f32.mxu0 0.0
      %1959 = vmatmul.mubr.f32.gmra.mxu0 %v1821
      %v1960 = vpop.f32.mrf.mxu0
      %v1961 = vadd.f32 %v1768, %v1960
      %v1962 = vpop.f32.mrf.mxu0
      %1963 = vmatprep.mubr.f32.mxu0 0.0
      %1964 = vmatmul.mubr.f32.gmra.mxu0 %v1824
      %v1965 = vpop.f32.mrf.mxu0
      %v1966 = vadd.f32 %v1773, %v1965
      %v1967 = vpop.f32.mrf.mxu0
      %1968 = vmatprep.mubr.f32.mxu0 0.0
      %1969 = vmatmul.mubr.f32.gmra.mxu0 %v1827
      %v1970 = vpop.f32.mrf.mxu0
      %v1971 = vadd.f32 %v1778, %v1970
      %v1972 = vpop.f32.mrf.mxu0
      %1973 = vdwg.mxu0
      %v1974 = vxor.u32 %v1896, 2147483648
      %v1975 = vxor.u32 %v1901, 2147483648
      %v1976 = vxor.u32 %v1906, 2147483648
      %v1977 = vxor.u32 %v1911, 2147483648
      %v1978 = vxor.u32 %v1916, 2147483648
      %v1979 = vxor.u32 %v1921, 2147483648
      %v1980 = vxor.u32 %v1926, 2147483648
      %v1981 = vxor.u32 %v1931, 2147483648
      %v1982 = vxor.u32 %v1936, 2147483648
      %v1983 = vxor.u32 %v1941, 2147483648
      %v1984 = vxor.u32 %v1946, 2147483648
      %v1985 = vxor.u32 %v1951, 2147483648
      %v1986 = vxor.u32 %v1956, 2147483648
      %v1987 = vxor.u32 %v1961, 2147483648
      %v1988 = vxor.u32 %v1966, 2147483648
      %v1989 = vxor.u32 %v1971, 2147483648
      %v1990 = vmul.f32 %v1974, 1.442695
      %v1991 = vpow.pop %v1990
      %v1992 = vmul.f32 %v1975, 1.442695
      %v1993 = vpow.pop %v1992
      %v1994 = vmul.f32 %v1976, 1.442695
      %v1995 = vpow.pop %v1994
      %v1996 = vmul.f32 %v1977, 1.442695
      %v1997 = vpow.pop %v1996
      %v1998 = vmul.f32 %v1978, 1.442695
      %v1999 = vpow.pop %v1998
      %v2000 = vmul.f32 %v1979, 1.442695
      %v2001 = vpow.pop %v2000
      %v2002 = vmul.f32 %v1980, 1.442695
      %v2003 = vpow.pop %v2002
      %v2004 = vmul.f32 %v1981, 1.442695
      %v2005 = vpow.pop %v2004
      %v2006 = vmul.f32 %v1982, 1.442695
      %v2007 = vpow.pop %v2006
      %v2008 = vmul.f32 %v1983, 1.442695
      %v2009 = vpow.pop %v2008
      %v2010 = vmul.f32 %v1984, 1.442695
      %v2011 = vpow.pop %v2010
      %v2012 = vmul.f32 %v1985, 1.442695
      %v2013 = vpow.pop %v2012
      %v2014 = vmul.f32 %v1986, 1.442695
      %v2015 = vpow.pop %v2014
      %v2016 = vmul.f32 %v1987, 1.442695
      %v2017 = vpow.pop %v2016
      %v2018 = vmul.f32 %v1988, 1.442695
      %v2019 = vpow.pop %v2018
      %v2020 = vmul.f32 %v1989, 1.442695
      %v2021 = vpow.pop %v2020
      %v2022 = vadd.f32 %v1991, 1.0
      %v2023 = vadd.f32 %v1993, 1.0
      %v2024 = vadd.f32 %v1995, 1.0
      %v2025 = vadd.f32 %v1997, 1.0
      %v2026 = vadd.f32 %v1999, 1.0
      %v2027 = vadd.f32 %v2001, 1.0
      %v2028 = vadd.f32 %v2003, 1.0
      %v2029 = vadd.f32 %v2005, 1.0
      %v2030 = vadd.f32 %v2007, 1.0
      %v2031 = vadd.f32 %v2009, 1.0
      %v2032 = vadd.f32 %v2011, 1.0
      %v2033 = vadd.f32 %v2013, 1.0
      %v2034 = vadd.f32 %v2015, 1.0
      %v2035 = vadd.f32 %v2017, 1.0
      %v2036 = vadd.f32 %v2019, 1.0
      %v2037 = vadd.f32 %v2021, 1.0
      %v2038 = vrcp.pop %v2022
      %v2039 = vmul.f32 1.0, %v2038
      %v2040 = vrcp.pop %v2023
      %v2041 = vmul.f32 1.0, %v2040
      %v2042 = vrcp.pop %v2024
      %v2043 = vmul.f32 1.0, %v2042
      %v2044 = vrcp.pop %v2025
      %v2045 = vmul.f32 1.0, %v2044
      %v2046 = vrcp.pop %v2026
      %v2047 = vmul.f32 1.0, %v2046
      %v2048 = vrcp.pop %v2027
      %v2049 = vmul.f32 1.0, %v2048
      %v2050 = vrcp.pop %v2028
      %v2051 = vmul.f32 1.0, %v2050
      %v2052 = vrcp.pop %v2029
      %v2053 = vmul.f32 1.0, %v2052
      %v2054 = vrcp.pop %v2030
      %v2055 = vmul.f32 1.0, %v2054
      %v2056 = vrcp.pop %v2031
      %v2057 = vmul.f32 1.0, %v2056
      %v2058 = vrcp.pop %v2032
      %v2059 = vmul.f32 1.0, %v2058
      %v2060 = vrcp.pop %v2033
      %v2061 = vmul.f32 1.0, %v2060
      %v2062 = vrcp.pop %v2034
      %v2063 = vmul.f32 1.0, %v2062
      %v2064 = vrcp.pop %v2035
      %v2065 = vmul.f32 1.0, %v2064
      %v2066 = vrcp.pop %v2036
      %v2067 = vmul.f32 1.0, %v2066
      %v2068 = vrcp.pop %v2037
      %v2069 = vmul.f32 1.0, %v2068
      %v2070 = vtanh.pop %v1896
      %v2071 = vtanh.pop %v1901
      %v2072 = vtanh.pop %v1906
      %v2073 = vtanh.pop %v1911
      %v2074 = vtanh.pop %v1916
      %v2075 = vtanh.pop %v1921
      %v2076 = vtanh.pop %v1926
      %v2077 = vtanh.pop %v1931
      %v2078 = vtanh.pop %v1936
      %v2079 = vtanh.pop %v1941
      %v2080 = vtanh.pop %v1946
      %v2081 = vtanh.pop %v1951
      %v2082 = vtanh.pop %v1956
      %v2083 = vtanh.pop %v1961
      %v2084 = vtanh.pop %v1966
      %v2085 = vtanh.pop %v1971
      %2102 = vrot.lane.b32.xlu0 %v1396, 32
      %v2103 = vpop.permute.xlu0 %2102
      %2104 = vrot.lane.b32.xlu0 %v1397, 32
      %v2105 = vpop.permute.xlu0 %2104
      %2106 = vrot.lane.b32.xlu0 %v1398, 32
      %v2107 = vpop.permute.xlu0 %2106
      %2108 = vrot.lane.b32.xlu0 %v1399, 32
      %v2109 = vpop.permute.xlu0 %2108
      %2110 = vrot.lane.b32.xlu0 %v1400, 32
      %v2111 = vpop.permute.xlu0 %2110
      %2112 = vrot.lane.b32.xlu0 %v1401, 32
      %v2113 = vpop.permute.xlu0 %2112
      %2114 = vrot.lane.b32.xlu0 %v1402, 32
      %v2115 = vpop.permute.xlu0 %2114
      %2116 = vrot.lane.b32.xlu0 %v1403, 32
      %v2117 = vpop.permute.xlu0 %2116
      %2118 = vrot.lane.b32.xlu0 %v1404, 32
      %v2119 = vpop.permute.xlu0 %2118
      %2120 = vrot.lane.b32.xlu0 %v1405, 32
      %v2121 = vpop.permute.xlu0 %2120
      %2122 = vrot.lane.b32.xlu0 %v1406, 32
      %v2123 = vpop.permute.xlu0 %2122
      %2124 = vrot.lane.b32.xlu0 %v1407, 32
      %v2125 = vpop.permute.xlu0 %2124
      %2126 = vrot.lane.b32.xlu0 %v1408, 32
      %v2127 = vpop.permute.xlu0 %2126
      %2128 = vrot.lane.b32.xlu0 %v1409, 32
      %v2129 = vpop.permute.xlu0 %2128
      %2130 = vrot.lane.b32.xlu0 %v1410, 32
      %v2131 = vpop.permute.xlu0 %2130
      %2132 = vrot.lane.b32.xlu0 %v1411, 32
      %v2133 = vpop.permute.xlu0 %2132
      %v2150 = vmul.f32 %v2039, %v2103
      %v2151 = vmul.f32 %v2041, %v2105
      %v2152 = vmul.f32 %v2043, %v2107
      %v2153 = vmul.f32 %v2045, %v2109
      %v2154 = vmul.f32 %v2047, %v2111
      %v2155 = vmul.f32 %v2049, %v2113
      %v2156 = vmul.f32 %v2051, %v2115
      %v2157 = vmul.f32 %v2053, %v2117
      %v2158 = vmul.f32 %v2055, %v2119
      %v2159 = vmul.f32 %v2057, %v2121
      %v2160 = vmul.f32 %v2059, %v2123
      %v2161 = vmul.f32 %v2061, %v2125
      %v2162 = vmul.f32 %v2063, %v2127
      %v2163 = vmul.f32 %v2065, %v2129
      %v2164 = vmul.f32 %v2067, %v2131
      %v2165 = vmul.f32 %v2069, %v2133
      %2182 = vrot.lane.b32.xlu0 %v2070, 32
      %v2183 = vpop.permute.xlu0 %2182
      %2184 = vrot.lane.b32.xlu0 %v2071, 32
      %v2185 = vpop.permute.xlu0 %2184
      %2186 = vrot.lane.b32.xlu0 %v2072, 32
      %v2187 = vpop.permute.xlu0 %2186
      %2188 = vrot.lane.b32.xlu0 %v2073, 32
      %v2189 = vpop.permute.xlu0 %2188
      %2190 = vrot.lane.b32.xlu0 %v2074, 32
      %v2191 = vpop.permute.xlu0 %2190
      %2192 = vrot.lane.b32.xlu0 %v2075, 32
      %v2193 = vpop.permute.xlu0 %2192
      %2194 = vrot.lane.b32.xlu0 %v2076, 32
      %v2195 = vpop.permute.xlu0 %2194
      %2196 = vrot.lane.b32.xlu0 %v2077, 32
      %v2197 = vpop.permute.xlu0 %2196
      %2198 = vrot.lane.b32.xlu0 %v2078, 32
      %v2199 = vpop.permute.xlu0 %2198
      %2200 = vrot.lane.b32.xlu0 %v2079, 32
      %v2201 = vpop.permute.xlu0 %2200
      %2202 = vrot.lane.b32.xlu0 %v2080, 32
      %v2203 = vpop.permute.xlu0 %2202
      %2204 = vrot.lane.b32.xlu0 %v2081, 32
      %v2205 = vpop.permute.xlu0 %2204
      %2206 = vrot.lane.b32.xlu0 %v2082, 32
      %v2207 = vpop.permute.xlu0 %2206
      %2208 = vrot.lane.b32.xlu0 %v2083, 32
      %v2209 = vpop.permute.xlu0 %2208
      %2210 = vrot.lane.b32.xlu0 %v2084, 32
      %v2211 = vpop.permute.xlu0 %2210
      %2212 = vrot.lane.b32.xlu0 %v2085, 32
      %v2213 = vpop.permute.xlu0 %2212
      %v2230 = vmul.f32 %v2039, %v2183
      %v2231 = vmul.f32 %v2041, %v2185
      %v2232 = vmul.f32 %v2043, %v2187
      %v2233 = vmul.f32 %v2045, %v2189
      %v2234 = vmul.f32 %v2047, %v2191
      %v2235 = vmul.f32 %v2049, %v2193
      %v2236 = vmul.f32 %v2051, %v2195
      %v2237 = vmul.f32 %v2053, %v2197
      %v2238 = vmul.f32 %v2055, %v2199
      %v2239 = vmul.f32 %v2057, %v2201
      %v2240 = vmul.f32 %v2059, %v2203
      %v2241 = vmul.f32 %v2061, %v2205
      %v2242 = vmul.f32 %v2063, %v2207
      %v2243 = vmul.f32 %v2065, %v2209
      %v2244 = vmul.f32 %v2067, %v2211
      %v2245 = vmul.f32 %v2069, %v2213
      %2262 = vrot.lane.b32.xlu0 %v2230, 32
      %v2263 = vpop.permute.xlu0 %2262
      %2264 = vrot.lane.b32.xlu0 %v2231, 32
      %v2265 = vpop.permute.xlu0 %2264
      %2266 = vrot.lane.b32.xlu0 %v2232, 32
      %v2267 = vpop.permute.xlu0 %2266
      %2268 = vrot.lane.b32.xlu0 %v2233, 32
      %v2269 = vpop.permute.xlu0 %2268
      %2270 = vrot.lane.b32.xlu0 %v2234, 32
      %v2271 = vpop.permute.xlu0 %2270
      %2272 = vrot.lane.b32.xlu0 %v2235, 32
      %v2273 = vpop.permute.xlu0 %2272
      %2274 = vrot.lane.b32.xlu0 %v2236, 32
      %v2275 = vpop.permute.xlu0 %2274
      %2276 = vrot.lane.b32.xlu0 %v2237, 32
      %v2277 = vpop.permute.xlu0 %2276
      %2278 = vrot.lane.b32.xlu0 %v2238, 32
      %v2279 = vpop.permute.xlu0 %2278
      %2280 = vrot.lane.b32.xlu0 %v2239, 32
      %v2281 = vpop.permute.xlu0 %2280
      %2282 = vrot.lane.b32.xlu0 %v2240, 32
      %v2283 = vpop.permute.xlu0 %2282
      %2284 = vrot.lane.b32.xlu0 %v2241, 32
      %v2285 = vpop.permute.xlu0 %2284
      %2286 = vrot.lane.b32.xlu0 %v2242, 32
      %v2287 = vpop.permute.xlu0 %2286
      %2288 = vrot.lane.b32.xlu0 %v2243, 32
      %v2289 = vpop.permute.xlu0 %2288
      %2290 = vrot.lane.b32.xlu0 %v2244, 32
      %v2291 = vpop.permute.xlu0 %2290
      %2292 = vrot.lane.b32.xlu0 %v2245, 32
      %v2293 = vpop.permute.xlu0 %2292
      %v2310 = vadd.f32 %v2150, %v2263
      %v2311 = vadd.f32 %v2151, %v2265
      %v2312 = vadd.f32 %v2152, %v2267
      %v2313 = vadd.f32 %v2153, %v2269
      %v2314 = vadd.f32 %v2154, %v2271
      %v2315 = vadd.f32 %v2155, %v2273
      %v2316 = vadd.f32 %v2156, %v2275
      %v2317 = vadd.f32 %v2157, %v2277
      %v2318 = vadd.f32 %v2158, %v2279
      %v2319 = vadd.f32 %v2159, %v2281
      %v2320 = vadd.f32 %v2160, %v2283
      %v2321 = vadd.f32 %v2161, %v2285
      %v2322 = vadd.f32 %v2162, %v2287
      %v2323 = vadd.f32 %v2163, %v2289
      %v2324 = vadd.f32 %v2164, %v2291
      %v2325 = vadd.f32 %v2165, %v2293
      %v2326 = vtanh.pop %v2310
      %v2327 = vtanh.pop %v2311
      %v2328 = vtanh.pop %v2312
      %v2329 = vtanh.pop %v2313
      %v2330 = vtanh.pop %v2314
      %v2331 = vtanh.pop %v2315
      %v2332 = vtanh.pop %v2316
      %v2333 = vtanh.pop %v2317
      %v2334 = vtanh.pop %v2318
      %v2335 = vtanh.pop %v2319
      %v2336 = vtanh.pop %v2320
      %v2337 = vtanh.pop %v2321
      %v2338 = vtanh.pop %v2322
      %v2339 = vtanh.pop %v2323
      %v2340 = vtanh.pop %v2324
      %v2341 = vtanh.pop %v2325
      %2358 = vrot.lane.b32.xlu0 %v2326, 32
      %v2359 = vpop.permute.xlu0 %2358
      %2360 = vrot.lane.b32.xlu0 %v2327, 32
      %v2361 = vpop.permute.xlu0 %2360
      %2362 = vrot.lane.b32.xlu0 %v2328, 32
      %v2363 = vpop.permute.xlu0 %2362
      %2364 = vrot.lane.b32.xlu0 %v2329, 32
      %v2365 = vpop.permute.xlu0 %2364
      %2366 = vrot.lane.b32.xlu0 %v2330, 32
      %v2367 = vpop.permute.xlu0 %2366
      %2368 = vrot.lane.b32.xlu0 %v2331, 32
      %v2369 = vpop.permute.xlu0 %2368
      %2370 = vrot.lane.b32.xlu0 %v2332, 32
      %v2371 = vpop.permute.xlu0 %2370
      %2372 = vrot.lane.b32.xlu0 %v2333, 32
      %v2373 = vpop.permute.xlu0 %2372
      %2374 = vrot.lane.b32.xlu0 %v2334, 32
      %v2375 = vpop.permute.xlu0 %2374
      %2376 = vrot.lane.b32.xlu0 %v2335, 32
      %v2377 = vpop.permute.xlu0 %2376
      %2378 = vrot.lane.b32.xlu0 %v2336, 32
      %v2379 = vpop.permute.xlu0 %2378
      %2380 = vrot.lane.b32.xlu0 %v2337, 32
      %v2381 = vpop.permute.xlu0 %2380
      %2382 = vrot.lane.b32.xlu0 %v2338, 32
      %v2383 = vpop.permute.xlu0 %2382
      %2384 = vrot.lane.b32.xlu0 %v2339, 32
      %v2385 = vpop.permute.xlu0 %2384
      %2386 = vrot.lane.b32.xlu0 %v2340, 32
      %v2387 = vpop.permute.xlu0 %2386
      %2388 = vrot.lane.b32.xlu0 %v2341, 32
      %v2389 = vpop.permute.xlu0 %2388
      %v2406 = vmul.f32 %v2039, %v2359
      %v2407 = vmul.f32 %v2041, %v2361
      %v2408 = vmul.f32 %v2043, %v2363
      %v2409 = vmul.f32 %v2045, %v2365
      %v2410 = vmul.f32 %v2047, %v2367
      %v2411 = vmul.f32 %v2049, %v2369
      %v2412 = vmul.f32 %v2051, %v2371
      %v2413 = vmul.f32 %v2053, %v2373
      %v2414 = vmul.f32 %v2055, %v2375
      %v2415 = vmul.f32 %v2057, %v2377
      %v2416 = vmul.f32 %v2059, %v2379
      %v2417 = vmul.f32 %v2061, %v2381
      %v2418 = vmul.f32 %v2063, %v2383
      %v2419 = vmul.f32 %v2065, %v2385
      %v2420 = vmul.f32 %v2067, %v2387
      %v2421 = vmul.f32 %v2069, %v2389
      %v2422 = vsel %vm267, 6, 1
      %vm2423 = vcmp.lt.s32.totalorder %v2422, %v1190
      %vm2424 = vcmp.lt.s32.totalorder %v2422, %v1193
      %vm2425 = vcmp.lt.s32.totalorder %v2422, %v1196
      %vm2426 = vcmp.lt.s32.totalorder %v2422, %v1199
      %vm2427 = vcmp.lt.s32.totalorder %v2422, %v1202
      %vm2428 = vcmp.lt.s32.totalorder %v2422, %v1205
      %vm2429 = vcmp.lt.s32.totalorder %v2422, %v1208
      %vm2430 = vcmp.lt.s32.totalorder %v2422, %v1211
      %vm2431 = vcmp.lt.s32.totalorder %v2422, %v1214
      %vm2432 = vcmp.lt.s32.totalorder %v2422, %v1217
      %vm2433 = vcmp.lt.s32.totalorder %v2422, %v1220
      %vm2434 = vcmp.lt.s32.totalorder %v2422, %v1223
      %vm2435 = vcmp.lt.s32.totalorder %v2422, %v1226
      %vm2436 = vcmp.lt.s32.totalorder %v2422, %v1229
      %vm2437 = vcmp.lt.s32.totalorder %v2422, %v1232
      %vm2438 = vcmp.lt.s32.totalorder %v2422, %v1235
      %2455 = vrot.lane.b32.xlu0 %v2406, 64
      %v2456 = vpop.permute.xlu0 %2455
      %2457 = vrot.lane.b32.xlu0 %v2407, 64
      %v2458 = vpop.permute.xlu0 %2457
      %2459 = vrot.lane.b32.xlu0 %v2408, 64
      %v2460 = vpop.permute.xlu0 %2459
      %2461 = vrot.lane.b32.xlu0 %v2409, 64
      %v2462 = vpop.permute.xlu0 %2461
      %2463 = vrot.lane.b32.xlu0 %v2410, 64
      %v2464 = vpop.permute.xlu0 %2463
      %2465 = vrot.lane.b32.xlu0 %v2411, 64
      %v2466 = vpop.permute.xlu0 %2465
      %2467 = vrot.lane.b32.xlu0 %v2412, 64
      %v2468 = vpop.permute.xlu0 %2467
      %2469 = vrot.lane.b32.xlu0 %v2413, 64
      %v2470 = vpop.permute.xlu0 %2469
      %2471 = vrot.lane.b32.xlu0 %v2414, 64
      %v2472 = vpop.permute.xlu0 %2471
      %2473 = vrot.lane.b32.xlu0 %v2415, 64
      %v2474 = vpop.permute.xlu0 %2473
      %2475 = vrot.lane.b32.xlu0 %v2416, 64
      %v2476 = vpop.permute.xlu0 %2475
      %2477 = vrot.lane.b32.xlu0 %v2417, 64
      %v2478 = vpop.permute.xlu0 %2477
      %2479 = vrot.lane.b32.xlu0 %v2418, 64
      %v2480 = vpop.permute.xlu0 %2479
      %2481 = vrot.lane.b32.xlu0 %v2419, 64
      %v2482 = vpop.permute.xlu0 %2481
      %2483 = vrot.lane.b32.xlu0 %v2420, 64
      %v2484 = vpop.permute.xlu0 %2483
      %2485 = vrot.lane.b32.xlu0 %v2421, 64
      %v2486 = vpop.permute.xlu0 %2485
      %v2503 = vsel %vm2423, %v2456, %v1316
      %v2504 = vsel %vm2424, %v2458, %v1317
      %v2505 = vsel %vm2425, %v2460, %v1318
      %v2506 = vsel %vm2426, %v2462, %v1319
      %v2507 = vsel %vm2427, %v2464, %v1320
      %v2508 = vsel %vm2428, %v2466, %v1321
      %v2509 = vsel %vm2429, %v2468, %v1322
      %v2510 = vsel %vm2430, %v2470, %v1323
      %v2511 = vsel %vm2431, %v2472, %v1324
      %v2512 = vsel %vm2432, %v2474, %v1325
      %v2513 = vsel %vm2433, %v2476, %v1326
      %v2514 = vsel %vm2434, %v2478, %v1327
      %v2515 = vsel %vm2435, %v2480, %v1328
      %v2516 = vsel %vm2436, %v2482, %v1329
      %v2517 = vsel %vm2437, %v2484, %v1330
      %v2518 = vsel %vm2438, %v2486, %v1331
      %2535 = vrot.lane.b32.xlu0 %v2310, 96
      %v2536 = vpop.permute.xlu0 %2535
      %2537 = vrot.lane.b32.xlu0 %v2311, 96
      %v2538 = vpop.permute.xlu0 %2537
      %2539 = vrot.lane.b32.xlu0 %v2312, 96
      %v2540 = vpop.permute.xlu0 %2539
      %2541 = vrot.lane.b32.xlu0 %v2313, 96
      %v2542 = vpop.permute.xlu0 %2541
      %2543 = vrot.lane.b32.xlu0 %v2314, 96
      %v2544 = vpop.permute.xlu0 %2543
      %2545 = vrot.lane.b32.xlu0 %v2315, 96
      %v2546 = vpop.permute.xlu0 %2545
      %2547 = vrot.lane.b32.xlu0 %v2316, 96
      %v2548 = vpop.permute.xlu0 %2547
      %2549 = vrot.lane.b32.xlu0 %v2317, 96
      %v2550 = vpop.permute.xlu0 %2549
      %2551 = vrot.lane.b32.xlu0 %v2318, 96
      %v2552 = vpop.permute.xlu0 %2551
      %2553 = vrot.lane.b32.xlu0 %v2319, 96
      %v2554 = vpop.permute.xlu0 %2553
      %2555 = vrot.lane.b32.xlu0 %v2320, 96
      %v2556 = vpop.permute.xlu0 %2555
      %2557 = vrot.lane.b32.xlu0 %v2321, 96
      %v2558 = vpop.permute.xlu0 %2557
      %2559 = vrot.lane.b32.xlu0 %v2322, 96
      %v2560 = vpop.permute.xlu0 %2559
      %2561 = vrot.lane.b32.xlu0 %v2323, 96
      %v2562 = vpop.permute.xlu0 %2561
      %2563 = vrot.lane.b32.xlu0 %v2324, 96
      %v2564 = vpop.permute.xlu0 %2563
      %2565 = vrot.lane.b32.xlu0 %v2325, 96
      %v2566 = vpop.permute.xlu0 %2565
      %v2583 = vsel %vm2423, %v2536, %v1396
      %v2584 = vsel %vm2424, %v2538, %v1397
      %v2585 = vsel %vm2425, %v2540, %v1398
      %v2586 = vsel %vm2426, %v2542, %v1399
      %v2587 = vsel %vm2427, %v2544, %v1400
      %v2588 = vsel %vm2428, %v2546, %v1401
      %v2589 = vsel %vm2429, %v2548, %v1402
      %v2590 = vsel %vm2430, %v2550, %v1403
      %v2591 = vsel %vm2431, %v2552, %v1404
      %v2592 = vsel %vm2432, %v2554, %v1405
      %v2593 = vsel %vm2433, %v2556, %v1406
      %v2594 = vsel %vm2434, %v2558, %v1407
      %v2595 = vsel %vm2435, %v2560, %v1408
      %v2596 = vsel %vm2436, %v2562, %v1409
      %v2597 = vsel %vm2437, %v2564, %v1410
      %v2598 = vsel %vm2438, %v2566, %v1411
      %2599 = vset.pattern.permute.xlu0 2
      %2600 = vperm.xlu0 %2599, %v223
      %v2601 = vpop.permute.xlu0 %2600
      %2602 = vset.pattern.permute.xlu0 2
      %2603 = vperm.xlu0 %2602, %v224
      %v2604 = vpop.permute.xlu0 %2603
      %2605 = vset.pattern.permute.xlu0 2
      %2606 = vperm.xlu0 %2605, %v225
      %v2607 = vpop.permute.xlu0 %2606
      %2608 = vset.pattern.permute.xlu0 2
      %2609 = vperm.xlu0 %2608, %v226
      %v2610 = vpop.permute.xlu0 %2609
      %2611 = vset.pattern.permute.xlu0 2
      %2612 = vperm.xlu0 %2611, %v227
      %v2613 = vpop.permute.xlu0 %2612
      %2614 = vset.pattern.permute.xlu0 2
      %2615 = vperm.xlu0 %2614, %v228
      %v2616 = vpop.permute.xlu0 %2615
      %2617 = vset.pattern.permute.xlu0 2
      %2618 = vperm.xlu0 %2617, %v229
      %v2619 = vpop.permute.xlu0 %2618
      %2620 = vset.pattern.permute.xlu0 2
      %2621 = vperm.xlu0 %2620, %v230
      %v2622 = vpop.permute.xlu0 %2621
      %2623 = vset.pattern.permute.xlu0 2
      %2624 = vperm.xlu0 %2623, %v231
      %v2625 = vpop.permute.xlu0 %2624
      %2626 = vset.pattern.permute.xlu0 2
      %2627 = vperm.xlu0 %2626, %v232
      %v2628 = vpop.permute.xlu0 %2627
      %2629 = vset.pattern.permute.xlu0 2
      %2630 = vperm.xlu0 %2629, %v233
      %v2631 = vpop.permute.xlu0 %2630
      %2632 = vset.pattern.permute.xlu0 2
      %2633 = vperm.xlu0 %2632, %v234
      %v2634 = vpop.permute.xlu0 %2633
      %2635 = vset.pattern.permute.xlu0 2
      %2636 = vperm.xlu0 %2635, %v235
      %v2637 = vpop.permute.xlu0 %2636
      %2638 = vset.pattern.permute.xlu0 2
      %2639 = vperm.xlu0 %2638, %v236
      %v2640 = vpop.permute.xlu0 %2639
      %2641 = vset.pattern.permute.xlu0 2
      %2642 = vperm.xlu0 %2641, %v237
      %v2643 = vpop.permute.xlu0 %2642
      %2644 = vset.pattern.permute.xlu0 2
      %2645 = vperm.xlu0 %2644, %v238
      %v2646 = vpop.permute.xlu0 %2645
      %vm2647 = vcmp.eq.s32.totalorder %v266, %v2601
      %vm2648 = vcmp.eq.s32.totalorder %v266, %v2604
      %vm2649 = vcmp.eq.s32.totalorder %v266, %v2607
      %vm2650 = vcmp.eq.s32.totalorder %v266, %v2610
      %vm2651 = vcmp.eq.s32.totalorder %v266, %v2613
      %vm2652 = vcmp.eq.s32.totalorder %v266, %v2616
      %vm2653 = vcmp.eq.s32.totalorder %v266, %v2619
      %vm2654 = vcmp.eq.s32.totalorder %v266, %v2622
      %vm2655 = vcmp.eq.s32.totalorder %v266, %v2625
      %vm2656 = vcmp.eq.s32.totalorder %v266, %v2628
      %vm2657 = vcmp.eq.s32.totalorder %v266, %v2631
      %vm2658 = vcmp.eq.s32.totalorder %v266, %v2634
      %vm2659 = vcmp.eq.s32.totalorder %v266, %v2637
      %vm2660 = vcmp.eq.s32.totalorder %v266, %v2640
      %vm2661 = vcmp.eq.s32.totalorder %v266, %v2643
      %vm2662 = vcmp.eq.s32.totalorder %v266, %v2646
      %2663 = vset.pattern.permute.xlu0 5
      %2664 = vperm.xlu0 %2663, %v332
      %v2665 = vpop.permute.xlu0 %2664
      %2666 = vset.pattern.permute.xlu0 5
      %2667 = vperm.xlu0 %2666, %v333
      %v2668 = vpop.permute.xlu0 %2667
      %2669 = vset.pattern.permute.xlu0 5
      %2670 = vperm.xlu0 %2669, %v334
      %v2671 = vpop.permute.xlu0 %2670
      %2672 = vset.pattern.permute.xlu0 5
      %2673 = vperm.xlu0 %2672, %v335
      %v2674 = vpop.permute.xlu0 %2673
      %2675 = vset.pattern.permute.xlu0 5
      %2676 = vperm.xlu0 %2675, %v336
      %v2677 = vpop.permute.xlu0 %2676
      %2678 = vset.pattern.permute.xlu0 5
      %2679 = vperm.xlu0 %2678, %v337
      %v2680 = vpop.permute.xlu0 %2679
      %2681 = vset.pattern.permute.xlu0 5
      %2682 = vperm.xlu0 %2681, %v338
      %v2683 = vpop.permute.xlu0 %2682
      %2684 = vset.pattern.permute.xlu0 5
      %2685 = vperm.xlu0 %2684, %v339
      %v2686 = vpop.permute.xlu0 %2685
      %2687 = vset.pattern.permute.xlu0 5
      %2688 = vperm.xlu0 %2687, %v340
      %v2689 = vpop.permute.xlu0 %2688
      %2690 = vset.pattern.permute.xlu0 5
      %2691 = vperm.xlu0 %2690, %v341
      %v2692 = vpop.permute.xlu0 %2691
      %2693 = vset.pattern.permute.xlu0 5
      %2694 = vperm.xlu0 %2693, %v342
      %v2695 = vpop.permute.xlu0 %2694
      %2696 = vset.pattern.permute.xlu0 5
      %2697 = vperm.xlu0 %2696, %v343
      %v2698 = vpop.permute.xlu0 %2697
      %2699 = vset.pattern.permute.xlu0 5
      %2700 = vperm.xlu0 %2699, %v344
      %v2701 = vpop.permute.xlu0 %2700
      %2702 = vset.pattern.permute.xlu0 5
      %2703 = vperm.xlu0 %2702, %v345
      %v2704 = vpop.permute.xlu0 %2703
      %2705 = vset.pattern.permute.xlu0 5
      %2706 = vperm.xlu0 %2705, %v346
      %v2707 = vpop.permute.xlu0 %2706
      %2708 = vset.pattern.permute.xlu0 5
      %2709 = vperm.xlu0 %2708, %v347
      %v2710 = vpop.permute.xlu0 %2709
      %vm2711 = vcmp.eq.s32.totalorder %v266, %v2665
      %vm2712 = vcmp.eq.s32.totalorder %v266, %v2668
      %vm2713 = vcmp.eq.s32.totalorder %v266, %v2671
      %vm2714 = vcmp.eq.s32.totalorder %v266, %v2674
      %vm2715 = vcmp.eq.s32.totalorder %v266, %v2677
      %vm2716 = vcmp.eq.s32.totalorder %v266, %v2680
      %vm2717 = vcmp.eq.s32.totalorder %v266, %v2683
      %vm2718 = vcmp.eq.s32.totalorder %v266, %v2686
      %vm2719 = vcmp.eq.s32.totalorder %v266, %v2689
      %vm2720 = vcmp.eq.s32.totalorder %v266, %v2692
      %vm2721 = vcmp.eq.s32.totalorder %v266, %v2695
      %vm2722 = vcmp.eq.s32.totalorder %v266, %v2698
      %vm2723 = vcmp.eq.s32.totalorder %v266, %v2701
      %vm2724 = vcmp.eq.s32.totalorder %v266, %v2704
      %vm2725 = vcmp.eq.s32.totalorder %v266, %v2707
      %vm2726 = vcmp.eq.s32.totalorder %v266, %v2710
      %vm2727 = vmor %vm2647, %vm2711
      %vm2728 = vmor %vm2648, %vm2712
      %vm2729 = vmor %vm2649, %vm2713
      %vm2730 = vmor %vm2650, %vm2714
      %vm2731 = vmor %vm2651, %vm2715
      %vm2732 = vmor %vm2652, %vm2716
      %vm2733 = vmor %vm2653, %vm2717
      %vm2734 = vmor %vm2654, %vm2718
      %vm2735 = vmor %vm2655, %vm2719
      %vm2736 = vmor %vm2656, %vm2720
      %vm2737 = vmor %vm2657, %vm2721
      %vm2738 = vmor %vm2658, %vm2722
      %vm2739 = vmor %vm2659, %vm2723
      %vm2740 = vmor %vm2660, %vm2724
      %vm2741 = vmor %vm2661, %vm2725
      %vm2742 = vmor %vm2662, %vm2726
      %v2743 = vsel %vm2727, 1, 0
      %v2744 = vsel %vm2728, 1, 0
      %v2745 = vsel %vm2729, 1, 0
      %v2746 = vsel %vm2730, 1, 0
      %v2747 = vsel %vm2731, 1, 0
      %v2748 = vsel %vm2732, 1, 0
      %v2749 = vsel %vm2733, 1, 0
      %v2750 = vsel %vm2734, 1, 0
      %v2751 = vsel %vm2735, 1, 0
      %v2752 = vsel %vm2736, 1, 0
      %v2753 = vsel %vm2737, 1, 0
      %v2754 = vsel %vm2738, 1, 0
      %v2755 = vsel %vm2739, 1, 0
      %v2756 = vsel %vm2740, 1, 0
      %v2757 = vsel %vm2741, 1, 0
      %v2758 = vsel %vm2742, 1, 0
      %v2759 = vcvt.s32.f32 %v2743
      %v2760 = vcvt.s32.f32 %v2744
      %v2761 = vcvt.s32.f32 %v2745
      %v2762 = vcvt.s32.f32 %v2746
      %v2763 = vcvt.s32.f32 %v2747
      %v2764 = vcvt.s32.f32 %v2748
      %v2765 = vcvt.s32.f32 %v2749
      %v2766 = vcvt.s32.f32 %v2750
      %v2767 = vcvt.s32.f32 %v2751
      %v2768 = vcvt.s32.f32 %v2752
      %v2769 = vcvt.s32.f32 %v2753
      %v2770 = vcvt.s32.f32 %v2754
      %v2771 = vcvt.s32.f32 %v2755
      %v2772 = vcvt.s32.f32 %v2756
      %v2773 = vcvt.s32.f32 %v2757
      %v2774 = vcvt.s32.f32 %v2758
      %v2776 = vsel %vm460, %v2503, 0
      %v2779 = vsel %vm460, %v2504, 0
      %v2782 = vsel %vm460, %v2505, 0
      %v2785 = vsel %vm460, %v2506, 0
      %v2788 = vsel %vm460, %v2507, 0
      %v2791 = vsel %vm460, %v2508, 0
      %v2794 = vsel %vm460, %v2509, 0
      %v2797 = vsel %vm460, %v2510, 0
      %v2800 = vsel %vm460, %v2511, 0
      %v2803 = vsel %vm460, %v2512, 0
      %v2806 = vsel %vm460, %v2513, 0
      %v2809 = vsel %vm460, %v2514, 0
      %v2812 = vsel %vm460, %v2515, 0
      %v2815 = vsel %vm460, %v2516, 0
      %v2818 = vsel %vm460, %v2517, 0
      %v2821 = vsel %vm460, %v2518, 0
      %2823 = vmatprep.subr.mxu0 0.0
      %2824 = vmatpush1.msra.mxu0 0.0
      %2825 = vmatprep.subr.mxu0 0.0
      %2826 = vmatpush1.msra.mxu0 0.0
      %2827 = vmatprep.subr.mxu0 0.0
      %2828 = vmatpush1.msra.mxu0 0.0
      %2829 = vmatprep.subr.mxu0 0.0
      %2830 = vmatpush1.msra.mxu0 0.0
      %2831 = vmatprep.subr.mxu0 0.0
      %2832 = vmatpush1.msra.mxu0 0.0
      %2833 = vmatprep.subr.mxu0 0.0
      %2834 = vmatpush1.msra.mxu0 0.0
      %2835 = vmatprep.subr.mxu0 0.0
      %2836 = vmatpush1.msra.mxu0 0.0
      %2837 = vmatprep.subr.mxu0 0.0
      %2838 = vmatpush1.msra.mxu0 0.0
      %2839 = vmatprep.subr.mxu0 0.0
      %2840 = vmatpush1.msra.mxu0 0.0
      %2841 = vmatprep.subr.mxu0 0.0
      %2842 = vmatpush1.msra.mxu0 0.0
      %2843 = vmatprep.subr.mxu0 0.0
      %2844 = vmatpush1.msra.mxu0 0.0
      %2845 = vmatprep.subr.mxu0 0.0
      %2846 = vmatpush1.msra.mxu0 0.0
      %2847 = vmatprep.subr.mxu0 0.0
      %2848 = vmatpush1.msra.mxu0 %v264
      %2849 = vmatprep.subr.mxu0 0.0
      %2850 = vmatpush1.msra.mxu0 %v263
      %2851 = vmatprep.subr.mxu0 0.0
      %2852 = vmatpush1.msra.mxu0 %v262
      %2853 = vmatprep.subr.mxu0 0.0
      %2854 = vmatpush1.msra.mxu0 %v261
      %2855 = vmatprep.subr.mxu0 0.0
      %2856 = vmatpush2.msra.mxu0 0.0
      %2857 = vmatprep.subr.mxu0 0.0
      %2858 = vmatpush2.msra.mxu0 0.0
      %2859 = vmatprep.subr.mxu0 0.0
      %2860 = vmatpush2.msra.mxu0 0.0
      %2861 = vmatprep.subr.mxu0 0.0
      %2862 = vmatpush2.msra.mxu0 0.0
      %2863 = vmatprep.subr.mxu0 0.0
      %2864 = vmatpush2.msra.mxu0 0.0
      %2865 = vmatprep.subr.mxu0 0.0
      %2866 = vmatpush2.msra.mxu0 0.0
      %2867 = vmatprep.subr.mxu0 0.0
      %2868 = vmatpush2.msra.mxu0 0.0
      %2869 = vmatprep.subr.mxu0 0.0
      %2870 = vmatpush2.msra.mxu0 0.0
      %2871 = vmatprep.subr.mxu0 0.0
      %2872 = vmatpush2.msra.mxu0 0.0
      %2873 = vmatprep.subr.mxu0 0.0
      %2874 = vmatpush2.msra.mxu0 0.0
      %2875 = vmatprep.subr.mxu0 0.0
      %2876 = vmatpush2.msra.mxu0 0.0
      %2877 = vmatprep.subr.mxu0 0.0
      %2878 = vmatpush2.msra.mxu0 0.0
      %2879 = vmatprep.subr.mxu0 0.0
      %2880 = vmatpush2.msra.mxu0 0.0
      %2881 = vmatprep.subr.mxu0 0.0
      %2882 = vmatpush2.msra.mxu0 0.0
      %2883 = vmatprep.subr.mxu0 0.0
      %2884 = vmatpush2.msra.mxu0 0.0
      %2885 = vmatprep.subr.mxu0 0.0
      %2886 = vmatpush2.msra.mxu0 0.0
      %2887 = vmatprep.mubr.f32.mxu0 0.0
      %2888 = vmatmul.mubr.f32.gmra.mxu0 %v2776
      %v2889 = vpop.f32.mrf.mxu0
      %v2890 = vadd.f32 0.0, %v2889
      %v2891 = vpop.f32.mrf.mxu0
      %2892 = vmatprep.mubr.f32.mxu0 0.0
      %2893 = vmatmul.mubr.f32.gmra.mxu0 %v2779
      %v2894 = vpop.f32.mrf.mxu0
      %v2895 = vadd.f32 0.0, %v2894
      %v2896 = vpop.f32.mrf.mxu0
      %2897 = vmatprep.mubr.f32.mxu0 0.0
      %2898 = vmatmul.mubr.f32.gmra.mxu0 %v2782
      %v2899 = vpop.f32.mrf.mxu0
      %v2900 = vadd.f32 0.0, %v2899
      %v2901 = vpop.f32.mrf.mxu0
      %2902 = vmatprep.mubr.f32.mxu0 0.0
      %2903 = vmatmul.mubr.f32.gmra.mxu0 %v2785
      %v2904 = vpop.f32.mrf.mxu0
      %v2905 = vadd.f32 0.0, %v2904
      %v2906 = vpop.f32.mrf.mxu0
      %2907 = vmatprep.mubr.f32.mxu0 0.0
      %2908 = vmatmul.mubr.f32.gmra.mxu0 %v2788
      %v2909 = vpop.f32.mrf.mxu0
      %v2910 = vadd.f32 0.0, %v2909
      %v2911 = vpop.f32.mrf.mxu0
      %2912 = vmatprep.mubr.f32.mxu0 0.0
      %2913 = vmatmul.mubr.f32.gmra.mxu0 %v2791
      %v2914 = vpop.f32.mrf.mxu0
      %v2915 = vadd.f32 0.0, %v2914
      %v2916 = vpop.f32.mrf.mxu0
      %2917 = vmatprep.mubr.f32.mxu0 0.0
      %2918 = vmatmul.mubr.f32.gmra.mxu0 %v2794
      %v2919 = vpop.f32.mrf.mxu0
      %v2920 = vadd.f32 0.0, %v2919
      %v2921 = vpop.f32.mrf.mxu0
      %2922 = vmatprep.mubr.f32.mxu0 0.0
      %2923 = vmatmul.mubr.f32.gmra.mxu0 %v2797
      %v2924 = vpop.f32.mrf.mxu0
      %v2925 = vadd.f32 0.0, %v2924
      %v2926 = vpop.f32.mrf.mxu0
      %2927 = vmatprep.mubr.f32.mxu0 0.0
      %2928 = vmatmul.mubr.f32.gmra.mxu0 %v2800
      %v2929 = vpop.f32.mrf.mxu0
      %v2930 = vadd.f32 0.0, %v2929
      %v2931 = vpop.f32.mrf.mxu0
      %2932 = vmatprep.mubr.f32.mxu0 0.0
      %2933 = vmatmul.mubr.f32.gmra.mxu0 %v2803
      %v2934 = vpop.f32.mrf.mxu0
      %v2935 = vadd.f32 0.0, %v2934
      %v2936 = vpop.f32.mrf.mxu0
      %2937 = vmatprep.mubr.f32.mxu0 0.0
      %2938 = vmatmul.mubr.f32.gmra.mxu0 %v2806
      %v2939 = vpop.f32.mrf.mxu0
      %v2940 = vadd.f32 0.0, %v2939
      %v2941 = vpop.f32.mrf.mxu0
      %2942 = vmatprep.mubr.f32.mxu0 0.0
      %2943 = vmatmul.mubr.f32.gmra.mxu0 %v2809
      %v2944 = vpop.f32.mrf.mxu0
      %v2945 = vadd.f32 0.0, %v2944
      %v2946 = vpop.f32.mrf.mxu0
      %2947 = vmatprep.mubr.f32.mxu0 0.0
      %2948 = vmatmul.mubr.f32.gmra.mxu0 %v2812
      %v2949 = vpop.f32.mrf.mxu0
      %v2950 = vadd.f32 0.0, %v2949
      %v2951 = vpop.f32.mrf.mxu0
      %2952 = vmatprep.mubr.f32.mxu0 0.0
      %2953 = vmatmul.mubr.f32.gmra.mxu0 %v2815
      %v2954 = vpop.f32.mrf.mxu0
      %v2955 = vadd.f32 0.0, %v2954
      %v2956 = vpop.f32.mrf.mxu0
      %2957 = vmatprep.mubr.f32.mxu0 0.0
      %2958 = vmatmul.mubr.f32.gmra.mxu0 %v2818
      %v2959 = vpop.f32.mrf.mxu0
      %v2960 = vadd.f32 0.0, %v2959
      %v2961 = vpop.f32.mrf.mxu0
      %2962 = vmatprep.mubr.f32.mxu0 0.0
      %2963 = vmatmul.mubr.f32.gmra.mxu0 %v2821
      %v2964 = vpop.f32.mrf.mxu0
      %v2965 = vadd.f32 0.0, %v2964
      %v2966 = vpop.f32.mrf.mxu0
      %2967 = vdwg.mxu0
      %v2969 = vsel %vm609, %v2759, 0
      %v2972 = vsel %vm609, %v2760, 0
      %v2975 = vsel %vm609, %v2761, 0
      %v2978 = vsel %vm609, %v2762, 0
      %v2981 = vsel %vm609, %v2763, 0
      %v2984 = vsel %vm609, %v2764, 0
      %v2987 = vsel %vm609, %v2765, 0
      %v2990 = vsel %vm609, %v2766, 0
      %v2993 = vsel %vm609, %v2767, 0
      %v2996 = vsel %vm609, %v2768, 0
      %v2999 = vsel %vm609, %v2769, 0
      %v3002 = vsel %vm609, %v2770, 0
      %v3005 = vsel %vm609, %v2771, 0
      %v3008 = vsel %vm609, %v2772, 0
      %v3011 = vsel %vm609, %v2773, 0
      %v3014 = vsel %vm609, %v2774, 0
      %3016 = vmatprep.subr.mxu0 0.0
      %3017 = vmatpush1.msra.mxu0 0.0
      %3018 = vmatprep.subr.mxu0 0.0
      %3019 = vmatpush1.msra.mxu0 0.0
      %3020 = vmatprep.subr.mxu0 0.0
      %3021 = vmatpush1.msra.mxu0 0.0
      %3022 = vmatprep.subr.mxu0 0.0
      %3023 = vmatpush1.msra.mxu0 0.0
      %3024 = vmatprep.subr.mxu0 0.0
      %3025 = vmatpush1.msra.mxu0 0.0
      %3026 = vmatprep.subr.mxu0 0.0
      %3027 = vmatpush1.msra.mxu0 0.0
      %3028 = vmatprep.subr.mxu0 0.0
      %3029 = vmatpush1.msra.mxu0 0.0
      %3030 = vmatprep.subr.mxu0 0.0
      %3031 = vmatpush1.msra.mxu0 0.0
      %3032 = vmatprep.subr.mxu0 0.0
      %3033 = vmatpush1.msra.mxu0 0.0
      %3034 = vmatprep.subr.mxu0 0.0
      %3035 = vmatpush1.msra.mxu0 0.0
      %3036 = vmatprep.subr.mxu0 0.0
      %3037 = vmatpush1.msra.mxu0 %v260
      %3038 = vmatprep.subr.mxu0 0.0
      %3039 = vmatpush1.msra.mxu0 %v259
      %3040 = vmatprep.subr.mxu0 0.0
      %3041 = vmatpush1.msra.mxu0 %v258
      %3042 = vmatprep.subr.mxu0 0.0
      %3043 = vmatpush1.msra.mxu0 %v257
      %3044 = vmatprep.subr.mxu0 0.0
      %3045 = vmatpush1.msra.mxu0 %v256
      %3046 = vmatprep.subr.mxu0 0.0
      %3047 = vmatpush1.msra.mxu0 %v255
      %3048 = vmatprep.subr.mxu0 0.0
      %3049 = vmatpush2.msra.mxu0 0.0
      %3050 = vmatprep.subr.mxu0 0.0
      %3051 = vmatpush2.msra.mxu0 0.0
      %3052 = vmatprep.subr.mxu0 0.0
      %3053 = vmatpush2.msra.mxu0 0.0
      %3054 = vmatprep.subr.mxu0 0.0
      %3055 = vmatpush2.msra.mxu0 0.0
      %3056 = vmatprep.subr.mxu0 0.0
      %3057 = vmatpush2.msra.mxu0 0.0
      %3058 = vmatprep.subr.mxu0 0.0
      %3059 = vmatpush2.msra.mxu0 0.0
      %3060 = vmatprep.subr.mxu0 0.0
      %3061 = vmatpush2.msra.mxu0 0.0
      %3062 = vmatprep.subr.mxu0 0.0
      %3063 = vmatpush2.msra.mxu0 0.0
      %3064 = vmatprep.subr.mxu0 0.0
      %3065 = vmatpush2.msra.mxu0 0.0
      %3066 = vmatprep.subr.mxu0 0.0
      %3067 = vmatpush2.msra.mxu0 0.0
      %3068 = vmatprep.subr.mxu0 0.0
      %3069 = vmatpush2.msra.mxu0 0.0
      %3070 = vmatprep.subr.mxu0 0.0
      %3071 = vmatpush2.msra.mxu0 0.0
      %3072 = vmatprep.subr.mxu0 0.0
      %3073 = vmatpush2.msra.mxu0 0.0
      %3074 = vmatprep.subr.mxu0 0.0
      %3075 = vmatpush2.msra.mxu0 0.0
      %3076 = vmatprep.subr.mxu0 0.0
      %3077 = vmatpush2.msra.mxu0 0.0
      %3078 = vmatprep.subr.mxu0 0.0
      %3079 = vmatpush2.msra.mxu0 0.0
      %3080 = vmatprep.mubr.f32.mxu0 0.0
      %3081 = vmatmul.mubr.f32.gmra.mxu0 %v2969
      %v3082 = vpop.f32.mrf.mxu0
      %v3083 = vadd.f32 %v2890, %v3082
      %v3084 = vpop.f32.mrf.mxu0
      %3085 = vmatprep.mubr.f32.mxu0 0.0
      %3086 = vmatmul.mubr.f32.gmra.mxu0 %v2972
      %v3087 = vpop.f32.mrf.mxu0
      %v3088 = vadd.f32 %v2895, %v3087
      %v3089 = vpop.f32.mrf.mxu0
      %3090 = vmatprep.mubr.f32.mxu0 0.0
      %3091 = vmatmul.mubr.f32.gmra.mxu0 %v2975
      %v3092 = vpop.f32.mrf.mxu0
      %v3093 = vadd.f32 %v2900, %v3092
      %v3094 = vpop.f32.mrf.mxu0
      %3095 = vmatprep.mubr.f32.mxu0 0.0
      %3096 = vmatmul.mubr.f32.gmra.mxu0 %v2978
      %v3097 = vpop.f32.mrf.mxu0
      %v3098 = vadd.f32 %v2905, %v3097
      %v3099 = vpop.f32.mrf.mxu0
      %3100 = vmatprep.mubr.f32.mxu0 0.0
      %3101 = vmatmul.mubr.f32.gmra.mxu0 %v2981
      %v3102 = vpop.f32.mrf.mxu0
      %v3103 = vadd.f32 %v2910, %v3102
      %v3104 = vpop.f32.mrf.mxu0
      %3105 = vmatprep.mubr.f32.mxu0 0.0
      %3106 = vmatmul.mubr.f32.gmra.mxu0 %v2984
      %v3107 = vpop.f32.mrf.mxu0
      %v3108 = vadd.f32 %v2915, %v3107
      %v3109 = vpop.f32.mrf.mxu0
      %3110 = vmatprep.mubr.f32.mxu0 0.0
      %3111 = vmatmul.mubr.f32.gmra.mxu0 %v2987
      %v3112 = vpop.f32.mrf.mxu0
      %v3113 = vadd.f32 %v2920, %v3112
      %v3114 = vpop.f32.mrf.mxu0
      %3115 = vmatprep.mubr.f32.mxu0 0.0
      %3116 = vmatmul.mubr.f32.gmra.mxu0 %v2990
      %v3117 = vpop.f32.mrf.mxu0
      %v3118 = vadd.f32 %v2925, %v3117
      %v3119 = vpop.f32.mrf.mxu0
      %3120 = vmatprep.mubr.f32.mxu0 0.0
      %3121 = vmatmul.mubr.f32.gmra.mxu0 %v2993
      %v3122 = vpop.f32.mrf.mxu0
      %v3123 = vadd.f32 %v2930, %v3122
      %v3124 = vpop.f32.mrf.mxu0
      %3125 = vmatprep.mubr.f32.mxu0 0.0
      %3126 = vmatmul.mubr.f32.gmra.mxu0 %v2996
      %v3127 = vpop.f32.mrf.mxu0
      %v3128 = vadd.f32 %v2935, %v3127
      %v3129 = vpop.f32.mrf.mxu0
      %3130 = vmatprep.mubr.f32.mxu0 0.0
      %3131 = vmatmul.mubr.f32.gmra.mxu0 %v2999
      %v3132 = vpop.f32.mrf.mxu0
      %v3133 = vadd.f32 %v2940, %v3132
      %v3134 = vpop.f32.mrf.mxu0
      %3135 = vmatprep.mubr.f32.mxu0 0.0
      %3136 = vmatmul.mubr.f32.gmra.mxu0 %v3002
      %v3137 = vpop.f32.mrf.mxu0
      %v3138 = vadd.f32 %v2945, %v3137
      %v3139 = vpop.f32.mrf.mxu0
      %3140 = vmatprep.mubr.f32.mxu0 0.0
      %3141 = vmatmul.mubr.f32.gmra.mxu0 %v3005
      %v3142 = vpop.f32.mrf.mxu0
      %v3143 = vadd.f32 %v2950, %v3142
      %v3144 = vpop.f32.mrf.mxu0
      %3145 = vmatprep.mubr.f32.mxu0 0.0
      %3146 = vmatmul.mubr.f32.gmra.mxu0 %v3008
      %v3147 = vpop.f32.mrf.mxu0
      %v3148 = vadd.f32 %v2955, %v3147
      %v3149 = vpop.f32.mrf.mxu0
      %3150 = vmatprep.mubr.f32.mxu0 0.0
      %3151 = vmatmul.mubr.f32.gmra.mxu0 %v3011
      %v3152 = vpop.f32.mrf.mxu0
      %v3153 = vadd.f32 %v2960, %v3152
      %v3154 = vpop.f32.mrf.mxu0
      %3155 = vmatprep.mubr.f32.mxu0 0.0
      %3156 = vmatmul.mubr.f32.gmra.mxu0 %v3014
      %v3157 = vpop.f32.mrf.mxu0
      %v3158 = vadd.f32 %v2965, %v3157
      %v3159 = vpop.f32.mrf.mxu0
      %3160 = vdwg.mxu0
      %v3161 = vxor.u32 %v3083, 2147483648
      %v3162 = vxor.u32 %v3088, 2147483648
      %v3163 = vxor.u32 %v3093, 2147483648
      %v3164 = vxor.u32 %v3098, 2147483648
      %v3165 = vxor.u32 %v3103, 2147483648
      %v3166 = vxor.u32 %v3108, 2147483648
      %v3167 = vxor.u32 %v3113, 2147483648
      %v3168 = vxor.u32 %v3118, 2147483648
      %v3169 = vxor.u32 %v3123, 2147483648
      %v3170 = vxor.u32 %v3128, 2147483648
      %v3171 = vxor.u32 %v3133, 2147483648
      %v3172 = vxor.u32 %v3138, 2147483648
      %v3173 = vxor.u32 %v3143, 2147483648
      %v3174 = vxor.u32 %v3148, 2147483648
      %v3175 = vxor.u32 %v3153, 2147483648
      %v3176 = vxor.u32 %v3158, 2147483648
      %v3177 = vmul.f32 %v3161, 1.442695
      %v3178 = vpow.pop %v3177
      %v3179 = vmul.f32 %v3162, 1.442695
      %v3180 = vpow.pop %v3179
      %v3181 = vmul.f32 %v3163, 1.442695
      %v3182 = vpow.pop %v3181
      %v3183 = vmul.f32 %v3164, 1.442695
      %v3184 = vpow.pop %v3183
      %v3185 = vmul.f32 %v3165, 1.442695
      %v3186 = vpow.pop %v3185
      %v3187 = vmul.f32 %v3166, 1.442695
      %v3188 = vpow.pop %v3187
      %v3189 = vmul.f32 %v3167, 1.442695
      %v3190 = vpow.pop %v3189
      %v3191 = vmul.f32 %v3168, 1.442695
      %v3192 = vpow.pop %v3191
      %v3193 = vmul.f32 %v3169, 1.442695
      %v3194 = vpow.pop %v3193
      %v3195 = vmul.f32 %v3170, 1.442695
      %v3196 = vpow.pop %v3195
      %v3197 = vmul.f32 %v3171, 1.442695
      %v3198 = vpow.pop %v3197
      %v3199 = vmul.f32 %v3172, 1.442695
      %v3200 = vpow.pop %v3199
      %v3201 = vmul.f32 %v3173, 1.442695
      %v3202 = vpow.pop %v3201
      %v3203 = vmul.f32 %v3174, 1.442695
      %v3204 = vpow.pop %v3203
      %v3205 = vmul.f32 %v3175, 1.442695
      %v3206 = vpow.pop %v3205
      %v3207 = vmul.f32 %v3176, 1.442695
      %v3208 = vpow.pop %v3207
      %v3209 = vadd.f32 %v3178, 1.0
      %v3210 = vadd.f32 %v3180, 1.0
      %v3211 = vadd.f32 %v3182, 1.0
      %v3212 = vadd.f32 %v3184, 1.0
      %v3213 = vadd.f32 %v3186, 1.0
      %v3214 = vadd.f32 %v3188, 1.0
      %v3215 = vadd.f32 %v3190, 1.0
      %v3216 = vadd.f32 %v3192, 1.0
      %v3217 = vadd.f32 %v3194, 1.0
      %v3218 = vadd.f32 %v3196, 1.0
      %v3219 = vadd.f32 %v3198, 1.0
      %v3220 = vadd.f32 %v3200, 1.0
      %v3221 = vadd.f32 %v3202, 1.0
      %v3222 = vadd.f32 %v3204, 1.0
      %v3223 = vadd.f32 %v3206, 1.0
      %v3224 = vadd.f32 %v3208, 1.0
      %v3225 = vrcp.pop %v3209
      %v3226 = vmul.f32 1.0, %v3225
      %v3227 = vrcp.pop %v3210
      %v3228 = vmul.f32 1.0, %v3227
      %v3229 = vrcp.pop %v3211
      %v3230 = vmul.f32 1.0, %v3229
      %v3231 = vrcp.pop %v3212
      %v3232 = vmul.f32 1.0, %v3231
      %v3233 = vrcp.pop %v3213
      %v3234 = vmul.f32 1.0, %v3233
      %v3235 = vrcp.pop %v3214
      %v3236 = vmul.f32 1.0, %v3235
      %v3237 = vrcp.pop %v3215
      %v3238 = vmul.f32 1.0, %v3237
      %v3239 = vrcp.pop %v3216
      %v3240 = vmul.f32 1.0, %v3239
      %v3241 = vrcp.pop %v3217
      %v3242 = vmul.f32 1.0, %v3241
      %v3243 = vrcp.pop %v3218
      %v3244 = vmul.f32 1.0, %v3243
      %v3245 = vrcp.pop %v3219
      %v3246 = vmul.f32 1.0, %v3245
      %v3247 = vrcp.pop %v3220
      %v3248 = vmul.f32 1.0, %v3247
      %v3249 = vrcp.pop %v3221
      %v3250 = vmul.f32 1.0, %v3249
      %v3251 = vrcp.pop %v3222
      %v3252 = vmul.f32 1.0, %v3251
      %v3253 = vrcp.pop %v3223
      %v3254 = vmul.f32 1.0, %v3253
      %v3255 = vrcp.pop %v3224
      %v3256 = vmul.f32 1.0, %v3255
      %v3257 = vtanh.pop %v3083
      %v3258 = vtanh.pop %v3088
      %v3259 = vtanh.pop %v3093
      %v3260 = vtanh.pop %v3098
      %v3261 = vtanh.pop %v3103
      %v3262 = vtanh.pop %v3108
      %v3263 = vtanh.pop %v3113
      %v3264 = vtanh.pop %v3118
      %v3265 = vtanh.pop %v3123
      %v3266 = vtanh.pop %v3128
      %v3267 = vtanh.pop %v3133
      %v3268 = vtanh.pop %v3138
      %v3269 = vtanh.pop %v3143
      %v3270 = vtanh.pop %v3148
      %v3271 = vtanh.pop %v3153
      %v3272 = vtanh.pop %v3158
      %3289 = vrot.lane.b32.xlu0 %v2583, 32
      %v3290 = vpop.permute.xlu0 %3289
      %3291 = vrot.lane.b32.xlu0 %v2584, 32
      %v3292 = vpop.permute.xlu0 %3291
      %3293 = vrot.lane.b32.xlu0 %v2585, 32
      %v3294 = vpop.permute.xlu0 %3293
      %3295 = vrot.lane.b32.xlu0 %v2586, 32
      %v3296 = vpop.permute.xlu0 %3295
      %3297 = vrot.lane.b32.xlu0 %v2587, 32
      %v3298 = vpop.permute.xlu0 %3297
      %3299 = vrot.lane.b32.xlu0 %v2588, 32
      %v3300 = vpop.permute.xlu0 %3299
      %3301 = vrot.lane.b32.xlu0 %v2589, 32
      %v3302 = vpop.permute.xlu0 %3301
      %3303 = vrot.lane.b32.xlu0 %v2590, 32
      %v3304 = vpop.permute.xlu0 %3303
      %3305 = vrot.lane.b32.xlu0 %v2591, 32
      %v3306 = vpop.permute.xlu0 %3305
      %3307 = vrot.lane.b32.xlu0 %v2592, 32
      %v3308 = vpop.permute.xlu0 %3307
      %3309 = vrot.lane.b32.xlu0 %v2593, 32
      %v3310 = vpop.permute.xlu0 %3309
      %3311 = vrot.lane.b32.xlu0 %v2594, 32
      %v3312 = vpop.permute.xlu0 %3311
      %3313 = vrot.lane.b32.xlu0 %v2595, 32
      %v3314 = vpop.permute.xlu0 %3313
      %3315 = vrot.lane.b32.xlu0 %v2596, 32
      %v3316 = vpop.permute.xlu0 %3315
      %3317 = vrot.lane.b32.xlu0 %v2597, 32
      %v3318 = vpop.permute.xlu0 %3317
      %3319 = vrot.lane.b32.xlu0 %v2598, 32
      %v3320 = vpop.permute.xlu0 %3319
      %v3337 = vmul.f32 %v3226, %v3290
      %v3338 = vmul.f32 %v3228, %v3292
      %v3339 = vmul.f32 %v3230, %v3294
      %v3340 = vmul.f32 %v3232, %v3296
      %v3341 = vmul.f32 %v3234, %v3298
      %v3342 = vmul.f32 %v3236, %v3300
      %v3343 = vmul.f32 %v3238, %v3302
      %v3344 = vmul.f32 %v3240, %v3304
      %v3345 = vmul.f32 %v3242, %v3306
      %v3346 = vmul.f32 %v3244, %v3308
      %v3347 = vmul.f32 %v3246, %v3310
      %v3348 = vmul.f32 %v3248, %v3312
      %v3349 = vmul.f32 %v3250, %v3314
      %v3350 = vmul.f32 %v3252, %v3316
      %v3351 = vmul.f32 %v3254, %v3318
      %v3352 = vmul.f32 %v3256, %v3320
      %3369 = vrot.lane.b32.xlu0 %v3257, 32
      %v3370 = vpop.permute.xlu0 %3369
      %3371 = vrot.lane.b32.xlu0 %v3258, 32
      %v3372 = vpop.permute.xlu0 %3371
      %3373 = vrot.lane.b32.xlu0 %v3259, 32
      %v3374 = vpop.permute.xlu0 %3373
      %3375 = vrot.lane.b32.xlu0 %v3260, 32
      %v3376 = vpop.permute.xlu0 %3375
      %3377 = vrot.lane.b32.xlu0 %v3261, 32
      %v3378 = vpop.permute.xlu0 %3377
      %3379 = vrot.lane.b32.xlu0 %v3262, 32
      %v3380 = vpop.permute.xlu0 %3379
      %3381 = vrot.lane.b32.xlu0 %v3263, 32
      %v3382 = vpop.permute.xlu0 %3381
      %3383 = vrot.lane.b32.xlu0 %v3264, 32
      %v3384 = vpop.permute.xlu0 %3383
      %3385 = vrot.lane.b32.xlu0 %v3265, 32
      %v3386 = vpop.permute.xlu0 %3385
      %3387 = vrot.lane.b32.xlu0 %v3266, 32
      %v3388 = vpop.permute.xlu0 %3387
      %3389 = vrot.lane.b32.xlu0 %v3267, 32
      %v3390 = vpop.permute.xlu0 %3389
      %3391 = vrot.lane.b32.xlu0 %v3268, 32
      %v3392 = vpop.permute.xlu0 %3391
      %3393 = vrot.lane.b32.xlu0 %v3269, 32
      %v3394 = vpop.permute.xlu0 %3393
      %3395 = vrot.lane.b32.xlu0 %v3270, 32
      %v3396 = vpop.permute.xlu0 %3395
      %3397 = vrot.lane.b32.xlu0 %v3271, 32
      %v3398 = vpop.permute.xlu0 %3397
      %3399 = vrot.lane.b32.xlu0 %v3272, 32
      %v3400 = vpop.permute.xlu0 %3399
      %v3417 = vmul.f32 %v3226, %v3370
      %v3418 = vmul.f32 %v3228, %v3372
      %v3419 = vmul.f32 %v3230, %v3374
      %v3420 = vmul.f32 %v3232, %v3376
      %v3421 = vmul.f32 %v3234, %v3378
      %v3422 = vmul.f32 %v3236, %v3380
      %v3423 = vmul.f32 %v3238, %v3382
      %v3424 = vmul.f32 %v3240, %v3384
      %v3425 = vmul.f32 %v3242, %v3386
      %v3426 = vmul.f32 %v3244, %v3388
      %v3427 = vmul.f32 %v3246, %v3390
      %v3428 = vmul.f32 %v3248, %v3392
      %v3429 = vmul.f32 %v3250, %v3394
      %v3430 = vmul.f32 %v3252, %v3396
      %v3431 = vmul.f32 %v3254, %v3398
      %v3432 = vmul.f32 %v3256, %v3400
      %3449 = vrot.lane.b32.xlu0 %v3417, 32
      %v3450 = vpop.permute.xlu0 %3449
      %3451 = vrot.lane.b32.xlu0 %v3418, 32
      %v3452 = vpop.permute.xlu0 %3451
      %3453 = vrot.lane.b32.xlu0 %v3419, 32
      %v3454 = vpop.permute.xlu0 %3453
      %3455 = vrot.lane.b32.xlu0 %v3420, 32
      %v3456 = vpop.permute.xlu0 %3455
      %3457 = vrot.lane.b32.xlu0 %v3421, 32
      %v3458 = vpop.permute.xlu0 %3457
      %3459 = vrot.lane.b32.xlu0 %v3422, 32
      %v3460 = vpop.permute.xlu0 %3459
      %3461 = vrot.lane.b32.xlu0 %v3423, 32
      %v3462 = vpop.permute.xlu0 %3461
      %3463 = vrot.lane.b32.xlu0 %v3424, 32
      %v3464 = vpop.permute.xlu0 %3463
      %3465 = vrot.lane.b32.xlu0 %v3425, 32
      %v3466 = vpop.permute.xlu0 %3465
      %3467 = vrot.lane.b32.xlu0 %v3426, 32
      %v3468 = vpop.permute.xlu0 %3467
      %3469 = vrot.lane.b32.xlu0 %v3427, 32
      %v3470 = vpop.permute.xlu0 %3469
      %3471 = vrot.lane.b32.xlu0 %v3428, 32
      %v3472 = vpop.permute.xlu0 %3471
      %3473 = vrot.lane.b32.xlu0 %v3429, 32
      %v3474 = vpop.permute.xlu0 %3473
      %3475 = vrot.lane.b32.xlu0 %v3430, 32
      %v3476 = vpop.permute.xlu0 %3475
      %3477 = vrot.lane.b32.xlu0 %v3431, 32
      %v3478 = vpop.permute.xlu0 %3477
      %3479 = vrot.lane.b32.xlu0 %v3432, 32
      %v3480 = vpop.permute.xlu0 %3479
      %v3497 = vadd.f32 %v3337, %v3450
      %v3498 = vadd.f32 %v3338, %v3452
      %v3499 = vadd.f32 %v3339, %v3454
      %v3500 = vadd.f32 %v3340, %v3456
      %v3501 = vadd.f32 %v3341, %v3458
      %v3502 = vadd.f32 %v3342, %v3460
      %v3503 = vadd.f32 %v3343, %v3462
      %v3504 = vadd.f32 %v3344, %v3464
      %v3505 = vadd.f32 %v3345, %v3466
      %v3506 = vadd.f32 %v3346, %v3468
      %v3507 = vadd.f32 %v3347, %v3470
      %v3508 = vadd.f32 %v3348, %v3472
      %v3509 = vadd.f32 %v3349, %v3474
      %v3510 = vadd.f32 %v3350, %v3476
      %v3511 = vadd.f32 %v3351, %v3478
      %v3512 = vadd.f32 %v3352, %v3480
      %v3513 = vtanh.pop %v3497
      %v3514 = vtanh.pop %v3498
      %v3515 = vtanh.pop %v3499
      %v3516 = vtanh.pop %v3500
      %v3517 = vtanh.pop %v3501
      %v3518 = vtanh.pop %v3502
      %v3519 = vtanh.pop %v3503
      %v3520 = vtanh.pop %v3504
      %v3521 = vtanh.pop %v3505
      %v3522 = vtanh.pop %v3506
      %v3523 = vtanh.pop %v3507
      %v3524 = vtanh.pop %v3508
      %v3525 = vtanh.pop %v3509
      %v3526 = vtanh.pop %v3510
      %v3527 = vtanh.pop %v3511
      %v3528 = vtanh.pop %v3512
      %3545 = vrot.lane.b32.xlu0 %v3513, 32
      %v3546 = vpop.permute.xlu0 %3545
      %3547 = vrot.lane.b32.xlu0 %v3514, 32
      %v3548 = vpop.permute.xlu0 %3547
      %3549 = vrot.lane.b32.xlu0 %v3515, 32
      %v3550 = vpop.permute.xlu0 %3549
      %3551 = vrot.lane.b32.xlu0 %v3516, 32
      %v3552 = vpop.permute.xlu0 %3551
      %3553 = vrot.lane.b32.xlu0 %v3517, 32
      %v3554 = vpop.permute.xlu0 %3553
      %3555 = vrot.lane.b32.xlu0 %v3518, 32
      %v3556 = vpop.permute.xlu0 %3555
      %3557 = vrot.lane.b32.xlu0 %v3519, 32
      %v3558 = vpop.permute.xlu0 %3557
      %3559 = vrot.lane.b32.xlu0 %v3520, 32
      %v3560 = vpop.permute.xlu0 %3559
      %3561 = vrot.lane.b32.xlu0 %v3521, 32
      %v3562 = vpop.permute.xlu0 %3561
      %3563 = vrot.lane.b32.xlu0 %v3522, 32
      %v3564 = vpop.permute.xlu0 %3563
      %3565 = vrot.lane.b32.xlu0 %v3523, 32
      %v3566 = vpop.permute.xlu0 %3565
      %3567 = vrot.lane.b32.xlu0 %v3524, 32
      %v3568 = vpop.permute.xlu0 %3567
      %3569 = vrot.lane.b32.xlu0 %v3525, 32
      %v3570 = vpop.permute.xlu0 %3569
      %3571 = vrot.lane.b32.xlu0 %v3526, 32
      %v3572 = vpop.permute.xlu0 %3571
      %3573 = vrot.lane.b32.xlu0 %v3527, 32
      %v3574 = vpop.permute.xlu0 %3573
      %3575 = vrot.lane.b32.xlu0 %v3528, 32
      %v3576 = vpop.permute.xlu0 %3575
      %v3593 = vmul.f32 %v3226, %v3546
      %v3594 = vmul.f32 %v3228, %v3548
      %v3595 = vmul.f32 %v3230, %v3550
      %v3596 = vmul.f32 %v3232, %v3552
      %v3597 = vmul.f32 %v3234, %v3554
      %v3598 = vmul.f32 %v3236, %v3556
      %v3599 = vmul.f32 %v3238, %v3558
      %v3600 = vmul.f32 %v3240, %v3560
      %v3601 = vmul.f32 %v3242, %v3562
      %v3602 = vmul.f32 %v3244, %v3564
      %v3603 = vmul.f32 %v3246, %v3566
      %v3604 = vmul.f32 %v3248, %v3568
      %v3605 = vmul.f32 %v3250, %v3570
      %v3606 = vmul.f32 %v3252, %v3572
      %v3607 = vmul.f32 %v3254, %v3574
      %v3608 = vmul.f32 %v3256, %v3576
      %v3609 = vsel %vm267, 5, 2
      %vm3610 = vcmp.lt.s32.totalorder %v3609, %v1190
      %vm3611 = vcmp.lt.s32.totalorder %v3609, %v1193
      %vm3612 = vcmp.lt.s32.totalorder %v3609, %v1196
      %vm3613 = vcmp.lt.s32.totalorder %v3609, %v1199
      %vm3614 = vcmp.lt.s32.totalorder %v3609, %v1202
      %vm3615 = vcmp.lt.s32.totalorder %v3609, %v1205
      %vm3616 = vcmp.lt.s32.totalorder %v3609, %v1208
      %vm3617 = vcmp.lt.s32.totalorder %v3609, %v1211
      %vm3618 = vcmp.lt.s32.totalorder %v3609, %v1214
      %vm3619 = vcmp.lt.s32.totalorder %v3609, %v1217
      %vm3620 = vcmp.lt.s32.totalorder %v3609, %v1220
      %vm3621 = vcmp.lt.s32.totalorder %v3609, %v1223
      %vm3622 = vcmp.lt.s32.totalorder %v3609, %v1226
      %vm3623 = vcmp.lt.s32.totalorder %v3609, %v1229
      %vm3624 = vcmp.lt.s32.totalorder %v3609, %v1232
      %vm3625 = vcmp.lt.s32.totalorder %v3609, %v1235
      %3642 = vrot.lane.b32.xlu0 %v3593, 64
      %v3643 = vpop.permute.xlu0 %3642
      %3644 = vrot.lane.b32.xlu0 %v3594, 64
      %v3645 = vpop.permute.xlu0 %3644
      %3646 = vrot.lane.b32.xlu0 %v3595, 64
      %v3647 = vpop.permute.xlu0 %3646
      %3648 = vrot.lane.b32.xlu0 %v3596, 64
      %v3649 = vpop.permute.xlu0 %3648
      %3650 = vrot.lane.b32.xlu0 %v3597, 64
      %v3651 = vpop.permute.xlu0 %3650
      %3652 = vrot.lane.b32.xlu0 %v3598, 64
      %v3653 = vpop.permute.xlu0 %3652
      %3654 = vrot.lane.b32.xlu0 %v3599, 64
      %v3655 = vpop.permute.xlu0 %3654
      %3656 = vrot.lane.b32.xlu0 %v3600, 64
      %v3657 = vpop.permute.xlu0 %3656
      %3658 = vrot.lane.b32.xlu0 %v3601, 64
      %v3659 = vpop.permute.xlu0 %3658
      %3660 = vrot.lane.b32.xlu0 %v3602, 64
      %v3661 = vpop.permute.xlu0 %3660
      %3662 = vrot.lane.b32.xlu0 %v3603, 64
      %v3663 = vpop.permute.xlu0 %3662
      %3664 = vrot.lane.b32.xlu0 %v3604, 64
      %v3665 = vpop.permute.xlu0 %3664
      %3666 = vrot.lane.b32.xlu0 %v3605, 64
      %v3667 = vpop.permute.xlu0 %3666
      %3668 = vrot.lane.b32.xlu0 %v3606, 64
      %v3669 = vpop.permute.xlu0 %3668
      %3670 = vrot.lane.b32.xlu0 %v3607, 64
      %v3671 = vpop.permute.xlu0 %3670
      %3672 = vrot.lane.b32.xlu0 %v3608, 64
      %v3673 = vpop.permute.xlu0 %3672
      %v3690 = vsel %vm3610, %v3643, %v2503
      %v3691 = vsel %vm3611, %v3645, %v2504
      %v3692 = vsel %vm3612, %v3647, %v2505
      %v3693 = vsel %vm3613, %v3649, %v2506
      %v3694 = vsel %vm3614, %v3651, %v2507
      %v3695 = vsel %vm3615, %v3653, %v2508
      %v3696 = vsel %vm3616, %v3655, %v2509
      %v3697 = vsel %vm3617, %v3657, %v2510
      %v3698 = vsel %vm3618, %v3659, %v2511
      %v3699 = vsel %vm3619, %v3661, %v2512
      %v3700 = vsel %vm3620, %v3663, %v2513
      %v3701 = vsel %vm3621, %v3665, %v2514
      %v3702 = vsel %vm3622, %v3667, %v2515
      %v3703 = vsel %vm3623, %v3669, %v2516
      %v3704 = vsel %vm3624, %v3671, %v2517
      %v3705 = vsel %vm3625, %v3673, %v2518
      %3722 = vrot.lane.b32.xlu0 %v3497, 96
      %v3723 = vpop.permute.xlu0 %3722
      %3724 = vrot.lane.b32.xlu0 %v3498, 96
      %v3725 = vpop.permute.xlu0 %3724
      %3726 = vrot.lane.b32.xlu0 %v3499, 96
      %v3727 = vpop.permute.xlu0 %3726
      %3728 = vrot.lane.b32.xlu0 %v3500, 96
      %v3729 = vpop.permute.xlu0 %3728
      %3730 = vrot.lane.b32.xlu0 %v3501, 96
      %v3731 = vpop.permute.xlu0 %3730
      %3732 = vrot.lane.b32.xlu0 %v3502, 96
      %v3733 = vpop.permute.xlu0 %3732
      %3734 = vrot.lane.b32.xlu0 %v3503, 96
      %v3735 = vpop.permute.xlu0 %3734
      %3736 = vrot.lane.b32.xlu0 %v3504, 96
      %v3737 = vpop.permute.xlu0 %3736
      %3738 = vrot.lane.b32.xlu0 %v3505, 96
      %v3739 = vpop.permute.xlu0 %3738
      %3740 = vrot.lane.b32.xlu0 %v3506, 96
      %v3741 = vpop.permute.xlu0 %3740
      %3742 = vrot.lane.b32.xlu0 %v3507, 96
      %v3743 = vpop.permute.xlu0 %3742
      %3744 = vrot.lane.b32.xlu0 %v3508, 96
      %v3745 = vpop.permute.xlu0 %3744
      %3746 = vrot.lane.b32.xlu0 %v3509, 96
      %v3747 = vpop.permute.xlu0 %3746
      %3748 = vrot.lane.b32.xlu0 %v3510, 96
      %v3749 = vpop.permute.xlu0 %3748
      %3750 = vrot.lane.b32.xlu0 %v3511, 96
      %v3751 = vpop.permute.xlu0 %3750
      %3752 = vrot.lane.b32.xlu0 %v3512, 96
      %v3753 = vpop.permute.xlu0 %3752
      %v3770 = vsel %vm3610, %v3723, %v2583
      %v3771 = vsel %vm3611, %v3725, %v2584
      %v3772 = vsel %vm3612, %v3727, %v2585
      %v3773 = vsel %vm3613, %v3729, %v2586
      %v3774 = vsel %vm3614, %v3731, %v2587
      %v3775 = vsel %vm3615, %v3733, %v2588
      %v3776 = vsel %vm3616, %v3735, %v2589
      %v3777 = vsel %vm3617, %v3737, %v2590
      %v3778 = vsel %vm3618, %v3739, %v2591
      %v3779 = vsel %vm3619, %v3741, %v2592
      %v3780 = vsel %vm3620, %v3743, %v2593
      %v3781 = vsel %vm3621, %v3745, %v2594
      %v3782 = vsel %vm3622, %v3747, %v2595
      %v3783 = vsel %vm3623, %v3749, %v2596
      %v3784 = vsel %vm3624, %v3751, %v2597
      %v3785 = vsel %vm3625, %v3753, %v2598
      %3786 = vset.pattern.permute.xlu0 3
      %3787 = vperm.xlu0 %3786, %v223
      %v3788 = vpop.permute.xlu0 %3787
      %3789 = vset.pattern.permute.xlu0 3
      %3790 = vperm.xlu0 %3789, %v224
      %v3791 = vpop.permute.xlu0 %3790
      %3792 = vset.pattern.permute.xlu0 3
      %3793 = vperm.xlu0 %3792, %v225
      %v3794 = vpop.permute.xlu0 %3793
      %3795 = vset.pattern.permute.xlu0 3
      %3796 = vperm.xlu0 %3795, %v226
      %v3797 = vpop.permute.xlu0 %3796
      %3798 = vset.pattern.permute.xlu0 3
      %3799 = vperm.xlu0 %3798, %v227
      %v3800 = vpop.permute.xlu0 %3799
      %3801 = vset.pattern.permute.xlu0 3
      %3802 = vperm.xlu0 %3801, %v228
      %v3803 = vpop.permute.xlu0 %3802
      %3804 = vset.pattern.permute.xlu0 3
      %3805 = vperm.xlu0 %3804, %v229
      %v3806 = vpop.permute.xlu0 %3805
      %3807 = vset.pattern.permute.xlu0 3
      %3808 = vperm.xlu0 %3807, %v230
      %v3809 = vpop.permute.xlu0 %3808
      %3810 = vset.pattern.permute.xlu0 3
      %3811 = vperm.xlu0 %3810, %v231
      %v3812 = vpop.permute.xlu0 %3811
      %3813 = vset.pattern.permute.xlu0 3
      %3814 = vperm.xlu0 %3813, %v232
      %v3815 = vpop.permute.xlu0 %3814
      %3816 = vset.pattern.permute.xlu0 3
      %3817 = vperm.xlu0 %3816, %v233
      %v3818 = vpop.permute.xlu0 %3817
      %3819 = vset.pattern.permute.xlu0 3
      %3820 = vperm.xlu0 %3819, %v234
      %v3821 = vpop.permute.xlu0 %3820
      %3822 = vset.pattern.permute.xlu0 3
      %3823 = vperm.xlu0 %3822, %v235
      %v3824 = vpop.permute.xlu0 %3823
      %3825 = vset.pattern.permute.xlu0 3
      %3826 = vperm.xlu0 %3825, %v236
      %v3827 = vpop.permute.xlu0 %3826
      %3828 = vset.pattern.permute.xlu0 3
      %3829 = vperm.xlu0 %3828, %v237
      %v3830 = vpop.permute.xlu0 %3829
      %3831 = vset.pattern.permute.xlu0 3
      %3832 = vperm.xlu0 %3831, %v238
      %v3833 = vpop.permute.xlu0 %3832
      %vm3834 = vcmp.eq.s32.totalorder %v266, %v3788
      %vm3835 = vcmp.eq.s32.totalorder %v266, %v3791
      %vm3836 = vcmp.eq.s32.totalorder %v266, %v3794
      %vm3837 = vcmp.eq.s32.totalorder %v266, %v3797
      %vm3838 = vcmp.eq.s32.totalorder %v266, %v3800
      %vm3839 = vcmp.eq.s32.totalorder %v266, %v3803
      %vm3840 = vcmp.eq.s32.totalorder %v266, %v3806
      %vm3841 = vcmp.eq.s32.totalorder %v266, %v3809
      %vm3842 = vcmp.eq.s32.totalorder %v266, %v3812
      %vm3843 = vcmp.eq.s32.totalorder %v266, %v3815
      %vm3844 = vcmp.eq.s32.totalorder %v266, %v3818
      %vm3845 = vcmp.eq.s32.totalorder %v266, %v3821
      %vm3846 = vcmp.eq.s32.totalorder %v266, %v3824
      %vm3847 = vcmp.eq.s32.totalorder %v266, %v3827
      %vm3848 = vcmp.eq.s32.totalorder %v266, %v3830
      %vm3849 = vcmp.eq.s32.totalorder %v266, %v3833
      %3850 = vset.pattern.permute.xlu0 4
      %3851 = vperm.xlu0 %3850, %v332
      %v3852 = vpop.permute.xlu0 %3851
      %3853 = vset.pattern.permute.xlu0 4
      %3854 = vperm.xlu0 %3853, %v333
      %v3855 = vpop.permute.xlu0 %3854
      %3856 = vset.pattern.permute.xlu0 4
      %3857 = vperm.xlu0 %3856, %v334
      %v3858 = vpop.permute.xlu0 %3857
      %3859 = vset.pattern.permute.xlu0 4
      %3860 = vperm.xlu0 %3859, %v335
      %v3861 = vpop.permute.xlu0 %3860
      %3862 = vset.pattern.permute.xlu0 4
      %3863 = vperm.xlu0 %3862, %v336
      %v3864 = vpop.permute.xlu0 %3863
      %3865 = vset.pattern.permute.xlu0 4
      %3866 = vperm.xlu0 %3865, %v337
      %v3867 = vpop.permute.xlu0 %3866
      %3868 = vset.pattern.permute.xlu0 4
      %3869 = vperm.xlu0 %3868, %v338
      %v3870 = vpop.permute.xlu0 %3869
      %3871 = vset.pattern.permute.xlu0 4
      %3872 = vperm.xlu0 %3871, %v339
      %v3873 = vpop.permute.xlu0 %3872
      %3874 = vset.pattern.permute.xlu0 4
      %3875 = vperm.xlu0 %3874, %v340
      %v3876 = vpop.permute.xlu0 %3875
      %3877 = vset.pattern.permute.xlu0 4
      %3878 = vperm.xlu0 %3877, %v341
      %v3879 = vpop.permute.xlu0 %3878
      %3880 = vset.pattern.permute.xlu0 4
      %3881 = vperm.xlu0 %3880, %v342
      %v3882 = vpop.permute.xlu0 %3881
      %3883 = vset.pattern.permute.xlu0 4
      %3884 = vperm.xlu0 %3883, %v343
      %v3885 = vpop.permute.xlu0 %3884
      %3886 = vset.pattern.permute.xlu0 4
      %3887 = vperm.xlu0 %3886, %v344
      %v3888 = vpop.permute.xlu0 %3887
      %3889 = vset.pattern.permute.xlu0 4
      %3890 = vperm.xlu0 %3889, %v345
      %v3891 = vpop.permute.xlu0 %3890
      %3892 = vset.pattern.permute.xlu0 4
      %3893 = vperm.xlu0 %3892, %v346
      %v3894 = vpop.permute.xlu0 %3893
      %3895 = vset.pattern.permute.xlu0 4
      %3896 = vperm.xlu0 %3895, %v347
      %v3897 = vpop.permute.xlu0 %3896
      %vm3898 = vcmp.eq.s32.totalorder %v266, %v3852
      %vm3899 = vcmp.eq.s32.totalorder %v266, %v3855
      %vm3900 = vcmp.eq.s32.totalorder %v266, %v3858
      %vm3901 = vcmp.eq.s32.totalorder %v266, %v3861
      %vm3902 = vcmp.eq.s32.totalorder %v266, %v3864
      %vm3903 = vcmp.eq.s32.totalorder %v266, %v3867
      %vm3904 = vcmp.eq.s32.totalorder %v266, %v3870
      %vm3905 = vcmp.eq.s32.totalorder %v266, %v3873
      %vm3906 = vcmp.eq.s32.totalorder %v266, %v3876
      %vm3907 = vcmp.eq.s32.totalorder %v266, %v3879
      %vm3908 = vcmp.eq.s32.totalorder %v266, %v3882
      %vm3909 = vcmp.eq.s32.totalorder %v266, %v3885
      %vm3910 = vcmp.eq.s32.totalorder %v266, %v3888
      %vm3911 = vcmp.eq.s32.totalorder %v266, %v3891
      %vm3912 = vcmp.eq.s32.totalorder %v266, %v3894
      %vm3913 = vcmp.eq.s32.totalorder %v266, %v3897
      %vm3914 = vmor %vm3834, %vm3898
      %vm3915 = vmor %vm3835, %vm3899
      %vm3916 = vmor %vm3836, %vm3900
      %vm3917 = vmor %vm3837, %vm3901
      %vm3918 = vmor %vm3838, %vm3902
      %vm3919 = vmor %vm3839, %vm3903
      %vm3920 = vmor %vm3840, %vm3904
      %vm3921 = vmor %vm3841, %vm3905
      %vm3922 = vmor %vm3842, %vm3906
      %vm3923 = vmor %vm3843, %vm3907
      %vm3924 = vmor %vm3844, %vm3908
      %vm3925 = vmor %vm3845, %vm3909
      %vm3926 = vmor %vm3846, %vm3910
      %vm3927 = vmor %vm3847, %vm3911
      %vm3928 = vmor %vm3848, %vm3912
      %vm3929 = vmor %vm3849, %vm3913
      %v3930 = vsel %vm3914, 1, 0
      %v3931 = vsel %vm3915, 1, 0
      %v3932 = vsel %vm3916, 1, 0
      %v3933 = vsel %vm3917, 1, 0
      %v3934 = vsel %vm3918, 1, 0
      %v3935 = vsel %vm3919, 1, 0
      %v3936 = vsel %vm3920, 1, 0
      %v3937 = vsel %vm3921, 1, 0
      %v3938 = vsel %vm3922, 1, 0
      %v3939 = vsel %vm3923, 1, 0
      %v3940 = vsel %vm3924, 1, 0
      %v3941 = vsel %vm3925, 1, 0
      %v3942 = vsel %vm3926, 1, 0
      %v3943 = vsel %vm3927, 1, 0
      %v3944 = vsel %vm3928, 1, 0
      %v3945 = vsel %vm3929, 1, 0
      %v3946 = vcvt.s32.f32 %v3930
      %v3947 = vcvt.s32.f32 %v3931
      %v3948 = vcvt.s32.f32 %v3932
      %v3949 = vcvt.s32.f32 %v3933
      %v3950 = vcvt.s32.f32 %v3934
      %v3951 = vcvt.s32.f32 %v3935
      %v3952 = vcvt.s32.f32 %v3936
      %v3953 = vcvt.s32.f32 %v3937
      %v3954 = vcvt.s32.f32 %v3938
      %v3955 = vcvt.s32.f32 %v3939
      %v3956 = vcvt.s32.f32 %v3940
      %v3957 = vcvt.s32.f32 %v3941
      %v3958 = vcvt.s32.f32 %v3942
      %v3959 = vcvt.s32.f32 %v3943
      %v3960 = vcvt.s32.f32 %v3944
      %v3961 = vcvt.s32.f32 %v3945
      %v3963 = vsel %vm460, %v3690, 0
      %v3966 = vsel %vm460, %v3691, 0
      %v3969 = vsel %vm460, %v3692, 0
      %v3972 = vsel %vm460, %v3693, 0
      %v3975 = vsel %vm460, %v3694, 0
      %v3978 = vsel %vm460, %v3695, 0
      %v3981 = vsel %vm460, %v3696, 0
      %v3984 = vsel %vm460, %v3697, 0
      %v3987 = vsel %vm460, %v3698, 0
      %v3990 = vsel %vm460, %v3699, 0
      %v3993 = vsel %vm460, %v3700, 0
      %v3996 = vsel %vm460, %v3701, 0
      %v3999 = vsel %vm460, %v3702, 0
      %v4002 = vsel %vm460, %v3703, 0
      %v4005 = vsel %vm460, %v3704, 0
      %v4008 = vsel %vm460, %v3705, 0
      %4010 = vmatprep.subr.mxu0 0.0
      %4011 = vmatpush1.msra.mxu0 0.0
      %4012 = vmatprep.subr.mxu0 0.0
      %4013 = vmatpush1.msra.mxu0 0.0
      %4014 = vmatprep.subr.mxu0 0.0
      %4015 = vmatpush1.msra.mxu0 0.0
      %4016 = vmatprep.subr.mxu0 0.0
      %4017 = vmatpush1.msra.mxu0 0.0
      %4018 = vmatprep.subr.mxu0 0.0
      %4019 = vmatpush1.msra.mxu0 0.0
      %4020 = vmatprep.subr.mxu0 0.0
      %4021 = vmatpush1.msra.mxu0 0.0
      %4022 = vmatprep.subr.mxu0 0.0
      %4023 = vmatpush1.msra.mxu0 0.0
      %4024 = vmatprep.subr.mxu0 0.0
      %4025 = vmatpush1.msra.mxu0 0.0
      %4026 = vmatprep.subr.mxu0 0.0
      %4027 = vmatpush1.msra.mxu0 0.0
      %4028 = vmatprep.subr.mxu0 0.0
      %4029 = vmatpush1.msra.mxu0 0.0
      %4030 = vmatprep.subr.mxu0 0.0
      %4031 = vmatpush1.msra.mxu0 0.0
      %4032 = vmatprep.subr.mxu0 0.0
      %4033 = vmatpush1.msra.mxu0 0.0
      %4034 = vmatprep.subr.mxu0 0.0
      %4035 = vmatpush1.msra.mxu0 %v264
      %4036 = vmatprep.subr.mxu0 0.0
      %4037 = vmatpush1.msra.mxu0 %v263
      %4038 = vmatprep.subr.mxu0 0.0
      %4039 = vmatpush1.msra.mxu0 %v262
      %4040 = vmatprep.subr.mxu0 0.0
      %4041 = vmatpush1.msra.mxu0 %v261
      %4042 = vmatprep.subr.mxu0 0.0
      %4043 = vmatpush2.msra.mxu0 0.0
      %4044 = vmatprep.subr.mxu0 0.0
      %4045 = vmatpush2.msra.mxu0 0.0
      %4046 = vmatprep.subr.mxu0 0.0
      %4047 = vmatpush2.msra.mxu0 0.0
      %4048 = vmatprep.subr.mxu0 0.0
      %4049 = vmatpush2.msra.mxu0 0.0
      %4050 = vmatprep.subr.mxu0 0.0
      %4051 = vmatpush2.msra.mxu0 0.0
      %4052 = vmatprep.subr.mxu0 0.0
      %4053 = vmatpush2.msra.mxu0 0.0
      %4054 = vmatprep.subr.mxu0 0.0
      %4055 = vmatpush2.msra.mxu0 0.0
      %4056 = vmatprep.subr.mxu0 0.0
      %4057 = vmatpush2.msra.mxu0 0.0
      %4058 = vmatprep.subr.mxu0 0.0
      %4059 = vmatpush2.msra.mxu0 0.0
      %4060 = vmatprep.subr.mxu0 0.0
      %4061 = vmatpush2.msra.mxu0 0.0
      %4062 = vmatprep.subr.mxu0 0.0
      %4063 = vmatpush2.msra.mxu0 0.0
      %4064 = vmatprep.subr.mxu0 0.0
      %4065 = vmatpush2.msra.mxu0 0.0
      %4066 = vmatprep.subr.mxu0 0.0
      %4067 = vmatpush2.msra.mxu0 0.0
      %4068 = vmatprep.subr.mxu0 0.0
      %4069 = vmatpush2.msra.mxu0 0.0
      %4070 = vmatprep.subr.mxu0 0.0
      %4071 = vmatpush2.msra.mxu0 0.0
      %4072 = vmatprep.subr.mxu0 0.0
      %4073 = vmatpush2.msra.mxu0 0.0
      %4074 = vmatprep.mubr.f32.mxu0 0.0
      %4075 = vmatmul.mubr.f32.gmra.mxu0 %v3963
      %v4076 = vpop.f32.mrf.mxu0
      %v4077 = vadd.f32 0.0, %v4076
      %v4078 = vpop.f32.mrf.mxu0
      %4079 = vmatprep.mubr.f32.mxu0 0.0
      %4080 = vmatmul.mubr.f32.gmra.mxu0 %v3966
      %v4081 = vpop.f32.mrf.mxu0
      %v4082 = vadd.f32 0.0, %v4081
      %v4083 = vpop.f32.mrf.mxu0
      %4084 = vmatprep.mubr.f32.mxu0 0.0
      %4085 = vmatmul.mubr.f32.gmra.mxu0 %v3969
      %v4086 = vpop.f32.mrf.mxu0
      %v4087 = vadd.f32 0.0, %v4086
      %v4088 = vpop.f32.mrf.mxu0
      %4089 = vmatprep.mubr.f32.mxu0 0.0
      %4090 = vmatmul.mubr.f32.gmra.mxu0 %v3972
      %v4091 = vpop.f32.mrf.mxu0
      %v4092 = vadd.f32 0.0, %v4091
      %v4093 = vpop.f32.mrf.mxu0
      %4094 = vmatprep.mubr.f32.mxu0 0.0
      %4095 = vmatmul.mubr.f32.gmra.mxu0 %v3975
      %v4096 = vpop.f32.mrf.mxu0
      %v4097 = vadd.f32 0.0, %v4096
      %v4098 = vpop.f32.mrf.mxu0
      %4099 = vmatprep.mubr.f32.mxu0 0.0
      %4100 = vmatmul.mubr.f32.gmra.mxu0 %v3978
      %v4101 = vpop.f32.mrf.mxu0
      %v4102 = vadd.f32 0.0, %v4101
      %v4103 = vpop.f32.mrf.mxu0
      %4104 = vmatprep.mubr.f32.mxu0 0.0
      %4105 = vmatmul.mubr.f32.gmra.mxu0 %v3981
      %v4106 = vpop.f32.mrf.mxu0
      %v4107 = vadd.f32 0.0, %v4106
      %v4108 = vpop.f32.mrf.mxu0
      %4109 = vmatprep.mubr.f32.mxu0 0.0
      %4110 = vmatmul.mubr.f32.gmra.mxu0 %v3984
      %v4111 = vpop.f32.mrf.mxu0
      %v4112 = vadd.f32 0.0, %v4111
      %v4113 = vpop.f32.mrf.mxu0
      %4114 = vmatprep.mubr.f32.mxu0 0.0
      %4115 = vmatmul.mubr.f32.gmra.mxu0 %v3987
      %v4116 = vpop.f32.mrf.mxu0
      %v4117 = vadd.f32 0.0, %v4116
      %v4118 = vpop.f32.mrf.mxu0
      %4119 = vmatprep.mubr.f32.mxu0 0.0
      %4120 = vmatmul.mubr.f32.gmra.mxu0 %v3990
      %v4121 = vpop.f32.mrf.mxu0
      %v4122 = vadd.f32 0.0, %v4121
      %v4123 = vpop.f32.mrf.mxu0
      %4124 = vmatprep.mubr.f32.mxu0 0.0
      %4125 = vmatmul.mubr.f32.gmra.mxu0 %v3993
      %v4126 = vpop.f32.mrf.mxu0
      %v4127 = vadd.f32 0.0, %v4126
      %v4128 = vpop.f32.mrf.mxu0
      %4129 = vmatprep.mubr.f32.mxu0 0.0
      %4130 = vmatmul.mubr.f32.gmra.mxu0 %v3996
      %v4131 = vpop.f32.mrf.mxu0
      %v4132 = vadd.f32 0.0, %v4131
      %v4133 = vpop.f32.mrf.mxu0
      %4134 = vmatprep.mubr.f32.mxu0 0.0
      %4135 = vmatmul.mubr.f32.gmra.mxu0 %v3999
      %v4136 = vpop.f32.mrf.mxu0
      %v4137 = vadd.f32 0.0, %v4136
      %v4138 = vpop.f32.mrf.mxu0
      %4139 = vmatprep.mubr.f32.mxu0 0.0
      %4140 = vmatmul.mubr.f32.gmra.mxu0 %v4002
      %v4141 = vpop.f32.mrf.mxu0
      %v4142 = vadd.f32 0.0, %v4141
      %v4143 = vpop.f32.mrf.mxu0
      %4144 = vmatprep.mubr.f32.mxu0 0.0
      %4145 = vmatmul.mubr.f32.gmra.mxu0 %v4005
      %v4146 = vpop.f32.mrf.mxu0
      %v4147 = vadd.f32 0.0, %v4146
      %v4148 = vpop.f32.mrf.mxu0
      %4149 = vmatprep.mubr.f32.mxu0 0.0
      %4150 = vmatmul.mubr.f32.gmra.mxu0 %v4008
      %v4151 = vpop.f32.mrf.mxu0
      %v4152 = vadd.f32 0.0, %v4151
      %v4153 = vpop.f32.mrf.mxu0
      %4154 = vdwg.mxu0
      %v4156 = vsel %vm609, %v3946, 0
      %v4159 = vsel %vm609, %v3947, 0
      %v4162 = vsel %vm609, %v3948, 0
      %v4165 = vsel %vm609, %v3949, 0
      %v4168 = vsel %vm609, %v3950, 0
      %v4171 = vsel %vm609, %v3951, 0
      %v4174 = vsel %vm609, %v3952, 0
      %v4177 = vsel %vm609, %v3953, 0
      %v4180 = vsel %vm609, %v3954, 0
      %v4183 = vsel %vm609, %v3955, 0
      %v4186 = vsel %vm609, %v3956, 0
      %v4189 = vsel %vm609, %v3957, 0
      %v4192 = vsel %vm609, %v3958, 0
      %v4195 = vsel %vm609, %v3959, 0
      %v4198 = vsel %vm609, %v3960, 0
      %v4201 = vsel %vm609, %v3961, 0
      %4203 = vmatprep.subr.mxu0 0.0
      %4204 = vmatpush1.msra.mxu0 0.0
      %4205 = vmatprep.subr.mxu0 0.0
      %4206 = vmatpush1.msra.mxu0 0.0
      %4207 = vmatprep.subr.mxu0 0.0
      %4208 = vmatpush1.msra.mxu0 0.0
      %4209 = vmatprep.subr.mxu0 0.0
      %4210 = vmatpush1.msra.mxu0 0.0
      %4211 = vmatprep.subr.mxu0 0.0
      %4212 = vmatpush1.msra.mxu0 0.0
      %4213 = vmatprep.subr.mxu0 0.0
      %4214 = vmatpush1.msra.mxu0 0.0
      %4215 = vmatprep.subr.mxu0 0.0
      %4216 = vmatpush1.msra.mxu0 0.0
      %4217 = vmatprep.subr.mxu0 0.0
      %4218 = vmatpush1.msra.mxu0 0.0
      %4219 = vmatprep.subr.mxu0 0.0
      %4220 = vmatpush1.msra.mxu0 0.0
      %4221 = vmatprep.subr.mxu0 0.0
      %4222 = vmatpush1.msra.mxu0 0.0
      %4223 = vmatprep.subr.mxu0 0.0
      %4224 = vmatpush1.msra.mxu0 %v260
      %4225 = vmatprep.subr.mxu0 0.0
      %4226 = vmatpush1.msra.mxu0 %v259
      %4227 = vmatprep.subr.mxu0 0.0
      %4228 = vmatpush1.msra.mxu0 %v258
      %4229 = vmatprep.subr.mxu0 0.0
      %4230 = vmatpush1.msra.mxu0 %v257
      %4231 = vmatprep.subr.mxu0 0.0
      %4232 = vmatpush1.msra.mxu0 %v256
      %4233 = vmatprep.subr.mxu0 0.0
      %4234 = vmatpush1.msra.mxu0 %v255
      %4235 = vmatprep.subr.mxu0 0.0
      %4236 = vmatpush2.msra.mxu0 0.0
      %4237 = vmatprep.subr.mxu0 0.0
      %4238 = vmatpush2.msra.mxu0 0.0
      %4239 = vmatprep.subr.mxu0 0.0
      %4240 = vmatpush2.msra.mxu0 0.0
      %4241 = vmatprep.subr.mxu0 0.0
      %4242 = vmatpush2.msra.mxu0 0.0
      %4243 = vmatprep.subr.mxu0 0.0
      %4244 = vmatpush2.msra.mxu0 0.0
      %4245 = vmatprep.subr.mxu0 0.0
      %4246 = vmatpush2.msra.mxu0 0.0
      %4247 = vmatprep.subr.mxu0 0.0
      %4248 = vmatpush2.msra.mxu0 0.0
      %4249 = vmatprep.subr.mxu0 0.0
      %4250 = vmatpush2.msra.mxu0 0.0
      %4251 = vmatprep.subr.mxu0 0.0
      %4252 = vmatpush2.msra.mxu0 0.0
      %4253 = vmatprep.subr.mxu0 0.0
      %4254 = vmatpush2.msra.mxu0 0.0
      %4255 = vmatprep.subr.mxu0 0.0
      %4256 = vmatpush2.msra.mxu0 0.0
      %4257 = vmatprep.subr.mxu0 0.0
      %4258 = vmatpush2.msra.mxu0 0.0
      %4259 = vmatprep.subr.mxu0 0.0
      %4260 = vmatpush2.msra.mxu0 0.0
      %4261 = vmatprep.subr.mxu0 0.0
      %4262 = vmatpush2.msra.mxu0 0.0
      %4263 = vmatprep.subr.mxu0 0.0
      %4264 = vmatpush2.msra.mxu0 0.0
      %4265 = vmatprep.subr.mxu0 0.0
      %4266 = vmatpush2.msra.mxu0 0.0
      %4267 = vmatprep.mubr.f32.mxu0 0.0
      %4268 = vmatmul.mubr.f32.gmra.mxu0 %v4156
      %v4269 = vpop.f32.mrf.mxu0
      %v4270 = vadd.f32 %v4077, %v4269
      %v4271 = vpop.f32.mrf.mxu0
      %4272 = vmatprep.mubr.f32.mxu0 0.0
      %4273 = vmatmul.mubr.f32.gmra.mxu0 %v4159
      %v4274 = vpop.f32.mrf.mxu0
      %v4275 = vadd.f32 %v4082, %v4274
      %v4276 = vpop.f32.mrf.mxu0
      %4277 = vmatprep.mubr.f32.mxu0 0.0
      %4278 = vmatmul.mubr.f32.gmra.mxu0 %v4162
      %v4279 = vpop.f32.mrf.mxu0
      %v4280 = vadd.f32 %v4087, %v4279
      %v4281 = vpop.f32.mrf.mxu0
      %4282 = vmatprep.mubr.f32.mxu0 0.0
      %4283 = vmatmul.mubr.f32.gmra.mxu0 %v4165
      %v4284 = vpop.f32.mrf.mxu0
      %v4285 = vadd.f32 %v4092, %v4284
      %v4286 = vpop.f32.mrf.mxu0
      %4287 = vmatprep.mubr.f32.mxu0 0.0
      %4288 = vmatmul.mubr.f32.gmra.mxu0 %v4168
      %v4289 = vpop.f32.mrf.mxu0
      %v4290 = vadd.f32 %v4097, %v4289
      %v4291 = vpop.f32.mrf.mxu0
      %4292 = vmatprep.mubr.f32.mxu0 0.0
      %4293 = vmatmul.mubr.f32.gmra.mxu0 %v4171
      %v4294 = vpop.f32.mrf.mxu0
      %v4295 = vadd.f32 %v4102, %v4294
      %v4296 = vpop.f32.mrf.mxu0
      %4297 = vmatprep.mubr.f32.mxu0 0.0
      %4298 = vmatmul.mubr.f32.gmra.mxu0 %v4174
      %v4299 = vpop.f32.mrf.mxu0
      %v4300 = vadd.f32 %v4107, %v4299
      %v4301 = vpop.f32.mrf.mxu0
      %4302 = vmatprep.mubr.f32.mxu0 0.0
      %4303 = vmatmul.mubr.f32.gmra.mxu0 %v4177
      %v4304 = vpop.f32.mrf.mxu0
      %v4305 = vadd.f32 %v4112, %v4304
      %v4306 = vpop.f32.mrf.mxu0
      %4307 = vmatprep.mubr.f32.mxu0 0.0
      %4308 = vmatmul.mubr.f32.gmra.mxu0 %v4180
      %v4309 = vpop.f32.mrf.mxu0
      %v4310 = vadd.f32 %v4117, %v4309
      %v4311 = vpop.f32.mrf.mxu0
      %4312 = vmatprep.mubr.f32.mxu0 0.0
      %4313 = vmatmul.mubr.f32.gmra.mxu0 %v4183
      %v4314 = vpop.f32.mrf.mxu0
      %v4315 = vadd.f32 %v4122, %v4314
      %v4316 = vpop.f32.mrf.mxu0
      %4317 = vmatprep.mubr.f32.mxu0 0.0
      %4318 = vmatmul.mubr.f32.gmra.mxu0 %v4186
      %v4319 = vpop.f32.mrf.mxu0
      %v4320 = vadd.f32 %v4127, %v4319
      %v4321 = vpop.f32.mrf.mxu0
      %4322 = vmatprep.mubr.f32.mxu0 0.0
      %4323 = vmatmul.mubr.f32.gmra.mxu0 %v4189
      %v4324 = vpop.f32.mrf.mxu0
      %v4325 = vadd.f32 %v4132, %v4324
      %v4326 = vpop.f32.mrf.mxu0
      %4327 = vmatprep.mubr.f32.mxu0 0.0
      %4328 = vmatmul.mubr.f32.gmra.mxu0 %v4192
      %v4329 = vpop.f32.mrf.mxu0
      %v4330 = vadd.f32 %v4137, %v4329
      %v4331 = vpop.f32.mrf.mxu0
      %4332 = vmatprep.mubr.f32.mxu0 0.0
      %4333 = vmatmul.mubr.f32.gmra.mxu0 %v4195
      %v4334 = vpop.f32.mrf.mxu0
      %v4335 = vadd.f32 %v4142, %v4334
      %v4336 = vpop.f32.mrf.mxu0
      %4337 = vmatprep.mubr.f32.mxu0 0.0
      %4338 = vmatmul.mubr.f32.gmra.mxu0 %v4198
      %v4339 = vpop.f32.mrf.mxu0
      %v4340 = vadd.f32 %v4147, %v4339
      %v4341 = vpop.f32.mrf.mxu0
      %4342 = vmatprep.mubr.f32.mxu0 0.0
      %4343 = vmatmul.mubr.f32.gmra.mxu0 %v4201
      %v4344 = vpop.f32.mrf.mxu0
      %v4345 = vadd.f32 %v4152, %v4344
      %v4346 = vpop.f32.mrf.mxu0
      %4347 = vdwg.mxu0
      %v4348 = vxor.u32 %v4270, 2147483648
      %v4349 = vxor.u32 %v4275, 2147483648
      %v4350 = vxor.u32 %v4280, 2147483648
      %v4351 = vxor.u32 %v4285, 2147483648
      %v4352 = vxor.u32 %v4290, 2147483648
      %v4353 = vxor.u32 %v4295, 2147483648
      %v4354 = vxor.u32 %v4300, 2147483648
      %v4355 = vxor.u32 %v4305, 2147483648
      %v4356 = vxor.u32 %v4310, 2147483648
      %v4357 = vxor.u32 %v4315, 2147483648
      %v4358 = vxor.u32 %v4320, 2147483648
      %v4359 = vxor.u32 %v4325, 2147483648
      %v4360 = vxor.u32 %v4330, 2147483648
      %v4361 = vxor.u32 %v4335, 2147483648
      %v4362 = vxor.u32 %v4340, 2147483648
      %v4363 = vxor.u32 %v4345, 2147483648
      %v4364 = vmul.f32 %v4348, 1.442695
      %v4365 = vpow.pop %v4364
      %v4366 = vmul.f32 %v4349, 1.442695
      %v4367 = vpow.pop %v4366
      %v4368 = vmul.f32 %v4350, 1.442695
      %v4369 = vpow.pop %v4368
      %v4370 = vmul.f32 %v4351, 1.442695
      %v4371 = vpow.pop %v4370
      %v4372 = vmul.f32 %v4352, 1.442695
      %v4373 = vpow.pop %v4372
      %v4374 = vmul.f32 %v4353, 1.442695
      %v4375 = vpow.pop %v4374
      %v4376 = vmul.f32 %v4354, 1.442695
      %v4377 = vpow.pop %v4376
      %v4378 = vmul.f32 %v4355, 1.442695
      %v4379 = vpow.pop %v4378
      %v4380 = vmul.f32 %v4356, 1.442695
      %v4381 = vpow.pop %v4380
      %v4382 = vmul.f32 %v4357, 1.442695
      %v4383 = vpow.pop %v4382
      %v4384 = vmul.f32 %v4358, 1.442695
      %v4385 = vpow.pop %v4384
      %v4386 = vmul.f32 %v4359, 1.442695
      %v4387 = vpow.pop %v4386
      %v4388 = vmul.f32 %v4360, 1.442695
      %v4389 = vpow.pop %v4388
      %v4390 = vmul.f32 %v4361, 1.442695
      %v4391 = vpow.pop %v4390
      %v4392 = vmul.f32 %v4362, 1.442695
      %v4393 = vpow.pop %v4392
      %v4394 = vmul.f32 %v4363, 1.442695
      %v4395 = vpow.pop %v4394
      %v4396 = vadd.f32 %v4365, 1.0
      %v4397 = vadd.f32 %v4367, 1.0
      %v4398 = vadd.f32 %v4369, 1.0
      %v4399 = vadd.f32 %v4371, 1.0
      %v4400 = vadd.f32 %v4373, 1.0
      %v4401 = vadd.f32 %v4375, 1.0
      %v4402 = vadd.f32 %v4377, 1.0
      %v4403 = vadd.f32 %v4379, 1.0
      %v4404 = vadd.f32 %v4381, 1.0
      %v4405 = vadd.f32 %v4383, 1.0
      %v4406 = vadd.f32 %v4385, 1.0
      %v4407 = vadd.f32 %v4387, 1.0
      %v4408 = vadd.f32 %v4389, 1.0
      %v4409 = vadd.f32 %v4391, 1.0
      %v4410 = vadd.f32 %v4393, 1.0
      %v4411 = vadd.f32 %v4395, 1.0
      %v4412 = vrcp.pop %v4396
      %v4413 = vmul.f32 1.0, %v4412
      %v4414 = vrcp.pop %v4397
      %v4415 = vmul.f32 1.0, %v4414
      %v4416 = vrcp.pop %v4398
      %v4417 = vmul.f32 1.0, %v4416
      %v4418 = vrcp.pop %v4399
      %v4419 = vmul.f32 1.0, %v4418
      %v4420 = vrcp.pop %v4400
      %v4421 = vmul.f32 1.0, %v4420
      %v4422 = vrcp.pop %v4401
      %v4423 = vmul.f32 1.0, %v4422
      %v4424 = vrcp.pop %v4402
      %v4425 = vmul.f32 1.0, %v4424
      %v4426 = vrcp.pop %v4403
      %v4427 = vmul.f32 1.0, %v4426
      %v4428 = vrcp.pop %v4404
      %v4429 = vmul.f32 1.0, %v4428
      %v4430 = vrcp.pop %v4405
      %v4431 = vmul.f32 1.0, %v4430
      %v4432 = vrcp.pop %v4406
      %v4433 = vmul.f32 1.0, %v4432
      %v4434 = vrcp.pop %v4407
      %v4435 = vmul.f32 1.0, %v4434
      %v4436 = vrcp.pop %v4408
      %v4437 = vmul.f32 1.0, %v4436
      %v4438 = vrcp.pop %v4409
      %v4439 = vmul.f32 1.0, %v4438
      %v4440 = vrcp.pop %v4410
      %v4441 = vmul.f32 1.0, %v4440
      %v4442 = vrcp.pop %v4411
      %v4443 = vmul.f32 1.0, %v4442
      %v4444 = vtanh.pop %v4270
      %v4445 = vtanh.pop %v4275
      %v4446 = vtanh.pop %v4280
      %v4447 = vtanh.pop %v4285
      %v4448 = vtanh.pop %v4290
      %v4449 = vtanh.pop %v4295
      %v4450 = vtanh.pop %v4300
      %v4451 = vtanh.pop %v4305
      %v4452 = vtanh.pop %v4310
      %v4453 = vtanh.pop %v4315
      %v4454 = vtanh.pop %v4320
      %v4455 = vtanh.pop %v4325
      %v4456 = vtanh.pop %v4330
      %v4457 = vtanh.pop %v4335
      %v4458 = vtanh.pop %v4340
      %v4459 = vtanh.pop %v4345
      %4476 = vrot.lane.b32.xlu0 %v3770, 32
      %v4477 = vpop.permute.xlu0 %4476
      %4478 = vrot.lane.b32.xlu0 %v3771, 32
      %v4479 = vpop.permute.xlu0 %4478
      %4480 = vrot.lane.b32.xlu0 %v3772, 32
      %v4481 = vpop.permute.xlu0 %4480
      %4482 = vrot.lane.b32.xlu0 %v3773, 32
      %v4483 = vpop.permute.xlu0 %4482
      %4484 = vrot.lane.b32.xlu0 %v3774, 32
      %v4485 = vpop.permute.xlu0 %4484
      %4486 = vrot.lane.b32.xlu0 %v3775, 32
      %v4487 = vpop.permute.xlu0 %4486
      %4488 = vrot.lane.b32.xlu0 %v3776, 32
      %v4489 = vpop.permute.xlu0 %4488
      %4490 = vrot.lane.b32.xlu0 %v3777, 32
      %v4491 = vpop.permute.xlu0 %4490
      %4492 = vrot.lane.b32.xlu0 %v3778, 32
      %v4493 = vpop.permute.xlu0 %4492
      %4494 = vrot.lane.b32.xlu0 %v3779, 32
      %v4495 = vpop.permute.xlu0 %4494
      %4496 = vrot.lane.b32.xlu0 %v3780, 32
      %v4497 = vpop.permute.xlu0 %4496
      %4498 = vrot.lane.b32.xlu0 %v3781, 32
      %v4499 = vpop.permute.xlu0 %4498
      %4500 = vrot.lane.b32.xlu0 %v3782, 32
      %v4501 = vpop.permute.xlu0 %4500
      %4502 = vrot.lane.b32.xlu0 %v3783, 32
      %v4503 = vpop.permute.xlu0 %4502
      %4504 = vrot.lane.b32.xlu0 %v3784, 32
      %v4505 = vpop.permute.xlu0 %4504
      %4506 = vrot.lane.b32.xlu0 %v3785, 32
      %v4507 = vpop.permute.xlu0 %4506
      %v4524 = vmul.f32 %v4413, %v4477
      %v4525 = vmul.f32 %v4415, %v4479
      %v4526 = vmul.f32 %v4417, %v4481
      %v4527 = vmul.f32 %v4419, %v4483
      %v4528 = vmul.f32 %v4421, %v4485
      %v4529 = vmul.f32 %v4423, %v4487
      %v4530 = vmul.f32 %v4425, %v4489
      %v4531 = vmul.f32 %v4427, %v4491
      %v4532 = vmul.f32 %v4429, %v4493
      %v4533 = vmul.f32 %v4431, %v4495
      %v4534 = vmul.f32 %v4433, %v4497
      %v4535 = vmul.f32 %v4435, %v4499
      %v4536 = vmul.f32 %v4437, %v4501
      %v4537 = vmul.f32 %v4439, %v4503
      %v4538 = vmul.f32 %v4441, %v4505
      %v4539 = vmul.f32 %v4443, %v4507
      %4556 = vrot.lane.b32.xlu0 %v4444, 32
      %v4557 = vpop.permute.xlu0 %4556
      %4558 = vrot.lane.b32.xlu0 %v4445, 32
      %v4559 = vpop.permute.xlu0 %4558
      %4560 = vrot.lane.b32.xlu0 %v4446, 32
      %v4561 = vpop.permute.xlu0 %4560
      %4562 = vrot.lane.b32.xlu0 %v4447, 32
      %v4563 = vpop.permute.xlu0 %4562
      %4564 = vrot.lane.b32.xlu0 %v4448, 32
      %v4565 = vpop.permute.xlu0 %4564
      %4566 = vrot.lane.b32.xlu0 %v4449, 32
      %v4567 = vpop.permute.xlu0 %4566
      %4568 = vrot.lane.b32.xlu0 %v4450, 32
      %v4569 = vpop.permute.xlu0 %4568
      %4570 = vrot.lane.b32.xlu0 %v4451, 32
      %v4571 = vpop.permute.xlu0 %4570
      %4572 = vrot.lane.b32.xlu0 %v4452, 32
      %v4573 = vpop.permute.xlu0 %4572
      %4574 = vrot.lane.b32.xlu0 %v4453, 32
      %v4575 = vpop.permute.xlu0 %4574
      %4576 = vrot.lane.b32.xlu0 %v4454, 32
      %v4577 = vpop.permute.xlu0 %4576
      %4578 = vrot.lane.b32.xlu0 %v4455, 32
      %v4579 = vpop.permute.xlu0 %4578
      %4580 = vrot.lane.b32.xlu0 %v4456, 32
      %v4581 = vpop.permute.xlu0 %4580
      %4582 = vrot.lane.b32.xlu0 %v4457, 32
      %v4583 = vpop.permute.xlu0 %4582
      %4584 = vrot.lane.b32.xlu0 %v4458, 32
      %v4585 = vpop.permute.xlu0 %4584
      %4586 = vrot.lane.b32.xlu0 %v4459, 32
      %v4587 = vpop.permute.xlu0 %4586
      %v4604 = vmul.f32 %v4413, %v4557
      %v4605 = vmul.f32 %v4415, %v4559
      %v4606 = vmul.f32 %v4417, %v4561
      %v4607 = vmul.f32 %v4419, %v4563
      %v4608 = vmul.f32 %v4421, %v4565
      %v4609 = vmul.f32 %v4423, %v4567
      %v4610 = vmul.f32 %v4425, %v4569
      %v4611 = vmul.f32 %v4427, %v4571
      %v4612 = vmul.f32 %v4429, %v4573
      %v4613 = vmul.f32 %v4431, %v4575
      %v4614 = vmul.f32 %v4433, %v4577
      %v4615 = vmul.f32 %v4435, %v4579
      %v4616 = vmul.f32 %v4437, %v4581
      %v4617 = vmul.f32 %v4439, %v4583
      %v4618 = vmul.f32 %v4441, %v4585
      %v4619 = vmul.f32 %v4443, %v4587
      %4636 = vrot.lane.b32.xlu0 %v4604, 32
      %v4637 = vpop.permute.xlu0 %4636
      %4638 = vrot.lane.b32.xlu0 %v4605, 32
      %v4639 = vpop.permute.xlu0 %4638
      %4640 = vrot.lane.b32.xlu0 %v4606, 32
      %v4641 = vpop.permute.xlu0 %4640
      %4642 = vrot.lane.b32.xlu0 %v4607, 32
      %v4643 = vpop.permute.xlu0 %4642
      %4644 = vrot.lane.b32.xlu0 %v4608, 32
      %v4645 = vpop.permute.xlu0 %4644
      %4646 = vrot.lane.b32.xlu0 %v4609, 32
      %v4647 = vpop.permute.xlu0 %4646
      %4648 = vrot.lane.b32.xlu0 %v4610, 32
      %v4649 = vpop.permute.xlu0 %4648
      %4650 = vrot.lane.b32.xlu0 %v4611, 32
      %v4651 = vpop.permute.xlu0 %4650
      %4652 = vrot.lane.b32.xlu0 %v4612, 32
      %v4653 = vpop.permute.xlu0 %4652
      %4654 = vrot.lane.b32.xlu0 %v4613, 32
      %v4655 = vpop.permute.xlu0 %4654
      %4656 = vrot.lane.b32.xlu0 %v4614, 32
      %v4657 = vpop.permute.xlu0 %4656
      %4658 = vrot.lane.b32.xlu0 %v4615, 32
      %v4659 = vpop.permute.xlu0 %4658
      %4660 = vrot.lane.b32.xlu0 %v4616, 32
      %v4661 = vpop.permute.xlu0 %4660
      %4662 = vrot.lane.b32.xlu0 %v4617, 32
      %v4663 = vpop.permute.xlu0 %4662
      %4664 = vrot.lane.b32.xlu0 %v4618, 32
      %v4665 = vpop.permute.xlu0 %4664
      %4666 = vrot.lane.b32.xlu0 %v4619, 32
      %v4667 = vpop.permute.xlu0 %4666
      %v4684 = vadd.f32 %v4524, %v4637
      %v4685 = vadd.f32 %v4525, %v4639
      %v4686 = vadd.f32 %v4526, %v4641
      %v4687 = vadd.f32 %v4527, %v4643
      %v4688 = vadd.f32 %v4528, %v4645
      %v4689 = vadd.f32 %v4529, %v4647
      %v4690 = vadd.f32 %v4530, %v4649
      %v4691 = vadd.f32 %v4531, %v4651
      %v4692 = vadd.f32 %v4532, %v4653
      %v4693 = vadd.f32 %v4533, %v4655
      %v4694 = vadd.f32 %v4534, %v4657
      %v4695 = vadd.f32 %v4535, %v4659
      %v4696 = vadd.f32 %v4536, %v4661
      %v4697 = vadd.f32 %v4537, %v4663
      %v4698 = vadd.f32 %v4538, %v4665
      %v4699 = vadd.f32 %v4539, %v4667
      %v4700 = vtanh.pop %v4684
      %v4701 = vtanh.pop %v4685
      %v4702 = vtanh.pop %v4686
      %v4703 = vtanh.pop %v4687
      %v4704 = vtanh.pop %v4688
      %v4705 = vtanh.pop %v4689
      %v4706 = vtanh.pop %v4690
      %v4707 = vtanh.pop %v4691
      %v4708 = vtanh.pop %v4692
      %v4709 = vtanh.pop %v4693
      %v4710 = vtanh.pop %v4694
      %v4711 = vtanh.pop %v4695
      %v4712 = vtanh.pop %v4696
      %v4713 = vtanh.pop %v4697
      %v4714 = vtanh.pop %v4698
      %v4715 = vtanh.pop %v4699
      %4732 = vrot.lane.b32.xlu0 %v4700, 32
      %v4733 = vpop.permute.xlu0 %4732
      %4734 = vrot.lane.b32.xlu0 %v4701, 32
      %v4735 = vpop.permute.xlu0 %4734
      %4736 = vrot.lane.b32.xlu0 %v4702, 32
      %v4737 = vpop.permute.xlu0 %4736
      %4738 = vrot.lane.b32.xlu0 %v4703, 32
      %v4739 = vpop.permute.xlu0 %4738
      %4740 = vrot.lane.b32.xlu0 %v4704, 32
      %v4741 = vpop.permute.xlu0 %4740
      %4742 = vrot.lane.b32.xlu0 %v4705, 32
      %v4743 = vpop.permute.xlu0 %4742
      %4744 = vrot.lane.b32.xlu0 %v4706, 32
      %v4745 = vpop.permute.xlu0 %4744
      %4746 = vrot.lane.b32.xlu0 %v4707, 32
      %v4747 = vpop.permute.xlu0 %4746
      %4748 = vrot.lane.b32.xlu0 %v4708, 32
      %v4749 = vpop.permute.xlu0 %4748
      %4750 = vrot.lane.b32.xlu0 %v4709, 32
      %v4751 = vpop.permute.xlu0 %4750
      %4752 = vrot.lane.b32.xlu0 %v4710, 32
      %v4753 = vpop.permute.xlu0 %4752
      %4754 = vrot.lane.b32.xlu0 %v4711, 32
      %v4755 = vpop.permute.xlu0 %4754
      %4756 = vrot.lane.b32.xlu0 %v4712, 32
      %v4757 = vpop.permute.xlu0 %4756
      %4758 = vrot.lane.b32.xlu0 %v4713, 32
      %v4759 = vpop.permute.xlu0 %4758
      %4760 = vrot.lane.b32.xlu0 %v4714, 32
      %v4761 = vpop.permute.xlu0 %4760
      %4762 = vrot.lane.b32.xlu0 %v4715, 32
      %v4763 = vpop.permute.xlu0 %4762
      %v4780 = vmul.f32 %v4413, %v4733
      %v4781 = vmul.f32 %v4415, %v4735
      %v4782 = vmul.f32 %v4417, %v4737
      %v4783 = vmul.f32 %v4419, %v4739
      %v4784 = vmul.f32 %v4421, %v4741
      %v4785 = vmul.f32 %v4423, %v4743
      %v4786 = vmul.f32 %v4425, %v4745
      %v4787 = vmul.f32 %v4427, %v4747
      %v4788 = vmul.f32 %v4429, %v4749
      %v4789 = vmul.f32 %v4431, %v4751
      %v4790 = vmul.f32 %v4433, %v4753
      %v4791 = vmul.f32 %v4435, %v4755
      %v4792 = vmul.f32 %v4437, %v4757
      %v4793 = vmul.f32 %v4439, %v4759
      %v4794 = vmul.f32 %v4441, %v4761
      %v4795 = vmul.f32 %v4443, %v4763
      %v4796 = vsel %vm267, 4, 3
      %vm4797 = vcmp.lt.s32.totalorder %v4796, %v1190
      %vm4798 = vcmp.lt.s32.totalorder %v4796, %v1193
      %vm4799 = vcmp.lt.s32.totalorder %v4796, %v1196
      %vm4800 = vcmp.lt.s32.totalorder %v4796, %v1199
      %vm4801 = vcmp.lt.s32.totalorder %v4796, %v1202
      %vm4802 = vcmp.lt.s32.totalorder %v4796, %v1205
      %vm4803 = vcmp.lt.s32.totalorder %v4796, %v1208
      %vm4804 = vcmp.lt.s32.totalorder %v4796, %v1211
      %vm4805 = vcmp.lt.s32.totalorder %v4796, %v1214
      %vm4806 = vcmp.lt.s32.totalorder %v4796, %v1217
      %vm4807 = vcmp.lt.s32.totalorder %v4796, %v1220
      %vm4808 = vcmp.lt.s32.totalorder %v4796, %v1223
      %vm4809 = vcmp.lt.s32.totalorder %v4796, %v1226
      %vm4810 = vcmp.lt.s32.totalorder %v4796, %v1229
      %vm4811 = vcmp.lt.s32.totalorder %v4796, %v1232
      %vm4812 = vcmp.lt.s32.totalorder %v4796, %v1235
      %4829 = vrot.lane.b32.xlu0 %v4780, 64
      %v4830 = vpop.permute.xlu0 %4829
      %4831 = vrot.lane.b32.xlu0 %v4781, 64
      %v4832 = vpop.permute.xlu0 %4831
      %4833 = vrot.lane.b32.xlu0 %v4782, 64
      %v4834 = vpop.permute.xlu0 %4833
      %4835 = vrot.lane.b32.xlu0 %v4783, 64
      %v4836 = vpop.permute.xlu0 %4835
      %4837 = vrot.lane.b32.xlu0 %v4784, 64
      %v4838 = vpop.permute.xlu0 %4837
      %4839 = vrot.lane.b32.xlu0 %v4785, 64
      %v4840 = vpop.permute.xlu0 %4839
      %4841 = vrot.lane.b32.xlu0 %v4786, 64
      %v4842 = vpop.permute.xlu0 %4841
      %4843 = vrot.lane.b32.xlu0 %v4787, 64
      %v4844 = vpop.permute.xlu0 %4843
      %4845 = vrot.lane.b32.xlu0 %v4788, 64
      %v4846 = vpop.permute.xlu0 %4845
      %4847 = vrot.lane.b32.xlu0 %v4789, 64
      %v4848 = vpop.permute.xlu0 %4847
      %4849 = vrot.lane.b32.xlu0 %v4790, 64
      %v4850 = vpop.permute.xlu0 %4849
      %4851 = vrot.lane.b32.xlu0 %v4791, 64
      %v4852 = vpop.permute.xlu0 %4851
      %4853 = vrot.lane.b32.xlu0 %v4792, 64
      %v4854 = vpop.permute.xlu0 %4853
      %4855 = vrot.lane.b32.xlu0 %v4793, 64
      %v4856 = vpop.permute.xlu0 %4855
      %4857 = vrot.lane.b32.xlu0 %v4794, 64
      %v4858 = vpop.permute.xlu0 %4857
      %4859 = vrot.lane.b32.xlu0 %v4795, 64
      %v4860 = vpop.permute.xlu0 %4859
      %v4877 = vsel %vm4797, %v4830, %v3690
      %v4878 = vsel %vm4798, %v4832, %v3691
      %v4879 = vsel %vm4799, %v4834, %v3692
      %v4880 = vsel %vm4800, %v4836, %v3693
      %v4881 = vsel %vm4801, %v4838, %v3694
      %v4882 = vsel %vm4802, %v4840, %v3695
      %v4883 = vsel %vm4803, %v4842, %v3696
      %v4884 = vsel %vm4804, %v4844, %v3697
      %v4885 = vsel %vm4805, %v4846, %v3698
      %v4886 = vsel %vm4806, %v4848, %v3699
      %v4887 = vsel %vm4807, %v4850, %v3700
      %v4888 = vsel %vm4808, %v4852, %v3701
      %v4889 = vsel %vm4809, %v4854, %v3702
      %v4890 = vsel %vm4810, %v4856, %v3703
      %v4891 = vsel %vm4811, %v4858, %v3704
      %v4892 = vsel %vm4812, %v4860, %v3705
      %4909 = vrot.lane.b32.xlu0 %v4684, 96
      %v4910 = vpop.permute.xlu0 %4909
      %4911 = vrot.lane.b32.xlu0 %v4685, 96
      %v4912 = vpop.permute.xlu0 %4911
      %4913 = vrot.lane.b32.xlu0 %v4686, 96
      %v4914 = vpop.permute.xlu0 %4913
      %4915 = vrot.lane.b32.xlu0 %v4687, 96
      %v4916 = vpop.permute.xlu0 %4915
      %4917 = vrot.lane.b32.xlu0 %v4688, 96
      %v4918 = vpop.permute.xlu0 %4917
      %4919 = vrot.lane.b32.xlu0 %v4689, 96
      %v4920 = vpop.permute.xlu0 %4919
      %4921 = vrot.lane.b32.xlu0 %v4690, 96
      %v4922 = vpop.permute.xlu0 %4921
      %4923 = vrot.lane.b32.xlu0 %v4691, 96
      %v4924 = vpop.permute.xlu0 %4923
      %4925 = vrot.lane.b32.xlu0 %v4692, 96
      %v4926 = vpop.permute.xlu0 %4925
      %4927 = vrot.lane.b32.xlu0 %v4693, 96
      %v4928 = vpop.permute.xlu0 %4927
      %4929 = vrot.lane.b32.xlu0 %v4694, 96
      %v4930 = vpop.permute.xlu0 %4929
      %4931 = vrot.lane.b32.xlu0 %v4695, 96
      %v4932 = vpop.permute.xlu0 %4931
      %4933 = vrot.lane.b32.xlu0 %v4696, 96
      %v4934 = vpop.permute.xlu0 %4933
      %4935 = vrot.lane.b32.xlu0 %v4697, 96
      %v4936 = vpop.permute.xlu0 %4935
      %4937 = vrot.lane.b32.xlu0 %v4698, 96
      %v4938 = vpop.permute.xlu0 %4937
      %4939 = vrot.lane.b32.xlu0 %v4699, 96
      %v4940 = vpop.permute.xlu0 %4939
      %v4957 = vsel %vm4797, %v4910, %v3770
      %v4958 = vsel %vm4798, %v4912, %v3771
      %v4959 = vsel %vm4799, %v4914, %v3772
      %v4960 = vsel %vm4800, %v4916, %v3773
      %v4961 = vsel %vm4801, %v4918, %v3774
      %v4962 = vsel %vm4802, %v4920, %v3775
      %v4963 = vsel %vm4803, %v4922, %v3776
      %v4964 = vsel %vm4804, %v4924, %v3777
      %v4965 = vsel %vm4805, %v4926, %v3778
      %v4966 = vsel %vm4806, %v4928, %v3779
      %v4967 = vsel %vm4807, %v4930, %v3780
      %v4968 = vsel %vm4808, %v4932, %v3781
      %v4969 = vsel %vm4809, %v4934, %v3782
      %v4970 = vsel %vm4810, %v4936, %v3783
      %v4971 = vsel %vm4811, %v4938, %v3784
      %v4972 = vsel %vm4812, %v4940, %v3785
      %4973 = vset.pattern.permute.xlu0 4
      %4974 = vperm.xlu0 %4973, %v223
      %v4975 = vpop.permute.xlu0 %4974
      %4976 = vset.pattern.permute.xlu0 4
      %4977 = vperm.xlu0 %4976, %v224
      %v4978 = vpop.permute.xlu0 %4977
      %4979 = vset.pattern.permute.xlu0 4
      %4980 = vperm.xlu0 %4979, %v225
      %v4981 = vpop.permute.xlu0 %4980
      %4982 = vset.pattern.permute.xlu0 4
      %4983 = vperm.xlu0 %4982, %v226
      %v4984 = vpop.permute.xlu0 %4983
      %4985 = vset.pattern.permute.xlu0 4
      %4986 = vperm.xlu0 %4985, %v227
      %v4987 = vpop.permute.xlu0 %4986
      %4988 = vset.pattern.permute.xlu0 4
      %4989 = vperm.xlu0 %4988, %v228
      %v4990 = vpop.permute.xlu0 %4989
      %4991 = vset.pattern.permute.xlu0 4
      %4992 = vperm.xlu0 %4991, %v229
      %v4993 = vpop.permute.xlu0 %4992
      %4994 = vset.pattern.permute.xlu0 4
      %4995 = vperm.xlu0 %4994, %v230
      %v4996 = vpop.permute.xlu0 %4995
      %4997 = vset.pattern.permute.xlu0 4
      %4998 = vperm.xlu0 %4997, %v231
      %v4999 = vpop.permute.xlu0 %4998
      %5000 = vset.pattern.permute.xlu0 4
      %5001 = vperm.xlu0 %5000, %v232
      %v5002 = vpop.permute.xlu0 %5001
      %5003 = vset.pattern.permute.xlu0 4
      %5004 = vperm.xlu0 %5003, %v233
      %v5005 = vpop.permute.xlu0 %5004
      %5006 = vset.pattern.permute.xlu0 4
      %5007 = vperm.xlu0 %5006, %v234
      %v5008 = vpop.permute.xlu0 %5007
      %5009 = vset.pattern.permute.xlu0 4
      %5010 = vperm.xlu0 %5009, %v235
      %v5011 = vpop.permute.xlu0 %5010
      %5012 = vset.pattern.permute.xlu0 4
      %5013 = vperm.xlu0 %5012, %v236
      %v5014 = vpop.permute.xlu0 %5013
      %5015 = vset.pattern.permute.xlu0 4
      %5016 = vperm.xlu0 %5015, %v237
      %v5017 = vpop.permute.xlu0 %5016
      %5018 = vset.pattern.permute.xlu0 4
      %5019 = vperm.xlu0 %5018, %v238
      %v5020 = vpop.permute.xlu0 %5019
      %vm5021 = vcmp.eq.s32.totalorder %v266, %v4975
      %vm5022 = vcmp.eq.s32.totalorder %v266, %v4978
      %vm5023 = vcmp.eq.s32.totalorder %v266, %v4981
      %vm5024 = vcmp.eq.s32.totalorder %v266, %v4984
      %vm5025 = vcmp.eq.s32.totalorder %v266, %v4987
      %vm5026 = vcmp.eq.s32.totalorder %v266, %v4990
      %vm5027 = vcmp.eq.s32.totalorder %v266, %v4993
      %vm5028 = vcmp.eq.s32.totalorder %v266, %v4996
      %vm5029 = vcmp.eq.s32.totalorder %v266, %v4999
      %vm5030 = vcmp.eq.s32.totalorder %v266, %v5002
      %vm5031 = vcmp.eq.s32.totalorder %v266, %v5005
      %vm5032 = vcmp.eq.s32.totalorder %v266, %v5008
      %vm5033 = vcmp.eq.s32.totalorder %v266, %v5011
      %vm5034 = vcmp.eq.s32.totalorder %v266, %v5014
      %vm5035 = vcmp.eq.s32.totalorder %v266, %v5017
      %vm5036 = vcmp.eq.s32.totalorder %v266, %v5020
      %5037 = vset.pattern.permute.xlu0 3
      %5038 = vperm.xlu0 %5037, %v332
      %v5039 = vpop.permute.xlu0 %5038
      %5040 = vset.pattern.permute.xlu0 3
      %5041 = vperm.xlu0 %5040, %v333
      %v5042 = vpop.permute.xlu0 %5041
      %5043 = vset.pattern.permute.xlu0 3
      %5044 = vperm.xlu0 %5043, %v334
      %v5045 = vpop.permute.xlu0 %5044
      %5046 = vset.pattern.permute.xlu0 3
      %5047 = vperm.xlu0 %5046, %v335
      %v5048 = vpop.permute.xlu0 %5047
      %5049 = vset.pattern.permute.xlu0 3
      %5050 = vperm.xlu0 %5049, %v336
      %v5051 = vpop.permute.xlu0 %5050
      %5052 = vset.pattern.permute.xlu0 3
      %5053 = vperm.xlu0 %5052, %v337
      %v5054 = vpop.permute.xlu0 %5053
      %5055 = vset.pattern.permute.xlu0 3
      %5056 = vperm.xlu0 %5055, %v338
      %v5057 = vpop.permute.xlu0 %5056
      %5058 = vset.pattern.permute.xlu0 3
      %5059 = vperm.xlu0 %5058, %v339
      %v5060 = vpop.permute.xlu0 %5059
      %5061 = vset.pattern.permute.xlu0 3
      %5062 = vperm.xlu0 %5061, %v340
      %v5063 = vpop.permute.xlu0 %5062
      %5064 = vset.pattern.permute.xlu0 3
      %5065 = vperm.xlu0 %5064, %v341
      %v5066 = vpop.permute.xlu0 %5065
      %5067 = vset.pattern.permute.xlu0 3
      %5068 = vperm.xlu0 %5067, %v342
      %v5069 = vpop.permute.xlu0 %5068
      %5070 = vset.pattern.permute.xlu0 3
      %5071 = vperm.xlu0 %5070, %v343
      %v5072 = vpop.permute.xlu0 %5071
      %5073 = vset.pattern.permute.xlu0 3
      %5074 = vperm.xlu0 %5073, %v344
      %v5075 = vpop.permute.xlu0 %5074
      %5076 = vset.pattern.permute.xlu0 3
      %5077 = vperm.xlu0 %5076, %v345
      %v5078 = vpop.permute.xlu0 %5077
      %5079 = vset.pattern.permute.xlu0 3
      %5080 = vperm.xlu0 %5079, %v346
      %v5081 = vpop.permute.xlu0 %5080
      %5082 = vset.pattern.permute.xlu0 3
      %5083 = vperm.xlu0 %5082, %v347
      %v5084 = vpop.permute.xlu0 %5083
      %vm5085 = vcmp.eq.s32.totalorder %v266, %v5039
      %vm5086 = vcmp.eq.s32.totalorder %v266, %v5042
      %vm5087 = vcmp.eq.s32.totalorder %v266, %v5045
      %vm5088 = vcmp.eq.s32.totalorder %v266, %v5048
      %vm5089 = vcmp.eq.s32.totalorder %v266, %v5051
      %vm5090 = vcmp.eq.s32.totalorder %v266, %v5054
      %vm5091 = vcmp.eq.s32.totalorder %v266, %v5057
      %vm5092 = vcmp.eq.s32.totalorder %v266, %v5060
      %vm5093 = vcmp.eq.s32.totalorder %v266, %v5063
      %vm5094 = vcmp.eq.s32.totalorder %v266, %v5066
      %vm5095 = vcmp.eq.s32.totalorder %v266, %v5069
      %vm5096 = vcmp.eq.s32.totalorder %v266, %v5072
      %vm5097 = vcmp.eq.s32.totalorder %v266, %v5075
      %vm5098 = vcmp.eq.s32.totalorder %v266, %v5078
      %vm5099 = vcmp.eq.s32.totalorder %v266, %v5081
      %vm5100 = vcmp.eq.s32.totalorder %v266, %v5084
      %vm5101 = vmor %vm5021, %vm5085
      %vm5102 = vmor %vm5022, %vm5086
      %vm5103 = vmor %vm5023, %vm5087
      %vm5104 = vmor %vm5024, %vm5088
      %vm5105 = vmor %vm5025, %vm5089
      %vm5106 = vmor %vm5026, %vm5090
      %vm5107 = vmor %vm5027, %vm5091
      %vm5108 = vmor %vm5028, %vm5092
      %vm5109 = vmor %vm5029, %vm5093
      %vm5110 = vmor %vm5030, %vm5094
      %vm5111 = vmor %vm5031, %vm5095
      %vm5112 = vmor %vm5032, %vm5096
      %vm5113 = vmor %vm5033, %vm5097
      %vm5114 = vmor %vm5034, %vm5098
      %vm5115 = vmor %vm5035, %vm5099
      %vm5116 = vmor %vm5036, %vm5100
      %v5117 = vsel %vm5101, 1, 0
      %v5118 = vsel %vm5102, 1, 0
      %v5119 = vsel %vm5103, 1, 0
      %v5120 = vsel %vm5104, 1, 0
      %v5121 = vsel %vm5105, 1, 0
      %v5122 = vsel %vm5106, 1, 0
      %v5123 = vsel %vm5107, 1, 0
      %v5124 = vsel %vm5108, 1, 0
      %v5125 = vsel %vm5109, 1, 0
      %v5126 = vsel %vm5110, 1, 0
      %v5127 = vsel %vm5111, 1, 0
      %v5128 = vsel %vm5112, 1, 0
      %v5129 = vsel %vm5113, 1, 0
      %v5130 = vsel %vm5114, 1, 0
      %v5131 = vsel %vm5115, 1, 0
      %v5132 = vsel %vm5116, 1, 0
      %v5133 = vcvt.s32.f32 %v5117
      %v5134 = vcvt.s32.f32 %v5118
      %v5135 = vcvt.s32.f32 %v5119
      %v5136 = vcvt.s32.f32 %v5120
      %v5137 = vcvt.s32.f32 %v5121
      %v5138 = vcvt.s32.f32 %v5122
      %v5139 = vcvt.s32.f32 %v5123
      %v5140 = vcvt.s32.f32 %v5124
      %v5141 = vcvt.s32.f32 %v5125
      %v5142 = vcvt.s32.f32 %v5126
      %v5143 = vcvt.s32.f32 %v5127
      %v5144 = vcvt.s32.f32 %v5128
      %v5145 = vcvt.s32.f32 %v5129
      %v5146 = vcvt.s32.f32 %v5130
      %v5147 = vcvt.s32.f32 %v5131
      %v5148 = vcvt.s32.f32 %v5132
      %v5150 = vsel %vm460, %v4877, 0
      %v5153 = vsel %vm460, %v4878, 0
      %v5156 = vsel %vm460, %v4879, 0
      %v5159 = vsel %vm460, %v4880, 0
      %v5162 = vsel %vm460, %v4881, 0
      %v5165 = vsel %vm460, %v4882, 0
      %v5168 = vsel %vm460, %v4883, 0
      %v5171 = vsel %vm460, %v4884, 0
      %v5174 = vsel %vm460, %v4885, 0
      %v5177 = vsel %vm460, %v4886, 0
      %v5180 = vsel %vm460, %v4887, 0
      %v5183 = vsel %vm460, %v4888, 0
      %v5186 = vsel %vm460, %v4889, 0
      %v5189 = vsel %vm460, %v4890, 0
      %v5192 = vsel %vm460, %v4891, 0
      %v5195 = vsel %vm460, %v4892, 0
      %5197 = vmatprep.subr.mxu0 0.0
      %5198 = vmatpush1.msra.mxu0 0.0
      %5199 = vmatprep.subr.mxu0 0.0
      %5200 = vmatpush1.msra.mxu0 0.0
      %5201 = vmatprep.subr.mxu0 0.0
      %5202 = vmatpush1.msra.mxu0 0.0
      %5203 = vmatprep.subr.mxu0 0.0
      %5204 = vmatpush1.msra.mxu0 0.0
      %5205 = vmatprep.subr.mxu0 0.0
      %5206 = vmatpush1.msra.mxu0 0.0
      %5207 = vmatprep.subr.mxu0 0.0
      %5208 = vmatpush1.msra.mxu0 0.0
      %5209 = vmatprep.subr.mxu0 0.0
      %5210 = vmatpush1.msra.mxu0 0.0
      %5211 = vmatprep.subr.mxu0 0.0
      %5212 = vmatpush1.msra.mxu0 0.0
      %5213 = vmatprep.subr.mxu0 0.0
      %5214 = vmatpush1.msra.mxu0 0.0
      %5215 = vmatprep.subr.mxu0 0.0
      %5216 = vmatpush1.msra.mxu0 0.0
      %5217 = vmatprep.subr.mxu0 0.0
      %5218 = vmatpush1.msra.mxu0 0.0
      %5219 = vmatprep.subr.mxu0 0.0
      %5220 = vmatpush1.msra.mxu0 0.0
      %5221 = vmatprep.subr.mxu0 0.0
      %5222 = vmatpush1.msra.mxu0 %v264
      %5223 = vmatprep.subr.mxu0 0.0
      %5224 = vmatpush1.msra.mxu0 %v263
      %5225 = vmatprep.subr.mxu0 0.0
      %5226 = vmatpush1.msra.mxu0 %v262
      %5227 = vmatprep.subr.mxu0 0.0
      %5228 = vmatpush1.msra.mxu0 %v261
      %5229 = vmatprep.subr.mxu0 0.0
      %5230 = vmatpush2.msra.mxu0 0.0
      %5231 = vmatprep.subr.mxu0 0.0
      %5232 = vmatpush2.msra.mxu0 0.0
      %5233 = vmatprep.subr.mxu0 0.0
      %5234 = vmatpush2.msra.mxu0 0.0
      %5235 = vmatprep.subr.mxu0 0.0
      %5236 = vmatpush2.msra.mxu0 0.0
      %5237 = vmatprep.subr.mxu0 0.0
      %5238 = vmatpush2.msra.mxu0 0.0
      %5239 = vmatprep.subr.mxu0 0.0
      %5240 = vmatpush2.msra.mxu0 0.0
      %5241 = vmatprep.subr.mxu0 0.0
      %5242 = vmatpush2.msra.mxu0 0.0
      %5243 = vmatprep.subr.mxu0 0.0
      %5244 = vmatpush2.msra.mxu0 0.0
      %5245 = vmatprep.subr.mxu0 0.0
      %5246 = vmatpush2.msra.mxu0 0.0
      %5247 = vmatprep.subr.mxu0 0.0
      %5248 = vmatpush2.msra.mxu0 0.0
      %5249 = vmatprep.subr.mxu0 0.0
      %5250 = vmatpush2.msra.mxu0 0.0
      %5251 = vmatprep.subr.mxu0 0.0
      %5252 = vmatpush2.msra.mxu0 0.0
      %5253 = vmatprep.subr.mxu0 0.0
      %5254 = vmatpush2.msra.mxu0 0.0
      %5255 = vmatprep.subr.mxu0 0.0
      %5256 = vmatpush2.msra.mxu0 0.0
      %5257 = vmatprep.subr.mxu0 0.0
      %5258 = vmatpush2.msra.mxu0 0.0
      %5259 = vmatprep.subr.mxu0 0.0
      %5260 = vmatpush2.msra.mxu0 0.0
      %5261 = vmatprep.mubr.f32.mxu0 0.0
      %5262 = vmatmul.mubr.f32.gmra.mxu0 %v5150
      %v5263 = vpop.f32.mrf.mxu0
      %v5264 = vadd.f32 0.0, %v5263
      %v5265 = vpop.f32.mrf.mxu0
      %5266 = vmatprep.mubr.f32.mxu0 0.0
      %5267 = vmatmul.mubr.f32.gmra.mxu0 %v5153
      %v5268 = vpop.f32.mrf.mxu0
      %v5269 = vadd.f32 0.0, %v5268
      %v5270 = vpop.f32.mrf.mxu0
      %5271 = vmatprep.mubr.f32.mxu0 0.0
      %5272 = vmatmul.mubr.f32.gmra.mxu0 %v5156
      %v5273 = vpop.f32.mrf.mxu0
      %v5274 = vadd.f32 0.0, %v5273
      %v5275 = vpop.f32.mrf.mxu0
      %5276 = vmatprep.mubr.f32.mxu0 0.0
      %5277 = vmatmul.mubr.f32.gmra.mxu0 %v5159
      %v5278 = vpop.f32.mrf.mxu0
      %v5279 = vadd.f32 0.0, %v5278
      %v5280 = vpop.f32.mrf.mxu0
      %5281 = vmatprep.mubr.f32.mxu0 0.0
      %5282 = vmatmul.mubr.f32.gmra.mxu0 %v5162
      %v5283 = vpop.f32.mrf.mxu0
      %v5284 = vadd.f32 0.0, %v5283
      %v5285 = vpop.f32.mrf.mxu0
      %5286 = vmatprep.mubr.f32.mxu0 0.0
      %5287 = vmatmul.mubr.f32.gmra.mxu0 %v5165
      %v5288 = vpop.f32.mrf.mxu0
      %v5289 = vadd.f32 0.0, %v5288
      %v5290 = vpop.f32.mrf.mxu0
      %5291 = vmatprep.mubr.f32.mxu0 0.0
      %5292 = vmatmul.mubr.f32.gmra.mxu0 %v5168
      %v5293 = vpop.f32.mrf.mxu0
      %v5294 = vadd.f32 0.0, %v5293
      %v5295 = vpop.f32.mrf.mxu0
      %5296 = vmatprep.mubr.f32.mxu0 0.0
      %5297 = vmatmul.mubr.f32.gmra.mxu0 %v5171
      %v5298 = vpop.f32.mrf.mxu0
      %v5299 = vadd.f32 0.0, %v5298
      %v5300 = vpop.f32.mrf.mxu0
      %5301 = vmatprep.mubr.f32.mxu0 0.0
      %5302 = vmatmul.mubr.f32.gmra.mxu0 %v5174
      %v5303 = vpop.f32.mrf.mxu0
      %v5304 = vadd.f32 0.0, %v5303
      %v5305 = vpop.f32.mrf.mxu0
      %5306 = vmatprep.mubr.f32.mxu0 0.0
      %5307 = vmatmul.mubr.f32.gmra.mxu0 %v5177
      %v5308 = vpop.f32.mrf.mxu0
      %v5309 = vadd.f32 0.0, %v5308
      %v5310 = vpop.f32.mrf.mxu0
      %5311 = vmatprep.mubr.f32.mxu0 0.0
      %5312 = vmatmul.mubr.f32.gmra.mxu0 %v5180
      %v5313 = vpop.f32.mrf.mxu0
      %v5314 = vadd.f32 0.0, %v5313
      %v5315 = vpop.f32.mrf.mxu0
      %5316 = vmatprep.mubr.f32.mxu0 0.0
      %5317 = vmatmul.mubr.f32.gmra.mxu0 %v5183
      %v5318 = vpop.f32.mrf.mxu0
      %v5319 = vadd.f32 0.0, %v5318
      %v5320 = vpop.f32.mrf.mxu0
      %5321 = vmatprep.mubr.f32.mxu0 0.0
      %5322 = vmatmul.mubr.f32.gmra.mxu0 %v5186
      %v5323 = vpop.f32.mrf.mxu0
      %v5324 = vadd.f32 0.0, %v5323
      %v5325 = vpop.f32.mrf.mxu0
      %5326 = vmatprep.mubr.f32.mxu0 0.0
      %5327 = vmatmul.mubr.f32.gmra.mxu0 %v5189
      %v5328 = vpop.f32.mrf.mxu0
      %v5329 = vadd.f32 0.0, %v5328
      %v5330 = vpop.f32.mrf.mxu0
      %5331 = vmatprep.mubr.f32.mxu0 0.0
      %5332 = vmatmul.mubr.f32.gmra.mxu0 %v5192
      %v5333 = vpop.f32.mrf.mxu0
      %v5334 = vadd.f32 0.0, %v5333
      %v5335 = vpop.f32.mrf.mxu0
      %5336 = vmatprep.mubr.f32.mxu0 0.0
      %5337 = vmatmul.mubr.f32.gmra.mxu0 %v5195
      %v5338 = vpop.f32.mrf.mxu0
      %v5339 = vadd.f32 0.0, %v5338
      %v5340 = vpop.f32.mrf.mxu0
      %5341 = vdwg.mxu0
      %v5343 = vsel %vm609, %v5133, 0
      %v5346 = vsel %vm609, %v5134, 0
      %v5349 = vsel %vm609, %v5135, 0
      %v5352 = vsel %vm609, %v5136, 0
      %v5355 = vsel %vm609, %v5137, 0
      %v5358 = vsel %vm609, %v5138, 0
      %v5361 = vsel %vm609, %v5139, 0
      %v5364 = vsel %vm609, %v5140, 0
      %v5367 = vsel %vm609, %v5141, 0
      %v5370 = vsel %vm609, %v5142, 0
      %v5373 = vsel %vm609, %v5143, 0
      %v5376 = vsel %vm609, %v5144, 0
      %v5379 = vsel %vm609, %v5145, 0
      %v5382 = vsel %vm609, %v5146, 0
      %v5385 = vsel %vm609, %v5147, 0
      %v5388 = vsel %vm609, %v5148, 0
      %5390 = vmatprep.subr.mxu0 0.0
      %5391 = vmatpush1.msra.mxu0 0.0
      %5392 = vmatprep.subr.mxu0 0.0
      %5393 = vmatpush1.msra.mxu0 0.0
      %5394 = vmatprep.subr.mxu0 0.0
      %5395 = vmatpush1.msra.mxu0 0.0
      %5396 = vmatprep.subr.mxu0 0.0
      %5397 = vmatpush1.msra.mxu0 0.0
      %5398 = vmatprep.subr.mxu0 0.0
      %5399 = vmatpush1.msra.mxu0 0.0
      %5400 = vmatprep.subr.mxu0 0.0
      %5401 = vmatpush1.msra.mxu0 0.0
      %5402 = vmatprep.subr.mxu0 0.0
      %5403 = vmatpush1.msra.mxu0 0.0
      %5404 = vmatprep.subr.mxu0 0.0
      %5405 = vmatpush1.msra.mxu0 0.0
      %5406 = vmatprep.subr.mxu0 0.0
      %5407 = vmatpush1.msra.mxu0 0.0
      %5408 = vmatprep.subr.mxu0 0.0
      %5409 = vmatpush1.msra.mxu0 0.0
      %5410 = vmatprep.subr.mxu0 0.0
      %5411 = vmatpush1.msra.mxu0 %v260
      %5412 = vmatprep.subr.mxu0 0.0
      %5413 = vmatpush1.msra.mxu0 %v259
      %5414 = vmatprep.subr.mxu0 0.0
      %5415 = vmatpush1.msra.mxu0 %v258
      %5416 = vmatprep.subr.mxu0 0.0
      %5417 = vmatpush1.msra.mxu0 %v257
      %5418 = vmatprep.subr.mxu0 0.0
      %5419 = vmatpush1.msra.mxu0 %v256
      %5420 = vmatprep.subr.mxu0 0.0
      %5421 = vmatpush1.msra.mxu0 %v255
      %5422 = vmatprep.subr.mxu0 0.0
      %5423 = vmatpush2.msra.mxu0 0.0
      %5424 = vmatprep.subr.mxu0 0.0
      %5425 = vmatpush2.msra.mxu0 0.0
      %5426 = vmatprep.subr.mxu0 0.0
      %5427 = vmatpush2.msra.mxu0 0.0
      %5428 = vmatprep.subr.mxu0 0.0
      %5429 = vmatpush2.msra.mxu0 0.0
      %5430 = vmatprep.subr.mxu0 0.0
      %5431 = vmatpush2.msra.mxu0 0.0
      %5432 = vmatprep.subr.mxu0 0.0
      %5433 = vmatpush2.msra.mxu0 0.0
      %5434 = vmatprep.subr.mxu0 0.0
      %5435 = vmatpush2.msra.mxu0 0.0
      %5436 = vmatprep.subr.mxu0 0.0
      %5437 = vmatpush2.msra.mxu0 0.0
      %5438 = vmatprep.subr.mxu0 0.0
      %5439 = vmatpush2.msra.mxu0 0.0
      %5440 = vmatprep.subr.mxu0 0.0
      %5441 = vmatpush2.msra.mxu0 0.0
      %5442 = vmatprep.subr.mxu0 0.0
      %5443 = vmatpush2.msra.mxu0 0.0
      %5444 = vmatprep.subr.mxu0 0.0
      %5445 = vmatpush2.msra.mxu0 0.0
      %5446 = vmatprep.subr.mxu0 0.0
      %5447 = vmatpush2.msra.mxu0 0.0
      %5448 = vmatprep.subr.mxu0 0.0
      %5449 = vmatpush2.msra.mxu0 0.0
      %5450 = vmatprep.subr.mxu0 0.0
      %5451 = vmatpush2.msra.mxu0 0.0
      %5452 = vmatprep.subr.mxu0 0.0
      %5453 = vmatpush2.msra.mxu0 0.0
      %5454 = vmatprep.mubr.f32.mxu0 0.0
      %5455 = vmatmul.mubr.f32.gmra.mxu0 %v5343
      %v5456 = vpop.f32.mrf.mxu0
      %v5457 = vadd.f32 %v5264, %v5456
      %v5458 = vpop.f32.mrf.mxu0
      %5459 = vmatprep.mubr.f32.mxu0 0.0
      %5460 = vmatmul.mubr.f32.gmra.mxu0 %v5346
      %v5461 = vpop.f32.mrf.mxu0
      %v5462 = vadd.f32 %v5269, %v5461
      %v5463 = vpop.f32.mrf.mxu0
      %5464 = vmatprep.mubr.f32.mxu0 0.0
      %5465 = vmatmul.mubr.f32.gmra.mxu0 %v5349
      %v5466 = vpop.f32.mrf.mxu0
      %v5467 = vadd.f32 %v5274, %v5466
      %v5468 = vpop.f32.mrf.mxu0
      %5469 = vmatprep.mubr.f32.mxu0 0.0
      %5470 = vmatmul.mubr.f32.gmra.mxu0 %v5352
      %v5471 = vpop.f32.mrf.mxu0
      %v5472 = vadd.f32 %v5279, %v5471
      %v5473 = vpop.f32.mrf.mxu0
      %5474 = vmatprep.mubr.f32.mxu0 0.0
      %5475 = vmatmul.mubr.f32.gmra.mxu0 %v5355
      %v5476 = vpop.f32.mrf.mxu0
      %v5477 = vadd.f32 %v5284, %v5476
      %v5478 = vpop.f32.mrf.mxu0
      %5479 = vmatprep.mubr.f32.mxu0 0.0
      %5480 = vmatmul.mubr.f32.gmra.mxu0 %v5358
      %v5481 = vpop.f32.mrf.mxu0
      %v5482 = vadd.f32 %v5289, %v5481
      %v5483 = vpop.f32.mrf.mxu0
      %5484 = vmatprep.mubr.f32.mxu0 0.0
      %5485 = vmatmul.mubr.f32.gmra.mxu0 %v5361
      %v5486 = vpop.f32.mrf.mxu0
      %v5487 = vadd.f32 %v5294, %v5486
      %v5488 = vpop.f32.mrf.mxu0
      %5489 = vmatprep.mubr.f32.mxu0 0.0
      %5490 = vmatmul.mubr.f32.gmra.mxu0 %v5364
      %v5491 = vpop.f32.mrf.mxu0
      %v5492 = vadd.f32 %v5299, %v5491
      %v5493 = vpop.f32.mrf.mxu0
      %5494 = vmatprep.mubr.f32.mxu0 0.0
      %5495 = vmatmul.mubr.f32.gmra.mxu0 %v5367
      %v5496 = vpop.f32.mrf.mxu0
      %v5497 = vadd.f32 %v5304, %v5496
      %v5498 = vpop.f32.mrf.mxu0
      %5499 = vmatprep.mubr.f32.mxu0 0.0
      %5500 = vmatmul.mubr.f32.gmra.mxu0 %v5370
      %v5501 = vpop.f32.mrf.mxu0
      %v5502 = vadd.f32 %v5309, %v5501
      %v5503 = vpop.f32.mrf.mxu0
      %5504 = vmatprep.mubr.f32.mxu0 0.0
      %5505 = vmatmul.mubr.f32.gmra.mxu0 %v5373
      %v5506 = vpop.f32.mrf.mxu0
      %v5507 = vadd.f32 %v5314, %v5506
      %v5508 = vpop.f32.mrf.mxu0
      %5509 = vmatprep.mubr.f32.mxu0 0.0
      %5510 = vmatmul.mubr.f32.gmra.mxu0 %v5376
      %v5511 = vpop.f32.mrf.mxu0
      %v5512 = vadd.f32 %v5319, %v5511
      %v5513 = vpop.f32.mrf.mxu0
      %5514 = vmatprep.mubr.f32.mxu0 0.0
      %5515 = vmatmul.mubr.f32.gmra.mxu0 %v5379
      %v5516 = vpop.f32.mrf.mxu0
      %v5517 = vadd.f32 %v5324, %v5516
      %v5518 = vpop.f32.mrf.mxu0
      %5519 = vmatprep.mubr.f32.mxu0 0.0
      %5520 = vmatmul.mubr.f32.gmra.mxu0 %v5382
      %v5521 = vpop.f32.mrf.mxu0
      %v5522 = vadd.f32 %v5329, %v5521
      %v5523 = vpop.f32.mrf.mxu0
      %5524 = vmatprep.mubr.f32.mxu0 0.0
      %5525 = vmatmul.mubr.f32.gmra.mxu0 %v5385
      %v5526 = vpop.f32.mrf.mxu0
      %v5527 = vadd.f32 %v5334, %v5526
      %v5528 = vpop.f32.mrf.mxu0
      %5529 = vmatprep.mubr.f32.mxu0 0.0
      %5530 = vmatmul.mubr.f32.gmra.mxu0 %v5388
      %v5531 = vpop.f32.mrf.mxu0
      %v5532 = vadd.f32 %v5339, %v5531
      %v5533 = vpop.f32.mrf.mxu0
      %5534 = vdwg.mxu0
      %v5535 = vxor.u32 %v5457, 2147483648
      %v5536 = vxor.u32 %v5462, 2147483648
      %v5537 = vxor.u32 %v5467, 2147483648
      %v5538 = vxor.u32 %v5472, 2147483648
      %v5539 = vxor.u32 %v5477, 2147483648
      %v5540 = vxor.u32 %v5482, 2147483648
      %v5541 = vxor.u32 %v5487, 2147483648
      %v5542 = vxor.u32 %v5492, 2147483648
      %v5543 = vxor.u32 %v5497, 2147483648
      %v5544 = vxor.u32 %v5502, 2147483648
      %v5545 = vxor.u32 %v5507, 2147483648
      %v5546 = vxor.u32 %v5512, 2147483648
      %v5547 = vxor.u32 %v5517, 2147483648
      %v5548 = vxor.u32 %v5522, 2147483648
      %v5549 = vxor.u32 %v5527, 2147483648
      %v5550 = vxor.u32 %v5532, 2147483648
      %v5551 = vmul.f32 %v5535, 1.442695
      %v5552 = vpow.pop %v5551
      %v5553 = vmul.f32 %v5536, 1.442695
      %v5554 = vpow.pop %v5553
      %v5555 = vmul.f32 %v5537, 1.442695
      %v5556 = vpow.pop %v5555
      %v5557 = vmul.f32 %v5538, 1.442695
      %v5558 = vpow.pop %v5557
      %v5559 = vmul.f32 %v5539, 1.442695
      %v5560 = vpow.pop %v5559
      %v5561 = vmul.f32 %v5540, 1.442695
      %v5562 = vpow.pop %v5561
      %v5563 = vmul.f32 %v5541, 1.442695
      %v5564 = vpow.pop %v5563
      %v5565 = vmul.f32 %v5542, 1.442695
      %v5566 = vpow.pop %v5565
      %v5567 = vmul.f32 %v5543, 1.442695
      %v5568 = vpow.pop %v5567
      %v5569 = vmul.f32 %v5544, 1.442695
      %v5570 = vpow.pop %v5569
      %v5571 = vmul.f32 %v5545, 1.442695
      %v5572 = vpow.pop %v5571
      %v5573 = vmul.f32 %v5546, 1.442695
      %v5574 = vpow.pop %v5573
      %v5575 = vmul.f32 %v5547, 1.442695
      %v5576 = vpow.pop %v5575
      %v5577 = vmul.f32 %v5548, 1.442695
      %v5578 = vpow.pop %v5577
      %v5579 = vmul.f32 %v5549, 1.442695
      %v5580 = vpow.pop %v5579
      %v5581 = vmul.f32 %v5550, 1.442695
      %v5582 = vpow.pop %v5581
      %v5583 = vadd.f32 %v5552, 1.0
      %v5584 = vadd.f32 %v5554, 1.0
      %v5585 = vadd.f32 %v5556, 1.0
      %v5586 = vadd.f32 %v5558, 1.0
      %v5587 = vadd.f32 %v5560, 1.0
      %v5588 = vadd.f32 %v5562, 1.0
      %v5589 = vadd.f32 %v5564, 1.0
      %v5590 = vadd.f32 %v5566, 1.0
      %v5591 = vadd.f32 %v5568, 1.0
      %v5592 = vadd.f32 %v5570, 1.0
      %v5593 = vadd.f32 %v5572, 1.0
      %v5594 = vadd.f32 %v5574, 1.0
      %v5595 = vadd.f32 %v5576, 1.0
      %v5596 = vadd.f32 %v5578, 1.0
      %v5597 = vadd.f32 %v5580, 1.0
      %v5598 = vadd.f32 %v5582, 1.0
      %v5599 = vrcp.pop %v5583
      %v5600 = vmul.f32 1.0, %v5599
      %v5601 = vrcp.pop %v5584
      %v5602 = vmul.f32 1.0, %v5601
      %v5603 = vrcp.pop %v5585
      %v5604 = vmul.f32 1.0, %v5603
      %v5605 = vrcp.pop %v5586
      %v5606 = vmul.f32 1.0, %v5605
      %v5607 = vrcp.pop %v5587
      %v5608 = vmul.f32 1.0, %v5607
      %v5609 = vrcp.pop %v5588
      %v5610 = vmul.f32 1.0, %v5609
      %v5611 = vrcp.pop %v5589
      %v5612 = vmul.f32 1.0, %v5611
      %v5613 = vrcp.pop %v5590
      %v5614 = vmul.f32 1.0, %v5613
      %v5615 = vrcp.pop %v5591
      %v5616 = vmul.f32 1.0, %v5615
      %v5617 = vrcp.pop %v5592
      %v5618 = vmul.f32 1.0, %v5617
      %v5619 = vrcp.pop %v5593
      %v5620 = vmul.f32 1.0, %v5619
      %v5621 = vrcp.pop %v5594
      %v5622 = vmul.f32 1.0, %v5621
      %v5623 = vrcp.pop %v5595
      %v5624 = vmul.f32 1.0, %v5623
      %v5625 = vrcp.pop %v5596
      %v5626 = vmul.f32 1.0, %v5625
      %v5627 = vrcp.pop %v5597
      %v5628 = vmul.f32 1.0, %v5627
      %v5629 = vrcp.pop %v5598
      %v5630 = vmul.f32 1.0, %v5629
      %v5631 = vtanh.pop %v5457
      %v5632 = vtanh.pop %v5462
      %v5633 = vtanh.pop %v5467
      %v5634 = vtanh.pop %v5472
      %v5635 = vtanh.pop %v5477
      %v5636 = vtanh.pop %v5482
      %v5637 = vtanh.pop %v5487
      %v5638 = vtanh.pop %v5492
      %v5639 = vtanh.pop %v5497
      %v5640 = vtanh.pop %v5502
      %v5641 = vtanh.pop %v5507
      %v5642 = vtanh.pop %v5512
      %v5643 = vtanh.pop %v5517
      %v5644 = vtanh.pop %v5522
      %v5645 = vtanh.pop %v5527
      %v5646 = vtanh.pop %v5532
      %5663 = vrot.lane.b32.xlu0 %v4957, 32
      %v5664 = vpop.permute.xlu0 %5663
      %5665 = vrot.lane.b32.xlu0 %v4958, 32
      %v5666 = vpop.permute.xlu0 %5665
      %5667 = vrot.lane.b32.xlu0 %v4959, 32
      %v5668 = vpop.permute.xlu0 %5667
      %5669 = vrot.lane.b32.xlu0 %v4960, 32
      %v5670 = vpop.permute.xlu0 %5669
      %5671 = vrot.lane.b32.xlu0 %v4961, 32
      %v5672 = vpop.permute.xlu0 %5671
      %5673 = vrot.lane.b32.xlu0 %v4962, 32
      %v5674 = vpop.permute.xlu0 %5673
      %5675 = vrot.lane.b32.xlu0 %v4963, 32
      %v5676 = vpop.permute.xlu0 %5675
      %5677 = vrot.lane.b32.xlu0 %v4964, 32
      %v5678 = vpop.permute.xlu0 %5677
      %5679 = vrot.lane.b32.xlu0 %v4965, 32
      %v5680 = vpop.permute.xlu0 %5679
      %5681 = vrot.lane.b32.xlu0 %v4966, 32
      %v5682 = vpop.permute.xlu0 %5681
      %5683 = vrot.lane.b32.xlu0 %v4967, 32
      %v5684 = vpop.permute.xlu0 %5683
      %5685 = vrot.lane.b32.xlu0 %v4968, 32
      %v5686 = vpop.permute.xlu0 %5685
      %5687 = vrot.lane.b32.xlu0 %v4969, 32
      %v5688 = vpop.permute.xlu0 %5687
      %5689 = vrot.lane.b32.xlu0 %v4970, 32
      %v5690 = vpop.permute.xlu0 %5689
      %5691 = vrot.lane.b32.xlu0 %v4971, 32
      %v5692 = vpop.permute.xlu0 %5691
      %5693 = vrot.lane.b32.xlu0 %v4972, 32
      %v5694 = vpop.permute.xlu0 %5693
      %v5711 = vmul.f32 %v5600, %v5664
      %v5712 = vmul.f32 %v5602, %v5666
      %v5713 = vmul.f32 %v5604, %v5668
      %v5714 = vmul.f32 %v5606, %v5670
      %v5715 = vmul.f32 %v5608, %v5672
      %v5716 = vmul.f32 %v5610, %v5674
      %v5717 = vmul.f32 %v5612, %v5676
      %v5718 = vmul.f32 %v5614, %v5678
      %v5719 = vmul.f32 %v5616, %v5680
      %v5720 = vmul.f32 %v5618, %v5682
      %v5721 = vmul.f32 %v5620, %v5684
      %v5722 = vmul.f32 %v5622, %v5686
      %v5723 = vmul.f32 %v5624, %v5688
      %v5724 = vmul.f32 %v5626, %v5690
      %v5725 = vmul.f32 %v5628, %v5692
      %v5726 = vmul.f32 %v5630, %v5694
      %5743 = vrot.lane.b32.xlu0 %v5631, 32
      %v5744 = vpop.permute.xlu0 %5743
      %5745 = vrot.lane.b32.xlu0 %v5632, 32
      %v5746 = vpop.permute.xlu0 %5745
      %5747 = vrot.lane.b32.xlu0 %v5633, 32
      %v5748 = vpop.permute.xlu0 %5747
      %5749 = vrot.lane.b32.xlu0 %v5634, 32
      %v5750 = vpop.permute.xlu0 %5749
      %5751 = vrot.lane.b32.xlu0 %v5635, 32
      %v5752 = vpop.permute.xlu0 %5751
      %5753 = vrot.lane.b32.xlu0 %v5636, 32
      %v5754 = vpop.permute.xlu0 %5753
      %5755 = vrot.lane.b32.xlu0 %v5637, 32
      %v5756 = vpop.permute.xlu0 %5755
      %5757 = vrot.lane.b32.xlu0 %v5638, 32
      %v5758 = vpop.permute.xlu0 %5757
      %5759 = vrot.lane.b32.xlu0 %v5639, 32
      %v5760 = vpop.permute.xlu0 %5759
      %5761 = vrot.lane.b32.xlu0 %v5640, 32
      %v5762 = vpop.permute.xlu0 %5761
      %5763 = vrot.lane.b32.xlu0 %v5641, 32
      %v5764 = vpop.permute.xlu0 %5763
      %5765 = vrot.lane.b32.xlu0 %v5642, 32
      %v5766 = vpop.permute.xlu0 %5765
      %5767 = vrot.lane.b32.xlu0 %v5643, 32
      %v5768 = vpop.permute.xlu0 %5767
      %5769 = vrot.lane.b32.xlu0 %v5644, 32
      %v5770 = vpop.permute.xlu0 %5769
      %5771 = vrot.lane.b32.xlu0 %v5645, 32
      %v5772 = vpop.permute.xlu0 %5771
      %5773 = vrot.lane.b32.xlu0 %v5646, 32
      %v5774 = vpop.permute.xlu0 %5773
      %v5791 = vmul.f32 %v5600, %v5744
      %v5792 = vmul.f32 %v5602, %v5746
      %v5793 = vmul.f32 %v5604, %v5748
      %v5794 = vmul.f32 %v5606, %v5750
      %v5795 = vmul.f32 %v5608, %v5752
      %v5796 = vmul.f32 %v5610, %v5754
      %v5797 = vmul.f32 %v5612, %v5756
      %v5798 = vmul.f32 %v5614, %v5758
      %v5799 = vmul.f32 %v5616, %v5760
      %v5800 = vmul.f32 %v5618, %v5762
      %v5801 = vmul.f32 %v5620, %v5764
      %v5802 = vmul.f32 %v5622, %v5766
      %v5803 = vmul.f32 %v5624, %v5768
      %v5804 = vmul.f32 %v5626, %v5770
      %v5805 = vmul.f32 %v5628, %v5772
      %v5806 = vmul.f32 %v5630, %v5774
      %5823 = vrot.lane.b32.xlu0 %v5791, 32
      %v5824 = vpop.permute.xlu0 %5823
      %5825 = vrot.lane.b32.xlu0 %v5792, 32
      %v5826 = vpop.permute.xlu0 %5825
      %5827 = vrot.lane.b32.xlu0 %v5793, 32
      %v5828 = vpop.permute.xlu0 %5827
      %5829 = vrot.lane.b32.xlu0 %v5794, 32
      %v5830 = vpop.permute.xlu0 %5829
      %5831 = vrot.lane.b32.xlu0 %v5795, 32
      %v5832 = vpop.permute.xlu0 %5831
      %5833 = vrot.lane.b32.xlu0 %v5796, 32
      %v5834 = vpop.permute.xlu0 %5833
      %5835 = vrot.lane.b32.xlu0 %v5797, 32
      %v5836 = vpop.permute.xlu0 %5835
      %5837 = vrot.lane.b32.xlu0 %v5798, 32
      %v5838 = vpop.permute.xlu0 %5837
      %5839 = vrot.lane.b32.xlu0 %v5799, 32
      %v5840 = vpop.permute.xlu0 %5839
      %5841 = vrot.lane.b32.xlu0 %v5800, 32
      %v5842 = vpop.permute.xlu0 %5841
      %5843 = vrot.lane.b32.xlu0 %v5801, 32
      %v5844 = vpop.permute.xlu0 %5843
      %5845 = vrot.lane.b32.xlu0 %v5802, 32
      %v5846 = vpop.permute.xlu0 %5845
      %5847 = vrot.lane.b32.xlu0 %v5803, 32
      %v5848 = vpop.permute.xlu0 %5847
      %5849 = vrot.lane.b32.xlu0 %v5804, 32
      %v5850 = vpop.permute.xlu0 %5849
      %5851 = vrot.lane.b32.xlu0 %v5805, 32
      %v5852 = vpop.permute.xlu0 %5851
      %5853 = vrot.lane.b32.xlu0 %v5806, 32
      %v5854 = vpop.permute.xlu0 %5853
      %v5871 = vadd.f32 %v5711, %v5824
      %v5872 = vadd.f32 %v5712, %v5826
      %v5873 = vadd.f32 %v5713, %v5828
      %v5874 = vadd.f32 %v5714, %v5830
      %v5875 = vadd.f32 %v5715, %v5832
      %v5876 = vadd.f32 %v5716, %v5834
      %v5877 = vadd.f32 %v5717, %v5836
      %v5878 = vadd.f32 %v5718, %v5838
      %v5879 = vadd.f32 %v5719, %v5840
      %v5880 = vadd.f32 %v5720, %v5842
      %v5881 = vadd.f32 %v5721, %v5844
      %v5882 = vadd.f32 %v5722, %v5846
      %v5883 = vadd.f32 %v5723, %v5848
      %v5884 = vadd.f32 %v5724, %v5850
      %v5885 = vadd.f32 %v5725, %v5852
      %v5886 = vadd.f32 %v5726, %v5854
      %v5887 = vtanh.pop %v5871
      %v5888 = vtanh.pop %v5872
      %v5889 = vtanh.pop %v5873
      %v5890 = vtanh.pop %v5874
      %v5891 = vtanh.pop %v5875
      %v5892 = vtanh.pop %v5876
      %v5893 = vtanh.pop %v5877
      %v5894 = vtanh.pop %v5878
      %v5895 = vtanh.pop %v5879
      %v5896 = vtanh.pop %v5880
      %v5897 = vtanh.pop %v5881
      %v5898 = vtanh.pop %v5882
      %v5899 = vtanh.pop %v5883
      %v5900 = vtanh.pop %v5884
      %v5901 = vtanh.pop %v5885
      %v5902 = vtanh.pop %v5886
      %5919 = vrot.lane.b32.xlu0 %v5887, 32
      %v5920 = vpop.permute.xlu0 %5919
      %5921 = vrot.lane.b32.xlu0 %v5888, 32
      %v5922 = vpop.permute.xlu0 %5921
      %5923 = vrot.lane.b32.xlu0 %v5889, 32
      %v5924 = vpop.permute.xlu0 %5923
      %5925 = vrot.lane.b32.xlu0 %v5890, 32
      %v5926 = vpop.permute.xlu0 %5925
      %5927 = vrot.lane.b32.xlu0 %v5891, 32
      %v5928 = vpop.permute.xlu0 %5927
      %5929 = vrot.lane.b32.xlu0 %v5892, 32
      %v5930 = vpop.permute.xlu0 %5929
      %5931 = vrot.lane.b32.xlu0 %v5893, 32
      %v5932 = vpop.permute.xlu0 %5931
      %5933 = vrot.lane.b32.xlu0 %v5894, 32
      %v5934 = vpop.permute.xlu0 %5933
      %5935 = vrot.lane.b32.xlu0 %v5895, 32
      %v5936 = vpop.permute.xlu0 %5935
      %5937 = vrot.lane.b32.xlu0 %v5896, 32
      %v5938 = vpop.permute.xlu0 %5937
      %5939 = vrot.lane.b32.xlu0 %v5897, 32
      %v5940 = vpop.permute.xlu0 %5939
      %5941 = vrot.lane.b32.xlu0 %v5898, 32
      %v5942 = vpop.permute.xlu0 %5941
      %5943 = vrot.lane.b32.xlu0 %v5899, 32
      %v5944 = vpop.permute.xlu0 %5943
      %5945 = vrot.lane.b32.xlu0 %v5900, 32
      %v5946 = vpop.permute.xlu0 %5945
      %5947 = vrot.lane.b32.xlu0 %v5901, 32
      %v5948 = vpop.permute.xlu0 %5947
      %5949 = vrot.lane.b32.xlu0 %v5902, 32
      %v5950 = vpop.permute.xlu0 %5949
      %v5967 = vmul.f32 %v5600, %v5920
      %v5968 = vmul.f32 %v5602, %v5922
      %v5969 = vmul.f32 %v5604, %v5924
      %v5970 = vmul.f32 %v5606, %v5926
      %v5971 = vmul.f32 %v5608, %v5928
      %v5972 = vmul.f32 %v5610, %v5930
      %v5973 = vmul.f32 %v5612, %v5932
      %v5974 = vmul.f32 %v5614, %v5934
      %v5975 = vmul.f32 %v5616, %v5936
      %v5976 = vmul.f32 %v5618, %v5938
      %v5977 = vmul.f32 %v5620, %v5940
      %v5978 = vmul.f32 %v5622, %v5942
      %v5979 = vmul.f32 %v5624, %v5944
      %v5980 = vmul.f32 %v5626, %v5946
      %v5981 = vmul.f32 %v5628, %v5948
      %v5982 = vmul.f32 %v5630, %v5950
      %v5983 = vsel %vm267, 3, 4
      %vm5984 = vcmp.lt.s32.totalorder %v5983, %v1190
      %vm5985 = vcmp.lt.s32.totalorder %v5983, %v1193
      %vm5986 = vcmp.lt.s32.totalorder %v5983, %v1196
      %vm5987 = vcmp.lt.s32.totalorder %v5983, %v1199
      %vm5988 = vcmp.lt.s32.totalorder %v5983, %v1202
      %vm5989 = vcmp.lt.s32.totalorder %v5983, %v1205
      %vm5990 = vcmp.lt.s32.totalorder %v5983, %v1208
      %vm5991 = vcmp.lt.s32.totalorder %v5983, %v1211
      %vm5992 = vcmp.lt.s32.totalorder %v5983, %v1214
      %vm5993 = vcmp.lt.s32.totalorder %v5983, %v1217
      %vm5994 = vcmp.lt.s32.totalorder %v5983, %v1220
      %vm5995 = vcmp.lt.s32.totalorder %v5983, %v1223
      %vm5996 = vcmp.lt.s32.totalorder %v5983, %v1226
      %vm5997 = vcmp.lt.s32.totalorder %v5983, %v1229
      %vm5998 = vcmp.lt.s32.totalorder %v5983, %v1232
      %vm5999 = vcmp.lt.s32.totalorder %v5983, %v1235
      %6016 = vrot.lane.b32.xlu0 %v5967, 64
      %v6017 = vpop.permute.xlu0 %6016
      %6018 = vrot.lane.b32.xlu0 %v5968, 64
      %v6019 = vpop.permute.xlu0 %6018
      %6020 = vrot.lane.b32.xlu0 %v5969, 64
      %v6021 = vpop.permute.xlu0 %6020
      %6022 = vrot.lane.b32.xlu0 %v5970, 64
      %v6023 = vpop.permute.xlu0 %6022
      %6024 = vrot.lane.b32.xlu0 %v5971, 64
      %v6025 = vpop.permute.xlu0 %6024
      %6026 = vrot.lane.b32.xlu0 %v5972, 64
      %v6027 = vpop.permute.xlu0 %6026
      %6028 = vrot.lane.b32.xlu0 %v5973, 64
      %v6029 = vpop.permute.xlu0 %6028
      %6030 = vrot.lane.b32.xlu0 %v5974, 64
      %v6031 = vpop.permute.xlu0 %6030
      %6032 = vrot.lane.b32.xlu0 %v5975, 64
      %v6033 = vpop.permute.xlu0 %6032
      %6034 = vrot.lane.b32.xlu0 %v5976, 64
      %v6035 = vpop.permute.xlu0 %6034
      %6036 = vrot.lane.b32.xlu0 %v5977, 64
      %v6037 = vpop.permute.xlu0 %6036
      %6038 = vrot.lane.b32.xlu0 %v5978, 64
      %v6039 = vpop.permute.xlu0 %6038
      %6040 = vrot.lane.b32.xlu0 %v5979, 64
      %v6041 = vpop.permute.xlu0 %6040
      %6042 = vrot.lane.b32.xlu0 %v5980, 64
      %v6043 = vpop.permute.xlu0 %6042
      %6044 = vrot.lane.b32.xlu0 %v5981, 64
      %v6045 = vpop.permute.xlu0 %6044
      %6046 = vrot.lane.b32.xlu0 %v5982, 64
      %v6047 = vpop.permute.xlu0 %6046
      %v6064 = vsel %vm5984, %v6017, %v4877
      %v6065 = vsel %vm5985, %v6019, %v4878
      %v6066 = vsel %vm5986, %v6021, %v4879
      %v6067 = vsel %vm5987, %v6023, %v4880
      %v6068 = vsel %vm5988, %v6025, %v4881
      %v6069 = vsel %vm5989, %v6027, %v4882
      %v6070 = vsel %vm5990, %v6029, %v4883
      %v6071 = vsel %vm5991, %v6031, %v4884
      %v6072 = vsel %vm5992, %v6033, %v4885
      %v6073 = vsel %vm5993, %v6035, %v4886
      %v6074 = vsel %vm5994, %v6037, %v4887
      %v6075 = vsel %vm5995, %v6039, %v4888
      %v6076 = vsel %vm5996, %v6041, %v4889
      %v6077 = vsel %vm5997, %v6043, %v4890
      %v6078 = vsel %vm5998, %v6045, %v4891
      %v6079 = vsel %vm5999, %v6047, %v4892
      %6096 = vrot.lane.b32.xlu0 %v5871, 96
      %v6097 = vpop.permute.xlu0 %6096
      %6098 = vrot.lane.b32.xlu0 %v5872, 96
      %v6099 = vpop.permute.xlu0 %6098
      %6100 = vrot.lane.b32.xlu0 %v5873, 96
      %v6101 = vpop.permute.xlu0 %6100
      %6102 = vrot.lane.b32.xlu0 %v5874, 96
      %v6103 = vpop.permute.xlu0 %6102
      %6104 = vrot.lane.b32.xlu0 %v5875, 96
      %v6105 = vpop.permute.xlu0 %6104
      %6106 = vrot.lane.b32.xlu0 %v5876, 96
      %v6107 = vpop.permute.xlu0 %6106
      %6108 = vrot.lane.b32.xlu0 %v5877, 96
      %v6109 = vpop.permute.xlu0 %6108
      %6110 = vrot.lane.b32.xlu0 %v5878, 96
      %v6111 = vpop.permute.xlu0 %6110
      %6112 = vrot.lane.b32.xlu0 %v5879, 96
      %v6113 = vpop.permute.xlu0 %6112
      %6114 = vrot.lane.b32.xlu0 %v5880, 96
      %v6115 = vpop.permute.xlu0 %6114
      %6116 = vrot.lane.b32.xlu0 %v5881, 96
      %v6117 = vpop.permute.xlu0 %6116
      %6118 = vrot.lane.b32.xlu0 %v5882, 96
      %v6119 = vpop.permute.xlu0 %6118
      %6120 = vrot.lane.b32.xlu0 %v5883, 96
      %v6121 = vpop.permute.xlu0 %6120
      %6122 = vrot.lane.b32.xlu0 %v5884, 96
      %v6123 = vpop.permute.xlu0 %6122
      %6124 = vrot.lane.b32.xlu0 %v5885, 96
      %v6125 = vpop.permute.xlu0 %6124
      %6126 = vrot.lane.b32.xlu0 %v5886, 96
      %v6127 = vpop.permute.xlu0 %6126
      %v6144 = vsel %vm5984, %v6097, %v4957
      %v6145 = vsel %vm5985, %v6099, %v4958
      %v6146 = vsel %vm5986, %v6101, %v4959
      %v6147 = vsel %vm5987, %v6103, %v4960
      %v6148 = vsel %vm5988, %v6105, %v4961
      %v6149 = vsel %vm5989, %v6107, %v4962
      %v6150 = vsel %vm5990, %v6109, %v4963
      %v6151 = vsel %vm5991, %v6111, %v4964
      %v6152 = vsel %vm5992, %v6113, %v4965
      %v6153 = vsel %vm5993, %v6115, %v4966
      %v6154 = vsel %vm5994, %v6117, %v4967
      %v6155 = vsel %vm5995, %v6119, %v4968
      %v6156 = vsel %vm5996, %v6121, %v4969
      %v6157 = vsel %vm5997, %v6123, %v4970
      %v6158 = vsel %vm5998, %v6125, %v4971
      %v6159 = vsel %vm5999, %v6127, %v4972
      %6160 = vset.pattern.permute.xlu0 5
      %6161 = vperm.xlu0 %6160, %v223
      %v6162 = vpop.permute.xlu0 %6161
      %6163 = vset.pattern.permute.xlu0 5
      %6164 = vperm.xlu0 %6163, %v224
      %v6165 = vpop.permute.xlu0 %6164
      %6166 = vset.pattern.permute.xlu0 5
      %6167 = vperm.xlu0 %6166, %v225
      %v6168 = vpop.permute.xlu0 %6167
      %6169 = vset.pattern.permute.xlu0 5
      %6170 = vperm.xlu0 %6169, %v226
      %v6171 = vpop.permute.xlu0 %6170
      %6172 = vset.pattern.permute.xlu0 5
      %6173 = vperm.xlu0 %6172, %v227
      %v6174 = vpop.permute.xlu0 %6173
      %6175 = vset.pattern.permute.xlu0 5
      %6176 = vperm.xlu0 %6175, %v228
      %v6177 = vpop.permute.xlu0 %6176
      %6178 = vset.pattern.permute.xlu0 5
      %6179 = vperm.xlu0 %6178, %v229
      %v6180 = vpop.permute.xlu0 %6179
      %6181 = vset.pattern.permute.xlu0 5
      %6182 = vperm.xlu0 %6181, %v230
      %v6183 = vpop.permute.xlu0 %6182
      %6184 = vset.pattern.permute.xlu0 5
      %6185 = vperm.xlu0 %6184, %v231
      %v6186 = vpop.permute.xlu0 %6185
      %6187 = vset.pattern.permute.xlu0 5
      %6188 = vperm.xlu0 %6187, %v232
      %v6189 = vpop.permute.xlu0 %6188
      %6190 = vset.pattern.permute.xlu0 5
      %6191 = vperm.xlu0 %6190, %v233
      %v6192 = vpop.permute.xlu0 %6191
      %6193 = vset.pattern.permute.xlu0 5
      %6194 = vperm.xlu0 %6193, %v234
      %v6195 = vpop.permute.xlu0 %6194
      %6196 = vset.pattern.permute.xlu0 5
      %6197 = vperm.xlu0 %6196, %v235
      %v6198 = vpop.permute.xlu0 %6197
      %6199 = vset.pattern.permute.xlu0 5
      %6200 = vperm.xlu0 %6199, %v236
      %v6201 = vpop.permute.xlu0 %6200
      %6202 = vset.pattern.permute.xlu0 5
      %6203 = vperm.xlu0 %6202, %v237
      %v6204 = vpop.permute.xlu0 %6203
      %6205 = vset.pattern.permute.xlu0 5
      %6206 = vperm.xlu0 %6205, %v238
      %v6207 = vpop.permute.xlu0 %6206
      %vm6208 = vcmp.eq.s32.totalorder %v266, %v6162
      %vm6209 = vcmp.eq.s32.totalorder %v266, %v6165
      %vm6210 = vcmp.eq.s32.totalorder %v266, %v6168
      %vm6211 = vcmp.eq.s32.totalorder %v266, %v6171
      %vm6212 = vcmp.eq.s32.totalorder %v266, %v6174
      %vm6213 = vcmp.eq.s32.totalorder %v266, %v6177
      %vm6214 = vcmp.eq.s32.totalorder %v266, %v6180
      %vm6215 = vcmp.eq.s32.totalorder %v266, %v6183
      %vm6216 = vcmp.eq.s32.totalorder %v266, %v6186
      %vm6217 = vcmp.eq.s32.totalorder %v266, %v6189
      %vm6218 = vcmp.eq.s32.totalorder %v266, %v6192
      %vm6219 = vcmp.eq.s32.totalorder %v266, %v6195
      %vm6220 = vcmp.eq.s32.totalorder %v266, %v6198
      %vm6221 = vcmp.eq.s32.totalorder %v266, %v6201
      %vm6222 = vcmp.eq.s32.totalorder %v266, %v6204
      %vm6223 = vcmp.eq.s32.totalorder %v266, %v6207
      %6224 = vset.pattern.permute.xlu0 2
      %6225 = vperm.xlu0 %6224, %v332
      %v6226 = vpop.permute.xlu0 %6225
      %6227 = vset.pattern.permute.xlu0 2
      %6228 = vperm.xlu0 %6227, %v333
      %v6229 = vpop.permute.xlu0 %6228
      %6230 = vset.pattern.permute.xlu0 2
      %6231 = vperm.xlu0 %6230, %v334
      %v6232 = vpop.permute.xlu0 %6231
      %6233 = vset.pattern.permute.xlu0 2
      %6234 = vperm.xlu0 %6233, %v335
      %v6235 = vpop.permute.xlu0 %6234
      %6236 = vset.pattern.permute.xlu0 2
      %6237 = vperm.xlu0 %6236, %v336
      %v6238 = vpop.permute.xlu0 %6237
      %6239 = vset.pattern.permute.xlu0 2
      %6240 = vperm.xlu0 %6239, %v337
      %v6241 = vpop.permute.xlu0 %6240
      %6242 = vset.pattern.permute.xlu0 2
      %6243 = vperm.xlu0 %6242, %v338
      %v6244 = vpop.permute.xlu0 %6243
      %6245 = vset.pattern.permute.xlu0 2
      %6246 = vperm.xlu0 %6245, %v339
      %v6247 = vpop.permute.xlu0 %6246
      %6248 = vset.pattern.permute.xlu0 2
      %6249 = vperm.xlu0 %6248, %v340
      %v6250 = vpop.permute.xlu0 %6249
      %6251 = vset.pattern.permute.xlu0 2
      %6252 = vperm.xlu0 %6251, %v341
      %v6253 = vpop.permute.xlu0 %6252
      %6254 = vset.pattern.permute.xlu0 2
      %6255 = vperm.xlu0 %6254, %v342
      %v6256 = vpop.permute.xlu0 %6255
      %6257 = vset.pattern.permute.xlu0 2
      %6258 = vperm.xlu0 %6257, %v343
      %v6259 = vpop.permute.xlu0 %6258
      %6260 = vset.pattern.permute.xlu0 2
      %6261 = vperm.xlu0 %6260, %v344
      %v6262 = vpop.permute.xlu0 %6261
      %6263 = vset.pattern.permute.xlu0 2
      %6264 = vperm.xlu0 %6263, %v345
      %v6265 = vpop.permute.xlu0 %6264
      %6266 = vset.pattern.permute.xlu0 2
      %6267 = vperm.xlu0 %6266, %v346
      %v6268 = vpop.permute.xlu0 %6267
      %6269 = vset.pattern.permute.xlu0 2
      %6270 = vperm.xlu0 %6269, %v347
      %v6271 = vpop.permute.xlu0 %6270
      %vm6272 = vcmp.eq.s32.totalorder %v266, %v6226
      %vm6273 = vcmp.eq.s32.totalorder %v266, %v6229
      %vm6274 = vcmp.eq.s32.totalorder %v266, %v6232
      %vm6275 = vcmp.eq.s32.totalorder %v266, %v6235
      %vm6276 = vcmp.eq.s32.totalorder %v266, %v6238
      %vm6277 = vcmp.eq.s32.totalorder %v266, %v6241
      %vm6278 = vcmp.eq.s32.totalorder %v266, %v6244
      %vm6279 = vcmp.eq.s32.totalorder %v266, %v6247
      %vm6280 = vcmp.eq.s32.totalorder %v266, %v6250
      %vm6281 = vcmp.eq.s32.totalorder %v266, %v6253
      %vm6282 = vcmp.eq.s32.totalorder %v266, %v6256
      %vm6283 = vcmp.eq.s32.totalorder %v266, %v6259
      %vm6284 = vcmp.eq.s32.totalorder %v266, %v6262
      %vm6285 = vcmp.eq.s32.totalorder %v266, %v6265
      %vm6286 = vcmp.eq.s32.totalorder %v266, %v6268
      %vm6287 = vcmp.eq.s32.totalorder %v266, %v6271
      %vm6288 = vmor %vm6208, %vm6272
      %vm6289 = vmor %vm6209, %vm6273
      %vm6290 = vmor %vm6210, %vm6274
      %vm6291 = vmor %vm6211, %vm6275
      %vm6292 = vmor %vm6212, %vm6276
      %vm6293 = vmor %vm6213, %vm6277
      %vm6294 = vmor %vm6214, %vm6278
      %vm6295 = vmor %vm6215, %vm6279
      %vm6296 = vmor %vm6216, %vm6280
      %vm6297 = vmor %vm6217, %vm6281
      %vm6298 = vmor %vm6218, %vm6282
      %vm6299 = vmor %vm6219, %vm6283
      %vm6300 = vmor %vm6220, %vm6284
      %vm6301 = vmor %vm6221, %vm6285
      %vm6302 = vmor %vm6222, %vm6286
      %vm6303 = vmor %vm6223, %vm6287
      %v6304 = vsel %vm6288, 1, 0
      %v6305 = vsel %vm6289, 1, 0
      %v6306 = vsel %vm6290, 1, 0
      %v6307 = vsel %vm6291, 1, 0
      %v6308 = vsel %vm6292, 1, 0
      %v6309 = vsel %vm6293, 1, 0
      %v6310 = vsel %vm6294, 1, 0
      %v6311 = vsel %vm6295, 1, 0
      %v6312 = vsel %vm6296, 1, 0
      %v6313 = vsel %vm6297, 1, 0
      %v6314 = vsel %vm6298, 1, 0
      %v6315 = vsel %vm6299, 1, 0
      %v6316 = vsel %vm6300, 1, 0
      %v6317 = vsel %vm6301, 1, 0
      %v6318 = vsel %vm6302, 1, 0
      %v6319 = vsel %vm6303, 1, 0
      %v6320 = vcvt.s32.f32 %v6304
      %v6321 = vcvt.s32.f32 %v6305
      %v6322 = vcvt.s32.f32 %v6306
      %v6323 = vcvt.s32.f32 %v6307
      %v6324 = vcvt.s32.f32 %v6308
      %v6325 = vcvt.s32.f32 %v6309
      %v6326 = vcvt.s32.f32 %v6310
      %v6327 = vcvt.s32.f32 %v6311
      %v6328 = vcvt.s32.f32 %v6312
      %v6329 = vcvt.s32.f32 %v6313
      %v6330 = vcvt.s32.f32 %v6314
      %v6331 = vcvt.s32.f32 %v6315
      %v6332 = vcvt.s32.f32 %v6316
      %v6333 = vcvt.s32.f32 %v6317
      %v6334 = vcvt.s32.f32 %v6318
      %v6335 = vcvt.s32.f32 %v6319
      %v6337 = vsel %vm460, %v6064, 0
      %v6340 = vsel %vm460, %v6065, 0
      %v6343 = vsel %vm460, %v6066, 0
      %v6346 = vsel %vm460, %v6067, 0
      %v6349 = vsel %vm460, %v6068, 0
      %v6352 = vsel %vm460, %v6069, 0
      %v6355 = vsel %vm460, %v6070, 0
      %v6358 = vsel %vm460, %v6071, 0
      %v6361 = vsel %vm460, %v6072, 0
      %v6364 = vsel %vm460, %v6073, 0
      %v6367 = vsel %vm460, %v6074, 0
      %v6370 = vsel %vm460, %v6075, 0
      %v6373 = vsel %vm460, %v6076, 0
      %v6376 = vsel %vm460, %v6077, 0
      %v6379 = vsel %vm460, %v6078, 0
      %v6382 = vsel %vm460, %v6079, 0
      %6384 = vmatprep.subr.mxu0 0.0
      %6385 = vmatpush1.msra.mxu0 0.0
      %6386 = vmatprep.subr.mxu0 0.0
      %6387 = vmatpush1.msra.mxu0 0.0
      %6388 = vmatprep.subr.mxu0 0.0
      %6389 = vmatpush1.msra.mxu0 0.0
      %6390 = vmatprep.subr.mxu0 0.0
      %6391 = vmatpush1.msra.mxu0 0.0
      %6392 = vmatprep.subr.mxu0 0.0
      %6393 = vmatpush1.msra.mxu0 0.0
      %6394 = vmatprep.subr.mxu0 0.0
      %6395 = vmatpush1.msra.mxu0 0.0
      %6396 = vmatprep.subr.mxu0 0.0
      %6397 = vmatpush1.msra.mxu0 0.0
      %6398 = vmatprep.subr.mxu0 0.0
      %6399 = vmatpush1.msra.mxu0 0.0
      %6400 = vmatprep.subr.mxu0 0.0
      %6401 = vmatpush1.msra.mxu0 0.0
      %6402 = vmatprep.subr.mxu0 0.0
      %6403 = vmatpush1.msra.mxu0 0.0
      %6404 = vmatprep.subr.mxu0 0.0
      %6405 = vmatpush1.msra.mxu0 0.0
      %6406 = vmatprep.subr.mxu0 0.0
      %6407 = vmatpush1.msra.mxu0 0.0
      %6408 = vmatprep.subr.mxu0 0.0
      %6409 = vmatpush1.msra.mxu0 %v264
      %6410 = vmatprep.subr.mxu0 0.0
      %6411 = vmatpush1.msra.mxu0 %v263
      %6412 = vmatprep.subr.mxu0 0.0
      %6413 = vmatpush1.msra.mxu0 %v262
      %6414 = vmatprep.subr.mxu0 0.0
      %6415 = vmatpush1.msra.mxu0 %v261
      %6416 = vmatprep.subr.mxu0 0.0
      %6417 = vmatpush2.msra.mxu0 0.0
      %6418 = vmatprep.subr.mxu0 0.0
      %6419 = vmatpush2.msra.mxu0 0.0
      %6420 = vmatprep.subr.mxu0 0.0
      %6421 = vmatpush2.msra.mxu0 0.0
      %6422 = vmatprep.subr.mxu0 0.0
      %6423 = vmatpush2.msra.mxu0 0.0
      %6424 = vmatprep.subr.mxu0 0.0
      %6425 = vmatpush2.msra.mxu0 0.0
      %6426 = vmatprep.subr.mxu0 0.0
      %6427 = vmatpush2.msra.mxu0 0.0
      %6428 = vmatprep.subr.mxu0 0.0
      %6429 = vmatpush2.msra.mxu0 0.0
      %6430 = vmatprep.subr.mxu0 0.0
      %6431 = vmatpush2.msra.mxu0 0.0
      %6432 = vmatprep.subr.mxu0 0.0
      %6433 = vmatpush2.msra.mxu0 0.0
      %6434 = vmatprep.subr.mxu0 0.0
      %6435 = vmatpush2.msra.mxu0 0.0
      %6436 = vmatprep.subr.mxu0 0.0
      %6437 = vmatpush2.msra.mxu0 0.0
      %6438 = vmatprep.subr.mxu0 0.0
      %6439 = vmatpush2.msra.mxu0 0.0
      %6440 = vmatprep.subr.mxu0 0.0
      %6441 = vmatpush2.msra.mxu0 0.0
      %6442 = vmatprep.subr.mxu0 0.0
      %6443 = vmatpush2.msra.mxu0 0.0
      %6444 = vmatprep.subr.mxu0 0.0
      %6445 = vmatpush2.msra.mxu0 0.0
      %6446 = vmatprep.subr.mxu0 0.0
      %6447 = vmatpush2.msra.mxu0 0.0
      %6448 = vmatprep.mubr.f32.mxu0 0.0
      %6449 = vmatmul.mubr.f32.gmra.mxu0 %v6337
      %v6450 = vpop.f32.mrf.mxu0
      %v6451 = vadd.f32 0.0, %v6450
      %v6452 = vpop.f32.mrf.mxu0
      %6453 = vmatprep.mubr.f32.mxu0 0.0
      %6454 = vmatmul.mubr.f32.gmra.mxu0 %v6340
      %v6455 = vpop.f32.mrf.mxu0
      %v6456 = vadd.f32 0.0, %v6455
      %v6457 = vpop.f32.mrf.mxu0
      %6458 = vmatprep.mubr.f32.mxu0 0.0
      %6459 = vmatmul.mubr.f32.gmra.mxu0 %v6343
      %v6460 = vpop.f32.mrf.mxu0
      %v6461 = vadd.f32 0.0, %v6460
      %v6462 = vpop.f32.mrf.mxu0
      %6463 = vmatprep.mubr.f32.mxu0 0.0
      %6464 = vmatmul.mubr.f32.gmra.mxu0 %v6346
      %v6465 = vpop.f32.mrf.mxu0
      %v6466 = vadd.f32 0.0, %v6465
      %v6467 = vpop.f32.mrf.mxu0
      %6468 = vmatprep.mubr.f32.mxu0 0.0
      %6469 = vmatmul.mubr.f32.gmra.mxu0 %v6349
      %v6470 = vpop.f32.mrf.mxu0
      %v6471 = vadd.f32 0.0, %v6470
      %v6472 = vpop.f32.mrf.mxu0
      %6473 = vmatprep.mubr.f32.mxu0 0.0
      %6474 = vmatmul.mubr.f32.gmra.mxu0 %v6352
      %v6475 = vpop.f32.mrf.mxu0
      %v6476 = vadd.f32 0.0, %v6475
      %v6477 = vpop.f32.mrf.mxu0
      %6478 = vmatprep.mubr.f32.mxu0 0.0
      %6479 = vmatmul.mubr.f32.gmra.mxu0 %v6355
      %v6480 = vpop.f32.mrf.mxu0
      %v6481 = vadd.f32 0.0, %v6480
      %v6482 = vpop.f32.mrf.mxu0
      %6483 = vmatprep.mubr.f32.mxu0 0.0
      %6484 = vmatmul.mubr.f32.gmra.mxu0 %v6358
      %v6485 = vpop.f32.mrf.mxu0
      %v6486 = vadd.f32 0.0, %v6485
      %v6487 = vpop.f32.mrf.mxu0
      %6488 = vmatprep.mubr.f32.mxu0 0.0
      %6489 = vmatmul.mubr.f32.gmra.mxu0 %v6361
      %v6490 = vpop.f32.mrf.mxu0
      %v6491 = vadd.f32 0.0, %v6490
      %v6492 = vpop.f32.mrf.mxu0
      %6493 = vmatprep.mubr.f32.mxu0 0.0
      %6494 = vmatmul.mubr.f32.gmra.mxu0 %v6364
      %v6495 = vpop.f32.mrf.mxu0
      %v6496 = vadd.f32 0.0, %v6495
      %v6497 = vpop.f32.mrf.mxu0
      %6498 = vmatprep.mubr.f32.mxu0 0.0
      %6499 = vmatmul.mubr.f32.gmra.mxu0 %v6367
      %v6500 = vpop.f32.mrf.mxu0
      %v6501 = vadd.f32 0.0, %v6500
      %v6502 = vpop.f32.mrf.mxu0
      %6503 = vmatprep.mubr.f32.mxu0 0.0
      %6504 = vmatmul.mubr.f32.gmra.mxu0 %v6370
      %v6505 = vpop.f32.mrf.mxu0
      %v6506 = vadd.f32 0.0, %v6505
      %v6507 = vpop.f32.mrf.mxu0
      %6508 = vmatprep.mubr.f32.mxu0 0.0
      %6509 = vmatmul.mubr.f32.gmra.mxu0 %v6373
      %v6510 = vpop.f32.mrf.mxu0
      %v6511 = vadd.f32 0.0, %v6510
      %v6512 = vpop.f32.mrf.mxu0
      %6513 = vmatprep.mubr.f32.mxu0 0.0
      %6514 = vmatmul.mubr.f32.gmra.mxu0 %v6376
      %v6515 = vpop.f32.mrf.mxu0
      %v6516 = vadd.f32 0.0, %v6515
      %v6517 = vpop.f32.mrf.mxu0
      %6518 = vmatprep.mubr.f32.mxu0 0.0
      %6519 = vmatmul.mubr.f32.gmra.mxu0 %v6379
      %v6520 = vpop.f32.mrf.mxu0
      %v6521 = vadd.f32 0.0, %v6520
      %v6522 = vpop.f32.mrf.mxu0
      %6523 = vmatprep.mubr.f32.mxu0 0.0
      %6524 = vmatmul.mubr.f32.gmra.mxu0 %v6382
      %v6525 = vpop.f32.mrf.mxu0
      %v6526 = vadd.f32 0.0, %v6525
      %v6527 = vpop.f32.mrf.mxu0
      %6528 = vdwg.mxu0
      %v6530 = vsel %vm609, %v6320, 0
      %v6533 = vsel %vm609, %v6321, 0
      %v6536 = vsel %vm609, %v6322, 0
      %v6539 = vsel %vm609, %v6323, 0
      %v6542 = vsel %vm609, %v6324, 0
      %v6545 = vsel %vm609, %v6325, 0
      %v6548 = vsel %vm609, %v6326, 0
      %v6551 = vsel %vm609, %v6327, 0
      %v6554 = vsel %vm609, %v6328, 0
      %v6557 = vsel %vm609, %v6329, 0
      %v6560 = vsel %vm609, %v6330, 0
      %v6563 = vsel %vm609, %v6331, 0
      %v6566 = vsel %vm609, %v6332, 0
      %v6569 = vsel %vm609, %v6333, 0
      %v6572 = vsel %vm609, %v6334, 0
      %v6575 = vsel %vm609, %v6335, 0
      %6577 = vmatprep.subr.mxu0 0.0
      %6578 = vmatpush1.msra.mxu0 0.0
      %6579 = vmatprep.subr.mxu0 0.0
      %6580 = vmatpush1.msra.mxu0 0.0
      %6581 = vmatprep.subr.mxu0 0.0
      %6582 = vmatpush1.msra.mxu0 0.0
      %6583 = vmatprep.subr.mxu0 0.0
      %6584 = vmatpush1.msra.mxu0 0.0
      %6585 = vmatprep.subr.mxu0 0.0
      %6586 = vmatpush1.msra.mxu0 0.0
      %6587 = vmatprep.subr.mxu0 0.0
      %6588 = vmatpush1.msra.mxu0 0.0
      %6589 = vmatprep.subr.mxu0 0.0
      %6590 = vmatpush1.msra.mxu0 0.0
      %6591 = vmatprep.subr.mxu0 0.0
      %6592 = vmatpush1.msra.mxu0 0.0
      %6593 = vmatprep.subr.mxu0 0.0
      %6594 = vmatpush1.msra.mxu0 0.0
      %6595 = vmatprep.subr.mxu0 0.0
      %6596 = vmatpush1.msra.mxu0 0.0
      %6597 = vmatprep.subr.mxu0 0.0
      %6598 = vmatpush1.msra.mxu0 %v260
      %6599 = vmatprep.subr.mxu0 0.0
      %6600 = vmatpush1.msra.mxu0 %v259
      %6601 = vmatprep.subr.mxu0 0.0
      %6602 = vmatpush1.msra.mxu0 %v258
      %6603 = vmatprep.subr.mxu0 0.0
      %6604 = vmatpush1.msra.mxu0 %v257
      %6605 = vmatprep.subr.mxu0 0.0
      %6606 = vmatpush1.msra.mxu0 %v256
      %6607 = vmatprep.subr.mxu0 0.0
      %6608 = vmatpush1.msra.mxu0 %v255
      %6609 = vmatprep.subr.mxu0 0.0
      %6610 = vmatpush2.msra.mxu0 0.0
      %6611 = vmatprep.subr.mxu0 0.0
      %6612 = vmatpush2.msra.mxu0 0.0
      %6613 = vmatprep.subr.mxu0 0.0
      %6614 = vmatpush2.msra.mxu0 0.0
      %6615 = vmatprep.subr.mxu0 0.0
      %6616 = vmatpush2.msra.mxu0 0.0
      %6617 = vmatprep.subr.mxu0 0.0
      %6618 = vmatpush2.msra.mxu0 0.0
      %6619 = vmatprep.subr.mxu0 0.0
      %6620 = vmatpush2.msra.mxu0 0.0
      %6621 = vmatprep.subr.mxu0 0.0
      %6622 = vmatpush2.msra.mxu0 0.0
      %6623 = vmatprep.subr.mxu0 0.0
      %6624 = vmatpush2.msra.mxu0 0.0
      %6625 = vmatprep.subr.mxu0 0.0
      %6626 = vmatpush2.msra.mxu0 0.0
      %6627 = vmatprep.subr.mxu0 0.0
      %6628 = vmatpush2.msra.mxu0 0.0
      %6629 = vmatprep.subr.mxu0 0.0
      %6630 = vmatpush2.msra.mxu0 0.0
      %6631 = vmatprep.subr.mxu0 0.0
      %6632 = vmatpush2.msra.mxu0 0.0
      %6633 = vmatprep.subr.mxu0 0.0
      %6634 = vmatpush2.msra.mxu0 0.0
      %6635 = vmatprep.subr.mxu0 0.0
      %6636 = vmatpush2.msra.mxu0 0.0
      %6637 = vmatprep.subr.mxu0 0.0
      %6638 = vmatpush2.msra.mxu0 0.0
      %6639 = vmatprep.subr.mxu0 0.0
      %6640 = vmatpush2.msra.mxu0 0.0
      %6641 = vmatprep.mubr.f32.mxu0 0.0
      %6642 = vmatmul.mubr.f32.gmra.mxu0 %v6530
      %v6643 = vpop.f32.mrf.mxu0
      %v6644 = vadd.f32 %v6451, %v6643
      %v6645 = vpop.f32.mrf.mxu0
      %6646 = vmatprep.mubr.f32.mxu0 0.0
      %6647 = vmatmul.mubr.f32.gmra.mxu0 %v6533
      %v6648 = vpop.f32.mrf.mxu0
      %v6649 = vadd.f32 %v6456, %v6648
      %v6650 = vpop.f32.mrf.mxu0
      %6651 = vmatprep.mubr.f32.mxu0 0.0
      %6652 = vmatmul.mubr.f32.gmra.mxu0 %v6536
      %v6653 = vpop.f32.mrf.mxu0
      %v6654 = vadd.f32 %v6461, %v6653
      %v6655 = vpop.f32.mrf.mxu0
      %6656 = vmatprep.mubr.f32.mxu0 0.0
      %6657 = vmatmul.mubr.f32.gmra.mxu0 %v6539
      %v6658 = vpop.f32.mrf.mxu0
      %v6659 = vadd.f32 %v6466, %v6658
      %v6660 = vpop.f32.mrf.mxu0
      %6661 = vmatprep.mubr.f32.mxu0 0.0
      %6662 = vmatmul.mubr.f32.gmra.mxu0 %v6542
      %v6663 = vpop.f32.mrf.mxu0
      %v6664 = vadd.f32 %v6471, %v6663
      %v6665 = vpop.f32.mrf.mxu0
      %6666 = vmatprep.mubr.f32.mxu0 0.0
      %6667 = vmatmul.mubr.f32.gmra.mxu0 %v6545
      %v6668 = vpop.f32.mrf.mxu0
      %v6669 = vadd.f32 %v6476, %v6668
      %v6670 = vpop.f32.mrf.mxu0
      %6671 = vmatprep.mubr.f32.mxu0 0.0
      %6672 = vmatmul.mubr.f32.gmra.mxu0 %v6548
      %v6673 = vpop.f32.mrf.mxu0
      %v6674 = vadd.f32 %v6481, %v6673
      %v6675 = vpop.f32.mrf.mxu0
      %6676 = vmatprep.mubr.f32.mxu0 0.0
      %6677 = vmatmul.mubr.f32.gmra.mxu0 %v6551
      %v6678 = vpop.f32.mrf.mxu0
      %v6679 = vadd.f32 %v6486, %v6678
      %v6680 = vpop.f32.mrf.mxu0
      %6681 = vmatprep.mubr.f32.mxu0 0.0
      %6682 = vmatmul.mubr.f32.gmra.mxu0 %v6554
      %v6683 = vpop.f32.mrf.mxu0
      %v6684 = vadd.f32 %v6491, %v6683
      %v6685 = vpop.f32.mrf.mxu0
      %6686 = vmatprep.mubr.f32.mxu0 0.0
      %6687 = vmatmul.mubr.f32.gmra.mxu0 %v6557
      %v6688 = vpop.f32.mrf.mxu0
      %v6689 = vadd.f32 %v6496, %v6688
      %v6690 = vpop.f32.mrf.mxu0
      %6691 = vmatprep.mubr.f32.mxu0 0.0
      %6692 = vmatmul.mubr.f32.gmra.mxu0 %v6560
      %v6693 = vpop.f32.mrf.mxu0
      %v6694 = vadd.f32 %v6501, %v6693
      %v6695 = vpop.f32.mrf.mxu0
      %6696 = vmatprep.mubr.f32.mxu0 0.0
      %6697 = vmatmul.mubr.f32.gmra.mxu0 %v6563
      %v6698 = vpop.f32.mrf.mxu0
      %v6699 = vadd.f32 %v6506, %v6698
      %v6700 = vpop.f32.mrf.mxu0
      %6701 = vmatprep.mubr.f32.mxu0 0.0
      %6702 = vmatmul.mubr.f32.gmra.mxu0 %v6566
      %v6703 = vpop.f32.mrf.mxu0
      %v6704 = vadd.f32 %v6511, %v6703
      %v6705 = vpop.f32.mrf.mxu0
      %6706 = vmatprep.mubr.f32.mxu0 0.0
      %6707 = vmatmul.mubr.f32.gmra.mxu0 %v6569
      %v6708 = vpop.f32.mrf.mxu0
      %v6709 = vadd.f32 %v6516, %v6708
      %v6710 = vpop.f32.mrf.mxu0
      %6711 = vmatprep.mubr.f32.mxu0 0.0
      %6712 = vmatmul.mubr.f32.gmra.mxu0 %v6572
      %v6713 = vpop.f32.mrf.mxu0
      %v6714 = vadd.f32 %v6521, %v6713
      %v6715 = vpop.f32.mrf.mxu0
      %6716 = vmatprep.mubr.f32.mxu0 0.0
      %6717 = vmatmul.mubr.f32.gmra.mxu0 %v6575
      %v6718 = vpop.f32.mrf.mxu0
      %v6719 = vadd.f32 %v6526, %v6718
      %v6720 = vpop.f32.mrf.mxu0
      %6721 = vdwg.mxu0
      %v6722 = vxor.u32 %v6644, 2147483648
      %v6723 = vxor.u32 %v6649, 2147483648
      %v6724 = vxor.u32 %v6654, 2147483648
      %v6725 = vxor.u32 %v6659, 2147483648
      %v6726 = vxor.u32 %v6664, 2147483648
      %v6727 = vxor.u32 %v6669, 2147483648
      %v6728 = vxor.u32 %v6674, 2147483648
      %v6729 = vxor.u32 %v6679, 2147483648
      %v6730 = vxor.u32 %v6684, 2147483648
      %v6731 = vxor.u32 %v6689, 2147483648
      %v6732 = vxor.u32 %v6694, 2147483648
      %v6733 = vxor.u32 %v6699, 2147483648
      %v6734 = vxor.u32 %v6704, 2147483648
      %v6735 = vxor.u32 %v6709, 2147483648
      %v6736 = vxor.u32 %v6714, 2147483648
      %v6737 = vxor.u32 %v6719, 2147483648
      %v6738 = vmul.f32 %v6722, 1.442695
      %v6739 = vpow.pop %v6738
      %v6740 = vmul.f32 %v6723, 1.442695
      %v6741 = vpow.pop %v6740
      %v6742 = vmul.f32 %v6724, 1.442695
      %v6743 = vpow.pop %v6742
      %v6744 = vmul.f32 %v6725, 1.442695
      %v6745 = vpow.pop %v6744
      %v6746 = vmul.f32 %v6726, 1.442695
      %v6747 = vpow.pop %v6746
      %v6748 = vmul.f32 %v6727, 1.442695
      %v6749 = vpow.pop %v6748
      %v6750 = vmul.f32 %v6728, 1.442695
      %v6751 = vpow.pop %v6750
      %v6752 = vmul.f32 %v6729, 1.442695
      %v6753 = vpow.pop %v6752
      %v6754 = vmul.f32 %v6730, 1.442695
      %v6755 = vpow.pop %v6754
      %v6756 = vmul.f32 %v6731, 1.442695
      %v6757 = vpow.pop %v6756
      %v6758 = vmul.f32 %v6732, 1.442695
      %v6759 = vpow.pop %v6758
      %v6760 = vmul.f32 %v6733, 1.442695
      %v6761 = vpow.pop %v6760
      %v6762 = vmul.f32 %v6734, 1.442695
      %v6763 = vpow.pop %v6762
      %v6764 = vmul.f32 %v6735, 1.442695
      %v6765 = vpow.pop %v6764
      %v6766 = vmul.f32 %v6736, 1.442695
      %v6767 = vpow.pop %v6766
      %v6768 = vmul.f32 %v6737, 1.442695
      %v6769 = vpow.pop %v6768
      %v6770 = vadd.f32 %v6739, 1.0
      %v6771 = vadd.f32 %v6741, 1.0
      %v6772 = vadd.f32 %v6743, 1.0
      %v6773 = vadd.f32 %v6745, 1.0
      %v6774 = vadd.f32 %v6747, 1.0
      %v6775 = vadd.f32 %v6749, 1.0
      %v6776 = vadd.f32 %v6751, 1.0
      %v6777 = vadd.f32 %v6753, 1.0
      %v6778 = vadd.f32 %v6755, 1.0
      %v6779 = vadd.f32 %v6757, 1.0
      %v6780 = vadd.f32 %v6759, 1.0
      %v6781 = vadd.f32 %v6761, 1.0
      %v6782 = vadd.f32 %v6763, 1.0
      %v6783 = vadd.f32 %v6765, 1.0
      %v6784 = vadd.f32 %v6767, 1.0
      %v6785 = vadd.f32 %v6769, 1.0
      %v6786 = vrcp.pop %v6770
      %v6787 = vmul.f32 1.0, %v6786
      %v6788 = vrcp.pop %v6771
      %v6789 = vmul.f32 1.0, %v6788
      %v6790 = vrcp.pop %v6772
      %v6791 = vmul.f32 1.0, %v6790
      %v6792 = vrcp.pop %v6773
      %v6793 = vmul.f32 1.0, %v6792
      %v6794 = vrcp.pop %v6774
      %v6795 = vmul.f32 1.0, %v6794
      %v6796 = vrcp.pop %v6775
      %v6797 = vmul.f32 1.0, %v6796
      %v6798 = vrcp.pop %v6776
      %v6799 = vmul.f32 1.0, %v6798
      %v6800 = vrcp.pop %v6777
      %v6801 = vmul.f32 1.0, %v6800
      %v6802 = vrcp.pop %v6778
      %v6803 = vmul.f32 1.0, %v6802
      %v6804 = vrcp.pop %v6779
      %v6805 = vmul.f32 1.0, %v6804
      %v6806 = vrcp.pop %v6780
      %v6807 = vmul.f32 1.0, %v6806
      %v6808 = vrcp.pop %v6781
      %v6809 = vmul.f32 1.0, %v6808
      %v6810 = vrcp.pop %v6782
      %v6811 = vmul.f32 1.0, %v6810
      %v6812 = vrcp.pop %v6783
      %v6813 = vmul.f32 1.0, %v6812
      %v6814 = vrcp.pop %v6784
      %v6815 = vmul.f32 1.0, %v6814
      %v6816 = vrcp.pop %v6785
      %v6817 = vmul.f32 1.0, %v6816
      %v6818 = vtanh.pop %v6644
      %v6819 = vtanh.pop %v6649
      %v6820 = vtanh.pop %v6654
      %v6821 = vtanh.pop %v6659
      %v6822 = vtanh.pop %v6664
      %v6823 = vtanh.pop %v6669
      %v6824 = vtanh.pop %v6674
      %v6825 = vtanh.pop %v6679
      %v6826 = vtanh.pop %v6684
      %v6827 = vtanh.pop %v6689
      %v6828 = vtanh.pop %v6694
      %v6829 = vtanh.pop %v6699
      %v6830 = vtanh.pop %v6704
      %v6831 = vtanh.pop %v6709
      %v6832 = vtanh.pop %v6714
      %v6833 = vtanh.pop %v6719
      %6850 = vrot.lane.b32.xlu0 %v6144, 32
      %v6851 = vpop.permute.xlu0 %6850
      %6852 = vrot.lane.b32.xlu0 %v6145, 32
      %v6853 = vpop.permute.xlu0 %6852
      %6854 = vrot.lane.b32.xlu0 %v6146, 32
      %v6855 = vpop.permute.xlu0 %6854
      %6856 = vrot.lane.b32.xlu0 %v6147, 32
      %v6857 = vpop.permute.xlu0 %6856
      %6858 = vrot.lane.b32.xlu0 %v6148, 32
      %v6859 = vpop.permute.xlu0 %6858
      %6860 = vrot.lane.b32.xlu0 %v6149, 32
      %v6861 = vpop.permute.xlu0 %6860
      %6862 = vrot.lane.b32.xlu0 %v6150, 32
      %v6863 = vpop.permute.xlu0 %6862
      %6864 = vrot.lane.b32.xlu0 %v6151, 32
      %v6865 = vpop.permute.xlu0 %6864
      %6866 = vrot.lane.b32.xlu0 %v6152, 32
      %v6867 = vpop.permute.xlu0 %6866
      %6868 = vrot.lane.b32.xlu0 %v6153, 32
      %v6869 = vpop.permute.xlu0 %6868
      %6870 = vrot.lane.b32.xlu0 %v6154, 32
      %v6871 = vpop.permute.xlu0 %6870
      %6872 = vrot.lane.b32.xlu0 %v6155, 32
      %v6873 = vpop.permute.xlu0 %6872
      %6874 = vrot.lane.b32.xlu0 %v6156, 32
      %v6875 = vpop.permute.xlu0 %6874
      %6876 = vrot.lane.b32.xlu0 %v6157, 32
      %v6877 = vpop.permute.xlu0 %6876
      %6878 = vrot.lane.b32.xlu0 %v6158, 32
      %v6879 = vpop.permute.xlu0 %6878
      %6880 = vrot.lane.b32.xlu0 %v6159, 32
      %v6881 = vpop.permute.xlu0 %6880
      %v6898 = vmul.f32 %v6787, %v6851
      %v6899 = vmul.f32 %v6789, %v6853
      %v6900 = vmul.f32 %v6791, %v6855
      %v6901 = vmul.f32 %v6793, %v6857
      %v6902 = vmul.f32 %v6795, %v6859
      %v6903 = vmul.f32 %v6797, %v6861
      %v6904 = vmul.f32 %v6799, %v6863
      %v6905 = vmul.f32 %v6801, %v6865
      %v6906 = vmul.f32 %v6803, %v6867
      %v6907 = vmul.f32 %v6805, %v6869
      %v6908 = vmul.f32 %v6807, %v6871
      %v6909 = vmul.f32 %v6809, %v6873
      %v6910 = vmul.f32 %v6811, %v6875
      %v6911 = vmul.f32 %v6813, %v6877
      %v6912 = vmul.f32 %v6815, %v6879
      %v6913 = vmul.f32 %v6817, %v6881
      %6930 = vrot.lane.b32.xlu0 %v6818, 32
      %v6931 = vpop.permute.xlu0 %6930
      %6932 = vrot.lane.b32.xlu0 %v6819, 32
      %v6933 = vpop.permute.xlu0 %6932
      %6934 = vrot.lane.b32.xlu0 %v6820, 32
      %v6935 = vpop.permute.xlu0 %6934
      %6936 = vrot.lane.b32.xlu0 %v6821, 32
      %v6937 = vpop.permute.xlu0 %6936
      %6938 = vrot.lane.b32.xlu0 %v6822, 32
      %v6939 = vpop.permute.xlu0 %6938
      %6940 = vrot.lane.b32.xlu0 %v6823, 32
      %v6941 = vpop.permute.xlu0 %6940
      %6942 = vrot.lane.b32.xlu0 %v6824, 32
      %v6943 = vpop.permute.xlu0 %6942
      %6944 = vrot.lane.b32.xlu0 %v6825, 32
      %v6945 = vpop.permute.xlu0 %6944
      %6946 = vrot.lane.b32.xlu0 %v6826, 32
      %v6947 = vpop.permute.xlu0 %6946
      %6948 = vrot.lane.b32.xlu0 %v6827, 32
      %v6949 = vpop.permute.xlu0 %6948
      %6950 = vrot.lane.b32.xlu0 %v6828, 32
      %v6951 = vpop.permute.xlu0 %6950
      %6952 = vrot.lane.b32.xlu0 %v6829, 32
      %v6953 = vpop.permute.xlu0 %6952
      %6954 = vrot.lane.b32.xlu0 %v6830, 32
      %v6955 = vpop.permute.xlu0 %6954
      %6956 = vrot.lane.b32.xlu0 %v6831, 32
      %v6957 = vpop.permute.xlu0 %6956
      %6958 = vrot.lane.b32.xlu0 %v6832, 32
      %v6959 = vpop.permute.xlu0 %6958
      %6960 = vrot.lane.b32.xlu0 %v6833, 32
      %v6961 = vpop.permute.xlu0 %6960
      %v6978 = vmul.f32 %v6787, %v6931
      %v6979 = vmul.f32 %v6789, %v6933
      %v6980 = vmul.f32 %v6791, %v6935
      %v6981 = vmul.f32 %v6793, %v6937
      %v6982 = vmul.f32 %v6795, %v6939
      %v6983 = vmul.f32 %v6797, %v6941
      %v6984 = vmul.f32 %v6799, %v6943
      %v6985 = vmul.f32 %v6801, %v6945
      %v6986 = vmul.f32 %v6803, %v6947
      %v6987 = vmul.f32 %v6805, %v6949
      %v6988 = vmul.f32 %v6807, %v6951
      %v6989 = vmul.f32 %v6809, %v6953
      %v6990 = vmul.f32 %v6811, %v6955
      %v6991 = vmul.f32 %v6813, %v6957
      %v6992 = vmul.f32 %v6815, %v6959
      %v6993 = vmul.f32 %v6817, %v6961
      %7010 = vrot.lane.b32.xlu0 %v6978, 32
      %v7011 = vpop.permute.xlu0 %7010
      %7012 = vrot.lane.b32.xlu0 %v6979, 32
      %v7013 = vpop.permute.xlu0 %7012
      %7014 = vrot.lane.b32.xlu0 %v6980, 32
      %v7015 = vpop.permute.xlu0 %7014
      %7016 = vrot.lane.b32.xlu0 %v6981, 32
      %v7017 = vpop.permute.xlu0 %7016
      %7018 = vrot.lane.b32.xlu0 %v6982, 32
      %v7019 = vpop.permute.xlu0 %7018
      %7020 = vrot.lane.b32.xlu0 %v6983, 32
      %v7021 = vpop.permute.xlu0 %7020
      %7022 = vrot.lane.b32.xlu0 %v6984, 32
      %v7023 = vpop.permute.xlu0 %7022
      %7024 = vrot.lane.b32.xlu0 %v6985, 32
      %v7025 = vpop.permute.xlu0 %7024
      %7026 = vrot.lane.b32.xlu0 %v6986, 32
      %v7027 = vpop.permute.xlu0 %7026
      %7028 = vrot.lane.b32.xlu0 %v6987, 32
      %v7029 = vpop.permute.xlu0 %7028
      %7030 = vrot.lane.b32.xlu0 %v6988, 32
      %v7031 = vpop.permute.xlu0 %7030
      %7032 = vrot.lane.b32.xlu0 %v6989, 32
      %v7033 = vpop.permute.xlu0 %7032
      %7034 = vrot.lane.b32.xlu0 %v6990, 32
      %v7035 = vpop.permute.xlu0 %7034
      %7036 = vrot.lane.b32.xlu0 %v6991, 32
      %v7037 = vpop.permute.xlu0 %7036
      %7038 = vrot.lane.b32.xlu0 %v6992, 32
      %v7039 = vpop.permute.xlu0 %7038
      %7040 = vrot.lane.b32.xlu0 %v6993, 32
      %v7041 = vpop.permute.xlu0 %7040
      %v7058 = vadd.f32 %v6898, %v7011
      %v7059 = vadd.f32 %v6899, %v7013
      %v7060 = vadd.f32 %v6900, %v7015
      %v7061 = vadd.f32 %v6901, %v7017
      %v7062 = vadd.f32 %v6902, %v7019
      %v7063 = vadd.f32 %v6903, %v7021
      %v7064 = vadd.f32 %v6904, %v7023
      %v7065 = vadd.f32 %v6905, %v7025
      %v7066 = vadd.f32 %v6906, %v7027
      %v7067 = vadd.f32 %v6907, %v7029
      %v7068 = vadd.f32 %v6908, %v7031
      %v7069 = vadd.f32 %v6909, %v7033
      %v7070 = vadd.f32 %v6910, %v7035
      %v7071 = vadd.f32 %v6911, %v7037
      %v7072 = vadd.f32 %v6912, %v7039
      %v7073 = vadd.f32 %v6913, %v7041
      %v7074 = vtanh.pop %v7058
      %v7075 = vtanh.pop %v7059
      %v7076 = vtanh.pop %v7060
      %v7077 = vtanh.pop %v7061
      %v7078 = vtanh.pop %v7062
      %v7079 = vtanh.pop %v7063
      %v7080 = vtanh.pop %v7064
      %v7081 = vtanh.pop %v7065
      %v7082 = vtanh.pop %v7066
      %v7083 = vtanh.pop %v7067
      %v7084 = vtanh.pop %v7068
      %v7085 = vtanh.pop %v7069
      %v7086 = vtanh.pop %v7070
      %v7087 = vtanh.pop %v7071
      %v7088 = vtanh.pop %v7072
      %v7089 = vtanh.pop %v7073
      %7106 = vrot.lane.b32.xlu0 %v7074, 32
      %v7107 = vpop.permute.xlu0 %7106
      %7108 = vrot.lane.b32.xlu0 %v7075, 32
      %v7109 = vpop.permute.xlu0 %7108
      %7110 = vrot.lane.b32.xlu0 %v7076, 32
      %v7111 = vpop.permute.xlu0 %7110
      %7112 = vrot.lane.b32.xlu0 %v7077, 32
      %v7113 = vpop.permute.xlu0 %7112
      %7114 = vrot.lane.b32.xlu0 %v7078, 32
      %v7115 = vpop.permute.xlu0 %7114
      %7116 = vrot.lane.b32.xlu0 %v7079, 32
      %v7117 = vpop.permute.xlu0 %7116
      %7118 = vrot.lane.b32.xlu0 %v7080, 32
      %v7119 = vpop.permute.xlu0 %7118
      %7120 = vrot.lane.b32.xlu0 %v7081, 32
      %v7121 = vpop.permute.xlu0 %7120
      %7122 = vrot.lane.b32.xlu0 %v7082, 32
      %v7123 = vpop.permute.xlu0 %7122
      %7124 = vrot.lane.b32.xlu0 %v7083, 32
      %v7125 = vpop.permute.xlu0 %7124
      %7126 = vrot.lane.b32.xlu0 %v7084, 32
      %v7127 = vpop.permute.xlu0 %7126
      %7128 = vrot.lane.b32.xlu0 %v7085, 32
      %v7129 = vpop.permute.xlu0 %7128
      %7130 = vrot.lane.b32.xlu0 %v7086, 32
      %v7131 = vpop.permute.xlu0 %7130
      %7132 = vrot.lane.b32.xlu0 %v7087, 32
      %v7133 = vpop.permute.xlu0 %7132
      %7134 = vrot.lane.b32.xlu0 %v7088, 32
      %v7135 = vpop.permute.xlu0 %7134
      %7136 = vrot.lane.b32.xlu0 %v7089, 32
      %v7137 = vpop.permute.xlu0 %7136
      %v7154 = vmul.f32 %v6787, %v7107
      %v7155 = vmul.f32 %v6789, %v7109
      %v7156 = vmul.f32 %v6791, %v7111
      %v7157 = vmul.f32 %v6793, %v7113
      %v7158 = vmul.f32 %v6795, %v7115
      %v7159 = vmul.f32 %v6797, %v7117
      %v7160 = vmul.f32 %v6799, %v7119
      %v7161 = vmul.f32 %v6801, %v7121
      %v7162 = vmul.f32 %v6803, %v7123
      %v7163 = vmul.f32 %v6805, %v7125
      %v7164 = vmul.f32 %v6807, %v7127
      %v7165 = vmul.f32 %v6809, %v7129
      %v7166 = vmul.f32 %v6811, %v7131
      %v7167 = vmul.f32 %v6813, %v7133
      %v7168 = vmul.f32 %v6815, %v7135
      %v7169 = vmul.f32 %v6817, %v7137
      %v7170 = vsel %vm267, 2, 5
      %vm7171 = vcmp.lt.s32.totalorder %v7170, %v1190
      %vm7172 = vcmp.lt.s32.totalorder %v7170, %v1193
      %vm7173 = vcmp.lt.s32.totalorder %v7170, %v1196
      %vm7174 = vcmp.lt.s32.totalorder %v7170, %v1199
      %vm7175 = vcmp.lt.s32.totalorder %v7170, %v1202
      %vm7176 = vcmp.lt.s32.totalorder %v7170, %v1205
      %vm7177 = vcmp.lt.s32.totalorder %v7170, %v1208
      %vm7178 = vcmp.lt.s32.totalorder %v7170, %v1211
      %vm7179 = vcmp.lt.s32.totalorder %v7170, %v1214
      %vm7180 = vcmp.lt.s32.totalorder %v7170, %v1217
      %vm7181 = vcmp.lt.s32.totalorder %v7170, %v1220
      %vm7182 = vcmp.lt.s32.totalorder %v7170, %v1223
      %vm7183 = vcmp.lt.s32.totalorder %v7170, %v1226
      %vm7184 = vcmp.lt.s32.totalorder %v7170, %v1229
      %vm7185 = vcmp.lt.s32.totalorder %v7170, %v1232
      %vm7186 = vcmp.lt.s32.totalorder %v7170, %v1235
      %7203 = vrot.lane.b32.xlu0 %v7154, 64
      %v7204 = vpop.permute.xlu0 %7203
      %7205 = vrot.lane.b32.xlu0 %v7155, 64
      %v7206 = vpop.permute.xlu0 %7205
      %7207 = vrot.lane.b32.xlu0 %v7156, 64
      %v7208 = vpop.permute.xlu0 %7207
      %7209 = vrot.lane.b32.xlu0 %v7157, 64
      %v7210 = vpop.permute.xlu0 %7209
      %7211 = vrot.lane.b32.xlu0 %v7158, 64
      %v7212 = vpop.permute.xlu0 %7211
      %7213 = vrot.lane.b32.xlu0 %v7159, 64
      %v7214 = vpop.permute.xlu0 %7213
      %7215 = vrot.lane.b32.xlu0 %v7160, 64
      %v7216 = vpop.permute.xlu0 %7215
      %7217 = vrot.lane.b32.xlu0 %v7161, 64
      %v7218 = vpop.permute.xlu0 %7217
      %7219 = vrot.lane.b32.xlu0 %v7162, 64
      %v7220 = vpop.permute.xlu0 %7219
      %7221 = vrot.lane.b32.xlu0 %v7163, 64
      %v7222 = vpop.permute.xlu0 %7221
      %7223 = vrot.lane.b32.xlu0 %v7164, 64
      %v7224 = vpop.permute.xlu0 %7223
      %7225 = vrot.lane.b32.xlu0 %v7165, 64
      %v7226 = vpop.permute.xlu0 %7225
      %7227 = vrot.lane.b32.xlu0 %v7166, 64
      %v7228 = vpop.permute.xlu0 %7227
      %7229 = vrot.lane.b32.xlu0 %v7167, 64
      %v7230 = vpop.permute.xlu0 %7229
      %7231 = vrot.lane.b32.xlu0 %v7168, 64
      %v7232 = vpop.permute.xlu0 %7231
      %7233 = vrot.lane.b32.xlu0 %v7169, 64
      %v7234 = vpop.permute.xlu0 %7233
      %v7251 = vsel %vm7171, %v7204, %v6064
      %v7252 = vsel %vm7172, %v7206, %v6065
      %v7253 = vsel %vm7173, %v7208, %v6066
      %v7254 = vsel %vm7174, %v7210, %v6067
      %v7255 = vsel %vm7175, %v7212, %v6068
      %v7256 = vsel %vm7176, %v7214, %v6069
      %v7257 = vsel %vm7177, %v7216, %v6070
      %v7258 = vsel %vm7178, %v7218, %v6071
      %v7259 = vsel %vm7179, %v7220, %v6072
      %v7260 = vsel %vm7180, %v7222, %v6073
      %v7261 = vsel %vm7181, %v7224, %v6074
      %v7262 = vsel %vm7182, %v7226, %v6075
      %v7263 = vsel %vm7183, %v7228, %v6076
      %v7264 = vsel %vm7184, %v7230, %v6077
      %v7265 = vsel %vm7185, %v7232, %v6078
      %v7266 = vsel %vm7186, %v7234, %v6079
      %7283 = vrot.lane.b32.xlu0 %v7058, 96
      %v7284 = vpop.permute.xlu0 %7283
      %7285 = vrot.lane.b32.xlu0 %v7059, 96
      %v7286 = vpop.permute.xlu0 %7285
      %7287 = vrot.lane.b32.xlu0 %v7060, 96
      %v7288 = vpop.permute.xlu0 %7287
      %7289 = vrot.lane.b32.xlu0 %v7061, 96
      %v7290 = vpop.permute.xlu0 %7289
      %7291 = vrot.lane.b32.xlu0 %v7062, 96
      %v7292 = vpop.permute.xlu0 %7291
      %7293 = vrot.lane.b32.xlu0 %v7063, 96
      %v7294 = vpop.permute.xlu0 %7293
      %7295 = vrot.lane.b32.xlu0 %v7064, 96
      %v7296 = vpop.permute.xlu0 %7295
      %7297 = vrot.lane.b32.xlu0 %v7065, 96
      %v7298 = vpop.permute.xlu0 %7297
      %7299 = vrot.lane.b32.xlu0 %v7066, 96
      %v7300 = vpop.permute.xlu0 %7299
      %7301 = vrot.lane.b32.xlu0 %v7067, 96
      %v7302 = vpop.permute.xlu0 %7301
      %7303 = vrot.lane.b32.xlu0 %v7068, 96
      %v7304 = vpop.permute.xlu0 %7303
      %7305 = vrot.lane.b32.xlu0 %v7069, 96
      %v7306 = vpop.permute.xlu0 %7305
      %7307 = vrot.lane.b32.xlu0 %v7070, 96
      %v7308 = vpop.permute.xlu0 %7307
      %7309 = vrot.lane.b32.xlu0 %v7071, 96
      %v7310 = vpop.permute.xlu0 %7309
      %7311 = vrot.lane.b32.xlu0 %v7072, 96
      %v7312 = vpop.permute.xlu0 %7311
      %7313 = vrot.lane.b32.xlu0 %v7073, 96
      %v7314 = vpop.permute.xlu0 %7313
      %v7331 = vsel %vm7171, %v7284, %v6144
      %v7332 = vsel %vm7172, %v7286, %v6145
      %v7333 = vsel %vm7173, %v7288, %v6146
      %v7334 = vsel %vm7174, %v7290, %v6147
      %v7335 = vsel %vm7175, %v7292, %v6148
      %v7336 = vsel %vm7176, %v7294, %v6149
      %v7337 = vsel %vm7177, %v7296, %v6150
      %v7338 = vsel %vm7178, %v7298, %v6151
      %v7339 = vsel %vm7179, %v7300, %v6152
      %v7340 = vsel %vm7180, %v7302, %v6153
      %v7341 = vsel %vm7181, %v7304, %v6154
      %v7342 = vsel %vm7182, %v7306, %v6155
      %v7343 = vsel %vm7183, %v7308, %v6156
      %v7344 = vsel %vm7184, %v7310, %v6157
      %v7345 = vsel %vm7185, %v7312, %v6158
      %v7346 = vsel %vm7186, %v7314, %v6159
      %7347 = vset.pattern.permute.xlu0 6
      %7348 = vperm.xlu0 %7347, %v223
      %v7349 = vpop.permute.xlu0 %7348
      %7350 = vset.pattern.permute.xlu0 6
      %7351 = vperm.xlu0 %7350, %v224
      %v7352 = vpop.permute.xlu0 %7351
      %7353 = vset.pattern.permute.xlu0 6
      %7354 = vperm.xlu0 %7353, %v225
      %v7355 = vpop.permute.xlu0 %7354
      %7356 = vset.pattern.permute.xlu0 6
      %7357 = vperm.xlu0 %7356, %v226
      %v7358 = vpop.permute.xlu0 %7357
      %7359 = vset.pattern.permute.xlu0 6
      %7360 = vperm.xlu0 %7359, %v227
      %v7361 = vpop.permute.xlu0 %7360
      %7362 = vset.pattern.permute.xlu0 6
      %7363 = vperm.xlu0 %7362, %v228
      %v7364 = vpop.permute.xlu0 %7363
      %7365 = vset.pattern.permute.xlu0 6
      %7366 = vperm.xlu0 %7365, %v229
      %v7367 = vpop.permute.xlu0 %7366
      %7368 = vset.pattern.permute.xlu0 6
      %7369 = vperm.xlu0 %7368, %v230
      %v7370 = vpop.permute.xlu0 %7369
      %7371 = vset.pattern.permute.xlu0 6
      %7372 = vperm.xlu0 %7371, %v231
      %v7373 = vpop.permute.xlu0 %7372
      %7374 = vset.pattern.permute.xlu0 6
      %7375 = vperm.xlu0 %7374, %v232
      %v7376 = vpop.permute.xlu0 %7375
      %7377 = vset.pattern.permute.xlu0 6
      %7378 = vperm.xlu0 %7377, %v233
      %v7379 = vpop.permute.xlu0 %7378
      %7380 = vset.pattern.permute.xlu0 6
      %7381 = vperm.xlu0 %7380, %v234
      %v7382 = vpop.permute.xlu0 %7381
      %7383 = vset.pattern.permute.xlu0 6
      %7384 = vperm.xlu0 %7383, %v235
      %v7385 = vpop.permute.xlu0 %7384
      %7386 = vset.pattern.permute.xlu0 6
      %7387 = vperm.xlu0 %7386, %v236
      %v7388 = vpop.permute.xlu0 %7387
      %7389 = vset.pattern.permute.xlu0 6
      %7390 = vperm.xlu0 %7389, %v237
      %v7391 = vpop.permute.xlu0 %7390
      %7392 = vset.pattern.permute.xlu0 6
      %7393 = vperm.xlu0 %7392, %v238
      %v7394 = vpop.permute.xlu0 %7393
      %vm7395 = vcmp.eq.s32.totalorder %v266, %v7349
      %vm7396 = vcmp.eq.s32.totalorder %v266, %v7352
      %vm7397 = vcmp.eq.s32.totalorder %v266, %v7355
      %vm7398 = vcmp.eq.s32.totalorder %v266, %v7358
      %vm7399 = vcmp.eq.s32.totalorder %v266, %v7361
      %vm7400 = vcmp.eq.s32.totalorder %v266, %v7364
      %vm7401 = vcmp.eq.s32.totalorder %v266, %v7367
      %vm7402 = vcmp.eq.s32.totalorder %v266, %v7370
      %vm7403 = vcmp.eq.s32.totalorder %v266, %v7373
      %vm7404 = vcmp.eq.s32.totalorder %v266, %v7376
      %vm7405 = vcmp.eq.s32.totalorder %v266, %v7379
      %vm7406 = vcmp.eq.s32.totalorder %v266, %v7382
      %vm7407 = vcmp.eq.s32.totalorder %v266, %v7385
      %vm7408 = vcmp.eq.s32.totalorder %v266, %v7388
      %vm7409 = vcmp.eq.s32.totalorder %v266, %v7391
      %vm7410 = vcmp.eq.s32.totalorder %v266, %v7394
      %7411 = vset.pattern.permute.xlu0 1
      %7412 = vperm.xlu0 %7411, %v332
      %v7413 = vpop.permute.xlu0 %7412
      %7414 = vset.pattern.permute.xlu0 1
      %7415 = vperm.xlu0 %7414, %v333
      %v7416 = vpop.permute.xlu0 %7415
      %7417 = vset.pattern.permute.xlu0 1
      %7418 = vperm.xlu0 %7417, %v334
      %v7419 = vpop.permute.xlu0 %7418
      %7420 = vset.pattern.permute.xlu0 1
      %7421 = vperm.xlu0 %7420, %v335
      %v7422 = vpop.permute.xlu0 %7421
      %7423 = vset.pattern.permute.xlu0 1
      %7424 = vperm.xlu0 %7423, %v336
      %v7425 = vpop.permute.xlu0 %7424
      %7426 = vset.pattern.permute.xlu0 1
      %7427 = vperm.xlu0 %7426, %v337
      %v7428 = vpop.permute.xlu0 %7427
      %7429 = vset.pattern.permute.xlu0 1
      %7430 = vperm.xlu0 %7429, %v338
      %v7431 = vpop.permute.xlu0 %7430
      %7432 = vset.pattern.permute.xlu0 1
      %7433 = vperm.xlu0 %7432, %v339
      %v7434 = vpop.permute.xlu0 %7433
      %7435 = vset.pattern.permute.xlu0 1
      %7436 = vperm.xlu0 %7435, %v340
      %v7437 = vpop.permute.xlu0 %7436
      %7438 = vset.pattern.permute.xlu0 1
      %7439 = vperm.xlu0 %7438, %v341
      %v7440 = vpop.permute.xlu0 %7439
      %7441 = vset.pattern.permute.xlu0 1
      %7442 = vperm.xlu0 %7441, %v342
      %v7443 = vpop.permute.xlu0 %7442
      %7444 = vset.pattern.permute.xlu0 1
      %7445 = vperm.xlu0 %7444, %v343
      %v7446 = vpop.permute.xlu0 %7445
      %7447 = vset.pattern.permute.xlu0 1
      %7448 = vperm.xlu0 %7447, %v344
      %v7449 = vpop.permute.xlu0 %7448
      %7450 = vset.pattern.permute.xlu0 1
      %7451 = vperm.xlu0 %7450, %v345
      %v7452 = vpop.permute.xlu0 %7451
      %7453 = vset.pattern.permute.xlu0 1
      %7454 = vperm.xlu0 %7453, %v346
      %v7455 = vpop.permute.xlu0 %7454
      %7456 = vset.pattern.permute.xlu0 1
      %7457 = vperm.xlu0 %7456, %v347
      %v7458 = vpop.permute.xlu0 %7457
      %vm7459 = vcmp.eq.s32.totalorder %v266, %v7413
      %vm7460 = vcmp.eq.s32.totalorder %v266, %v7416
      %vm7461 = vcmp.eq.s32.totalorder %v266, %v7419
      %vm7462 = vcmp.eq.s32.totalorder %v266, %v7422
      %vm7463 = vcmp.eq.s32.totalorder %v266, %v7425
      %vm7464 = vcmp.eq.s32.totalorder %v266, %v7428
      %vm7465 = vcmp.eq.s32.totalorder %v266, %v7431
      %vm7466 = vcmp.eq.s32.totalorder %v266, %v7434
      %vm7467 = vcmp.eq.s32.totalorder %v266, %v7437
      %vm7468 = vcmp.eq.s32.totalorder %v266, %v7440
      %vm7469 = vcmp.eq.s32.totalorder %v266, %v7443
      %vm7470 = vcmp.eq.s32.totalorder %v266, %v7446
      %vm7471 = vcmp.eq.s32.totalorder %v266, %v7449
      %vm7472 = vcmp.eq.s32.totalorder %v266, %v7452
      %vm7473 = vcmp.eq.s32.totalorder %v266, %v7455
      %vm7474 = vcmp.eq.s32.totalorder %v266, %v7458
      %vm7475 = vmor %vm7395, %vm7459
      %vm7476 = vmor %vm7396, %vm7460
      %vm7477 = vmor %vm7397, %vm7461
      %vm7478 = vmor %vm7398, %vm7462
      %vm7479 = vmor %vm7399, %vm7463
      %vm7480 = vmor %vm7400, %vm7464
      %vm7481 = vmor %vm7401, %vm7465
      %vm7482 = vmor %vm7402, %vm7466
      %vm7483 = vmor %vm7403, %vm7467
      %vm7484 = vmor %vm7404, %vm7468
      %vm7485 = vmor %vm7405, %vm7469
      %vm7486 = vmor %vm7406, %vm7470
      %vm7487 = vmor %vm7407, %vm7471
      %vm7488 = vmor %vm7408, %vm7472
      %vm7489 = vmor %vm7409, %vm7473
      %vm7490 = vmor %vm7410, %vm7474
      %v7491 = vsel %vm7475, 1, 0
      %v7492 = vsel %vm7476, 1, 0
      %v7493 = vsel %vm7477, 1, 0
      %v7494 = vsel %vm7478, 1, 0
      %v7495 = vsel %vm7479, 1, 0
      %v7496 = vsel %vm7480, 1, 0
      %v7497 = vsel %vm7481, 1, 0
      %v7498 = vsel %vm7482, 1, 0
      %v7499 = vsel %vm7483, 1, 0
      %v7500 = vsel %vm7484, 1, 0
      %v7501 = vsel %vm7485, 1, 0
      %v7502 = vsel %vm7486, 1, 0
      %v7503 = vsel %vm7487, 1, 0
      %v7504 = vsel %vm7488, 1, 0
      %v7505 = vsel %vm7489, 1, 0
      %v7506 = vsel %vm7490, 1, 0
      %v7507 = vcvt.s32.f32 %v7491
      %v7508 = vcvt.s32.f32 %v7492
      %v7509 = vcvt.s32.f32 %v7493
      %v7510 = vcvt.s32.f32 %v7494
      %v7511 = vcvt.s32.f32 %v7495
      %v7512 = vcvt.s32.f32 %v7496
      %v7513 = vcvt.s32.f32 %v7497
      %v7514 = vcvt.s32.f32 %v7498
      %v7515 = vcvt.s32.f32 %v7499
      %v7516 = vcvt.s32.f32 %v7500
      %v7517 = vcvt.s32.f32 %v7501
      %v7518 = vcvt.s32.f32 %v7502
      %v7519 = vcvt.s32.f32 %v7503
      %v7520 = vcvt.s32.f32 %v7504
      %v7521 = vcvt.s32.f32 %v7505
      %v7522 = vcvt.s32.f32 %v7506
      %v7524 = vsel %vm460, %v7251, 0
      %v7527 = vsel %vm460, %v7252, 0
      %v7530 = vsel %vm460, %v7253, 0
      %v7533 = vsel %vm460, %v7254, 0
      %v7536 = vsel %vm460, %v7255, 0
      %v7539 = vsel %vm460, %v7256, 0
      %v7542 = vsel %vm460, %v7257, 0
      %v7545 = vsel %vm460, %v7258, 0
      %v7548 = vsel %vm460, %v7259, 0
      %v7551 = vsel %vm460, %v7260, 0
      %v7554 = vsel %vm460, %v7261, 0
      %v7557 = vsel %vm460, %v7262, 0
      %v7560 = vsel %vm460, %v7263, 0
      %v7563 = vsel %vm460, %v7264, 0
      %v7566 = vsel %vm460, %v7265, 0
      %v7569 = vsel %vm460, %v7266, 0
      %7571 = vmatprep.subr.mxu0 0.0
      %7572 = vmatpush1.msra.mxu0 0.0
      %7573 = vmatprep.subr.mxu0 0.0
      %7574 = vmatpush1.msra.mxu0 0.0
      %7575 = vmatprep.subr.mxu0 0.0
      %7576 = vmatpush1.msra.mxu0 0.0
      %7577 = vmatprep.subr.mxu0 0.0
      %7578 = vmatpush1.msra.mxu0 0.0
      %7579 = vmatprep.subr.mxu0 0.0
      %7580 = vmatpush1.msra.mxu0 0.0
      %7581 = vmatprep.subr.mxu0 0.0
      %7582 = vmatpush1.msra.mxu0 0.0
      %7583 = vmatprep.subr.mxu0 0.0
      %7584 = vmatpush1.msra.mxu0 0.0
      %7585 = vmatprep.subr.mxu0 0.0
      %7586 = vmatpush1.msra.mxu0 0.0
      %7587 = vmatprep.subr.mxu0 0.0
      %7588 = vmatpush1.msra.mxu0 0.0
      %7589 = vmatprep.subr.mxu0 0.0
      %7590 = vmatpush1.msra.mxu0 0.0
      %7591 = vmatprep.subr.mxu0 0.0
      %7592 = vmatpush1.msra.mxu0 0.0
      %7593 = vmatprep.subr.mxu0 0.0
      %7594 = vmatpush1.msra.mxu0 0.0
      %7595 = vmatprep.subr.mxu0 0.0
      %7596 = vmatpush1.msra.mxu0 %v264
      %7597 = vmatprep.subr.mxu0 0.0
      %7598 = vmatpush1.msra.mxu0 %v263
      %7599 = vmatprep.subr.mxu0 0.0
      %7600 = vmatpush1.msra.mxu0 %v262
      %7601 = vmatprep.subr.mxu0 0.0
      %7602 = vmatpush1.msra.mxu0 %v261
      %7603 = vmatprep.subr.mxu0 0.0
      %7604 = vmatpush2.msra.mxu0 0.0
      %7605 = vmatprep.subr.mxu0 0.0
      %7606 = vmatpush2.msra.mxu0 0.0
      %7607 = vmatprep.subr.mxu0 0.0
      %7608 = vmatpush2.msra.mxu0 0.0
      %7609 = vmatprep.subr.mxu0 0.0
      %7610 = vmatpush2.msra.mxu0 0.0
      %7611 = vmatprep.subr.mxu0 0.0
      %7612 = vmatpush2.msra.mxu0 0.0
      %7613 = vmatprep.subr.mxu0 0.0
      %7614 = vmatpush2.msra.mxu0 0.0
      %7615 = vmatprep.subr.mxu0 0.0
      %7616 = vmatpush2.msra.mxu0 0.0
      %7617 = vmatprep.subr.mxu0 0.0
      %7618 = vmatpush2.msra.mxu0 0.0
      %7619 = vmatprep.subr.mxu0 0.0
      %7620 = vmatpush2.msra.mxu0 0.0
      %7621 = vmatprep.subr.mxu0 0.0
      %7622 = vmatpush2.msra.mxu0 0.0
      %7623 = vmatprep.subr.mxu0 0.0
      %7624 = vmatpush2.msra.mxu0 0.0
      %7625 = vmatprep.subr.mxu0 0.0
      %7626 = vmatpush2.msra.mxu0 0.0
      %7627 = vmatprep.subr.mxu0 0.0
      %7628 = vmatpush2.msra.mxu0 0.0
      %7629 = vmatprep.subr.mxu0 0.0
      %7630 = vmatpush2.msra.mxu0 0.0
      %7631 = vmatprep.subr.mxu0 0.0
      %7632 = vmatpush2.msra.mxu0 0.0
      %7633 = vmatprep.subr.mxu0 0.0
      %7634 = vmatpush2.msra.mxu0 0.0
      %7635 = vmatprep.mubr.f32.mxu0 0.0
      %7636 = vmatmul.mubr.f32.gmra.mxu0 %v7524
      %v7637 = vpop.f32.mrf.mxu0
      %v7638 = vadd.f32 0.0, %v7637
      %v7639 = vpop.f32.mrf.mxu0
      %7640 = vmatprep.mubr.f32.mxu0 0.0
      %7641 = vmatmul.mubr.f32.gmra.mxu0 %v7527
      %v7642 = vpop.f32.mrf.mxu0
      %v7643 = vadd.f32 0.0, %v7642
      %v7644 = vpop.f32.mrf.mxu0
      %7645 = vmatprep.mubr.f32.mxu0 0.0
      %7646 = vmatmul.mubr.f32.gmra.mxu0 %v7530
      %v7647 = vpop.f32.mrf.mxu0
      %v7648 = vadd.f32 0.0, %v7647
      %v7649 = vpop.f32.mrf.mxu0
      %7650 = vmatprep.mubr.f32.mxu0 0.0
      %7651 = vmatmul.mubr.f32.gmra.mxu0 %v7533
      %v7652 = vpop.f32.mrf.mxu0
      %v7653 = vadd.f32 0.0, %v7652
      %v7654 = vpop.f32.mrf.mxu0
      %7655 = vmatprep.mubr.f32.mxu0 0.0
      %7656 = vmatmul.mubr.f32.gmra.mxu0 %v7536
      %v7657 = vpop.f32.mrf.mxu0
      %v7658 = vadd.f32 0.0, %v7657
      %v7659 = vpop.f32.mrf.mxu0
      %7660 = vmatprep.mubr.f32.mxu0 0.0
      %7661 = vmatmul.mubr.f32.gmra.mxu0 %v7539
      %v7662 = vpop.f32.mrf.mxu0
      %v7663 = vadd.f32 0.0, %v7662
      %v7664 = vpop.f32.mrf.mxu0
      %7665 = vmatprep.mubr.f32.mxu0 0.0
      %7666 = vmatmul.mubr.f32.gmra.mxu0 %v7542
      %v7667 = vpop.f32.mrf.mxu0
      %v7668 = vadd.f32 0.0, %v7667
      %v7669 = vpop.f32.mrf.mxu0
      %7670 = vmatprep.mubr.f32.mxu0 0.0
      %7671 = vmatmul.mubr.f32.gmra.mxu0 %v7545
      %v7672 = vpop.f32.mrf.mxu0
      %v7673 = vadd.f32 0.0, %v7672
      %v7674 = vpop.f32.mrf.mxu0
      %7675 = vmatprep.mubr.f32.mxu0 0.0
      %7676 = vmatmul.mubr.f32.gmra.mxu0 %v7548
      %v7677 = vpop.f32.mrf.mxu0
      %v7678 = vadd.f32 0.0, %v7677
      %v7679 = vpop.f32.mrf.mxu0
      %7680 = vmatprep.mubr.f32.mxu0 0.0
      %7681 = vmatmul.mubr.f32.gmra.mxu0 %v7551
      %v7682 = vpop.f32.mrf.mxu0
      %v7683 = vadd.f32 0.0, %v7682
      %v7684 = vpop.f32.mrf.mxu0
      %7685 = vmatprep.mubr.f32.mxu0 0.0
      %7686 = vmatmul.mubr.f32.gmra.mxu0 %v7554
      %v7687 = vpop.f32.mrf.mxu0
      %v7688 = vadd.f32 0.0, %v7687
      %v7689 = vpop.f32.mrf.mxu0
      %7690 = vmatprep.mubr.f32.mxu0 0.0
      %7691 = vmatmul.mubr.f32.gmra.mxu0 %v7557
      %v7692 = vpop.f32.mrf.mxu0
      %v7693 = vadd.f32 0.0, %v7692
      %v7694 = vpop.f32.mrf.mxu0
      %7695 = vmatprep.mubr.f32.mxu0 0.0
      %7696 = vmatmul.mubr.f32.gmra.mxu0 %v7560
      %v7697 = vpop.f32.mrf.mxu0
      %v7698 = vadd.f32 0.0, %v7697
      %v7699 = vpop.f32.mrf.mxu0
      %7700 = vmatprep.mubr.f32.mxu0 0.0
      %7701 = vmatmul.mubr.f32.gmra.mxu0 %v7563
      %v7702 = vpop.f32.mrf.mxu0
      %v7703 = vadd.f32 0.0, %v7702
      %v7704 = vpop.f32.mrf.mxu0
      %7705 = vmatprep.mubr.f32.mxu0 0.0
      %7706 = vmatmul.mubr.f32.gmra.mxu0 %v7566
      %v7707 = vpop.f32.mrf.mxu0
      %v7708 = vadd.f32 0.0, %v7707
      %v7709 = vpop.f32.mrf.mxu0
      %7710 = vmatprep.mubr.f32.mxu0 0.0
      %7711 = vmatmul.mubr.f32.gmra.mxu0 %v7569
      %v7712 = vpop.f32.mrf.mxu0
      %v7713 = vadd.f32 0.0, %v7712
      %v7714 = vpop.f32.mrf.mxu0
      %7715 = vdwg.mxu0
      %v7717 = vsel %vm609, %v7507, 0
      %v7720 = vsel %vm609, %v7508, 0
      %v7723 = vsel %vm609, %v7509, 0
      %v7726 = vsel %vm609, %v7510, 0
      %v7729 = vsel %vm609, %v7511, 0
      %v7732 = vsel %vm609, %v7512, 0
      %v7735 = vsel %vm609, %v7513, 0
      %v7738 = vsel %vm609, %v7514, 0
      %v7741 = vsel %vm609, %v7515, 0
      %v7744 = vsel %vm609, %v7516, 0
      %v7747 = vsel %vm609, %v7517, 0
      %v7750 = vsel %vm609, %v7518, 0
      %v7753 = vsel %vm609, %v7519, 0
      %v7756 = vsel %vm609, %v7520, 0
      %v7759 = vsel %vm609, %v7521, 0
      %v7762 = vsel %vm609, %v7522, 0
      %7764 = vmatprep.subr.mxu0 0.0
      %7765 = vmatpush1.msra.mxu0 0.0
      %7766 = vmatprep.subr.mxu0 0.0
      %7767 = vmatpush1.msra.mxu0 0.0
      %7768 = vmatprep.subr.mxu0 0.0
      %7769 = vmatpush1.msra.mxu0 0.0
      %7770 = vmatprep.subr.mxu0 0.0
      %7771 = vmatpush1.msra.mxu0 0.0
      %7772 = vmatprep.subr.mxu0 0.0
      %7773 = vmatpush1.msra.mxu0 0.0
      %7774 = vmatprep.subr.mxu0 0.0
      %7775 = vmatpush1.msra.mxu0 0.0
      %7776 = vmatprep.subr.mxu0 0.0
      %7777 = vmatpush1.msra.mxu0 0.0
      %7778 = vmatprep.subr.mxu0 0.0
      %7779 = vmatpush1.msra.mxu0 0.0
      %7780 = vmatprep.subr.mxu0 0.0
      %7781 = vmatpush1.msra.mxu0 0.0
      %7782 = vmatprep.subr.mxu0 0.0
      %7783 = vmatpush1.msra.mxu0 0.0
      %7784 = vmatprep.subr.mxu0 0.0
      %7785 = vmatpush1.msra.mxu0 %v260
      %7786 = vmatprep.subr.mxu0 0.0
      %7787 = vmatpush1.msra.mxu0 %v259
      %7788 = vmatprep.subr.mxu0 0.0
      %7789 = vmatpush1.msra.mxu0 %v258
      %7790 = vmatprep.subr.mxu0 0.0
      %7791 = vmatpush1.msra.mxu0 %v257
      %7792 = vmatprep.subr.mxu0 0.0
      %7793 = vmatpush1.msra.mxu0 %v256
      %7794 = vmatprep.subr.mxu0 0.0
      %7795 = vmatpush1.msra.mxu0 %v255
      %7796 = vmatprep.subr.mxu0 0.0
      %7797 = vmatpush2.msra.mxu0 0.0
      %7798 = vmatprep.subr.mxu0 0.0
      %7799 = vmatpush2.msra.mxu0 0.0
      %7800 = vmatprep.subr.mxu0 0.0
      %7801 = vmatpush2.msra.mxu0 0.0
      %7802 = vmatprep.subr.mxu0 0.0
      %7803 = vmatpush2.msra.mxu0 0.0
      %7804 = vmatprep.subr.mxu0 0.0
      %7805 = vmatpush2.msra.mxu0 0.0
      %7806 = vmatprep.subr.mxu0 0.0
      %7807 = vmatpush2.msra.mxu0 0.0
      %7808 = vmatprep.subr.mxu0 0.0
      %7809 = vmatpush2.msra.mxu0 0.0
      %7810 = vmatprep.subr.mxu0 0.0
      %7811 = vmatpush2.msra.mxu0 0.0
      %7812 = vmatprep.subr.mxu0 0.0
      %7813 = vmatpush2.msra.mxu0 0.0
      %7814 = vmatprep.subr.mxu0 0.0
      %7815 = vmatpush2.msra.mxu0 0.0
      %7816 = vmatprep.subr.mxu0 0.0
      %7817 = vmatpush2.msra.mxu0 0.0
      %7818 = vmatprep.subr.mxu0 0.0
      %7819 = vmatpush2.msra.mxu0 0.0
      %7820 = vmatprep.subr.mxu0 0.0
      %7821 = vmatpush2.msra.mxu0 0.0
      %7822 = vmatprep.subr.mxu0 0.0
      %7823 = vmatpush2.msra.mxu0 0.0
      %7824 = vmatprep.subr.mxu0 0.0
      %7825 = vmatpush2.msra.mxu0 0.0
      %7826 = vmatprep.subr.mxu0 0.0
      %7827 = vmatpush2.msra.mxu0 0.0
      %7828 = vmatprep.mubr.f32.mxu0 0.0
      %7829 = vmatmul.mubr.f32.gmra.mxu0 %v7717
      %v7830 = vpop.f32.mrf.mxu0
      %v7831 = vadd.f32 %v7638, %v7830
      %v7832 = vpop.f32.mrf.mxu0
      %7833 = vmatprep.mubr.f32.mxu0 0.0
      %7834 = vmatmul.mubr.f32.gmra.mxu0 %v7720
      %v7835 = vpop.f32.mrf.mxu0
      %v7836 = vadd.f32 %v7643, %v7835
      %v7837 = vpop.f32.mrf.mxu0
      %7838 = vmatprep.mubr.f32.mxu0 0.0
      %7839 = vmatmul.mubr.f32.gmra.mxu0 %v7723
      %v7840 = vpop.f32.mrf.mxu0
      %v7841 = vadd.f32 %v7648, %v7840
      %v7842 = vpop.f32.mrf.mxu0
      %7843 = vmatprep.mubr.f32.mxu0 0.0
      %7844 = vmatmul.mubr.f32.gmra.mxu0 %v7726
      %v7845 = vpop.f32.mrf.mxu0
      %v7846 = vadd.f32 %v7653, %v7845
      %v7847 = vpop.f32.mrf.mxu0
      %7848 = vmatprep.mubr.f32.mxu0 0.0
      %7849 = vmatmul.mubr.f32.gmra.mxu0 %v7729
      %v7850 = vpop.f32.mrf.mxu0
      %v7851 = vadd.f32 %v7658, %v7850
      %v7852 = vpop.f32.mrf.mxu0
      %7853 = vmatprep.mubr.f32.mxu0 0.0
      %7854 = vmatmul.mubr.f32.gmra.mxu0 %v7732
      %v7855 = vpop.f32.mrf.mxu0
      %v7856 = vadd.f32 %v7663, %v7855
      %v7857 = vpop.f32.mrf.mxu0
      %7858 = vmatprep.mubr.f32.mxu0 0.0
      %7859 = vmatmul.mubr.f32.gmra.mxu0 %v7735
      %v7860 = vpop.f32.mrf.mxu0
      %v7861 = vadd.f32 %v7668, %v7860
      %v7862 = vpop.f32.mrf.mxu0
      %7863 = vmatprep.mubr.f32.mxu0 0.0
      %7864 = vmatmul.mubr.f32.gmra.mxu0 %v7738
      %v7865 = vpop.f32.mrf.mxu0
      %v7866 = vadd.f32 %v7673, %v7865
      %v7867 = vpop.f32.mrf.mxu0
      %7868 = vmatprep.mubr.f32.mxu0 0.0
      %7869 = vmatmul.mubr.f32.gmra.mxu0 %v7741
      %v7870 = vpop.f32.mrf.mxu0
      %v7871 = vadd.f32 %v7678, %v7870
      %v7872 = vpop.f32.mrf.mxu0
      %7873 = vmatprep.mubr.f32.mxu0 0.0
      %7874 = vmatmul.mubr.f32.gmra.mxu0 %v7744
      %v7875 = vpop.f32.mrf.mxu0
      %v7876 = vadd.f32 %v7683, %v7875
      %v7877 = vpop.f32.mrf.mxu0
      %7878 = vmatprep.mubr.f32.mxu0 0.0
      %7879 = vmatmul.mubr.f32.gmra.mxu0 %v7747
      %v7880 = vpop.f32.mrf.mxu0
      %v7881 = vadd.f32 %v7688, %v7880
      %v7882 = vpop.f32.mrf.mxu0
      %7883 = vmatprep.mubr.f32.mxu0 0.0
      %7884 = vmatmul.mubr.f32.gmra.mxu0 %v7750
      %v7885 = vpop.f32.mrf.mxu0
      %v7886 = vadd.f32 %v7693, %v7885
      %v7887 = vpop.f32.mrf.mxu0
      %7888 = vmatprep.mubr.f32.mxu0 0.0
      %7889 = vmatmul.mubr.f32.gmra.mxu0 %v7753
      %v7890 = vpop.f32.mrf.mxu0
      %v7891 = vadd.f32 %v7698, %v7890
      %v7892 = vpop.f32.mrf.mxu0
      %7893 = vmatprep.mubr.f32.mxu0 0.0
      %7894 = vmatmul.mubr.f32.gmra.mxu0 %v7756
      %v7895 = vpop.f32.mrf.mxu0
      %v7896 = vadd.f32 %v7703, %v7895
      %v7897 = vpop.f32.mrf.mxu0
      %7898 = vmatprep.mubr.f32.mxu0 0.0
      %7899 = vmatmul.mubr.f32.gmra.mxu0 %v7759
      %v7900 = vpop.f32.mrf.mxu0
      %v7901 = vadd.f32 %v7708, %v7900
      %v7902 = vpop.f32.mrf.mxu0
      %7903 = vmatprep.mubr.f32.mxu0 0.0
      %7904 = vmatmul.mubr.f32.gmra.mxu0 %v7762
      %v7905 = vpop.f32.mrf.mxu0
      %v7906 = vadd.f32 %v7713, %v7905
      %v7907 = vpop.f32.mrf.mxu0
      %7908 = vdwg.mxu0
      %v7909 = vxor.u32 %v7831, 2147483648
      %v7910 = vxor.u32 %v7836, 2147483648
      %v7911 = vxor.u32 %v7841, 2147483648
      %v7912 = vxor.u32 %v7846, 2147483648
      %v7913 = vxor.u32 %v7851, 2147483648
      %v7914 = vxor.u32 %v7856, 2147483648
      %v7915 = vxor.u32 %v7861, 2147483648
      %v7916 = vxor.u32 %v7866, 2147483648
      %v7917 = vxor.u32 %v7871, 2147483648
      %v7918 = vxor.u32 %v7876, 2147483648
      %v7919 = vxor.u32 %v7881, 2147483648
      %v7920 = vxor.u32 %v7886, 2147483648
      %v7921 = vxor.u32 %v7891, 2147483648
      %v7922 = vxor.u32 %v7896, 2147483648
      %v7923 = vxor.u32 %v7901, 2147483648
      %v7924 = vxor.u32 %v7906, 2147483648
      %v7925 = vmul.f32 %v7909, 1.442695
      %v7926 = vpow.pop %v7925
      %v7927 = vmul.f32 %v7910, 1.442695
      %v7928 = vpow.pop %v7927
      %v7929 = vmul.f32 %v7911, 1.442695
      %v7930 = vpow.pop %v7929
      %v7931 = vmul.f32 %v7912, 1.442695
      %v7932 = vpow.pop %v7931
      %v7933 = vmul.f32 %v7913, 1.442695
      %v7934 = vpow.pop %v7933
      %v7935 = vmul.f32 %v7914, 1.442695
      %v7936 = vpow.pop %v7935
      %v7937 = vmul.f32 %v7915, 1.442695
      %v7938 = vpow.pop %v7937
      %v7939 = vmul.f32 %v7916, 1.442695
      %v7940 = vpow.pop %v7939
      %v7941 = vmul.f32 %v7917, 1.442695
      %v7942 = vpow.pop %v7941
      %v7943 = vmul.f32 %v7918, 1.442695
      %v7944 = vpow.pop %v7943
      %v7945 = vmul.f32 %v7919, 1.442695
      %v7946 = vpow.pop %v7945
      %v7947 = vmul.f32 %v7920, 1.442695
      %v7948 = vpow.pop %v7947
      %v7949 = vmul.f32 %v7921, 1.442695
      %v7950 = vpow.pop %v7949
      %v7951 = vmul.f32 %v7922, 1.442695
      %v7952 = vpow.pop %v7951
      %v7953 = vmul.f32 %v7923, 1.442695
      %v7954 = vpow.pop %v7953
      %v7955 = vmul.f32 %v7924, 1.442695
      %v7956 = vpow.pop %v7955
      %v7957 = vadd.f32 %v7926, 1.0
      %v7958 = vadd.f32 %v7928, 1.0
      %v7959 = vadd.f32 %v7930, 1.0
      %v7960 = vadd.f32 %v7932, 1.0
      %v7961 = vadd.f32 %v7934, 1.0
      %v7962 = vadd.f32 %v7936, 1.0
      %v7963 = vadd.f32 %v7938, 1.0
      %v7964 = vadd.f32 %v7940, 1.0
      %v7965 = vadd.f32 %v7942, 1.0
      %v7966 = vadd.f32 %v7944, 1.0
      %v7967 = vadd.f32 %v7946, 1.0
      %v7968 = vadd.f32 %v7948, 1.0
      %v7969 = vadd.f32 %v7950, 1.0
      %v7970 = vadd.f32 %v7952, 1.0
      %v7971 = vadd.f32 %v7954, 1.0
      %v7972 = vadd.f32 %v7956, 1.0
      %v7973 = vrcp.pop %v7957
      %v7974 = vmul.f32 1.0, %v7973
      %v7975 = vrcp.pop %v7958
      %v7976 = vmul.f32 1.0, %v7975
      %v7977 = vrcp.pop %v7959
      %v7978 = vmul.f32 1.0, %v7977
      %v7979 = vrcp.pop %v7960
      %v7980 = vmul.f32 1.0, %v7979
      %v7981 = vrcp.pop %v7961
      %v7982 = vmul.f32 1.0, %v7981
      %v7983 = vrcp.pop %v7962
      %v7984 = vmul.f32 1.0, %v7983
      %v7985 = vrcp.pop %v7963
      %v7986 = vmul.f32 1.0, %v7985
      %v7987 = vrcp.pop %v7964
      %v7988 = vmul.f32 1.0, %v7987
      %v7989 = vrcp.pop %v7965
      %v7990 = vmul.f32 1.0, %v7989
      %v7991 = vrcp.pop %v7966
      %v7992 = vmul.f32 1.0, %v7991
      %v7993 = vrcp.pop %v7967
      %v7994 = vmul.f32 1.0, %v7993
      %v7995 = vrcp.pop %v7968
      %v7996 = vmul.f32 1.0, %v7995
      %v7997 = vrcp.pop %v7969
      %v7998 = vmul.f32 1.0, %v7997
      %v7999 = vrcp.pop %v7970
      %v8000 = vmul.f32 1.0, %v7999
      %v8001 = vrcp.pop %v7971
      %v8002 = vmul.f32 1.0, %v8001
      %v8003 = vrcp.pop %v7972
      %v8004 = vmul.f32 1.0, %v8003
      %v8005 = vtanh.pop %v7831
      %v8006 = vtanh.pop %v7836
      %v8007 = vtanh.pop %v7841
      %v8008 = vtanh.pop %v7846
      %v8009 = vtanh.pop %v7851
      %v8010 = vtanh.pop %v7856
      %v8011 = vtanh.pop %v7861
      %v8012 = vtanh.pop %v7866
      %v8013 = vtanh.pop %v7871
      %v8014 = vtanh.pop %v7876
      %v8015 = vtanh.pop %v7881
      %v8016 = vtanh.pop %v7886
      %v8017 = vtanh.pop %v7891
      %v8018 = vtanh.pop %v7896
      %v8019 = vtanh.pop %v7901
      %v8020 = vtanh.pop %v7906
      %8037 = vrot.lane.b32.xlu0 %v7331, 32
      %v8038 = vpop.permute.xlu0 %8037
      %8039 = vrot.lane.b32.xlu0 %v7332, 32
      %v8040 = vpop.permute.xlu0 %8039
      %8041 = vrot.lane.b32.xlu0 %v7333, 32
      %v8042 = vpop.permute.xlu0 %8041
      %8043 = vrot.lane.b32.xlu0 %v7334, 32
      %v8044 = vpop.permute.xlu0 %8043
      %8045 = vrot.lane.b32.xlu0 %v7335, 32
      %v8046 = vpop.permute.xlu0 %8045
      %8047 = vrot.lane.b32.xlu0 %v7336, 32
      %v8048 = vpop.permute.xlu0 %8047
      %8049 = vrot.lane.b32.xlu0 %v7337, 32
      %v8050 = vpop.permute.xlu0 %8049
      %8051 = vrot.lane.b32.xlu0 %v7338, 32
      %v8052 = vpop.permute.xlu0 %8051
      %8053 = vrot.lane.b32.xlu0 %v7339, 32
      %v8054 = vpop.permute.xlu0 %8053
      %8055 = vrot.lane.b32.xlu0 %v7340, 32
      %v8056 = vpop.permute.xlu0 %8055
      %8057 = vrot.lane.b32.xlu0 %v7341, 32
      %v8058 = vpop.permute.xlu0 %8057
      %8059 = vrot.lane.b32.xlu0 %v7342, 32
      %v8060 = vpop.permute.xlu0 %8059
      %8061 = vrot.lane.b32.xlu0 %v7343, 32
      %v8062 = vpop.permute.xlu0 %8061
      %8063 = vrot.lane.b32.xlu0 %v7344, 32
      %v8064 = vpop.permute.xlu0 %8063
      %8065 = vrot.lane.b32.xlu0 %v7345, 32
      %v8066 = vpop.permute.xlu0 %8065
      %8067 = vrot.lane.b32.xlu0 %v7346, 32
      %v8068 = vpop.permute.xlu0 %8067
      %v8085 = vmul.f32 %v7974, %v8038
      %v8086 = vmul.f32 %v7976, %v8040
      %v8087 = vmul.f32 %v7978, %v8042
      %v8088 = vmul.f32 %v7980, %v8044
      %v8089 = vmul.f32 %v7982, %v8046
      %v8090 = vmul.f32 %v7984, %v8048
      %v8091 = vmul.f32 %v7986, %v8050
      %v8092 = vmul.f32 %v7988, %v8052
      %v8093 = vmul.f32 %v7990, %v8054
      %v8094 = vmul.f32 %v7992, %v8056
      %v8095 = vmul.f32 %v7994, %v8058
      %v8096 = vmul.f32 %v7996, %v8060
      %v8097 = vmul.f32 %v7998, %v8062
      %v8098 = vmul.f32 %v8000, %v8064
      %v8099 = vmul.f32 %v8002, %v8066
      %v8100 = vmul.f32 %v8004, %v8068
      %8117 = vrot.lane.b32.xlu0 %v8005, 32
      %v8118 = vpop.permute.xlu0 %8117
      %8119 = vrot.lane.b32.xlu0 %v8006, 32
      %v8120 = vpop.permute.xlu0 %8119
      %8121 = vrot.lane.b32.xlu0 %v8007, 32
      %v8122 = vpop.permute.xlu0 %8121
      %8123 = vrot.lane.b32.xlu0 %v8008, 32
      %v8124 = vpop.permute.xlu0 %8123
      %8125 = vrot.lane.b32.xlu0 %v8009, 32
      %v8126 = vpop.permute.xlu0 %8125
      %8127 = vrot.lane.b32.xlu0 %v8010, 32
      %v8128 = vpop.permute.xlu0 %8127
      %8129 = vrot.lane.b32.xlu0 %v8011, 32
      %v8130 = vpop.permute.xlu0 %8129
      %8131 = vrot.lane.b32.xlu0 %v8012, 32
      %v8132 = vpop.permute.xlu0 %8131
      %8133 = vrot.lane.b32.xlu0 %v8013, 32
      %v8134 = vpop.permute.xlu0 %8133
      %8135 = vrot.lane.b32.xlu0 %v8014, 32
      %v8136 = vpop.permute.xlu0 %8135
      %8137 = vrot.lane.b32.xlu0 %v8015, 32
      %v8138 = vpop.permute.xlu0 %8137
      %8139 = vrot.lane.b32.xlu0 %v8016, 32
      %v8140 = vpop.permute.xlu0 %8139
      %8141 = vrot.lane.b32.xlu0 %v8017, 32
      %v8142 = vpop.permute.xlu0 %8141
      %8143 = vrot.lane.b32.xlu0 %v8018, 32
      %v8144 = vpop.permute.xlu0 %8143
      %8145 = vrot.lane.b32.xlu0 %v8019, 32
      %v8146 = vpop.permute.xlu0 %8145
      %8147 = vrot.lane.b32.xlu0 %v8020, 32
      %v8148 = vpop.permute.xlu0 %8147
      %v8165 = vmul.f32 %v7974, %v8118
      %v8166 = vmul.f32 %v7976, %v8120
      %v8167 = vmul.f32 %v7978, %v8122
      %v8168 = vmul.f32 %v7980, %v8124
      %v8169 = vmul.f32 %v7982, %v8126
      %v8170 = vmul.f32 %v7984, %v8128
      %v8171 = vmul.f32 %v7986, %v8130
      %v8172 = vmul.f32 %v7988, %v8132
      %v8173 = vmul.f32 %v7990, %v8134
      %v8174 = vmul.f32 %v7992, %v8136
      %v8175 = vmul.f32 %v7994, %v8138
      %v8176 = vmul.f32 %v7996, %v8140
      %v8177 = vmul.f32 %v7998, %v8142
      %v8178 = vmul.f32 %v8000, %v8144
      %v8179 = vmul.f32 %v8002, %v8146
      %v8180 = vmul.f32 %v8004, %v8148
      %8197 = vrot.lane.b32.xlu0 %v8165, 32
      %v8198 = vpop.permute.xlu0 %8197
      %8199 = vrot.lane.b32.xlu0 %v8166, 32
      %v8200 = vpop.permute.xlu0 %8199
      %8201 = vrot.lane.b32.xlu0 %v8167, 32
      %v8202 = vpop.permute.xlu0 %8201
      %8203 = vrot.lane.b32.xlu0 %v8168, 32
      %v8204 = vpop.permute.xlu0 %8203
      %8205 = vrot.lane.b32.xlu0 %v8169, 32
      %v8206 = vpop.permute.xlu0 %8205
      %8207 = vrot.lane.b32.xlu0 %v8170, 32
      %v8208 = vpop.permute.xlu0 %8207
      %8209 = vrot.lane.b32.xlu0 %v8171, 32
      %v8210 = vpop.permute.xlu0 %8209
      %8211 = vrot.lane.b32.xlu0 %v8172, 32
      %v8212 = vpop.permute.xlu0 %8211
      %8213 = vrot.lane.b32.xlu0 %v8173, 32
      %v8214 = vpop.permute.xlu0 %8213
      %8215 = vrot.lane.b32.xlu0 %v8174, 32
      %v8216 = vpop.permute.xlu0 %8215
      %8217 = vrot.lane.b32.xlu0 %v8175, 32
      %v8218 = vpop.permute.xlu0 %8217
      %8219 = vrot.lane.b32.xlu0 %v8176, 32
      %v8220 = vpop.permute.xlu0 %8219
      %8221 = vrot.lane.b32.xlu0 %v8177, 32
      %v8222 = vpop.permute.xlu0 %8221
      %8223 = vrot.lane.b32.xlu0 %v8178, 32
      %v8224 = vpop.permute.xlu0 %8223
      %8225 = vrot.lane.b32.xlu0 %v8179, 32
      %v8226 = vpop.permute.xlu0 %8225
      %8227 = vrot.lane.b32.xlu0 %v8180, 32
      %v8228 = vpop.permute.xlu0 %8227
      %v8245 = vadd.f32 %v8085, %v8198
      %v8246 = vadd.f32 %v8086, %v8200
      %v8247 = vadd.f32 %v8087, %v8202
      %v8248 = vadd.f32 %v8088, %v8204
      %v8249 = vadd.f32 %v8089, %v8206
      %v8250 = vadd.f32 %v8090, %v8208
      %v8251 = vadd.f32 %v8091, %v8210
      %v8252 = vadd.f32 %v8092, %v8212
      %v8253 = vadd.f32 %v8093, %v8214
      %v8254 = vadd.f32 %v8094, %v8216
      %v8255 = vadd.f32 %v8095, %v8218
      %v8256 = vadd.f32 %v8096, %v8220
      %v8257 = vadd.f32 %v8097, %v8222
      %v8258 = vadd.f32 %v8098, %v8224
      %v8259 = vadd.f32 %v8099, %v8226
      %v8260 = vadd.f32 %v8100, %v8228
      %v8261 = vtanh.pop %v8245
      %v8262 = vtanh.pop %v8246
      %v8263 = vtanh.pop %v8247
      %v8264 = vtanh.pop %v8248
      %v8265 = vtanh.pop %v8249
      %v8266 = vtanh.pop %v8250
      %v8267 = vtanh.pop %v8251
      %v8268 = vtanh.pop %v8252
      %v8269 = vtanh.pop %v8253
      %v8270 = vtanh.pop %v8254
      %v8271 = vtanh.pop %v8255
      %v8272 = vtanh.pop %v8256
      %v8273 = vtanh.pop %v8257
      %v8274 = vtanh.pop %v8258
      %v8275 = vtanh.pop %v8259
      %v8276 = vtanh.pop %v8260
      %8293 = vrot.lane.b32.xlu0 %v8261, 32
      %v8294 = vpop.permute.xlu0 %8293
      %8295 = vrot.lane.b32.xlu0 %v8262, 32
      %v8296 = vpop.permute.xlu0 %8295
      %8297 = vrot.lane.b32.xlu0 %v8263, 32
      %v8298 = vpop.permute.xlu0 %8297
      %8299 = vrot.lane.b32.xlu0 %v8264, 32
      %v8300 = vpop.permute.xlu0 %8299
      %8301 = vrot.lane.b32.xlu0 %v8265, 32
      %v8302 = vpop.permute.xlu0 %8301
      %8303 = vrot.lane.b32.xlu0 %v8266, 32
      %v8304 = vpop.permute.xlu0 %8303
      %8305 = vrot.lane.b32.xlu0 %v8267, 32
      %v8306 = vpop.permute.xlu0 %8305
      %8307 = vrot.lane.b32.xlu0 %v8268, 32
      %v8308 = vpop.permute.xlu0 %8307
      %8309 = vrot.lane.b32.xlu0 %v8269, 32
      %v8310 = vpop.permute.xlu0 %8309
      %8311 = vrot.lane.b32.xlu0 %v8270, 32
      %v8312 = vpop.permute.xlu0 %8311
      %8313 = vrot.lane.b32.xlu0 %v8271, 32
      %v8314 = vpop.permute.xlu0 %8313
      %8315 = vrot.lane.b32.xlu0 %v8272, 32
      %v8316 = vpop.permute.xlu0 %8315
      %8317 = vrot.lane.b32.xlu0 %v8273, 32
      %v8318 = vpop.permute.xlu0 %8317
      %8319 = vrot.lane.b32.xlu0 %v8274, 32
      %v8320 = vpop.permute.xlu0 %8319
      %8321 = vrot.lane.b32.xlu0 %v8275, 32
      %v8322 = vpop.permute.xlu0 %8321
      %8323 = vrot.lane.b32.xlu0 %v8276, 32
      %v8324 = vpop.permute.xlu0 %8323
      %v8341 = vmul.f32 %v7974, %v8294
      %v8342 = vmul.f32 %v7976, %v8296
      %v8343 = vmul.f32 %v7978, %v8298
      %v8344 = vmul.f32 %v7980, %v8300
      %v8345 = vmul.f32 %v7982, %v8302
      %v8346 = vmul.f32 %v7984, %v8304
      %v8347 = vmul.f32 %v7986, %v8306
      %v8348 = vmul.f32 %v7988, %v8308
      %v8349 = vmul.f32 %v7990, %v8310
      %v8350 = vmul.f32 %v7992, %v8312
      %v8351 = vmul.f32 %v7994, %v8314
      %v8352 = vmul.f32 %v7996, %v8316
      %v8353 = vmul.f32 %v7998, %v8318
      %v8354 = vmul.f32 %v8000, %v8320
      %v8355 = vmul.f32 %v8002, %v8322
      %v8356 = vmul.f32 %v8004, %v8324
      %v8357 = vsel %vm267, 1, 6
      %vm8358 = vcmp.lt.s32.totalorder %v8357, %v1190
      %vm8359 = vcmp.lt.s32.totalorder %v8357, %v1193
      %vm8360 = vcmp.lt.s32.totalorder %v8357, %v1196
      %vm8361 = vcmp.lt.s32.totalorder %v8357, %v1199
      %vm8362 = vcmp.lt.s32.totalorder %v8357, %v1202
      %vm8363 = vcmp.lt.s32.totalorder %v8357, %v1205
      %vm8364 = vcmp.lt.s32.totalorder %v8357, %v1208
      %vm8365 = vcmp.lt.s32.totalorder %v8357, %v1211
      %vm8366 = vcmp.lt.s32.totalorder %v8357, %v1214
      %vm8367 = vcmp.lt.s32.totalorder %v8357, %v1217
      %vm8368 = vcmp.lt.s32.totalorder %v8357, %v1220
      %vm8369 = vcmp.lt.s32.totalorder %v8357, %v1223
      %vm8370 = vcmp.lt.s32.totalorder %v8357, %v1226
      %vm8371 = vcmp.lt.s32.totalorder %v8357, %v1229
      %vm8372 = vcmp.lt.s32.totalorder %v8357, %v1232
      %vm8373 = vcmp.lt.s32.totalorder %v8357, %v1235
      %8390 = vrot.lane.b32.xlu0 %v8341, 64
      %v8391 = vpop.permute.xlu0 %8390
      %8392 = vrot.lane.b32.xlu0 %v8342, 64
      %v8393 = vpop.permute.xlu0 %8392
      %8394 = vrot.lane.b32.xlu0 %v8343, 64
      %v8395 = vpop.permute.xlu0 %8394
      %8396 = vrot.lane.b32.xlu0 %v8344, 64
      %v8397 = vpop.permute.xlu0 %8396
      %8398 = vrot.lane.b32.xlu0 %v8345, 64
      %v8399 = vpop.permute.xlu0 %8398
      %8400 = vrot.lane.b32.xlu0 %v8346, 64
      %v8401 = vpop.permute.xlu0 %8400
      %8402 = vrot.lane.b32.xlu0 %v8347, 64
      %v8403 = vpop.permute.xlu0 %8402
      %8404 = vrot.lane.b32.xlu0 %v8348, 64
      %v8405 = vpop.permute.xlu0 %8404
      %8406 = vrot.lane.b32.xlu0 %v8349, 64
      %v8407 = vpop.permute.xlu0 %8406
      %8408 = vrot.lane.b32.xlu0 %v8350, 64
      %v8409 = vpop.permute.xlu0 %8408
      %8410 = vrot.lane.b32.xlu0 %v8351, 64
      %v8411 = vpop.permute.xlu0 %8410
      %8412 = vrot.lane.b32.xlu0 %v8352, 64
      %v8413 = vpop.permute.xlu0 %8412
      %8414 = vrot.lane.b32.xlu0 %v8353, 64
      %v8415 = vpop.permute.xlu0 %8414
      %8416 = vrot.lane.b32.xlu0 %v8354, 64
      %v8417 = vpop.permute.xlu0 %8416
      %8418 = vrot.lane.b32.xlu0 %v8355, 64
      %v8419 = vpop.permute.xlu0 %8418
      %8420 = vrot.lane.b32.xlu0 %v8356, 64
      %v8421 = vpop.permute.xlu0 %8420
      %v8438 = vsel %vm8358, %v8391, %v7251
      %v8439 = vsel %vm8359, %v8393, %v7252
      %v8440 = vsel %vm8360, %v8395, %v7253
      %v8441 = vsel %vm8361, %v8397, %v7254
      %v8442 = vsel %vm8362, %v8399, %v7255
      %v8443 = vsel %vm8363, %v8401, %v7256
      %v8444 = vsel %vm8364, %v8403, %v7257
      %v8445 = vsel %vm8365, %v8405, %v7258
      %v8446 = vsel %vm8366, %v8407, %v7259
      %v8447 = vsel %vm8367, %v8409, %v7260
      %v8448 = vsel %vm8368, %v8411, %v7261
      %v8449 = vsel %vm8369, %v8413, %v7262
      %v8450 = vsel %vm8370, %v8415, %v7263
      %v8451 = vsel %vm8371, %v8417, %v7264
      %v8452 = vsel %vm8372, %v8419, %v7265
      %v8453 = vsel %vm8373, %v8421, %v7266
      %8470 = vrot.lane.b32.xlu0 %v8245, 96
      %v8471 = vpop.permute.xlu0 %8470
      %8472 = vrot.lane.b32.xlu0 %v8246, 96
      %v8473 = vpop.permute.xlu0 %8472
      %8474 = vrot.lane.b32.xlu0 %v8247, 96
      %v8475 = vpop.permute.xlu0 %8474
      %8476 = vrot.lane.b32.xlu0 %v8248, 96
      %v8477 = vpop.permute.xlu0 %8476
      %8478 = vrot.lane.b32.xlu0 %v8249, 96
      %v8479 = vpop.permute.xlu0 %8478
      %8480 = vrot.lane.b32.xlu0 %v8250, 96
      %v8481 = vpop.permute.xlu0 %8480
      %8482 = vrot.lane.b32.xlu0 %v8251, 96
      %v8483 = vpop.permute.xlu0 %8482
      %8484 = vrot.lane.b32.xlu0 %v8252, 96
      %v8485 = vpop.permute.xlu0 %8484
      %8486 = vrot.lane.b32.xlu0 %v8253, 96
      %v8487 = vpop.permute.xlu0 %8486
      %8488 = vrot.lane.b32.xlu0 %v8254, 96
      %v8489 = vpop.permute.xlu0 %8488
      %8490 = vrot.lane.b32.xlu0 %v8255, 96
      %v8491 = vpop.permute.xlu0 %8490
      %8492 = vrot.lane.b32.xlu0 %v8256, 96
      %v8493 = vpop.permute.xlu0 %8492
      %8494 = vrot.lane.b32.xlu0 %v8257, 96
      %v8495 = vpop.permute.xlu0 %8494
      %8496 = vrot.lane.b32.xlu0 %v8258, 96
      %v8497 = vpop.permute.xlu0 %8496
      %8498 = vrot.lane.b32.xlu0 %v8259, 96
      %v8499 = vpop.permute.xlu0 %8498
      %8500 = vrot.lane.b32.xlu0 %v8260, 96
      %v8501 = vpop.permute.xlu0 %8500
      %v8518 = vsel %vm8358, %v8471, %v7331
      %v8519 = vsel %vm8359, %v8473, %v7332
      %v8520 = vsel %vm8360, %v8475, %v7333
      %v8521 = vsel %vm8361, %v8477, %v7334
      %v8522 = vsel %vm8362, %v8479, %v7335
      %v8523 = vsel %vm8363, %v8481, %v7336
      %v8524 = vsel %vm8364, %v8483, %v7337
      %v8525 = vsel %vm8365, %v8485, %v7338
      %v8526 = vsel %vm8366, %v8487, %v7339
      %v8527 = vsel %vm8367, %v8489, %v7340
      %v8528 = vsel %vm8368, %v8491, %v7341
      %v8529 = vsel %vm8369, %v8493, %v7342
      %v8530 = vsel %vm8370, %v8495, %v7343
      %v8531 = vsel %vm8371, %v8497, %v7344
      %v8532 = vsel %vm8372, %v8499, %v7345
      %v8533 = vsel %vm8373, %v8501, %v7346
      %8534 = vset.pattern.permute.xlu0 7
      %8535 = vperm.xlu0 %8534, %v223
      %v8536 = vpop.permute.xlu0 %8535
      %8537 = vset.pattern.permute.xlu0 7
      %8538 = vperm.xlu0 %8537, %v224
      %v8539 = vpop.permute.xlu0 %8538
      %8540 = vset.pattern.permute.xlu0 7
      %8541 = vperm.xlu0 %8540, %v225
      %v8542 = vpop.permute.xlu0 %8541
      %8543 = vset.pattern.permute.xlu0 7
      %8544 = vperm.xlu0 %8543, %v226
      %v8545 = vpop.permute.xlu0 %8544
      %8546 = vset.pattern.permute.xlu0 7
      %8547 = vperm.xlu0 %8546, %v227
      %v8548 = vpop.permute.xlu0 %8547
      %8549 = vset.pattern.permute.xlu0 7
      %8550 = vperm.xlu0 %8549, %v228
      %v8551 = vpop.permute.xlu0 %8550
      %8552 = vset.pattern.permute.xlu0 7
      %8553 = vperm.xlu0 %8552, %v229
      %v8554 = vpop.permute.xlu0 %8553
      %8555 = vset.pattern.permute.xlu0 7
      %8556 = vperm.xlu0 %8555, %v230
      %v8557 = vpop.permute.xlu0 %8556
      %8558 = vset.pattern.permute.xlu0 7
      %8559 = vperm.xlu0 %8558, %v231
      %v8560 = vpop.permute.xlu0 %8559
      %8561 = vset.pattern.permute.xlu0 7
      %8562 = vperm.xlu0 %8561, %v232
      %v8563 = vpop.permute.xlu0 %8562
      %8564 = vset.pattern.permute.xlu0 7
      %8565 = vperm.xlu0 %8564, %v233
      %v8566 = vpop.permute.xlu0 %8565
      %8567 = vset.pattern.permute.xlu0 7
      %8568 = vperm.xlu0 %8567, %v234
      %v8569 = vpop.permute.xlu0 %8568
      %8570 = vset.pattern.permute.xlu0 7
      %8571 = vperm.xlu0 %8570, %v235
      %v8572 = vpop.permute.xlu0 %8571
      %8573 = vset.pattern.permute.xlu0 7
      %8574 = vperm.xlu0 %8573, %v236
      %v8575 = vpop.permute.xlu0 %8574
      %8576 = vset.pattern.permute.xlu0 7
      %8577 = vperm.xlu0 %8576, %v237
      %v8578 = vpop.permute.xlu0 %8577
      %8579 = vset.pattern.permute.xlu0 7
      %8580 = vperm.xlu0 %8579, %v238
      %v8581 = vpop.permute.xlu0 %8580
      %vm8582 = vcmp.eq.s32.totalorder %v266, %v8536
      %vm8583 = vcmp.eq.s32.totalorder %v266, %v8539
      %vm8584 = vcmp.eq.s32.totalorder %v266, %v8542
      %vm8585 = vcmp.eq.s32.totalorder %v266, %v8545
      %vm8586 = vcmp.eq.s32.totalorder %v266, %v8548
      %vm8587 = vcmp.eq.s32.totalorder %v266, %v8551
      %vm8588 = vcmp.eq.s32.totalorder %v266, %v8554
      %vm8589 = vcmp.eq.s32.totalorder %v266, %v8557
      %vm8590 = vcmp.eq.s32.totalorder %v266, %v8560
      %vm8591 = vcmp.eq.s32.totalorder %v266, %v8563
      %vm8592 = vcmp.eq.s32.totalorder %v266, %v8566
      %vm8593 = vcmp.eq.s32.totalorder %v266, %v8569
      %vm8594 = vcmp.eq.s32.totalorder %v266, %v8572
      %vm8595 = vcmp.eq.s32.totalorder %v266, %v8575
      %vm8596 = vcmp.eq.s32.totalorder %v266, %v8578
      %vm8597 = vcmp.eq.s32.totalorder %v266, %v8581
      %8598 = vset.pattern.permute.xlu0 0
      %8599 = vperm.xlu0 %8598, %v332
      %v8600 = vpop.permute.xlu0 %8599
      %8601 = vset.pattern.permute.xlu0 0
      %8602 = vperm.xlu0 %8601, %v333
      %v8603 = vpop.permute.xlu0 %8602
      %8604 = vset.pattern.permute.xlu0 0
      %8605 = vperm.xlu0 %8604, %v334
      %v8606 = vpop.permute.xlu0 %8605
      %8607 = vset.pattern.permute.xlu0 0
      %8608 = vperm.xlu0 %8607, %v335
      %v8609 = vpop.permute.xlu0 %8608
      %8610 = vset.pattern.permute.xlu0 0
      %8611 = vperm.xlu0 %8610, %v336
      %v8612 = vpop.permute.xlu0 %8611
      %8613 = vset.pattern.permute.xlu0 0
      %8614 = vperm.xlu0 %8613, %v337
      %v8615 = vpop.permute.xlu0 %8614
      %8616 = vset.pattern.permute.xlu0 0
      %8617 = vperm.xlu0 %8616, %v338
      %v8618 = vpop.permute.xlu0 %8617
      %8619 = vset.pattern.permute.xlu0 0
      %8620 = vperm.xlu0 %8619, %v339
      %v8621 = vpop.permute.xlu0 %8620
      %8622 = vset.pattern.permute.xlu0 0
      %8623 = vperm.xlu0 %8622, %v340
      %v8624 = vpop.permute.xlu0 %8623
      %8625 = vset.pattern.permute.xlu0 0
      %8626 = vperm.xlu0 %8625, %v341
      %v8627 = vpop.permute.xlu0 %8626
      %8628 = vset.pattern.permute.xlu0 0
      %8629 = vperm.xlu0 %8628, %v342
      %v8630 = vpop.permute.xlu0 %8629
      %8631 = vset.pattern.permute.xlu0 0
      %8632 = vperm.xlu0 %8631, %v343
      %v8633 = vpop.permute.xlu0 %8632
      %8634 = vset.pattern.permute.xlu0 0
      %8635 = vperm.xlu0 %8634, %v344
      %v8636 = vpop.permute.xlu0 %8635
      %8637 = vset.pattern.permute.xlu0 0
      %8638 = vperm.xlu0 %8637, %v345
      %v8639 = vpop.permute.xlu0 %8638
      %8640 = vset.pattern.permute.xlu0 0
      %8641 = vperm.xlu0 %8640, %v346
      %v8642 = vpop.permute.xlu0 %8641
      %8643 = vset.pattern.permute.xlu0 0
      %8644 = vperm.xlu0 %8643, %v347
      %v8645 = vpop.permute.xlu0 %8644
      %vm8646 = vcmp.eq.s32.totalorder %v266, %v8600
      %vm8647 = vcmp.eq.s32.totalorder %v266, %v8603
      %vm8648 = vcmp.eq.s32.totalorder %v266, %v8606
      %vm8649 = vcmp.eq.s32.totalorder %v266, %v8609
      %vm8650 = vcmp.eq.s32.totalorder %v266, %v8612
      %vm8651 = vcmp.eq.s32.totalorder %v266, %v8615
      %vm8652 = vcmp.eq.s32.totalorder %v266, %v8618
      %vm8653 = vcmp.eq.s32.totalorder %v266, %v8621
      %vm8654 = vcmp.eq.s32.totalorder %v266, %v8624
      %vm8655 = vcmp.eq.s32.totalorder %v266, %v8627
      %vm8656 = vcmp.eq.s32.totalorder %v266, %v8630
      %vm8657 = vcmp.eq.s32.totalorder %v266, %v8633
      %vm8658 = vcmp.eq.s32.totalorder %v266, %v8636
      %vm8659 = vcmp.eq.s32.totalorder %v266, %v8639
      %vm8660 = vcmp.eq.s32.totalorder %v266, %v8642
      %vm8661 = vcmp.eq.s32.totalorder %v266, %v8645
      %vm8662 = vmor %vm8582, %vm8646
      %vm8663 = vmor %vm8583, %vm8647
      %vm8664 = vmor %vm8584, %vm8648
      %vm8665 = vmor %vm8585, %vm8649
      %vm8666 = vmor %vm8586, %vm8650
      %vm8667 = vmor %vm8587, %vm8651
      %vm8668 = vmor %vm8588, %vm8652
      %vm8669 = vmor %vm8589, %vm8653
      %vm8670 = vmor %vm8590, %vm8654
      %vm8671 = vmor %vm8591, %vm8655
      %vm8672 = vmor %vm8592, %vm8656
      %vm8673 = vmor %vm8593, %vm8657
      %vm8674 = vmor %vm8594, %vm8658
      %vm8675 = vmor %vm8595, %vm8659
      %vm8676 = vmor %vm8596, %vm8660
      %vm8677 = vmor %vm8597, %vm8661
      %v8678 = vsel %vm8662, 1, 0
      %v8679 = vsel %vm8663, 1, 0
      %v8680 = vsel %vm8664, 1, 0
      %v8681 = vsel %vm8665, 1, 0
      %v8682 = vsel %vm8666, 1, 0
      %v8683 = vsel %vm8667, 1, 0
      %v8684 = vsel %vm8668, 1, 0
      %v8685 = vsel %vm8669, 1, 0
      %v8686 = vsel %vm8670, 1, 0
      %v8687 = vsel %vm8671, 1, 0
      %v8688 = vsel %vm8672, 1, 0
      %v8689 = vsel %vm8673, 1, 0
      %v8690 = vsel %vm8674, 1, 0
      %v8691 = vsel %vm8675, 1, 0
      %v8692 = vsel %vm8676, 1, 0
      %v8693 = vsel %vm8677, 1, 0
      %v8694 = vcvt.s32.f32 %v8678
      %v8695 = vcvt.s32.f32 %v8679
      %v8696 = vcvt.s32.f32 %v8680
      %v8697 = vcvt.s32.f32 %v8681
      %v8698 = vcvt.s32.f32 %v8682
      %v8699 = vcvt.s32.f32 %v8683
      %v8700 = vcvt.s32.f32 %v8684
      %v8701 = vcvt.s32.f32 %v8685
      %v8702 = vcvt.s32.f32 %v8686
      %v8703 = vcvt.s32.f32 %v8687
      %v8704 = vcvt.s32.f32 %v8688
      %v8705 = vcvt.s32.f32 %v8689
      %v8706 = vcvt.s32.f32 %v8690
      %v8707 = vcvt.s32.f32 %v8691
      %v8708 = vcvt.s32.f32 %v8692
      %v8709 = vcvt.s32.f32 %v8693
      %v8711 = vsel %vm460, %v8438, 0
      %v8714 = vsel %vm460, %v8439, 0
      %v8717 = vsel %vm460, %v8440, 0
      %v8720 = vsel %vm460, %v8441, 0
      %v8723 = vsel %vm460, %v8442, 0
      %v8726 = vsel %vm460, %v8443, 0
      %v8729 = vsel %vm460, %v8444, 0
      %v8732 = vsel %vm460, %v8445, 0
      %v8735 = vsel %vm460, %v8446, 0
      %v8738 = vsel %vm460, %v8447, 0
      %v8741 = vsel %vm460, %v8448, 0
      %v8744 = vsel %vm460, %v8449, 0
      %v8747 = vsel %vm460, %v8450, 0
      %v8750 = vsel %vm460, %v8451, 0
      %v8753 = vsel %vm460, %v8452, 0
      %v8756 = vsel %vm460, %v8453, 0
      %8758 = vmatprep.subr.mxu0 0.0
      %8759 = vmatpush1.msra.mxu0 0.0
      %8760 = vmatprep.subr.mxu0 0.0
      %8761 = vmatpush1.msra.mxu0 0.0
      %8762 = vmatprep.subr.mxu0 0.0
      %8763 = vmatpush1.msra.mxu0 0.0
      %8764 = vmatprep.subr.mxu0 0.0
      %8765 = vmatpush1.msra.mxu0 0.0
      %8766 = vmatprep.subr.mxu0 0.0
      %8767 = vmatpush1.msra.mxu0 0.0
      %8768 = vmatprep.subr.mxu0 0.0
      %8769 = vmatpush1.msra.mxu0 0.0
      %8770 = vmatprep.subr.mxu0 0.0
      %8771 = vmatpush1.msra.mxu0 0.0
      %8772 = vmatprep.subr.mxu0 0.0
      %8773 = vmatpush1.msra.mxu0 0.0
      %8774 = vmatprep.subr.mxu0 0.0
      %8775 = vmatpush1.msra.mxu0 0.0
      %8776 = vmatprep.subr.mxu0 0.0
      %8777 = vmatpush1.msra.mxu0 0.0
      %8778 = vmatprep.subr.mxu0 0.0
      %8779 = vmatpush1.msra.mxu0 0.0
      %8780 = vmatprep.subr.mxu0 0.0
      %8781 = vmatpush1.msra.mxu0 0.0
      %8782 = vmatprep.subr.mxu0 0.0
      %8783 = vmatpush1.msra.mxu0 %v264
      %8784 = vmatprep.subr.mxu0 0.0
      %8785 = vmatpush1.msra.mxu0 %v263
      %8786 = vmatprep.subr.mxu0 0.0
      %8787 = vmatpush1.msra.mxu0 %v262
      %8788 = vmatprep.subr.mxu0 0.0
      %8789 = vmatpush1.msra.mxu0 %v261
      %8790 = vmatprep.subr.mxu0 0.0
      %8791 = vmatpush2.msra.mxu0 0.0
      %8792 = vmatprep.subr.mxu0 0.0
      %8793 = vmatpush2.msra.mxu0 0.0
      %8794 = vmatprep.subr.mxu0 0.0
      %8795 = vmatpush2.msra.mxu0 0.0
      %8796 = vmatprep.subr.mxu0 0.0
      %8797 = vmatpush2.msra.mxu0 0.0
      %8798 = vmatprep.subr.mxu0 0.0
      %8799 = vmatpush2.msra.mxu0 0.0
      %8800 = vmatprep.subr.mxu0 0.0
      %8801 = vmatpush2.msra.mxu0 0.0
      %8802 = vmatprep.subr.mxu0 0.0
      %8803 = vmatpush2.msra.mxu0 0.0
      %8804 = vmatprep.subr.mxu0 0.0
      %8805 = vmatpush2.msra.mxu0 0.0
      %8806 = vmatprep.subr.mxu0 0.0
      %8807 = vmatpush2.msra.mxu0 0.0
      %8808 = vmatprep.subr.mxu0 0.0
      %8809 = vmatpush2.msra.mxu0 0.0
      %8810 = vmatprep.subr.mxu0 0.0
      %8811 = vmatpush2.msra.mxu0 0.0
      %8812 = vmatprep.subr.mxu0 0.0
      %8813 = vmatpush2.msra.mxu0 0.0
      %8814 = vmatprep.subr.mxu0 0.0
      %8815 = vmatpush2.msra.mxu0 0.0
      %8816 = vmatprep.subr.mxu0 0.0
      %8817 = vmatpush2.msra.mxu0 0.0
      %8818 = vmatprep.subr.mxu0 0.0
      %8819 = vmatpush2.msra.mxu0 0.0
      %8820 = vmatprep.subr.mxu0 0.0
      %8821 = vmatpush2.msra.mxu0 0.0
      %8822 = vmatprep.mubr.f32.mxu0 0.0
      %8823 = vmatmul.mubr.f32.gmra.mxu0 %v8711
      %v8824 = vpop.f32.mrf.mxu0
      %v8825 = vadd.f32 0.0, %v8824
      %v8826 = vpop.f32.mrf.mxu0
      %8827 = vmatprep.mubr.f32.mxu0 0.0
      %8828 = vmatmul.mubr.f32.gmra.mxu0 %v8714
      %v8829 = vpop.f32.mrf.mxu0
      %v8830 = vadd.f32 0.0, %v8829
      %v8831 = vpop.f32.mrf.mxu0
      %8832 = vmatprep.mubr.f32.mxu0 0.0
      %8833 = vmatmul.mubr.f32.gmra.mxu0 %v8717
      %v8834 = vpop.f32.mrf.mxu0
      %v8835 = vadd.f32 0.0, %v8834
      %v8836 = vpop.f32.mrf.mxu0
      %8837 = vmatprep.mubr.f32.mxu0 0.0
      %8838 = vmatmul.mubr.f32.gmra.mxu0 %v8720
      %v8839 = vpop.f32.mrf.mxu0
      %v8840 = vadd.f32 0.0, %v8839
      %v8841 = vpop.f32.mrf.mxu0
      %8842 = vmatprep.mubr.f32.mxu0 0.0
      %8843 = vmatmul.mubr.f32.gmra.mxu0 %v8723
      %v8844 = vpop.f32.mrf.mxu0
      %v8845 = vadd.f32 0.0, %v8844
      %v8846 = vpop.f32.mrf.mxu0
      %8847 = vmatprep.mubr.f32.mxu0 0.0
      %8848 = vmatmul.mubr.f32.gmra.mxu0 %v8726
      %v8849 = vpop.f32.mrf.mxu0
      %v8850 = vadd.f32 0.0, %v8849
      %v8851 = vpop.f32.mrf.mxu0
      %8852 = vmatprep.mubr.f32.mxu0 0.0
      %8853 = vmatmul.mubr.f32.gmra.mxu0 %v8729
      %v8854 = vpop.f32.mrf.mxu0
      %v8855 = vadd.f32 0.0, %v8854
      %v8856 = vpop.f32.mrf.mxu0
      %8857 = vmatprep.mubr.f32.mxu0 0.0
      %8858 = vmatmul.mubr.f32.gmra.mxu0 %v8732
      %v8859 = vpop.f32.mrf.mxu0
      %v8860 = vadd.f32 0.0, %v8859
      %v8861 = vpop.f32.mrf.mxu0
      %8862 = vmatprep.mubr.f32.mxu0 0.0
      %8863 = vmatmul.mubr.f32.gmra.mxu0 %v8735
      %v8864 = vpop.f32.mrf.mxu0
      %v8865 = vadd.f32 0.0, %v8864
      %v8866 = vpop.f32.mrf.mxu0
      %8867 = vmatprep.mubr.f32.mxu0 0.0
      %8868 = vmatmul.mubr.f32.gmra.mxu0 %v8738
      %v8869 = vpop.f32.mrf.mxu0
      %v8870 = vadd.f32 0.0, %v8869
      %v8871 = vpop.f32.mrf.mxu0
      %8872 = vmatprep.mubr.f32.mxu0 0.0
      %8873 = vmatmul.mubr.f32.gmra.mxu0 %v8741
      %v8874 = vpop.f32.mrf.mxu0
      %v8875 = vadd.f32 0.0, %v8874
      %v8876 = vpop.f32.mrf.mxu0
      %8877 = vmatprep.mubr.f32.mxu0 0.0
      %8878 = vmatmul.mubr.f32.gmra.mxu0 %v8744
      %v8879 = vpop.f32.mrf.mxu0
      %v8880 = vadd.f32 0.0, %v8879
      %v8881 = vpop.f32.mrf.mxu0
      %8882 = vmatprep.mubr.f32.mxu0 0.0
      %8883 = vmatmul.mubr.f32.gmra.mxu0 %v8747
      %v8884 = vpop.f32.mrf.mxu0
      %v8885 = vadd.f32 0.0, %v8884
      %v8886 = vpop.f32.mrf.mxu0
      %8887 = vmatprep.mubr.f32.mxu0 0.0
      %8888 = vmatmul.mubr.f32.gmra.mxu0 %v8750
      %v8889 = vpop.f32.mrf.mxu0
      %v8890 = vadd.f32 0.0, %v8889
      %v8891 = vpop.f32.mrf.mxu0
      %8892 = vmatprep.mubr.f32.mxu0 0.0
      %8893 = vmatmul.mubr.f32.gmra.mxu0 %v8753
      %v8894 = vpop.f32.mrf.mxu0
      %v8895 = vadd.f32 0.0, %v8894
      %v8896 = vpop.f32.mrf.mxu0
      %8897 = vmatprep.mubr.f32.mxu0 0.0
      %8898 = vmatmul.mubr.f32.gmra.mxu0 %v8756
      %v8899 = vpop.f32.mrf.mxu0
      %v8900 = vadd.f32 0.0, %v8899
      %v8901 = vpop.f32.mrf.mxu0
      %8902 = vdwg.mxu0
      %v8904 = vsel %vm609, %v8694, 0
      %v8907 = vsel %vm609, %v8695, 0
      %v8910 = vsel %vm609, %v8696, 0
      %v8913 = vsel %vm609, %v8697, 0
      %v8916 = vsel %vm609, %v8698, 0
      %v8919 = vsel %vm609, %v8699, 0
      %v8922 = vsel %vm609, %v8700, 0
      %v8925 = vsel %vm609, %v8701, 0
      %v8928 = vsel %vm609, %v8702, 0
      %v8931 = vsel %vm609, %v8703, 0
      %v8934 = vsel %vm609, %v8704, 0
      %v8937 = vsel %vm609, %v8705, 0
      %v8940 = vsel %vm609, %v8706, 0
      %v8943 = vsel %vm609, %v8707, 0
      %v8946 = vsel %vm609, %v8708, 0
      %v8949 = vsel %vm609, %v8709, 0
      %8951 = vmatprep.subr.mxu0 0.0
      %8952 = vmatpush1.msra.mxu0 0.0
      %8953 = vmatprep.subr.mxu0 0.0
      %8954 = vmatpush1.msra.mxu0 0.0
      %8955 = vmatprep.subr.mxu0 0.0
      %8956 = vmatpush1.msra.mxu0 0.0
      %8957 = vmatprep.subr.mxu0 0.0
      %8958 = vmatpush1.msra.mxu0 0.0
      %8959 = vmatprep.subr.mxu0 0.0
      %8960 = vmatpush1.msra.mxu0 0.0
      %8961 = vmatprep.subr.mxu0 0.0
      %8962 = vmatpush1.msra.mxu0 0.0
      %8963 = vmatprep.subr.mxu0 0.0
      %8964 = vmatpush1.msra.mxu0 0.0
      %8965 = vmatprep.subr.mxu0 0.0
      %8966 = vmatpush1.msra.mxu0 0.0
      %8967 = vmatprep.subr.mxu0 0.0
      %8968 = vmatpush1.msra.mxu0 0.0
      %8969 = vmatprep.subr.mxu0 0.0
      %8970 = vmatpush1.msra.mxu0 0.0
      %8971 = vmatprep.subr.mxu0 0.0
      %8972 = vmatpush1.msra.mxu0 %v260
      %8973 = vmatprep.subr.mxu0 0.0
      %8974 = vmatpush1.msra.mxu0 %v259
      %8975 = vmatprep.subr.mxu0 0.0
      %8976 = vmatpush1.msra.mxu0 %v258
      %8977 = vmatprep.subr.mxu0 0.0
      %8978 = vmatpush1.msra.mxu0 %v257
      %8979 = vmatprep.subr.mxu0 0.0
      %8980 = vmatpush1.msra.mxu0 %v256
      %8981 = vmatprep.subr.mxu0 0.0
      %8982 = vmatpush1.msra.mxu0 %v255
      %8983 = vmatprep.subr.mxu0 0.0
      %8984 = vmatpush2.msra.mxu0 0.0
      %8985 = vmatprep.subr.mxu0 0.0
      %8986 = vmatpush2.msra.mxu0 0.0
      %8987 = vmatprep.subr.mxu0 0.0
      %8988 = vmatpush2.msra.mxu0 0.0
      %8989 = vmatprep.subr.mxu0 0.0
      %8990 = vmatpush2.msra.mxu0 0.0
      %8991 = vmatprep.subr.mxu0 0.0
      %8992 = vmatpush2.msra.mxu0 0.0
      %8993 = vmatprep.subr.mxu0 0.0
      %8994 = vmatpush2.msra.mxu0 0.0
      %8995 = vmatprep.subr.mxu0 0.0
      %8996 = vmatpush2.msra.mxu0 0.0
      %8997 = vmatprep.subr.mxu0 0.0
      %8998 = vmatpush2.msra.mxu0 0.0
      %8999 = vmatprep.subr.mxu0 0.0
      %9000 = vmatpush2.msra.mxu0 0.0
      %9001 = vmatprep.subr.mxu0 0.0
      %9002 = vmatpush2.msra.mxu0 0.0
      %9003 = vmatprep.subr.mxu0 0.0
      %9004 = vmatpush2.msra.mxu0 0.0
      %9005 = vmatprep.subr.mxu0 0.0
      %9006 = vmatpush2.msra.mxu0 0.0
      %9007 = vmatprep.subr.mxu0 0.0
      %9008 = vmatpush2.msra.mxu0 0.0
      %9009 = vmatprep.subr.mxu0 0.0
      %9010 = vmatpush2.msra.mxu0 0.0
      %9011 = vmatprep.subr.mxu0 0.0
      %9012 = vmatpush2.msra.mxu0 0.0
      %9013 = vmatprep.subr.mxu0 0.0
      %9014 = vmatpush2.msra.mxu0 0.0
      %9015 = vmatprep.mubr.f32.mxu0 0.0
      %9016 = vmatmul.mubr.f32.gmra.mxu0 %v8904
      %v9017 = vpop.f32.mrf.mxu0
      %v9018 = vadd.f32 %v8825, %v9017
      %v9019 = vpop.f32.mrf.mxu0
      %9020 = vmatprep.mubr.f32.mxu0 0.0
      %9021 = vmatmul.mubr.f32.gmra.mxu0 %v8907
      %v9022 = vpop.f32.mrf.mxu0
      %v9023 = vadd.f32 %v8830, %v9022
      %v9024 = vpop.f32.mrf.mxu0
      %9025 = vmatprep.mubr.f32.mxu0 0.0
      %9026 = vmatmul.mubr.f32.gmra.mxu0 %v8910
      %v9027 = vpop.f32.mrf.mxu0
      %v9028 = vadd.f32 %v8835, %v9027
      %v9029 = vpop.f32.mrf.mxu0
      %9030 = vmatprep.mubr.f32.mxu0 0.0
      %9031 = vmatmul.mubr.f32.gmra.mxu0 %v8913
      %v9032 = vpop.f32.mrf.mxu0
      %v9033 = vadd.f32 %v8840, %v9032
      %v9034 = vpop.f32.mrf.mxu0
      %9035 = vmatprep.mubr.f32.mxu0 0.0
      %9036 = vmatmul.mubr.f32.gmra.mxu0 %v8916
      %v9037 = vpop.f32.mrf.mxu0
      %v9038 = vadd.f32 %v8845, %v9037
      %v9039 = vpop.f32.mrf.mxu0
      %9040 = vmatprep.mubr.f32.mxu0 0.0
      %9041 = vmatmul.mubr.f32.gmra.mxu0 %v8919
      %v9042 = vpop.f32.mrf.mxu0
      %v9043 = vadd.f32 %v8850, %v9042
      %v9044 = vpop.f32.mrf.mxu0
      %9045 = vmatprep.mubr.f32.mxu0 0.0
      %9046 = vmatmul.mubr.f32.gmra.mxu0 %v8922
      %v9047 = vpop.f32.mrf.mxu0
      %v9048 = vadd.f32 %v8855, %v9047
      %v9049 = vpop.f32.mrf.mxu0
      %9050 = vmatprep.mubr.f32.mxu0 0.0
      %9051 = vmatmul.mubr.f32.gmra.mxu0 %v8925
      %v9052 = vpop.f32.mrf.mxu0
      %v9053 = vadd.f32 %v8860, %v9052
      %v9054 = vpop.f32.mrf.mxu0
      %9055 = vmatprep.mubr.f32.mxu0 0.0
      %9056 = vmatmul.mubr.f32.gmra.mxu0 %v8928
      %v9057 = vpop.f32.mrf.mxu0
      %v9058 = vadd.f32 %v8865, %v9057
      %v9059 = vpop.f32.mrf.mxu0
      %9060 = vmatprep.mubr.f32.mxu0 0.0
      %9061 = vmatmul.mubr.f32.gmra.mxu0 %v8931
      %v9062 = vpop.f32.mrf.mxu0
      %v9063 = vadd.f32 %v8870, %v9062
      %v9064 = vpop.f32.mrf.mxu0
      %9065 = vmatprep.mubr.f32.mxu0 0.0
      %9066 = vmatmul.mubr.f32.gmra.mxu0 %v8934
      %v9067 = vpop.f32.mrf.mxu0
      %v9068 = vadd.f32 %v8875, %v9067
      %v9069 = vpop.f32.mrf.mxu0
      %9070 = vmatprep.mubr.f32.mxu0 0.0
      %9071 = vmatmul.mubr.f32.gmra.mxu0 %v8937
      %v9072 = vpop.f32.mrf.mxu0
      %v9073 = vadd.f32 %v8880, %v9072
      %v9074 = vpop.f32.mrf.mxu0
      %9075 = vmatprep.mubr.f32.mxu0 0.0
      %9076 = vmatmul.mubr.f32.gmra.mxu0 %v8940
      %v9077 = vpop.f32.mrf.mxu0
      %v9078 = vadd.f32 %v8885, %v9077
      %v9079 = vpop.f32.mrf.mxu0
      %9080 = vmatprep.mubr.f32.mxu0 0.0
      %9081 = vmatmul.mubr.f32.gmra.mxu0 %v8943
      %v9082 = vpop.f32.mrf.mxu0
      %v9083 = vadd.f32 %v8890, %v9082
      %v9084 = vpop.f32.mrf.mxu0
      %9085 = vmatprep.mubr.f32.mxu0 0.0
      %9086 = vmatmul.mubr.f32.gmra.mxu0 %v8946
      %v9087 = vpop.f32.mrf.mxu0
      %v9088 = vadd.f32 %v8895, %v9087
      %v9089 = vpop.f32.mrf.mxu0
      %9090 = vmatprep.mubr.f32.mxu0 0.0
      %9091 = vmatmul.mubr.f32.gmra.mxu0 %v8949
      %v9092 = vpop.f32.mrf.mxu0
      %v9093 = vadd.f32 %v8900, %v9092
      %v9094 = vpop.f32.mrf.mxu0
      %9095 = vdwg.mxu0
      %v9096 = vxor.u32 %v9018, 2147483648
      %v9097 = vxor.u32 %v9023, 2147483648
      %v9098 = vxor.u32 %v9028, 2147483648
      %v9099 = vxor.u32 %v9033, 2147483648
      %v9100 = vxor.u32 %v9038, 2147483648
      %v9101 = vxor.u32 %v9043, 2147483648
      %v9102 = vxor.u32 %v9048, 2147483648
      %v9103 = vxor.u32 %v9053, 2147483648
      %v9104 = vxor.u32 %v9058, 2147483648
      %v9105 = vxor.u32 %v9063, 2147483648
      %v9106 = vxor.u32 %v9068, 2147483648
      %v9107 = vxor.u32 %v9073, 2147483648
      %v9108 = vxor.u32 %v9078, 2147483648
      %v9109 = vxor.u32 %v9083, 2147483648
      %v9110 = vxor.u32 %v9088, 2147483648
      %v9111 = vxor.u32 %v9093, 2147483648
      %v9112 = vmul.f32 %v9096, 1.442695
      %v9113 = vpow.pop %v9112
      %v9114 = vmul.f32 %v9097, 1.442695
      %v9115 = vpow.pop %v9114
      %v9116 = vmul.f32 %v9098, 1.442695
      %v9117 = vpow.pop %v9116
      %v9118 = vmul.f32 %v9099, 1.442695
      %v9119 = vpow.pop %v9118
      %v9120 = vmul.f32 %v9100, 1.442695
      %v9121 = vpow.pop %v9120
      %v9122 = vmul.f32 %v9101, 1.442695
      %v9123 = vpow.pop %v9122
      %v9124 = vmul.f32 %v9102, 1.442695
      %v9125 = vpow.pop %v9124
      %v9126 = vmul.f32 %v9103, 1.442695
      %v9127 = vpow.pop %v9126
      %v9128 = vmul.f32 %v9104, 1.442695
      %v9129 = vpow.pop %v9128
      %v9130 = vmul.f32 %v9105, 1.442695
      %v9131 = vpow.pop %v9130
      %v9132 = vmul.f32 %v9106, 1.442695
      %v9133 = vpow.pop %v9132
      %v9134 = vmul.f32 %v9107, 1.442695
      %v9135 = vpow.pop %v9134
      %v9136 = vmul.f32 %v9108, 1.442695
      %v9137 = vpow.pop %v9136
      %v9138 = vmul.f32 %v9109, 1.442695
      %v9139 = vpow.pop %v9138
      %v9140 = vmul.f32 %v9110, 1.442695
      %v9141 = vpow.pop %v9140
      %v9142 = vmul.f32 %v9111, 1.442695
      %v9143 = vpow.pop %v9142
      %v9144 = vadd.f32 %v9113, 1.0
      %v9145 = vadd.f32 %v9115, 1.0
      %v9146 = vadd.f32 %v9117, 1.0
      %v9147 = vadd.f32 %v9119, 1.0
      %v9148 = vadd.f32 %v9121, 1.0
      %v9149 = vadd.f32 %v9123, 1.0
      %v9150 = vadd.f32 %v9125, 1.0
      %v9151 = vadd.f32 %v9127, 1.0
      %v9152 = vadd.f32 %v9129, 1.0
      %v9153 = vadd.f32 %v9131, 1.0
      %v9154 = vadd.f32 %v9133, 1.0
      %v9155 = vadd.f32 %v9135, 1.0
      %v9156 = vadd.f32 %v9137, 1.0
      %v9157 = vadd.f32 %v9139, 1.0
      %v9158 = vadd.f32 %v9141, 1.0
      %v9159 = vadd.f32 %v9143, 1.0
      %v9160 = vrcp.pop %v9144
      %v9161 = vmul.f32 1.0, %v9160
      %v9162 = vrcp.pop %v9145
      %v9163 = vmul.f32 1.0, %v9162
      %v9164 = vrcp.pop %v9146
      %v9165 = vmul.f32 1.0, %v9164
      %v9166 = vrcp.pop %v9147
      %v9167 = vmul.f32 1.0, %v9166
      %v9168 = vrcp.pop %v9148
      %v9169 = vmul.f32 1.0, %v9168
      %v9170 = vrcp.pop %v9149
      %v9171 = vmul.f32 1.0, %v9170
      %v9172 = vrcp.pop %v9150
      %v9173 = vmul.f32 1.0, %v9172
      %v9174 = vrcp.pop %v9151
      %v9175 = vmul.f32 1.0, %v9174
      %v9176 = vrcp.pop %v9152
      %v9177 = vmul.f32 1.0, %v9176
      %v9178 = vrcp.pop %v9153
      %v9179 = vmul.f32 1.0, %v9178
      %v9180 = vrcp.pop %v9154
      %v9181 = vmul.f32 1.0, %v9180
      %v9182 = vrcp.pop %v9155
      %v9183 = vmul.f32 1.0, %v9182
      %v9184 = vrcp.pop %v9156
      %v9185 = vmul.f32 1.0, %v9184
      %v9186 = vrcp.pop %v9157
      %v9187 = vmul.f32 1.0, %v9186
      %v9188 = vrcp.pop %v9158
      %v9189 = vmul.f32 1.0, %v9188
      %v9190 = vrcp.pop %v9159
      %v9191 = vmul.f32 1.0, %v9190
      %v9192 = vtanh.pop %v9018
      %v9193 = vtanh.pop %v9023
      %v9194 = vtanh.pop %v9028
      %v9195 = vtanh.pop %v9033
      %v9196 = vtanh.pop %v9038
      %v9197 = vtanh.pop %v9043
      %v9198 = vtanh.pop %v9048
      %v9199 = vtanh.pop %v9053
      %v9200 = vtanh.pop %v9058
      %v9201 = vtanh.pop %v9063
      %v9202 = vtanh.pop %v9068
      %v9203 = vtanh.pop %v9073
      %v9204 = vtanh.pop %v9078
      %v9205 = vtanh.pop %v9083
      %v9206 = vtanh.pop %v9088
      %v9207 = vtanh.pop %v9093
      %9224 = vrot.lane.b32.xlu0 %v8518, 32
      %v9225 = vpop.permute.xlu0 %9224
      %9226 = vrot.lane.b32.xlu0 %v8519, 32
      %v9227 = vpop.permute.xlu0 %9226
      %9228 = vrot.lane.b32.xlu0 %v8520, 32
      %v9229 = vpop.permute.xlu0 %9228
      %9230 = vrot.lane.b32.xlu0 %v8521, 32
      %v9231 = vpop.permute.xlu0 %9230
      %9232 = vrot.lane.b32.xlu0 %v8522, 32
      %v9233 = vpop.permute.xlu0 %9232
      %9234 = vrot.lane.b32.xlu0 %v8523, 32
      %v9235 = vpop.permute.xlu0 %9234
      %9236 = vrot.lane.b32.xlu0 %v8524, 32
      %v9237 = vpop.permute.xlu0 %9236
      %9238 = vrot.lane.b32.xlu0 %v8525, 32
      %v9239 = vpop.permute.xlu0 %9238
      %9240 = vrot.lane.b32.xlu0 %v8526, 32
      %v9241 = vpop.permute.xlu0 %9240
      %9242 = vrot.lane.b32.xlu0 %v8527, 32
      %v9243 = vpop.permute.xlu0 %9242
      %9244 = vrot.lane.b32.xlu0 %v8528, 32
      %v9245 = vpop.permute.xlu0 %9244
      %9246 = vrot.lane.b32.xlu0 %v8529, 32
      %v9247 = vpop.permute.xlu0 %9246
      %9248 = vrot.lane.b32.xlu0 %v8530, 32
      %v9249 = vpop.permute.xlu0 %9248
      %9250 = vrot.lane.b32.xlu0 %v8531, 32
      %v9251 = vpop.permute.xlu0 %9250
      %9252 = vrot.lane.b32.xlu0 %v8532, 32
      %v9253 = vpop.permute.xlu0 %9252
      %9254 = vrot.lane.b32.xlu0 %v8533, 32
      %v9255 = vpop.permute.xlu0 %9254
      %v9272 = vmul.f32 %v9161, %v9225
      %v9273 = vmul.f32 %v9163, %v9227
      %v9274 = vmul.f32 %v9165, %v9229
      %v9275 = vmul.f32 %v9167, %v9231
      %v9276 = vmul.f32 %v9169, %v9233
      %v9277 = vmul.f32 %v9171, %v9235
      %v9278 = vmul.f32 %v9173, %v9237
      %v9279 = vmul.f32 %v9175, %v9239
      %v9280 = vmul.f32 %v9177, %v9241
      %v9281 = vmul.f32 %v9179, %v9243
      %v9282 = vmul.f32 %v9181, %v9245
      %v9283 = vmul.f32 %v9183, %v9247
      %v9284 = vmul.f32 %v9185, %v9249
      %v9285 = vmul.f32 %v9187, %v9251
      %v9286 = vmul.f32 %v9189, %v9253
      %v9287 = vmul.f32 %v9191, %v9255
      %9304 = vrot.lane.b32.xlu0 %v9192, 32
      %v9305 = vpop.permute.xlu0 %9304
      %9306 = vrot.lane.b32.xlu0 %v9193, 32
      %v9307 = vpop.permute.xlu0 %9306
      %9308 = vrot.lane.b32.xlu0 %v9194, 32
      %v9309 = vpop.permute.xlu0 %9308
      %9310 = vrot.lane.b32.xlu0 %v9195, 32
      %v9311 = vpop.permute.xlu0 %9310
      %9312 = vrot.lane.b32.xlu0 %v9196, 32
      %v9313 = vpop.permute.xlu0 %9312
      %9314 = vrot.lane.b32.xlu0 %v9197, 32
      %v9315 = vpop.permute.xlu0 %9314
      %9316 = vrot.lane.b32.xlu0 %v9198, 32
      %v9317 = vpop.permute.xlu0 %9316
      %9318 = vrot.lane.b32.xlu0 %v9199, 32
      %v9319 = vpop.permute.xlu0 %9318
      %9320 = vrot.lane.b32.xlu0 %v9200, 32
      %v9321 = vpop.permute.xlu0 %9320
      %9322 = vrot.lane.b32.xlu0 %v9201, 32
      %v9323 = vpop.permute.xlu0 %9322
      %9324 = vrot.lane.b32.xlu0 %v9202, 32
      %v9325 = vpop.permute.xlu0 %9324
      %9326 = vrot.lane.b32.xlu0 %v9203, 32
      %v9327 = vpop.permute.xlu0 %9326
      %9328 = vrot.lane.b32.xlu0 %v9204, 32
      %v9329 = vpop.permute.xlu0 %9328
      %9330 = vrot.lane.b32.xlu0 %v9205, 32
      %v9331 = vpop.permute.xlu0 %9330
      %9332 = vrot.lane.b32.xlu0 %v9206, 32
      %v9333 = vpop.permute.xlu0 %9332
      %9334 = vrot.lane.b32.xlu0 %v9207, 32
      %v9335 = vpop.permute.xlu0 %9334
      %v9352 = vmul.f32 %v9161, %v9305
      %v9353 = vmul.f32 %v9163, %v9307
      %v9354 = vmul.f32 %v9165, %v9309
      %v9355 = vmul.f32 %v9167, %v9311
      %v9356 = vmul.f32 %v9169, %v9313
      %v9357 = vmul.f32 %v9171, %v9315
      %v9358 = vmul.f32 %v9173, %v9317
      %v9359 = vmul.f32 %v9175, %v9319
      %v9360 = vmul.f32 %v9177, %v9321
      %v9361 = vmul.f32 %v9179, %v9323
      %v9362 = vmul.f32 %v9181, %v9325
      %v9363 = vmul.f32 %v9183, %v9327
      %v9364 = vmul.f32 %v9185, %v9329
      %v9365 = vmul.f32 %v9187, %v9331
      %v9366 = vmul.f32 %v9189, %v9333
      %v9367 = vmul.f32 %v9191, %v9335
      %9384 = vrot.lane.b32.xlu0 %v9352, 32
      %v9385 = vpop.permute.xlu0 %9384
      %9386 = vrot.lane.b32.xlu0 %v9353, 32
      %v9387 = vpop.permute.xlu0 %9386
      %9388 = vrot.lane.b32.xlu0 %v9354, 32
      %v9389 = vpop.permute.xlu0 %9388
      %9390 = vrot.lane.b32.xlu0 %v9355, 32
      %v9391 = vpop.permute.xlu0 %9390
      %9392 = vrot.lane.b32.xlu0 %v9356, 32
      %v9393 = vpop.permute.xlu0 %9392
      %9394 = vrot.lane.b32.xlu0 %v9357, 32
      %v9395 = vpop.permute.xlu0 %9394
      %9396 = vrot.lane.b32.xlu0 %v9358, 32
      %v9397 = vpop.permute.xlu0 %9396
      %9398 = vrot.lane.b32.xlu0 %v9359, 32
      %v9399 = vpop.permute.xlu0 %9398
      %9400 = vrot.lane.b32.xlu0 %v9360, 32
      %v9401 = vpop.permute.xlu0 %9400
      %9402 = vrot.lane.b32.xlu0 %v9361, 32
      %v9403 = vpop.permute.xlu0 %9402
      %9404 = vrot.lane.b32.xlu0 %v9362, 32
      %v9405 = vpop.permute.xlu0 %9404
      %9406 = vrot.lane.b32.xlu0 %v9363, 32
      %v9407 = vpop.permute.xlu0 %9406
      %9408 = vrot.lane.b32.xlu0 %v9364, 32
      %v9409 = vpop.permute.xlu0 %9408
      %9410 = vrot.lane.b32.xlu0 %v9365, 32
      %v9411 = vpop.permute.xlu0 %9410
      %9412 = vrot.lane.b32.xlu0 %v9366, 32
      %v9413 = vpop.permute.xlu0 %9412
      %9414 = vrot.lane.b32.xlu0 %v9367, 32
      %v9415 = vpop.permute.xlu0 %9414
      %v9432 = vadd.f32 %v9272, %v9385
      %v9433 = vadd.f32 %v9273, %v9387
      %v9434 = vadd.f32 %v9274, %v9389
      %v9435 = vadd.f32 %v9275, %v9391
      %v9436 = vadd.f32 %v9276, %v9393
      %v9437 = vadd.f32 %v9277, %v9395
      %v9438 = vadd.f32 %v9278, %v9397
      %v9439 = vadd.f32 %v9279, %v9399
      %v9440 = vadd.f32 %v9280, %v9401
      %v9441 = vadd.f32 %v9281, %v9403
      %v9442 = vadd.f32 %v9282, %v9405
      %v9443 = vadd.f32 %v9283, %v9407
      %v9444 = vadd.f32 %v9284, %v9409
      %v9445 = vadd.f32 %v9285, %v9411
      %v9446 = vadd.f32 %v9286, %v9413
      %v9447 = vadd.f32 %v9287, %v9415
      %v9448 = vtanh.pop %v9432
      %v9449 = vtanh.pop %v9433
      %v9450 = vtanh.pop %v9434
      %v9451 = vtanh.pop %v9435
      %v9452 = vtanh.pop %v9436
      %v9453 = vtanh.pop %v9437
      %v9454 = vtanh.pop %v9438
      %v9455 = vtanh.pop %v9439
      %v9456 = vtanh.pop %v9440
      %v9457 = vtanh.pop %v9441
      %v9458 = vtanh.pop %v9442
      %v9459 = vtanh.pop %v9443
      %v9460 = vtanh.pop %v9444
      %v9461 = vtanh.pop %v9445
      %v9462 = vtanh.pop %v9446
      %v9463 = vtanh.pop %v9447
      %9480 = vrot.lane.b32.xlu0 %v9448, 32
      %v9481 = vpop.permute.xlu0 %9480
      %9482 = vrot.lane.b32.xlu0 %v9449, 32
      %v9483 = vpop.permute.xlu0 %9482
      %9484 = vrot.lane.b32.xlu0 %v9450, 32
      %v9485 = vpop.permute.xlu0 %9484
      %9486 = vrot.lane.b32.xlu0 %v9451, 32
      %v9487 = vpop.permute.xlu0 %9486
      %9488 = vrot.lane.b32.xlu0 %v9452, 32
      %v9489 = vpop.permute.xlu0 %9488
      %9490 = vrot.lane.b32.xlu0 %v9453, 32
      %v9491 = vpop.permute.xlu0 %9490
      %9492 = vrot.lane.b32.xlu0 %v9454, 32
      %v9493 = vpop.permute.xlu0 %9492
      %9494 = vrot.lane.b32.xlu0 %v9455, 32
      %v9495 = vpop.permute.xlu0 %9494
      %9496 = vrot.lane.b32.xlu0 %v9456, 32
      %v9497 = vpop.permute.xlu0 %9496
      %9498 = vrot.lane.b32.xlu0 %v9457, 32
      %v9499 = vpop.permute.xlu0 %9498
      %9500 = vrot.lane.b32.xlu0 %v9458, 32
      %v9501 = vpop.permute.xlu0 %9500
      %9502 = vrot.lane.b32.xlu0 %v9459, 32
      %v9503 = vpop.permute.xlu0 %9502
      %9504 = vrot.lane.b32.xlu0 %v9460, 32
      %v9505 = vpop.permute.xlu0 %9504
      %9506 = vrot.lane.b32.xlu0 %v9461, 32
      %v9507 = vpop.permute.xlu0 %9506
      %9508 = vrot.lane.b32.xlu0 %v9462, 32
      %v9509 = vpop.permute.xlu0 %9508
      %9510 = vrot.lane.b32.xlu0 %v9463, 32
      %v9511 = vpop.permute.xlu0 %9510
      %v9528 = vmul.f32 %v9161, %v9481
      %v9529 = vmul.f32 %v9163, %v9483
      %v9530 = vmul.f32 %v9165, %v9485
      %v9531 = vmul.f32 %v9167, %v9487
      %v9532 = vmul.f32 %v9169, %v9489
      %v9533 = vmul.f32 %v9171, %v9491
      %v9534 = vmul.f32 %v9173, %v9493
      %v9535 = vmul.f32 %v9175, %v9495
      %v9536 = vmul.f32 %v9177, %v9497
      %v9537 = vmul.f32 %v9179, %v9499
      %v9538 = vmul.f32 %v9181, %v9501
      %v9539 = vmul.f32 %v9183, %v9503
      %v9540 = vmul.f32 %v9185, %v9505
      %v9541 = vmul.f32 %v9187, %v9507
      %v9542 = vmul.f32 %v9189, %v9509
      %v9543 = vmul.f32 %v9191, %v9511
      %v9544 = vsel %vm267, 0, 7
      %vm9545 = vcmp.lt.s32.totalorder %v9544, %v1190
      %vm9546 = vcmp.lt.s32.totalorder %v9544, %v1193
      %vm9547 = vcmp.lt.s32.totalorder %v9544, %v1196
      %vm9548 = vcmp.lt.s32.totalorder %v9544, %v1199
      %vm9549 = vcmp.lt.s32.totalorder %v9544, %v1202
      %vm9550 = vcmp.lt.s32.totalorder %v9544, %v1205
      %vm9551 = vcmp.lt.s32.totalorder %v9544, %v1208
      %vm9552 = vcmp.lt.s32.totalorder %v9544, %v1211
      %vm9553 = vcmp.lt.s32.totalorder %v9544, %v1214
      %vm9554 = vcmp.lt.s32.totalorder %v9544, %v1217
      %vm9555 = vcmp.lt.s32.totalorder %v9544, %v1220
      %vm9556 = vcmp.lt.s32.totalorder %v9544, %v1223
      %vm9557 = vcmp.lt.s32.totalorder %v9544, %v1226
      %vm9558 = vcmp.lt.s32.totalorder %v9544, %v1229
      %vm9559 = vcmp.lt.s32.totalorder %v9544, %v1232
      %vm9560 = vcmp.lt.s32.totalorder %v9544, %v1235
      %9577 = vrot.lane.b32.xlu0 %v9528, 64
      %v9578 = vpop.permute.xlu0 %9577
      %9579 = vrot.lane.b32.xlu0 %v9529, 64
      %v9580 = vpop.permute.xlu0 %9579
      %9581 = vrot.lane.b32.xlu0 %v9530, 64
      %v9582 = vpop.permute.xlu0 %9581
      %9583 = vrot.lane.b32.xlu0 %v9531, 64
      %v9584 = vpop.permute.xlu0 %9583
      %9585 = vrot.lane.b32.xlu0 %v9532, 64
      %v9586 = vpop.permute.xlu0 %9585
      %9587 = vrot.lane.b32.xlu0 %v9533, 64
      %v9588 = vpop.permute.xlu0 %9587
      %9589 = vrot.lane.b32.xlu0 %v9534, 64
      %v9590 = vpop.permute.xlu0 %9589
      %9591 = vrot.lane.b32.xlu0 %v9535, 64
      %v9592 = vpop.permute.xlu0 %9591
      %9593 = vrot.lane.b32.xlu0 %v9536, 64
      %v9594 = vpop.permute.xlu0 %9593
      %9595 = vrot.lane.b32.xlu0 %v9537, 64
      %v9596 = vpop.permute.xlu0 %9595
      %9597 = vrot.lane.b32.xlu0 %v9538, 64
      %v9598 = vpop.permute.xlu0 %9597
      %9599 = vrot.lane.b32.xlu0 %v9539, 64
      %v9600 = vpop.permute.xlu0 %9599
      %9601 = vrot.lane.b32.xlu0 %v9540, 64
      %v9602 = vpop.permute.xlu0 %9601
      %9603 = vrot.lane.b32.xlu0 %v9541, 64
      %v9604 = vpop.permute.xlu0 %9603
      %9605 = vrot.lane.b32.xlu0 %v9542, 64
      %v9606 = vpop.permute.xlu0 %9605
      %9607 = vrot.lane.b32.xlu0 %v9543, 64
      %v9608 = vpop.permute.xlu0 %9607
      %v9625 = vsel %vm9545, %v9578, %v8438
      %v9626 = vsel %vm9546, %v9580, %v8439
      %v9627 = vsel %vm9547, %v9582, %v8440
      %v9628 = vsel %vm9548, %v9584, %v8441
      %v9629 = vsel %vm9549, %v9586, %v8442
      %v9630 = vsel %vm9550, %v9588, %v8443
      %v9631 = vsel %vm9551, %v9590, %v8444
      %v9632 = vsel %vm9552, %v9592, %v8445
      %v9633 = vsel %vm9553, %v9594, %v8446
      %v9634 = vsel %vm9554, %v9596, %v8447
      %v9635 = vsel %vm9555, %v9598, %v8448
      %v9636 = vsel %vm9556, %v9600, %v8449
      %v9637 = vsel %vm9557, %v9602, %v8450
      %v9638 = vsel %vm9558, %v9604, %v8451
      %v9639 = vsel %vm9559, %v9606, %v8452
      %v9640 = vsel %vm9560, %v9608, %v8453
      %9641 = vst.msk [vmem:[%s221] sm:$0xff] %vm460, %v9625
      %9642 = vst.msk [vmem:[%s221 + $0x8] sm:$0xff] %vm460, %v9626
      %9643 = vst.msk [vmem:[%s221 + $0x10] sm:$0xff] %vm460, %v9627
      %9644 = vst.msk [vmem:[%s221 + $0x18] sm:$0xff] %vm460, %v9628
      %9645 = vst.msk [vmem:[%s221 + $0x20] sm:$0xff] %vm460, %v9629
      %9646 = vst.msk [vmem:[%s221 + $0x28] sm:$0xff] %vm460, %v9630
      %9647 = vst.msk [vmem:[%s221 + $0x30] sm:$0xff] %vm460, %v9631
      %9648 = vst.msk [vmem:[%s221 + $0x38] sm:$0xff] %vm460, %v9632
      %9649 = vst.msk [vmem:[%s221 + $0x40] sm:$0xff] %vm460, %v9633
      %9650 = vst.msk [vmem:[%s221 + $0x48] sm:$0xff] %vm460, %v9634
      %9651 = vst.msk [vmem:[%s221 + $0x50] sm:$0xff] %vm460, %v9635
      %9652 = vst.msk [vmem:[%s221 + $0x58] sm:$0xff] %vm460, %v9636
      %9653 = vst.msk [vmem:[%s221 + $0x60] sm:$0xff] %vm460, %v9637
      %9654 = vst.msk [vmem:[%s221 + $0x68] sm:$0xff] %vm460, %v9638
      %9655 = vst.msk [vmem:[%s221 + $0x70] sm:$0xff] %vm460, %v9639
      %9656 = vst.msk [vmem:[%s221 + $0x78] sm:$0xff] %vm460, %v9640
      %s9657 = smul.u32 16, %s15
      %p9658 = scmp.lt.s32.totalorder %s9657, 31
      %s9659 = scalar_select %p9658, %s9657, 31
      %s9660 = smul.addr %s9659, 8
      %s9661 = scalar_lea.vmem %s4, %s9660
      // Predicated region
      $region37: #{tpu_custom_call.1} parent=35 // pred_check
        %p9662 = pneg %p127
      $region38: #{tpu_custom_call.1} parent=35 // pred_check_branch
        %9664 = sbr.rel (%p9662) target = $region40
      $region39: #{tpu_custom_call.1} parent=35 // pred_region
        %s9665 = smul.u32 16, %s15
      $region40: #{tpu_custom_call.1} parent=35 // pred_fallthru
        _
    $region36: #{tpu_custom_call.1} parent=5 // pred_fallthru
      _
    %p9666 = scmp.le.s32.totalorder 2, %s10
    // Predicated region
    $region41: #{tpu_custom_call.1} parent=5 // pred_check
      %p9667 = pneg %p9666
    $region42: #{tpu_custom_call.1} parent=5 // pred_check_branch
      %9669 = sbr.rel (%p9667) target = $region44
    $region43: #{tpu_custom_call.1} parent=5 // pred_region
      %s9670 = ssub.s32 %s10, 2
      // Predicated region
      $region45: #{tpu_custom_call.1} parent=43 // pred_check
        %p9671 = pneg %p133
      $region46: #{tpu_custom_call.1} parent=43 // pred_check_branch
        %9673 = sbr.rel (%p9671) target = $region48
      $region47: #{tpu_custom_call.1} parent=43 // pred_region
        %s9674 = smul.u32 16, %s16
        %p9675 = scmp.lt.s32.totalorder %s9674, 31
        %s9676 = scalar_select %p9675, %s9674, 31
        %s9677 = smul.addr %s9676, 8
        %s9678 = scalar_lea.vmem %s4, %s9677
      $region48: #{tpu_custom_call.1} parent=43 // pred_fallthru
        _
    $region44: #{tpu_custom_call.1} parent=5 // pred_fallthru
      _
  $region6: #{tpu_custom_call.1} parent=0 // loop_footer
    %s14 = sadd.s32 1, %s10
  $region7: #{tpu_custom_call.1} parent=0 // loop_footer_branch
    %9 = sbr.rel target = $region3
  $region8: #{tpu_custom_call.1} parent=0 // loop_exit
    _

</llo_original>
